<compile_context>
chip_gen: v7x
topology: tpu7x:2x2x1
jax: 0.10.0
libtpu: 0.0.40
codegen_flags: <defaults>
</compile_context>

<pallas_src>
import functools

import jax
import jax.numpy as jnp
from jax import lax
from jax.experimental import pallas as pl
from jax.experimental.pallas import tpu as pltpu

LANE = 128      # last-dim vreg tile
SUBLANE = 8     # second-minor vreg tile


def _round_up(x, m):
    return (x + m - 1) // m * m


def _sigmoid(v):
    return 1.0 / (1.0 + jnp.exp(-v))


# ---------------------------------------------------------------------------
# Pallas kernel factory: one chunk of t_chunk timesteps, BOTH directions.
# Gate order follows PyTorch: [r | z | n] within each 3*hp-wide slab.
# ---------------------------------------------------------------------------
def _make_bigru_chunk_kernel(*, n_slabs, d_slab, t_chunk, b_pad, hp,
                             t_real, num_chunks, compute_dtype, unroll):
    g = 3 * hp
    needs_time_mask = (num_chunks * t_chunk != t_real)

    def kernel(*refs):
        xf_refs = refs[0:n_slabs]                       # fwd-ordered x views
        xb_refs = refs[n_slabs:2 * n_slabs]             # time-reversed x views
        (wih_f_ref, wih_b_ref, whh2_ref, bias_f_ref, bias_b_ref,
         bhn_f_ref, bhn_b_ref) = refs[2 * n_slabs:2 * n_slabs + 7]
        outf_ref, outb_ref = refs[2 * n_slabs + 7:2 * n_slabs + 9]
        h2_ref, gxf_ref, gxb_ref = refs[2 * n_slabs + 9:]

        c = pl.program_id(0)

        @pl.when(c == 0)
        def _():
            h2_ref[...] = jnp.zeros_like(h2_ref)

        # ---- chunk-level input projection (fused 3 gates, off the serial
        #      per-step path): one matmul per slab per direction, M = t_chunk*b_pad.
        def project(x_refs, wih_ref, bias_ref):
            acc = None
            for s in range(n_slabs):
                xs = x_refs[s][...].astype(compute_dtype)
                ws = wih_ref[s * d_slab:(s + 1) * d_slab, :]
                p = jnp.dot(xs, ws, preferred_element_type=jnp.float32)
                acc = p if acc is None else acc + p
            return acc + bias_ref[...]

        gxf_ref[...] = project(xf_refs, wih_f_ref, bias_f_ref)
        gxb_ref[...] = project(xb_refs, wih_b_ref, bias_b_ref)

        whh2 = whh2_ref[...]          # (hp, 6*hp), resident across the chunk
        bhn_f = bhn_f_ref[...]        # (1, hp)
        bhn_b = bhn_b_ref[...]

        def gru_gates(gx, gh, bhn, h_prev):
            r = _sigmoid(gx[:, :hp] + gh[:, :hp])
            z = _sigmoid(gx[:, hp:2 * hp] + gh[:, hp:2 * hp])
            n = jnp.tanh(gx[:, 2 * hp:] + r * (gh[:, 2 * hp:] + bhn))
            return (1.0 - z) * n + z * h_prev

        def step(i, carry):
            h2 = h2_ref[...]
            # ONE fused MXU matmul per timestep for BOTH directions:
            # [h_f ; h_b] (2*b_pad, hp) @ [W_hh_f | W_hh_b] (hp, 6*hp)
            gh2 = jnp.dot(h2.astype(compute_dtype), whh2,
                          preferred_element_type=jnp.float32)

            # forward: within-chunk index i (global time ascending)
            rf = pl.multiple_of(i * b_pad, SUBLANE)
            h_f = gru_gates(gxf_ref[pl.ds(rf, b_pad), :],
                            gh2[:b_pad, :g], bhn_f, h2[:b_pad, :])

            # backward: within-chunk index reversed (global time descending)
            j = t_chunk - 1 - i
            rb = pl.multiple_of(j * b_pad, SUBLANE)
            h_b = gru_gates(gxb_ref[pl.ds(rb, b_pad), :],
                            gh2[b_pad:, g:], bhn_b, h2[b_pad:, :])

            if needs_time_mask:
                # Padded tail timesteps (global t >= t_real) are the FIRST ones
                # the backward direction sees; freeze its state there so it
                # enters the real sequence as zeros.  Forward needs no mask:
                # its padded steps come last and are never consumed.
                t_glob_b = (num_chunks - 1 - c) * t_chunk + j
                keep = (t_glob_b < t_real).astype(jnp.float32)
                h_b = keep * h_b + (1.0 - keep) * h2[b_pad:, :]

            h2_ref[:b_pad, :] = h_f
            h2_ref[b_pad:, :] = h_b
            outf_ref[pl.ds(rf, b_pad), :] = h_f.astype(outf_ref.dtype)
            outb_ref[pl.ds(rb, b_pad), :] = h_b.astype(outb_ref.dtype)
            return carry

        lax.fori_loop(0, t_chunk, step, 0, unroll=unroll)

    return kernel


# ---------------------------------------------------------------------------
# Weight packing: pad H -> hp (lane multiple), fold b_hh(r,z) into the bias.
# ---------------------------------------------------------------------------
def _pack_wih(wih, n_slabs, src_dim, d_slab, H, hp):
    out = jnp.zeros((n_slabs * d_slab, 3 * hp), jnp.float32)
    for s in range(n_slabs):
        blk = wih[s * src_dim:(s + 1) * src_dim, :]
        for gate in range(3):
            out = out.at[s * d_slab:s * d_slab + src_dim,
                         gate * hp:gate * hp + H].set(blk[:, gate * H:(gate + 1) * H])
    return out


def _pack_whh(whh, H, hp):
    out = jnp.zeros((hp, 3 * hp), jnp.float32)
    for gate in range(3):
        out = out.at[:H, gate * hp:gate * hp + H].set(whh[:, gate * H:(gate + 1) * H])
    return out


def _pack_bias(bih, bhh, H, hp):
    bias = jnp.zeros((1, 3 * hp), jnp.float32)
    for gate in range(3):
        seg = bih[gate * H:(gate + 1) * H]
        if gate < 2:                       # b_hh for r,z folds into the projection
            seg = seg + bhh[gate * H:(gate + 1) * H]
        bias = bias.at[0, gate * hp:gate * hp + H].set(seg)
    bhn = jnp.zeros((1, hp), jnp.float32).at[0, :H].set(bhh[2 * H:])
    return bias, bhn


# ---------------------------------------------------------------------------
# One bidirectional GRU layer (both directions fused in one pallas_call).
# slabs: list of (t_pad*b_pad, d_slab) lane-dense activation slabs.
# Returns [out_f, out_b], each (t_pad*b_pad, hp) -- no concatenate.
# ---------------------------------------------------------------------------
def _bigru_layer(slabs, dir_params, *, t_real, t_chunk, num_chunks, b_pad, hp,
                 src_slab_dim, compute_dtype, unroll):
    (wih_f, whh_f, bih_f, bhh_f), (wih_b, whh_b, bih_b, bhh_b) = dir_params
    n_slabs = len(slabs)
    d_slab = slabs[0].shape[-1]
    H = whh_f.shape[0]
    g = 3 * hp
    m_chunk = t_chunk * b_pad
    m_total = num_chunks * m_chunk

    # Pack / pad weights (in production these would be pre-packed once).
    wih_f_p = _pack_wih(wih_f, n_slabs, src_slab_dim, d_slab, H, hp).astype(compute_dtype)
    wih_b_p = _pack_wih(wih_b, n_slabs, src_slab_dim, d_slab, H, hp).astype(compute_dtype)
    whh2 = jnp.concatenate([_pack_whh(whh_f, H, hp), _pack_whh(whh_b, H, hp)],
                           axis=1).astype(compute_dtype)
    bias_f, bhn_f = _pack_bias(bih_f, bhh_f, H, hp)
    bias_b, bhn_b = _pack_bias(bih_b, bhh_b, H, hp)

    fwd_spec = pl.BlockSpec((m_chunk, d_slab), lambda c: (c, 0))
    bwd_spec = pl.BlockSpec((m_chunk, d_slab), lambda c: (num_chunks - 1 - c, 0))

    def resident(shape):
        return pl.BlockSpec(shape, lambda c: (0, 0))

    in_specs = ([fwd_spec] * n_slabs + [bwd_spec] * n_slabs + [
        resident((n_slabs * d_slab, g)), resident((n_slabs * d_slab, g)),
        resident((hp, 2 * g)),
        resident((1, g)), resident((1, g)),
        resident((1, hp)), resident((1, hp)),
    ])
    out_specs = [
        pl.BlockSpec((m_chunk, hp), lambda c: (c, 0)),
        pl.BlockSpec((m_chunk, hp), lambda c: (num_chunks - 1 - c, 0)),
    ]

    kernel = _make_bigru_chunk_kernel(
        n_slabs=n_slabs, d_slab=d_slab, t_chunk=t_chunk, b_pad=b_pad, hp=hp,
        t_real=t_real, num_chunks=num_chunks, compute_dtype=compute_dtype,
        unroll=unroll)

    # TODO(synk): on v7x the two directions could be split across the 2
    # TensorCores (core_map / parallel leading axis); here they run fused on
    # one core with a single MXU matmul per timestep.
    out_f, out_b = pl.pallas_call(
        kernel,
        out_shape=(jax.ShapeDtypeStruct((m_total, hp), jnp.float32),
                   jax.ShapeDtypeStruct((m_total, hp), jnp.float32)),
        grid_spec=pltpu.PrefetchScalarGridSpec(
            num_scalar_prefetch=0,
            grid=(num_chunks,),
            in_specs=in_specs,
            out_specs=out_specs,
            scratch_shapes=[
                pltpu.VMEM((2 * b_pad, hp), jnp.float32),   # fused [h_f; h_b] carry
                pltpu.VMEM((m_chunk, g), jnp.float32),      # gx fwd (chunk)
                pltpu.VMEM((m_chunk, g), jnp.float32),      # gx bwd (chunk)
            ]),
        compiler_params=pltpu.CompilerParams(
            dimension_semantics=("arbitrary",)),   # serial: h carried across chunks
    )(*(list(slabs) + list(slabs) +
        [wih_f_p, wih_b_p, whh2, bias_f, bias_b, bhn_f, bhn_b]))

    return [out_f, out_b]


# ---------------------------------------------------------------------------
# Time tiling: minimal padding, VMEM-bounded chunk (fits v7x's smaller VMEM).
# ---------------------------------------------------------------------------
def _choose_time_tiling(T, b_pad, hp, d0_pad, max_chunk):
    d_slab = max(d0_pad, hp)

    def vmem_bytes(tc):
        m = tc * b_pad
        x_in = 4 * 2 * m * d_slab * 4            # <=2 slabs x 2 views x 2 buffers
        outs = 2 * 2 * m * hp * 4
        wgts = 2 * (2 * 2 * d_slab * 3 * hp + hp * 6 * hp) * 4
        scr = (2 * b_pad * hp + 2 * m * 3 * hp) * 4
        return x_in + outs + wgts + scr

    cap = max(1, max_chunk)
    while cap > 1 and vmem_bytes(cap) > 24 * 1024 * 1024:
        cap //= 2
    num_chunks = -(-T // cap)
    t_chunk = -(-T // num_chunks)
    return t_chunk, num_chunks


# ---------------------------------------------------------------------------
# Full EnhModel forward: x (B, feat_dim, T) -> permute -> stacked biGRU ->
# eval-mode dropout (identity) -> (B, T, 2H).
# ---------------------------------------------------------------------------
def enh_model_forward(x_ncl, params, *, compute_dtype=jnp.float32, max_chunk=32):
    x_ncl = x_ncl.astype(jnp.float32)
    B, F, T = x_ncl.shape
    H = params[0][0][1].shape[0]                 # whh: (H, 3H)

    hp = _round_up(H, LANE)
    b_pad = _round_up(max(B, SUBLANE), SUBLANE)
    d0_pad = _round_up(F, LANE)

    t_chunk, num_chunks = _choose_time_tiling(T, b_pad, hp, d0_pad, max_chunk)
    t_pad = t_chunk * num_chunks

    unroll = 1
    for u in (8, 4, 2):                          # capped unroll (not full chunk)
        if t_chunk % u == 0:
            unroll = u
            break

    # Time-major, zero-pad to (t_pad, b_pad, d0_pad), flatten to a lane/sublane
    # dense 2-D slab (row = one (t, b) pair).
    x = jnp.transpose(x_ncl, (2, 0, 1))
    x = jnp.pad(x, ((0, t_pad - T), (0, b_pad - B), (0, d0_pad - F)))
    slabs = [x.reshape(t_pad * b_pad, d0_pad)]
    src_slab_dim = F

    for layer_params in params:
        slabs = _bigru_layer(
            slabs, layer_params, t_real=T, t_chunk=t_chunk,
            num_chunks=num_chunks, b_pad=b_pad, hp=hp,
            src_slab_dim=src_slab_dim, compute_dtype=compute_dtype,
            unroll=unroll)
        src_slab_dim = H     # next layer consumes (out_f, out_b), H real features each

    out_f = slabs[0].reshape(t_pad, b_pad, hp)[:T, :B, :H]
    out_b = slabs[1].reshape(t_pad, b_pad, hp)[:T, :B, :H]
    y = jnp.concatenate([out_f, out_b], axis=-1)     # (T, B, 2H) — only final concat
    # nn.Dropout() at inference is the identity (eval-mode semantics).
    return jnp.transpose(y, (1, 0, 2))               # (B, T, 2H)


# ---------------------------------------------------------------------------
# Pure-JAX reference (lax.scan) for correctness checking.
# ---------------------------------------------------------------------------
def _gru_dir_ref(x_tbd, wih, whh, bih, bhh):
    B = x_tbd.shape[1]
    H = whh.shape[0]

    def step(h, x_t):
        gx = x_t @ wih + bih
        gh = h @ whh + bhh
        r = _sigmoid(gx[:, :H] + gh[:, :H])
        z = _sigmoid(gx[:, H:2 * H] + gh[:, H:2 * H])
        n = jnp.tanh(gx[:, 2 * H:] + r * gh[:, 2 * H:])
        h_new = (1.0 - z) * n + z * h
        return h_new, h_new

    h0 = jnp.zeros((B, H), jnp.float32)
    _, ys = lax.scan(step, h0, x_tbd)
    return ys


def enh_model_ref(x_ncl, params):
    x = jnp.transpose(x_ncl, (2, 0, 1)).astype(jnp.float32)
    for p_fwd, p_bwd in params:
        out_f = _gru_dir_ref(x, *p_fwd)
        out_b = jnp.flip(_gru_dir_ref(jnp.flip(x, axis=0), *p_bwd), axis=0)
        x = jnp.concatenate([out_f, out_b], axis=-1)
    return jnp.transpose(x, (1, 0, 2))


# ---------------------------------------------------------------------------
# Deterministic parameter init (PyTorch-style uniform(-1/sqrt(H), 1/sqrt(H))).
# Fused gate layout per direction: W_ih (D_in, 3H), W_hh (H, 3H), biases (3H,);
# gate order r | z | n.
# ---------------------------------------------------------------------------
def init_params(key, feat_dim, hidden_dim, num_layers):
    k = 1.0 / (hidden_dim ** 0.5)
    params = []
    for layer in range(num_layers):
        d_in = feat_dim if layer == 0 else 2 * hidden_dim
        layer_params = []
        for _ in range(2):
            key, k1, k2, k3, k4 = jax.random.split(key, 5)
            wih = jax.random.uniform(k1, (d_in, 3 * hidden_dim), jnp.float32, -k, k)
            whh = jax.random.uniform(k2, (hidden_dim, 3 * hidden_dim), jnp.float32, -k, k)
            bih = jax.random.uniform(k3, (3 * hidden_dim,), jnp.float32, -k, k)
            bhh = jax.random.uniform(k4, (3 * hidden_dim,), jnp.float32, -k, k)
            layer_params.append((wih, whh, bih, bhh))
        params.append(tuple(layer_params))
    return params


if __name__ == "__main__":
    B, FEAT, HIDDEN, NUM_LAYERS = 2, 16, 32, 3

    key = jax.random.PRNGKey(0)
    key, pkey = jax.random.split(key)
    params = init_params(pkey, FEAT, HIDDEN, NUM_LAYERS)

    # --- test 1: T fits in one chunk (no time padding) ---
    T1 = 8
    key, xkey = jax.random.split(key)
    x1 = jax.random.normal(xkey, (B, FEAT, T1), jnp.float32)   # (B, feat, T) like PyTorch
    fwd = jax.jit(enh_model_forward)
    y1 = jax.block_until_ready(fwd(x1, params))
    assert y1.shape == (B, T1, 2 * HIDDEN), y1.shape
    y1_ref = jax.block_until_ready(enh_model_ref(x1, params))
    err1 = float(jnp.max(jnp.abs(y1 - y1_ref)))
    # tolerance covers MXU matmul-precision differences vs the XLA reference
    assert err1 < 3e-2, f"f32 mismatch: {err1}"

    # --- test 2: awkward T -> multi-chunk + time padding + in-kernel tail mask ---
    T2 = 13
    key, xkey = jax.random.split(key)
    x2 = jax.random.normal(xkey, (B, FEAT, T2), jnp.float32)
    fwd_small_chunk = jax.jit(functools.partial(enh_model_forward, max_chunk=4))
    y2 = jax.block_until_ready(fwd_small_chunk(x2, params))
    assert y2.shape == (B, T2, 2 * HIDDEN), y2.shape
    y2_ref = jax.block_until_ready(enh_model_ref(x2, params))
    err2 = float(jnp.max(jnp.abs(y2 - y2_ref)))
    assert err2 < 3e-2, f"padded-T mismatch: {err2}"

    # --- test 3: bf16 MXU operands (production setting on v6e/v7x), f32 accum ---
    fwd_bf16 = jax.jit(functools.partial(enh_model_forward,
                                         compute_dtype=jnp.bfloat16))
    y3 = jax.block_until_ready(fwd_bf16(x1, params))
    err3 = float(jnp.max(jnp.abs(y3 - y1_ref)))
    assert bool(jnp.all(jnp.isfinite(y3))) and err3 < 0.3, f"bf16 mismatch: {err3}"

    print("KERNEL_OK")
</pallas_src>

<mosaic_0001>
module attributes {stable_mosaic.version = 11 : i64} {
  func.func @kernel(%arg0: i32, %arg1: memref<64x128xf32, #tpu.memory_space<vmem>>, %arg2: memref<64x128xf32, #tpu.memory_space<vmem>>, %arg3: memref<128x384xf32, #tpu.memory_space<vmem>>, %arg4: memref<128x384xf32, #tpu.memory_space<vmem>>, %arg5: memref<128x768xf32, #tpu.memory_space<vmem>>, %arg6: memref<1x384xf32, #tpu.memory_space<vmem>>, %arg7: memref<1x384xf32, #tpu.memory_space<vmem>>, %arg8: memref<1x128xf32, #tpu.memory_space<vmem>>, %arg9: memref<1x128xf32, #tpu.memory_space<vmem>>, %arg10: memref<64x128xf32, #tpu.memory_space<vmem>>, %arg11: memref<64x128xf32, #tpu.memory_space<vmem>>, %arg12: memref<16x128xf32, #tpu.memory_space<vmem>>, %arg13: memref<64x384xf32, #tpu.memory_space<vmem>>, %arg14: memref<64x384xf32, #tpu.memory_space<vmem>>) attributes {dimension_semantics = [#tpu.dimension_semantics<arbitrary>], iteration_bounds = array<i64: 1>, scalar_prefetch = 0 : i64, scratch_operands = 3 : i64, tpu.core_type = #tpu.core_type<tc>, window_params = [{transform_indices = @transform_0, window_bounds = array<i64: 64, 128>}, {transform_indices = @transform_1, window_bounds = array<i64: 64, 128>}, {pipeline_mode = #tpu.pipeline_mode<synchronous>, transform_indices = @transform_2, window_bounds = array<i64: 128, 384>}, {pipeline_mode = #tpu.pipeline_mode<synchronous>, transform_indices = @transform_3, window_bounds = array<i64: 128, 384>}, {pipeline_mode = #tpu.pipeline_mode<synchronous>, transform_indices = @transform_4, window_bounds = array<i64: 128, 768>}, {pipeline_mode = #tpu.pipeline_mode<synchronous>, transform_indices = @transform_5, window_bounds = array<i64: 1, 384>}, {pipeline_mode = #tpu.pipeline_mode<synchronous>, transform_indices = @transform_6, window_bounds = array<i64: 1, 384>}, {pipeline_mode = #tpu.pipeline_mode<synchronous>, transform_indices = @transform_7, window_bounds = array<i64: 1, 128>}, {pipeline_mode = #tpu.pipeline_mode<synchronous>, transform_indices = @transform_8, window_bounds = array<i64: 1, 128>}, {transform_indices = @transform_9, window_bounds = array<i64: 64, 128>}, {transform_indices = @transform_10, window_bounds = array<i64: 64, 128>}]} {
    %c0_i32 = arith.constant 0 : i32
    %0 = arith.cmpi eq, %arg0, %c0_i32 : i32
    %1 = arith.extui %0 : i1 to i32
    %c0_i32_0 = arith.constant 0 : i32
    %2 = arith.cmpi ne, %1, %c0_i32_0 : i32
    scf.if %2 {
      %cst_247 = arith.constant 0.000000e+00 : f32
      %700 = vector.broadcast %cst_247 : f32 to vector<16x128xf32>
      %c0_248 = arith.constant 0 : index
      %c0_249 = arith.constant 0 : index
      %701 = vector.load %arg12[%c0_248, %c0_249] : memref<16x128xf32, #tpu.memory_space<vmem>>, vector<16x128xf32>
      tpu.vector_store %arg12[%c0_248, %c0_249], %700 {strides = array<i32>} : memref<16x128xf32, #tpu.memory_space<vmem>>, vector<16x128xf32>,
    } else {
    }
    %c0 = arith.constant 0 : index
    %c0_1 = arith.constant 0 : index
    %3 = vector.load %arg1[%c0, %c0_1] : memref<64x128xf32, #tpu.memory_space<vmem>>, vector<64x128xf32>
    %c0_2 = arith.constant 0 : index
    %c0_3 = arith.constant 0 : index
    %4 = vector.load %arg3[%c0_2, %c0_3] : memref<128x384xf32, #tpu.memory_space<vmem>>, vector<128x384xf32>
    %cst = arith.constant dense<0.000000e+00> : vector<64x384xf32>
    %5 = tpu.matmul %3, %4, %cst {dimension_numbers = #tpu.dot_dimension_numbers<[1], [0], [0], [1], [0, 0, 1, 1], [], []>} : vector<64x128xf32>, vector<128x384xf32>, vector<64x384xf32> -> vector<64x384xf32>
    %c0_4 = arith.constant 0 : index
    %c0_5 = arith.constant 0 : index
    %6 = vector.load %arg6[%c0_4, %c0_5] : memref<1x384xf32, #tpu.memory_space<vmem>>, vector<1x384xf32>
    %7 = vector.broadcast %6 : vector<1x384xf32> to vector<64x384xf32>
    %8 = arith.addf %5, %7 : vector<64x384xf32>
    %c0_6 = arith.constant 0 : index
    %c0_7 = arith.constant 0 : index
    %9 = vector.load %arg13[%c0_6, %c0_7] : memref<64x384xf32, #tpu.memory_space<vmem>>, vector<64x384xf32>
    tpu.vector_store %arg13[%c0_6, %c0_7], %8 {strides = array<i32>} : memref<64x384xf32, #tpu.memory_space<vmem>>, vector<64x384xf32>,
    %c0_8 = arith.constant 0 : index
    %c0_9 = arith.constant 0 : index
    %10 = vector.load %arg2[%c0_8, %c0_9] : memref<64x128xf32, #tpu.memory_space<vmem>>, vector<64x128xf32>
    %c0_10 = arith.constant 0 : index
    %c0_11 = arith.constant 0 : index
    %11 = vector.load %arg4[%c0_10, %c0_11] : memref<128x384xf32, #tpu.memory_space<vmem>>, vector<128x384xf32>
    %cst_12 = arith.constant dense<0.000000e+00> : vector<64x384xf32>
    %12 = tpu.matmul %10, %11, %cst_12 {dimension_numbers = #tpu.dot_dimension_numbers<[1], [0], [0], [1], [0, 0, 1, 1], [], []>} : vector<64x128xf32>, vector<128x384xf32>, vector<64x384xf32> -> vector<64x384xf32>
    %c0_13 = arith.constant 0 : index
    %c0_14 = arith.constant 0 : index
    %13 = vector.load %arg7[%c0_13, %c0_14] : memref<1x384xf32, #tpu.memory_space<vmem>>, vector<1x384xf32>
    %14 = vector.broadcast %13 : vector<1x384xf32> to vector<64x384xf32>
    %15 = arith.addf %12, %14 : vector<64x384xf32>
    %c0_15 = arith.constant 0 : index
    %c0_16 = arith.constant 0 : index
    %16 = vector.load %arg14[%c0_15, %c0_16] : memref<64x384xf32, #tpu.memory_space<vmem>>, vector<64x384xf32>
    tpu.vector_store %arg14[%c0_15, %c0_16], %15 {strides = array<i32>} : memref<64x384xf32, #tpu.memory_space<vmem>>, vector<64x384xf32>,
    %c0_17 = arith.constant 0 : index
    %c0_18 = arith.constant 0 : index
    %17 = vector.load %arg5[%c0_17, %c0_18] : memref<128x768xf32, #tpu.memory_space<vmem>>, vector<128x768xf32>
    %c0_19 = arith.constant 0 : index
    %c0_20 = arith.constant 0 : index
    %18 = vector.load %arg8[%c0_19, %c0_20] : memref<1x128xf32, #tpu.memory_space<vmem>>, vector<1x128xf32>
    %c0_21 = arith.constant 0 : index
    %c0_22 = arith.constant 0 : index
    %19 = vector.load %arg9[%c0_21, %c0_22] : memref<1x128xf32, #tpu.memory_space<vmem>>, vector<1x128xf32>
    %c0_i32_23 = arith.constant 0 : i32
    %c0_24 = arith.constant 0 : index
    %c0_25 = arith.constant 0 : index
    %20 = vector.load %arg12[%c0_24, %c0_25] : memref<16x128xf32, #tpu.memory_space<vmem>>, vector<16x128xf32>
    %cst_26 = arith.constant dense<0.000000e+00> : vector<16x768xf32>
    %21 = tpu.matmul %20, %17, %cst_26 {dimension_numbers = #tpu.dot_dimension_numbers<[1], [0], [0], [1], [0, 0, 1, 1], [], []>} : vector<16x128xf32>, vector<128x768xf32>, vector<16x768xf32> -> vector<16x768xf32>
    %c8_i32 = arith.constant 8 : i32
    %22 = arith.muli %c0_i32_23, %c8_i32 : i32
    %23 = tpu.assume_multiple %22, 8 : i32
    %24 = arith.index_cast %23 : i32 to index
    %c0_27 = arith.constant 0 : index
    %25 = vector.load %arg13[%24, %c0_27] : memref<64x384xf32, #tpu.memory_space<vmem>>, vector<8x384xf32>
    %26 = vector.extract_strided_slice %21 {offsets = [0, 0], sizes = [8, 384], strides = [1, 1]} : vector<16x768xf32> to vector<8x384xf32>
    %27 = vector.extract_strided_slice %20 {offsets = [0, 0], sizes = [8, 128], strides = [1, 1]} : vector<16x128xf32> to vector<8x128xf32>
    %28 = vector.extract_strided_slice %25 {offsets = [0, 0], sizes = [8, 128], strides = [1, 1]} : vector<8x384xf32> to vector<8x128xf32>
    %29 = vector.extract_strided_slice %26 {offsets = [0, 0], sizes = [8, 128], strides = [1, 1]} : vector<8x384xf32> to vector<8x128xf32>
    %30 = arith.addf %28, %29 : vector<8x128xf32>
    %cst_28 = arith.constant 0.000000e+00 : f32
    %31 = vector.broadcast %cst_28 : f32 to vector<8x128xf32>
    %32 = arith.subf %31, %30 : vector<8x128xf32>
    %33 = math.exp %32 : vector<8x128xf32>
    %cst_29 = arith.constant 1.000000e+00 : f32
    %34 = vector.broadcast %cst_29 : f32 to vector<8x128xf32>
    %35 = arith.addf %34, %33 : vector<8x128xf32>
    %cst_30 = arith.constant 1.000000e+00 : f32
    %36 = vector.broadcast %cst_30 : f32 to vector<8x128xf32>
    %37 = arith.divf %36, %35 : vector<8x128xf32>
    %38 = vector.extract_strided_slice %25 {offsets = [0, 128], sizes = [8, 128], strides = [1, 1]} : vector<8x384xf32> to vector<8x128xf32>
    %39 = vector.extract_strided_slice %26 {offsets = [0, 128], sizes = [8, 128], strides = [1, 1]} : vector<8x384xf32> to vector<8x128xf32>
    %40 = arith.addf %38, %39 : vector<8x128xf32>
    %cst_31 = arith.constant 0.000000e+00 : f32
    %41 = vector.broadcast %cst_31 : f32 to vector<8x128xf32>
    %42 = arith.subf %41, %40 : vector<8x128xf32>
    %43 = math.exp %42 : vector<8x128xf32>
    %cst_32 = arith.constant 1.000000e+00 : f32
    %44 = vector.broadcast %cst_32 : f32 to vector<8x128xf32>
    %45 = arith.addf %44, %43 : vector<8x128xf32>
    %cst_33 = arith.constant 1.000000e+00 : f32
    %46 = vector.broadcast %cst_33 : f32 to vector<8x128xf32>
    %47 = arith.divf %46, %45 : vector<8x128xf32>
    %48 = vector.extract_strided_slice %25 {offsets = [0, 256], sizes = [8, 128], strides = [1, 1]} : vector<8x384xf32> to vector<8x128xf32>
    %49 = vector.extract_strided_slice %26 {offsets = [0, 256], sizes = [8, 128], strides = [1, 1]} : vector<8x384xf32> to vector<8x128xf32>
    %50 = vector.broadcast %18 : vector<1x128xf32> to vector<8x128xf32>
    %51 = arith.addf %49, %50 : vector<8x128xf32>
    %52 = arith.mulf %37, %51 : vector<8x128xf32>
    %53 = arith.addf %48, %52 : vector<8x128xf32>
    %54 = math.tanh %53 : vector<8x128xf32>
    %cst_34 = arith.constant 1.000000e+00 : f32
    %55 = vector.broadcast %cst_34 : f32 to vector<8x128xf32>
    %56 = arith.subf %55, %47 : vector<8x128xf32>
    %57 = arith.mulf %56, %54 : vector<8x128xf32>
    %58 = arith.mulf %47, %27 : vector<8x128xf32>
    %59 = arith.addf %57, %58 : vector<8x128xf32>
    %c7_i32 = arith.constant 7 : i32
    %60 = arith.subi %c7_i32, %c0_i32_23 : i32
    %c8_i32_35 = arith.constant 8 : i32
    %61 = arith.muli %60, %c8_i32_35 : i32
    %62 = tpu.assume_multiple %61, 8 : i32
    %63 = arith.index_cast %62 : i32 to index
    %c0_36 = arith.constant 0 : index
    %64 = vector.load %arg14[%63, %c0_36] : memref<64x384xf32, #tpu.memory_space<vmem>>, vector<8x384xf32>
    %65 = vector.extract_strided_slice %21 {offsets = [8, 384], sizes = [8, 384], strides = [1, 1]} : vector<16x768xf32> to vector<8x384xf32>
    %66 = vector.extract_strided_slice %20 {offsets = [8, 0], sizes = [8, 128], strides = [1, 1]} : vector<16x128xf32> to vector<8x128xf32>
    %67 = vector.extract_strided_slice %64 {offsets = [0, 0], sizes = [8, 128], strides = [1, 1]} : vector<8x384xf32> to vector<8x128xf32>
    %68 = vector.extract_strided_slice %65 {offsets = [0, 0], sizes = [8, 128], strides = [1, 1]} : vector<8x384xf32> to vector<8x128xf32>
    %69 = arith.addf %67, %68 : vector<8x128xf32>
    %cst_37 = arith.constant 0.000000e+00 : f32
    %70 = vector.broadcast %cst_37 : f32 to vector<8x128xf32>
    %71 = arith.subf %70, %69 : vector<8x128xf32>
    %72 = math.exp %71 : vector<8x128xf32>
    %cst_38 = arith.constant 1.000000e+00 : f32
    %73 = vector.broadcast %cst_38 : f32 to vector<8x128xf32>
    %74 = arith.addf %73, %72 : vector<8x128xf32>
    %cst_39 = arith.constant 1.000000e+00 : f32
    %75 = vector.broadcast %cst_39 : f32 to vector<8x128xf32>
    %76 = arith.divf %75, %74 : vector<8x128xf32>
    %77 = vector.extract_strided_slice %64 {offsets = [0, 128], sizes = [8, 128], strides = [1, 1]} : vector<8x384xf32> to vector<8x128xf32>
    %78 = vector.extract_strided_slice %65 {offsets = [0, 128], sizes = [8, 128], strides = [1, 1]} : vector<8x384xf32> to vector<8x128xf32>
    %79 = arith.addf %77, %78 : vector<8x128xf32>
    %cst_40 = arith.constant 0.000000e+00 : f32
    %80 = vector.broadcast %cst_40 : f32 to vector<8x128xf32>
    %81 = arith.subf %80, %79 : vector<8x128xf32>
    %82 = math.exp %81 : vector<8x128xf32>
    %cst_41 = arith.constant 1.000000e+00 : f32
    %83 = vector.broadcast %cst_41 : f32 to vector<8x128xf32>
    %84 = arith.addf %83, %82 : vector<8x128xf32>
    %cst_42 = arith.constant 1.000000e+00 : f32
    %85 = vector.broadcast %cst_42 : f32 to vector<8x128xf32>
    %86 = arith.divf %85, %84 : vector<8x128xf32>
    %87 = vector.extract_strided_slice %64 {offsets = [0, 256], sizes = [8, 128], strides = [1, 1]} : vector<8x384xf32> to vector<8x128xf32>
    %88 = vector.extract_strided_slice %65 {offsets = [0, 256], sizes = [8, 128], strides = [1, 1]} : vector<8x384xf32> to vector<8x128xf32>
    %89 = vector.broadcast %19 : vector<1x128xf32> to vector<8x128xf32>
    %90 = arith.addf %88, %89 : vector<8x128xf32>
    %91 = arith.mulf %76, %90 : vector<8x128xf32>
    %92 = arith.addf %87, %91 : vector<8x128xf32>
    %93 = math.tanh %92 : vector<8x128xf32>
    %cst_43 = arith.constant 1.000000e+00 : f32
    %94 = vector.broadcast %cst_43 : f32 to vector<8x128xf32>
    %95 = arith.subf %94, %86 : vector<8x128xf32>
    %96 = arith.mulf %95, %93 : vector<8x128xf32>
    %97 = arith.mulf %86, %66 : vector<8x128xf32>
    %98 = arith.addf %96, %97 : vector<8x128xf32>
    %c0_44 = arith.constant 0 : index
    %c0_45 = arith.constant 0 : index
    %99 = vector.load %arg12[%c0_44, %c0_45] : memref<16x128xf32, #tpu.memory_space<vmem>>, vector<8x128xf32>
    tpu.vector_store %arg12[%c0_44, %c0_45], %59 {strides = array<i32>} : memref<16x128xf32, #tpu.memory_space<vmem>>, vector<8x128xf32>,
    %c8 = arith.constant 8 : index
    %c0_46 = arith.constant 0 : index
    %100 = vector.load %arg12[%c8, %c0_46] : memref<16x128xf32, #tpu.memory_space<vmem>>, vector<8x128xf32>
    tpu.vector_store %arg12[%c8, %c0_46], %98 {strides = array<i32>} : memref<16x128xf32, #tpu.memory_space<vmem>>, vector<8x128xf32>,
    %101 = arith.index_cast %23 : i32 to index
    %c0_47 = arith.constant 0 : index
    %102 = vector.load %arg10[%101, %c0_47] : memref<64x128xf32, #tpu.memory_space<vmem>>, vector<8x128xf32>
    tpu.vector_store %arg10[%101, %c0_47], %59 {strides = array<i32>} : memref<64x128xf32, #tpu.memory_space<vmem>>, vector<8x128xf32>,
    %103 = arith.index_cast %62 : i32 to index
    %c0_48 = arith.constant 0 : index
    %104 = vector.load %arg11[%103, %c0_48] : memref<64x128xf32, #tpu.memory_space<vmem>>, vector<8x128xf32>
    tpu.vector_store %arg11[%103, %c0_48], %98 {strides = array<i32>} : memref<64x128xf32, #tpu.memory_space<vmem>>, vector<8x128xf32>,
    %c1_i32 = arith.constant 1 : i32
    %c0_49 = arith.constant 0 : index
    %c0_50 = arith.constant 0 : index
    %105 = vector.load %arg12[%c0_49, %c0_50] : memref<16x128xf32, #tpu.memory_space<vmem>>, vector<16x128xf32>
    %cst_51 = arith.constant dense<0.000000e+00> : vector<16x768xf32>
    %106 = tpu.matmul %105, %17, %cst_51 {dimension_numbers = #tpu.dot_dimension_numbers<[1], [0], [0], [1], [0, 0, 1, 1], [], []>} : vector<16x128xf32>, vector<128x768xf32>, vector<16x768xf32> -> vector<16x768xf32>
    %c8_i32_52 = arith.constant 8 : i32
    %107 = arith.muli %c1_i32, %c8_i32_52 : i32
    %108 = tpu.assume_multiple %107, 8 : i32
    %109 = arith.index_cast %108 : i32 to index
    %c0_53 = arith.constant 0 : index
    %110 = vector.load %arg13[%109, %c0_53] : memref<64x384xf32, #tpu.memory_space<vmem>>, vector<8x384xf32>
    %111 = vector.extract_strided_slice %106 {offsets = [0, 0], sizes = [8, 384], strides = [1, 1]} : vector<16x768xf32> to vector<8x384xf32>
    %112 = vector.extract_strided_slice %105 {offsets = [0, 0], sizes = [8, 128], strides = [1, 1]} : vector<16x128xf32> to vector<8x128xf32>
    %113 = vector.extract_strided_slice %110 {offsets = [0, 0], sizes = [8, 128], strides = [1, 1]} : vector<8x384xf32> to vector<8x128xf32>
    %114 = vector.extract_strided_slice %111 {offsets = [0, 0], sizes = [8, 128], strides = [1, 1]} : vector<8x384xf32> to vector<8x128xf32>
    %115 = arith.addf %113, %114 : vector<8x128xf32>
    %cst_54 = arith.constant 0.000000e+00 : f32
    %116 = vector.broadcast %cst_54 : f32 to vector<8x128xf32>
    %117 = arith.subf %116, %115 : vector<8x128xf32>
    %118 = math.exp %117 : vector<8x128xf32>
    %cst_55 = arith.constant 1.000000e+00 : f32
    %119 = vector.broadcast %cst_55 : f32 to vector<8x128xf32>
    %120 = arith.addf %119, %118 : vector<8x128xf32>
    %cst_56 = arith.constant 1.000000e+00 : f32
    %121 = vector.broadcast %cst_56 : f32 to vector<8x128xf32>
    %122 = arith.divf %121, %120 : vector<8x128xf32>
    %123 = vector.extract_strided_slice %110 {offsets = [0, 128], sizes = [8, 128], strides = [1, 1]} : vector<8x384xf32> to vector<8x128xf32>
    %124 = vector.extract_strided_slice %111 {offsets = [0, 128], sizes = [8, 128], strides = [1, 1]} : vector<8x384xf32> to vector<8x128xf32>
    %125 = arith.addf %123, %124 : vector<8x128xf32>
    %cst_57 = arith.constant 0.000000e+00 : f32
    %126 = vector.broadcast %cst_57 : f32 to vector<8x128xf32>
    %127 = arith.subf %126, %125 : vector<8x128xf32>
    %128 = math.exp %127 : vector<8x128xf32>
    %cst_58 = arith.constant 1.000000e+00 : f32
    %129 = vector.broadcast %cst_58 : f32 to vector<8x128xf32>
    %130 = arith.addf %129, %128 : vector<8x128xf32>
    %cst_59 = arith.constant 1.000000e+00 : f32
    %131 = vector.broadcast %cst_59 : f32 to vector<8x128xf32>
    %132 = arith.divf %131, %130 : vector<8x128xf32>
    %133 = vector.extract_strided_slice %110 {offsets = [0, 256], sizes = [8, 128], strides = [1, 1]} : vector<8x384xf32> to vector<8x128xf32>
    %134 = vector.extract_strided_slice %111 {offsets = [0, 256], sizes = [8, 128], strides = [1, 1]} : vector<8x384xf32> to vector<8x128xf32>
    %135 = vector.broadcast %18 : vector<1x128xf32> to vector<8x128xf32>
    %136 = arith.addf %134, %135 : vector<8x128xf32>
    %137 = arith.mulf %122, %136 : vector<8x128xf32>
    %138 = arith.addf %133, %137 : vector<8x128xf32>
    %139 = math.tanh %138 : vector<8x128xf32>
    %cst_60 = arith.constant 1.000000e+00 : f32
    %140 = vector.broadcast %cst_60 : f32 to vector<8x128xf32>
    %141 = arith.subf %140, %132 : vector<8x128xf32>
    %142 = arith.mulf %141, %139 : vector<8x128xf32>
    %143 = arith.mulf %132, %112 : vector<8x128xf32>
    %144 = arith.addf %142, %143 : vector<8x128xf32>
    %c7_i32_61 = arith.constant 7 : i32
    %145 = arith.subi %c7_i32_61, %c1_i32 : i32
    %c8_i32_62 = arith.constant 8 : i32
    %146 = arith.muli %145, %c8_i32_62 : i32
    %147 = tpu.assume_multiple %146, 8 : i32
    %148 = arith.index_cast %147 : i32 to index
    %c0_63 = arith.constant 0 : index
    %149 = vector.load %arg14[%148, %c0_63] : memref<64x384xf32, #tpu.memory_space<vmem>>, vector<8x384xf32>
    %150 = vector.extract_strided_slice %106 {offsets = [8, 384], sizes = [8, 384], strides = [1, 1]} : vector<16x768xf32> to vector<8x384xf32>
    %151 = vector.extract_strided_slice %105 {offsets = [8, 0], sizes = [8, 128], strides = [1, 1]} : vector<16x128xf32> to vector<8x128xf32>
    %152 = vector.extract_strided_slice %149 {offsets = [0, 0], sizes = [8, 128], strides = [1, 1]} : vector<8x384xf32> to vector<8x128xf32>
    %153 = vector.extract_strided_slice %150 {offsets = [0, 0], sizes = [8, 128], strides = [1, 1]} : vector<8x384xf32> to vector<8x128xf32>
    %154 = arith.addf %152, %153 : vector<8x128xf32>
    %cst_64 = arith.constant 0.000000e+00 : f32
    %155 = vector.broadcast %cst_64 : f32 to vector<8x128xf32>
    %156 = arith.subf %155, %154 : vector<8x128xf32>
    %157 = math.exp %156 : vector<8x128xf32>
    %cst_65 = arith.constant 1.000000e+00 : f32
    %158 = vector.broadcast %cst_65 : f32 to vector<8x128xf32>
    %159 = arith.addf %158, %157 : vector<8x128xf32>
    %cst_66 = arith.constant 1.000000e+00 : f32
    %160 = vector.broadcast %cst_66 : f32 to vector<8x128xf32>
    %161 = arith.divf %160, %159 : vector<8x128xf32>
    %162 = vector.extract_strided_slice %149 {offsets = [0, 128], sizes = [8, 128], strides = [1, 1]} : vector<8x384xf32> to vector<8x128xf32>
    %163 = vector.extract_strided_slice %150 {offsets = [0, 128], sizes = [8, 128], strides = [1, 1]} : vector<8x384xf32> to vector<8x128xf32>
    %164 = arith.addf %162, %163 : vector<8x128xf32>
    %cst_67 = arith.constant 0.000000e+00 : f32
    %165 = vector.broadcast %cst_67 : f32 to vector<8x128xf32>
    %166 = arith.subf %165, %164 : vector<8x128xf32>
    %167 = math.exp %166 : vector<8x128xf32>
    %cst_68 = arith.constant 1.000000e+00 : f32
    %168 = vector.broadcast %cst_68 : f32 to vector<8x128xf32>
    %169 = arith.addf %168, %167 : vector<8x128xf32>
    %cst_69 = arith.constant 1.000000e+00 : f32
    %170 = vector.broadcast %cst_69 : f32 to vector<8x128xf32>
    %171 = arith.divf %170, %169 : vector<8x128xf32>
    %172 = vector.extract_strided_slice %149 {offsets = [0, 256], sizes = [8, 128], strides = [1, 1]} : vector<8x384xf32> to vector<8x128xf32>
    %173 = vector.extract_strided_slice %150 {offsets = [0, 256], sizes = [8, 128], strides = [1, 1]} : vector<8x384xf32> to vector<8x128xf32>
    %174 = vector.broadcast %19 : vector<1x128xf32> to vector<8x128xf32>
    %175 = arith.addf %173, %174 : vector<8x128xf32>
    %176 = arith.mulf %161, %175 : vector<8x128xf32>
    %177 = arith.addf %172, %176 : vector<8x128xf32>
    %178 = math.tanh %177 : vector<8x128xf32>
    %cst_70 = arith.constant 1.000000e+00 : f32
    %179 = vector.broadcast %cst_70 : f32 to vector<8x128xf32>
    %180 = arith.subf %179, %171 : vector<8x128xf32>
    %181 = arith.mulf %180, %178 : vector<8x128xf32>
    %182 = arith.mulf %171, %151 : vector<8x128xf32>
    %183 = arith.addf %181, %182 : vector<8x128xf32>
    %c0_71 = arith.constant 0 : index
    %c0_72 = arith.constant 0 : index
    %184 = vector.load %arg12[%c0_71, %c0_72] : memref<16x128xf32, #tpu.memory_space<vmem>>, vector<8x128xf32>
    tpu.vector_store %arg12[%c0_71, %c0_72], %144 {strides = array<i32>} : memref<16x128xf32, #tpu.memory_space<vmem>>, vector<8x128xf32>,
    %c8_73 = arith.constant 8 : index
    %c0_74 = arith.constant 0 : index
    %185 = vector.load %arg12[%c8_73, %c0_74] : memref<16x128xf32, #tpu.memory_space<vmem>>, vector<8x128xf32>
    tpu.vector_store %arg12[%c8_73, %c0_74], %183 {strides = array<i32>} : memref<16x128xf32, #tpu.memory_space<vmem>>, vector<8x128xf32>,
    %186 = arith.index_cast %108 : i32 to index
    %c0_75 = arith.constant 0 : index
    %187 = vector.load %arg10[%186, %c0_75] : memref<64x128xf32, #tpu.memory_space<vmem>>, vector<8x128xf32>
    tpu.vector_store %arg10[%186, %c0_75], %144 {strides = array<i32>} : memref<64x128xf32, #tpu.memory_space<vmem>>, vector<8x128xf32>,
    %188 = arith.index_cast %147 : i32 to index
    %c0_76 = arith.constant 0 : index
    %189 = vector.load %arg11[%188, %c0_76] : memref<64x128xf32, #tpu.memory_space<vmem>>, vector<8x128xf32>
    tpu.vector_store %arg11[%188, %c0_76], %183 {strides = array<i32>} : memref<64x128xf32, #tpu.memory_space<vmem>>, vector<8x128xf32>,
    %c2_i32 = arith.constant 2 : i32
    %c0_77 = arith.constant 0 : index
    %c0_78 = arith.constant 0 : index
    %190 = vector.load %arg12[%c0_77, %c0_78] : memref<16x128xf32, #tpu.memory_space<vmem>>, vector<16x128xf32>
    %cst_79 = arith.constant dense<0.000000e+00> : vector<16x768xf32>
    %191 = tpu.matmul %190, %17, %cst_79 {dimension_numbers = #tpu.dot_dimension_numbers<[1], [0], [0], [1], [0, 0, 1, 1], [], []>} : vector<16x128xf32>, vector<128x768xf32>, vector<16x768xf32> -> vector<16x768xf32>
    %c8_i32_80 = arith.constant 8 : i32
    %192 = arith.muli %c2_i32, %c8_i32_80 : i32
    %193 = tpu.assume_multiple %192, 8 : i32
    %194 = arith.index_cast %193 : i32 to index
    %c0_81 = arith.constant 0 : index
    %195 = vector.load %arg13[%194, %c0_81] : memref<64x384xf32, #tpu.memory_space<vmem>>, vector<8x384xf32>
    %196 = vector.extract_strided_slice %191 {offsets = [0, 0], sizes = [8, 384], strides = [1, 1]} : vector<16x768xf32> to vector<8x384xf32>
    %197 = vector.extract_strided_slice %190 {offsets = [0, 0], sizes = [8, 128], strides = [1, 1]} : vector<16x128xf32> to vector<8x128xf32>
    %198 = vector.extract_strided_slice %195 {offsets = [0, 0], sizes = [8, 128], strides = [1, 1]} : vector<8x384xf32> to vector<8x128xf32>
    %199 = vector.extract_strided_slice %196 {offsets = [0, 0], sizes = [8, 128], strides = [1, 1]} : vector<8x384xf32> to vector<8x128xf32>
    %200 = arith.addf %198, %199 : vector<8x128xf32>
    %cst_82 = arith.constant 0.000000e+00 : f32
    %201 = vector.broadcast %cst_82 : f32 to vector<8x128xf32>
    %202 = arith.subf %201, %200 : vector<8x128xf32>
    %203 = math.exp %202 : vector<8x128xf32>
    %cst_83 = arith.constant 1.000000e+00 : f32
    %204 = vector.broadcast %cst_83 : f32 to vector<8x128xf32>
    %205 = arith.addf %204, %203 : vector<8x128xf32>
    %cst_84 = arith.constant 1.000000e+00 : f32
    %206 = vector.broadcast %cst_84 : f32 to vector<8x128xf32>
    %207 = arith.divf %206, %205 : vector<8x128xf32>
    %208 = vector.extract_strided_slice %195 {offsets = [0, 128], sizes = [8, 128], strides = [1, 1]} : vector<8x384xf32> to vector<8x128xf32>
    %209 = vector.extract_strided_slice %196 {offsets = [0, 128], sizes = [8, 128], strides = [1, 1]} : vector<8x384xf32> to vector<8x128xf32>
    %210 = arith.addf %208, %209 : vector<8x128xf32>
    %cst_85 = arith.constant 0.000000e+00 : f32
    %211 = vector.broadcast %cst_85 : f32 to vector<8x128xf32>
    %212 = arith.subf %211, %210 : vector<8x128xf32>
    %213 = math.exp %212 : vector<8x128xf32>
    %cst_86 = arith.constant 1.000000e+00 : f32
    %214 = vector.broadcast %cst_86 : f32 to vector<8x128xf32>
    %215 = arith.addf %214, %213 : vector<8x128xf32>
    %cst_87 = arith.constant 1.000000e+00 : f32
    %216 = vector.broadcast %cst_87 : f32 to vector<8x128xf32>
    %217 = arith.divf %216, %215 : vector<8x128xf32>
    %218 = vector.extract_strided_slice %195 {offsets = [0, 256], sizes = [8, 128], strides = [1, 1]} : vector<8x384xf32> to vector<8x128xf32>
    %219 = vector.extract_strided_slice %196 {offsets = [0, 256], sizes = [8, 128], strides = [1, 1]} : vector<8x384xf32> to vector<8x128xf32>
    %220 = vector.broadcast %18 : vector<1x128xf32> to vector<8x128xf32>
    %221 = arith.addf %219, %220 : vector<8x128xf32>
    %222 = arith.mulf %207, %221 : vector<8x128xf32>
    %223 = arith.addf %218, %222 : vector<8x128xf32>
    %224 = math.tanh %223 : vector<8x128xf32>
    %cst_88 = arith.constant 1.000000e+00 : f32
    %225 = vector.broadcast %cst_88 : f32 to vector<8x128xf32>
    %226 = arith.subf %225, %217 : vector<8x128xf32>
    %227 = arith.mulf %226, %224 : vector<8x128xf32>
    %228 = arith.mulf %217, %197 : vector<8x128xf32>
    %229 = arith.addf %227, %228 : vector<8x128xf32>
    %c7_i32_89 = arith.constant 7 : i32
    %230 = arith.subi %c7_i32_89, %c2_i32 : i32
    %c8_i32_90 = arith.constant 8 : i32
    %231 = arith.muli %230, %c8_i32_90 : i32
    %232 = tpu.assume_multiple %231, 8 : i32
    %233 = arith.index_cast %232 : i32 to index
    %c0_91 = arith.constant 0 : index
    %234 = vector.load %arg14[%233, %c0_91] : memref<64x384xf32, #tpu.memory_space<vmem>>, vector<8x384xf32>
    %235 = vector.extract_strided_slice %191 {offsets = [8, 384], sizes = [8, 384], strides = [1, 1]} : vector<16x768xf32> to vector<8x384xf32>
    %236 = vector.extract_strided_slice %190 {offsets = [8, 0], sizes = [8, 128], strides = [1, 1]} : vector<16x128xf32> to vector<8x128xf32>
    %237 = vector.extract_strided_slice %234 {offsets = [0, 0], sizes = [8, 128], strides = [1, 1]} : vector<8x384xf32> to vector<8x128xf32>
    %238 = vector.extract_strided_slice %235 {offsets = [0, 0], sizes = [8, 128], strides = [1, 1]} : vector<8x384xf32> to vector<8x128xf32>
    %239 = arith.addf %237, %238 : vector<8x128xf32>
    %cst_92 = arith.constant 0.000000e+00 : f32
    %240 = vector.broadcast %cst_92 : f32 to vector<8x128xf32>
    %241 = arith.subf %240, %239 : vector<8x128xf32>
    %242 = math.exp %241 : vector<8x128xf32>
    %cst_93 = arith.constant 1.000000e+00 : f32
    %243 = vector.broadcast %cst_93 : f32 to vector<8x128xf32>
    %244 = arith.addf %243, %242 : vector<8x128xf32>
    %cst_94 = arith.constant 1.000000e+00 : f32
    %245 = vector.broadcast %cst_94 : f32 to vector<8x128xf32>
    %246 = arith.divf %245, %244 : vector<8x128xf32>
    %247 = vector.extract_strided_slice %234 {offsets = [0, 128], sizes = [8, 128], strides = [1, 1]} : vector<8x384xf32> to vector<8x128xf32>
    %248 = vector.extract_strided_slice %235 {offsets = [0, 128], sizes = [8, 128], strides = [1, 1]} : vector<8x384xf32> to vector<8x128xf32>
    %249 = arith.addf %247, %248 : vector<8x128xf32>
    %cst_95 = arith.constant 0.000000e+00 : f32
    %250 = vector.broadcast %cst_95 : f32 to vector<8x128xf32>
    %251 = arith.subf %250, %249 : vector<8x128xf32>
    %252 = math.exp %251 : vector<8x128xf32>
    %cst_96 = arith.constant 1.000000e+00 : f32
    %253 = vector.broadcast %cst_96 : f32 to vector<8x128xf32>
    %254 = arith.addf %253, %252 : vector<8x128xf32>
    %cst_97 = arith.constant 1.000000e+00 : f32
    %255 = vector.broadcast %cst_97 : f32 to vector<8x128xf32>
    %256 = arith.divf %255, %254 : vector<8x128xf32>
    %257 = vector.extract_strided_slice %234 {offsets = [0, 256], sizes = [8, 128], strides = [1, 1]} : vector<8x384xf32> to vector<8x128xf32>
    %258 = vector.extract_strided_slice %235 {offsets = [0, 256], sizes = [8, 128], strides = [1, 1]} : vector<8x384xf32> to vector<8x128xf32>
    %259 = vector.broadcast %19 : vector<1x128xf32> to vector<8x128xf32>
    %260 = arith.addf %258, %259 : vector<8x128xf32>
    %261 = arith.mulf %246, %260 : vector<8x128xf32>
    %262 = arith.addf %257, %261 : vector<8x128xf32>
    %263 = math.tanh %262 : vector<8x128xf32>
    %cst_98 = arith.constant 1.000000e+00 : f32
    %264 = vector.broadcast %cst_98 : f32 to vector<8x128xf32>
    %265 = arith.subf %264, %256 : vector<8x128xf32>
    %266 = arith.mulf %265, %263 : vector<8x128xf32>
    %267 = arith.mulf %256, %236 : vector<8x128xf32>
    %268 = arith.addf %266, %267 : vector<8x128xf32>
    %c0_99 = arith.constant 0 : index
    %c0_100 = arith.constant 0 : index
    %269 = vector.load %arg12[%c0_99, %c0_100] : memref<16x128xf32, #tpu.memory_space<vmem>>, vector<8x128xf32>
    tpu.vector_store %arg12[%c0_99, %c0_100], %229 {strides = array<i32>} : memref<16x128xf32, #tpu.memory_space<vmem>>, vector<8x128xf32>,
    %c8_101 = arith.constant 8 : index
    %c0_102 = arith.constant 0 : index
    %270 = vector.load %arg12[%c8_101, %c0_102] : memref<16x128xf32, #tpu.memory_space<vmem>>, vector<8x128xf32>
    tpu.vector_store %arg12[%c8_101, %c0_102], %268 {strides = array<i32>} : memref<16x128xf32, #tpu.memory_space<vmem>>, vector<8x128xf32>,
    %271 = arith.index_cast %193 : i32 to index
    %c0_103 = arith.constant 0 : index
    %272 = vector.load %arg10[%271, %c0_103] : memref<64x128xf32, #tpu.memory_space<vmem>>, vector<8x128xf32>
    tpu.vector_store %arg10[%271, %c0_103], %229 {strides = array<i32>} : memref<64x128xf32, #tpu.memory_space<vmem>>, vector<8x128xf32>,
    %273 = arith.index_cast %232 : i32 to index
    %c0_104 = arith.constant 0 : index
    %274 = vector.load %arg11[%273, %c0_104] : memref<64x128xf32, #tpu.memory_space<vmem>>, vector<8x128xf32>
    tpu.vector_store %arg11[%273, %c0_104], %268 {strides = array<i32>} : memref<64x128xf32, #tpu.memory_space<vmem>>, vector<8x128xf32>,
    %c3_i32 = arith.constant 3 : i32
    %c0_105 = arith.constant 0 : index
    %c0_106 = arith.constant 0 : index
    %275 = vector.load %arg12[%c0_105, %c0_106] : memref<16x128xf32, #tpu.memory_space<vmem>>, vector<16x128xf32>
    %cst_107 = arith.constant dense<0.000000e+00> : vector<16x768xf32>
    %276 = tpu.matmul %275, %17, %cst_107 {dimension_numbers = #tpu.dot_dimension_numbers<[1], [0], [0], [1], [0, 0, 1, 1], [], []>} : vector<16x128xf32>, vector<128x768xf32>, vector<16x768xf32> -> vector<16x768xf32>
    %c8_i32_108 = arith.constant 8 : i32
    %277 = arith.muli %c3_i32, %c8_i32_108 : i32
    %278 = tpu.assume_multiple %277, 8 : i32
    %279 = arith.index_cast %278 : i32 to index
    %c0_109 = arith.constant 0 : index
    %280 = vector.load %arg13[%279, %c0_109] : memref<64x384xf32, #tpu.memory_space<vmem>>, vector<8x384xf32>
    %281 = vector.extract_strided_slice %276 {offsets = [0, 0], sizes = [8, 384], strides = [1, 1]} : vector<16x768xf32> to vector<8x384xf32>
    %282 = vector.extract_strided_slice %275 {offsets = [0, 0], sizes = [8, 128], strides = [1, 1]} : vector<16x128xf32> to vector<8x128xf32>
    %283 = vector.extract_strided_slice %280 {offsets = [0, 0], sizes = [8, 128], strides = [1, 1]} : vector<8x384xf32> to vector<8x128xf32>
    %284 = vector.extract_strided_slice %281 {offsets = [0, 0], sizes = [8, 128], strides = [1, 1]} : vector<8x384xf32> to vector<8x128xf32>
    %285 = arith.addf %283, %284 : vector<8x128xf32>
    %cst_110 = arith.constant 0.000000e+00 : f32
    %286 = vector.broadcast %cst_110 : f32 to vector<8x128xf32>
    %287 = arith.subf %286, %285 : vector<8x128xf32>
    %288 = math.exp %287 : vector<8x128xf32>
    %cst_111 = arith.constant 1.000000e+00 : f32
    %289 = vector.broadcast %cst_111 : f32 to vector<8x128xf32>
    %290 = arith.addf %289, %288 : vector<8x128xf32>
    %cst_112 = arith.constant 1.000000e+00 : f32
    %291 = vector.broadcast %cst_112 : f32 to vector<8x128xf32>
    %292 = arith.divf %291, %290 : vector<8x128xf32>
    %293 = vector.extract_strided_slice %280 {offsets = [0, 128], sizes = [8, 128], strides = [1, 1]} : vector<8x384xf32> to vector<8x128xf32>
    %294 = vector.extract_strided_slice %281 {offsets = [0, 128], sizes = [8, 128], strides = [1, 1]} : vector<8x384xf32> to vector<8x128xf32>
    %295 = arith.addf %293, %294 : vector<8x128xf32>
    %cst_113 = arith.constant 0.000000e+00 : f32
    %296 = vector.broadcast %cst_113 : f32 to vector<8x128xf32>
    %297 = arith.subf %296, %295 : vector<8x128xf32>
    %298 = math.exp %297 : vector<8x128xf32>
    %cst_114 = arith.constant 1.000000e+00 : f32
    %299 = vector.broadcast %cst_114 : f32 to vector<8x128xf32>
    %300 = arith.addf %299, %298 : vector<8x128xf32>
    %cst_115 = arith.constant 1.000000e+00 : f32
    %301 = vector.broadcast %cst_115 : f32 to vector<8x128xf32>
    %302 = arith.divf %301, %300 : vector<8x128xf32>
    %303 = vector.extract_strided_slice %280 {offsets = [0, 256], sizes = [8, 128], strides = [1, 1]} : vector<8x384xf32> to vector<8x128xf32>
    %304 = vector.extract_strided_slice %281 {offsets = [0, 256], sizes = [8, 128], strides = [1, 1]} : vector<8x384xf32> to vector<8x128xf32>
    %305 = vector.broadcast %18 : vector<1x128xf32> to vector<8x128xf32>
    %306 = arith.addf %304, %305 : vector<8x128xf32>
    %307 = arith.mulf %292, %306 : vector<8x128xf32>
    %308 = arith.addf %303, %307 : vector<8x128xf32>
    %309 = math.tanh %308 : vector<8x128xf32>
    %cst_116 = arith.constant 1.000000e+00 : f32
    %310 = vector.broadcast %cst_116 : f32 to vector<8x128xf32>
    %311 = arith.subf %310, %302 : vector<8x128xf32>
    %312 = arith.mulf %311, %309 : vector<8x128xf32>
    %313 = arith.mulf %302, %282 : vector<8x128xf32>
    %314 = arith.addf %312, %313 : vector<8x128xf32>
    %c7_i32_117 = arith.constant 7 : i32
    %315 = arith.subi %c7_i32_117, %c3_i32 : i32
    %c8_i32_118 = arith.constant 8 : i32
    %316 = arith.muli %315, %c8_i32_118 : i32
    %317 = tpu.assume_multiple %316, 8 : i32
    %318 = arith.index_cast %317 : i32 to index
    %c0_119 = arith.constant 0 : index
    %319 = vector.load %arg14[%318, %c0_119] : memref<64x384xf32, #tpu.memory_space<vmem>>, vector<8x384xf32>
    %320 = vector.extract_strided_slice %276 {offsets = [8, 384], sizes = [8, 384], strides = [1, 1]} : vector<16x768xf32> to vector<8x384xf32>
    %321 = vector.extract_strided_slice %275 {offsets = [8, 0], sizes = [8, 128], strides = [1, 1]} : vector<16x128xf32> to vector<8x128xf32>
    %322 = vector.extract_strided_slice %319 {offsets = [0, 0], sizes = [8, 128], strides = [1, 1]} : vector<8x384xf32> to vector<8x128xf32>
    %323 = vector.extract_strided_slice %320 {offsets = [0, 0], sizes = [8, 128], strides = [1, 1]} : vector<8x384xf32> to vector<8x128xf32>
    %324 = arith.addf %322, %323 : vector<8x128xf32>
    %cst_120 = arith.constant 0.000000e+00 : f32
    %325 = vector.broadcast %cst_120 : f32 to vector<8x128xf32>
    %326 = arith.subf %325, %324 : vector<8x128xf32>
    %327 = math.exp %326 : vector<8x128xf32>
    %cst_121 = arith.constant 1.000000e+00 : f32
    %328 = vector.broadcast %cst_121 : f32 to vector<8x128xf32>
    %329 = arith.addf %328, %327 : vector<8x128xf32>
    %cst_122 = arith.constant 1.000000e+00 : f32
    %330 = vector.broadcast %cst_122 : f32 to vector<8x128xf32>
    %331 = arith.divf %330, %329 : vector<8x128xf32>
    %332 = vector.extract_strided_slice %319 {offsets = [0, 128], sizes = [8, 128], strides = [1, 1]} : vector<8x384xf32> to vector<8x128xf32>
    %333 = vector.extract_strided_slice %320 {offsets = [0, 128], sizes = [8, 128], strides = [1, 1]} : vector<8x384xf32> to vector<8x128xf32>
    %334 = arith.addf %332, %333 : vector<8x128xf32>
    %cst_123 = arith.constant 0.000000e+00 : f32
    %335 = vector.broadcast %cst_123 : f32 to vector<8x128xf32>
    %336 = arith.subf %335, %334 : vector<8x128xf32>
    %337 = math.exp %336 : vector<8x128xf32>
    %cst_124 = arith.constant 1.000000e+00 : f32
    %338 = vector.broadcast %cst_124 : f32 to vector<8x128xf32>
    %339 = arith.addf %338, %337 : vector<8x128xf32>
    %cst_125 = arith.constant 1.000000e+00 : f32
    %340 = vector.broadcast %cst_125 : f32 to vector<8x128xf32>
    %341 = arith.divf %340, %339 : vector<8x128xf32>
    %342 = vector.extract_strided_slice %319 {offsets = [0, 256], sizes = [8, 128], strides = [1, 1]} : vector<8x384xf32> to vector<8x128xf32>
    %343 = vector.extract_strided_slice %320 {offsets = [0, 256], sizes = [8, 128], strides = [1, 1]} : vector<8x384xf32> to vector<8x128xf32>
    %344 = vector.broadcast %19 : vector<1x128xf32> to vector<8x128xf32>
    %345 = arith.addf %343, %344 : vector<8x128xf32>
    %346 = arith.mulf %331, %345 : vector<8x128xf32>
    %347 = arith.addf %342, %346 : vector<8x128xf32>
    %348 = math.tanh %347 : vector<8x128xf32>
    %cst_126 = arith.constant 1.000000e+00 : f32
    %349 = vector.broadcast %cst_126 : f32 to vector<8x128xf32>
    %350 = arith.subf %349, %341 : vector<8x128xf32>
    %351 = arith.mulf %350, %348 : vector<8x128xf32>
    %352 = arith.mulf %341, %321 : vector<8x128xf32>
    %353 = arith.addf %351, %352 : vector<8x128xf32>
    %c0_127 = arith.constant 0 : index
    %c0_128 = arith.constant 0 : index
    %354 = vector.load %arg12[%c0_127, %c0_128] : memref<16x128xf32, #tpu.memory_space<vmem>>, vector<8x128xf32>
    tpu.vector_store %arg12[%c0_127, %c0_128], %314 {strides = array<i32>} : memref<16x128xf32, #tpu.memory_space<vmem>>, vector<8x128xf32>,
    %c8_129 = arith.constant 8 : index
    %c0_130 = arith.constant 0 : index
    %355 = vector.load %arg12[%c8_129, %c0_130] : memref<16x128xf32, #tpu.memory_space<vmem>>, vector<8x128xf32>
    tpu.vector_store %arg12[%c8_129, %c0_130], %353 {strides = array<i32>} : memref<16x128xf32, #tpu.memory_space<vmem>>, vector<8x128xf32>,
    %356 = arith.index_cast %278 : i32 to index
    %c0_131 = arith.constant 0 : index
    %357 = vector.load %arg10[%356, %c0_131] : memref<64x128xf32, #tpu.memory_space<vmem>>, vector<8x128xf32>
    tpu.vector_store %arg10[%356, %c0_131], %314 {strides = array<i32>} : memref<64x128xf32, #tpu.memory_space<vmem>>, vector<8x128xf32>,
    %358 = arith.index_cast %317 : i32 to index
    %c0_132 = arith.constant 0 : index
    %359 = vector.load %arg11[%358, %c0_132] : memref<64x128xf32, #tpu.memory_space<vmem>>, vector<8x128xf32>
    tpu.vector_store %arg11[%358, %c0_132], %353 {strides = array<i32>} : memref<64x128xf32, #tpu.memory_space<vmem>>, vector<8x128xf32>,
    %c4_i32 = arith.constant 4 : i32
    %c0_133 = arith.constant 0 : index
    %c0_134 = arith.constant 0 : index
    %360 = vector.load %arg12[%c0_133, %c0_134] : memref<16x128xf32, #tpu.memory_space<vmem>>, vector<16x128xf32>
    %cst_135 = arith.constant dense<0.000000e+00> : vector<16x768xf32>
    %361 = tpu.matmul %360, %17, %cst_135 {dimension_numbers = #tpu.dot_dimension_numbers<[1], [0], [0], [1], [0, 0, 1, 1], [], []>} : vector<16x128xf32>, vector<128x768xf32>, vector<16x768xf32> -> vector<16x768xf32>
    %c8_i32_136 = arith.constant 8 : i32
    %362 = arith.muli %c4_i32, %c8_i32_136 : i32
    %363 = tpu.assume_multiple %362, 8 : i32
    %364 = arith.index_cast %363 : i32 to index
    %c0_137 = arith.constant 0 : index
    %365 = vector.load %arg13[%364, %c0_137] : memref<64x384xf32, #tpu.memory_space<vmem>>, vector<8x384xf32>
    %366 = vector.extract_strided_slice %361 {offsets = [0, 0], sizes = [8, 384], strides = [1, 1]} : vector<16x768xf32> to vector<8x384xf32>
    %367 = vector.extract_strided_slice %360 {offsets = [0, 0], sizes = [8, 128], strides = [1, 1]} : vector<16x128xf32> to vector<8x128xf32>
    %368 = vector.extract_strided_slice %365 {offsets = [0, 0], sizes = [8, 128], strides = [1, 1]} : vector<8x384xf32> to vector<8x128xf32>
    %369 = vector.extract_strided_slice %366 {offsets = [0, 0], sizes = [8, 128], strides = [1, 1]} : vector<8x384xf32> to vector<8x128xf32>
    %370 = arith.addf %368, %369 : vector<8x128xf32>
    %cst_138 = arith.constant 0.000000e+00 : f32
    %371 = vector.broadcast %cst_138 : f32 to vector<8x128xf32>
    %372 = arith.subf %371, %370 : vector<8x128xf32>
    %373 = math.exp %372 : vector<8x128xf32>
    %cst_139 = arith.constant 1.000000e+00 : f32
    %374 = vector.broadcast %cst_139 : f32 to vector<8x128xf32>
    %375 = arith.addf %374, %373 : vector<8x128xf32>
    %cst_140 = arith.constant 1.000000e+00 : f32
    %376 = vector.broadcast %cst_140 : f32 to vector<8x128xf32>
    %377 = arith.divf %376, %375 : vector<8x128xf32>
    %378 = vector.extract_strided_slice %365 {offsets = [0, 128], sizes = [8, 128], strides = [1, 1]} : vector<8x384xf32> to vector<8x128xf32>
    %379 = vector.extract_strided_slice %366 {offsets = [0, 128], sizes = [8, 128], strides = [1, 1]} : vector<8x384xf32> to vector<8x128xf32>
    %380 = arith.addf %378, %379 : vector<8x128xf32>
    %cst_141 = arith.constant 0.000000e+00 : f32
    %381 = vector.broadcast %cst_141 : f32 to vector<8x128xf32>
    %382 = arith.subf %381, %380 : vector<8x128xf32>
    %383 = math.exp %382 : vector<8x128xf32>
    %cst_142 = arith.constant 1.000000e+00 : f32
    %384 = vector.broadcast %cst_142 : f32 to vector<8x128xf32>
    %385 = arith.addf %384, %383 : vector<8x128xf32>
    %cst_143 = arith.constant 1.000000e+00 : f32
    %386 = vector.broadcast %cst_143 : f32 to vector<8x128xf32>
    %387 = arith.divf %386, %385 : vector<8x128xf32>
    %388 = vector.extract_strided_slice %365 {offsets = [0, 256], sizes = [8, 128], strides = [1, 1]} : vector<8x384xf32> to vector<8x128xf32>
    %389 = vector.extract_strided_slice %366 {offsets = [0, 256], sizes = [8, 128], strides = [1, 1]} : vector<8x384xf32> to vector<8x128xf32>
    %390 = vector.broadcast %18 : vector<1x128xf32> to vector<8x128xf32>
    %391 = arith.addf %389, %390 : vector<8x128xf32>
    %392 = arith.mulf %377, %391 : vector<8x128xf32>
    %393 = arith.addf %388, %392 : vector<8x128xf32>
    %394 = math.tanh %393 : vector<8x128xf32>
    %cst_144 = arith.constant 1.000000e+00 : f32
    %395 = vector.broadcast %cst_144 : f32 to vector<8x128xf32>
    %396 = arith.subf %395, %387 : vector<8x128xf32>
    %397 = arith.mulf %396, %394 : vector<8x128xf32>
    %398 = arith.mulf %387, %367 : vector<8x128xf32>
    %399 = arith.addf %397, %398 : vector<8x128xf32>
    %c7_i32_145 = arith.constant 7 : i32
    %400 = arith.subi %c7_i32_145, %c4_i32 : i32
    %c8_i32_146 = arith.constant 8 : i32
    %401 = arith.muli %400, %c8_i32_146 : i32
    %402 = tpu.assume_multiple %401, 8 : i32
    %403 = arith.index_cast %402 : i32 to index
    %c0_147 = arith.constant 0 : index
    %404 = vector.load %arg14[%403, %c0_147] : memref<64x384xf32, #tpu.memory_space<vmem>>, vector<8x384xf32>
    %405 = vector.extract_strided_slice %361 {offsets = [8, 384], sizes = [8, 384], strides = [1, 1]} : vector<16x768xf32> to vector<8x384xf32>
    %406 = vector.extract_strided_slice %360 {offsets = [8, 0], sizes = [8, 128], strides = [1, 1]} : vector<16x128xf32> to vector<8x128xf32>
    %407 = vector.extract_strided_slice %404 {offsets = [0, 0], sizes = [8, 128], strides = [1, 1]} : vector<8x384xf32> to vector<8x128xf32>
    %408 = vector.extract_strided_slice %405 {offsets = [0, 0], sizes = [8, 128], strides = [1, 1]} : vector<8x384xf32> to vector<8x128xf32>
    %409 = arith.addf %407, %408 : vector<8x128xf32>
    %cst_148 = arith.constant 0.000000e+00 : f32
    %410 = vector.broadcast %cst_148 : f32 to vector<8x128xf32>
    %411 = arith.subf %410, %409 : vector<8x128xf32>
    %412 = math.exp %411 : vector<8x128xf32>
    %cst_149 = arith.constant 1.000000e+00 : f32
    %413 = vector.broadcast %cst_149 : f32 to vector<8x128xf32>
    %414 = arith.addf %413, %412 : vector<8x128xf32>
    %cst_150 = arith.constant 1.000000e+00 : f32
    %415 = vector.broadcast %cst_150 : f32 to vector<8x128xf32>
    %416 = arith.divf %415, %414 : vector<8x128xf32>
    %417 = vector.extract_strided_slice %404 {offsets = [0, 128], sizes = [8, 128], strides = [1, 1]} : vector<8x384xf32> to vector<8x128xf32>
    %418 = vector.extract_strided_slice %405 {offsets = [0, 128], sizes = [8, 128], strides = [1, 1]} : vector<8x384xf32> to vector<8x128xf32>
    %419 = arith.addf %417, %418 : vector<8x128xf32>
    %cst_151 = arith.constant 0.000000e+00 : f32
    %420 = vector.broadcast %cst_151 : f32 to vector<8x128xf32>
    %421 = arith.subf %420, %419 : vector<8x128xf32>
    %422 = math.exp %421 : vector<8x128xf32>
    %cst_152 = arith.constant 1.000000e+00 : f32
    %423 = vector.broadcast %cst_152 : f32 to vector<8x128xf32>
    %424 = arith.addf %423, %422 : vector<8x128xf32>
    %cst_153 = arith.constant 1.000000e+00 : f32
    %425 = vector.broadcast %cst_153 : f32 to vector<8x128xf32>
    %426 = arith.divf %425, %424 : vector<8x128xf32>
    %427 = vector.extract_strided_slice %404 {offsets = [0, 256], sizes = [8, 128], strides = [1, 1]} : vector<8x384xf32> to vector<8x128xf32>
    %428 = vector.extract_strided_slice %405 {offsets = [0, 256], sizes = [8, 128], strides = [1, 1]} : vector<8x384xf32> to vector<8x128xf32>
    %429 = vector.broadcast %19 : vector<1x128xf32> to vector<8x128xf32>
    %430 = arith.addf %428, %429 : vector<8x128xf32>
    %431 = arith.mulf %416, %430 : vector<8x128xf32>
    %432 = arith.addf %427, %431 : vector<8x128xf32>
    %433 = math.tanh %432 : vector<8x128xf32>
    %cst_154 = arith.constant 1.000000e+00 : f32
    %434 = vector.broadcast %cst_154 : f32 to vector<8x128xf32>
    %435 = arith.subf %434, %426 : vector<8x128xf32>
    %436 = arith.mulf %435, %433 : vector<8x128xf32>
    %437 = arith.mulf %426, %406 : vector<8x128xf32>
    %438 = arith.addf %436, %437 : vector<8x128xf32>
    %c0_155 = arith.constant 0 : index
    %c0_156 = arith.constant 0 : index
    %439 = vector.load %arg12[%c0_155, %c0_156] : memref<16x128xf32, #tpu.memory_space<vmem>>, vector<8x128xf32>
    tpu.vector_store %arg12[%c0_155, %c0_156], %399 {strides = array<i32>} : memref<16x128xf32, #tpu.memory_space<vmem>>, vector<8x128xf32>,
    %c8_157 = arith.constant 8 : index
    %c0_158 = arith.constant 0 : index
    %440 = vector.load %arg12[%c8_157, %c0_158] : memref<16x128xf32, #tpu.memory_space<vmem>>, vector<8x128xf32>
    tpu.vector_store %arg12[%c8_157, %c0_158], %438 {strides = array<i32>} : memref<16x128xf32, #tpu.memory_space<vmem>>, vector<8x128xf32>,
    %441 = arith.index_cast %363 : i32 to index
    %c0_159 = arith.constant 0 : index
    %442 = vector.load %arg10[%441, %c0_159] : memref<64x128xf32, #tpu.memory_space<vmem>>, vector<8x128xf32>
    tpu.vector_store %arg10[%441, %c0_159], %399 {strides = array<i32>} : memref<64x128xf32, #tpu.memory_space<vmem>>, vector<8x128xf32>,
    %443 = arith.index_cast %402 : i32 to index
    %c0_160 = arith.constant 0 : index
    %444 = vector.load %arg11[%443, %c0_160] : memref<64x128xf32, #tpu.memory_space<vmem>>, vector<8x128xf32>
    tpu.vector_store %arg11[%443, %c0_160], %438 {strides = array<i32>} : memref<64x128xf32, #tpu.memory_space<vmem>>, vector<8x128xf32>,
    %c5_i32 = arith.constant 5 : i32
    %c0_161 = arith.constant 0 : index
    %c0_162 = arith.constant 0 : index
    %445 = vector.load %arg12[%c0_161, %c0_162] : memref<16x128xf32, #tpu.memory_space<vmem>>, vector<16x128xf32>
    %cst_163 = arith.constant dense<0.000000e+00> : vector<16x768xf32>
    %446 = tpu.matmul %445, %17, %cst_163 {dimension_numbers = #tpu.dot_dimension_numbers<[1], [0], [0], [1], [0, 0, 1, 1], [], []>} : vector<16x128xf32>, vector<128x768xf32>, vector<16x768xf32> -> vector<16x768xf32>
    %c8_i32_164 = arith.constant 8 : i32
    %447 = arith.muli %c5_i32, %c8_i32_164 : i32
    %448 = tpu.assume_multiple %447, 8 : i32
    %449 = arith.index_cast %448 : i32 to index
    %c0_165 = arith.constant 0 : index
    %450 = vector.load %arg13[%449, %c0_165] : memref<64x384xf32, #tpu.memory_space<vmem>>, vector<8x384xf32>
    %451 = vector.extract_strided_slice %446 {offsets = [0, 0], sizes = [8, 384], strides = [1, 1]} : vector<16x768xf32> to vector<8x384xf32>
    %452 = vector.extract_strided_slice %445 {offsets = [0, 0], sizes = [8, 128], strides = [1, 1]} : vector<16x128xf32> to vector<8x128xf32>
    %453 = vector.extract_strided_slice %450 {offsets = [0, 0], sizes = [8, 128], strides = [1, 1]} : vector<8x384xf32> to vector<8x128xf32>
    %454 = vector.extract_strided_slice %451 {offsets = [0, 0], sizes = [8, 128], strides = [1, 1]} : vector<8x384xf32> to vector<8x128xf32>
    %455 = arith.addf %453, %454 : vector<8x128xf32>
    %cst_166 = arith.constant 0.000000e+00 : f32
    %456 = vector.broadcast %cst_166 : f32 to vector<8x128xf32>
    %457 = arith.subf %456, %455 : vector<8x128xf32>
    %458 = math.exp %457 : vector<8x128xf32>
    %cst_167 = arith.constant 1.000000e+00 : f32
    %459 = vector.broadcast %cst_167 : f32 to vector<8x128xf32>
    %460 = arith.addf %459, %458 : vector<8x128xf32>
    %cst_168 = arith.constant 1.000000e+00 : f32
    %461 = vector.broadcast %cst_168 : f32 to vector<8x128xf32>
    %462 = arith.divf %461, %460 : vector<8x128xf32>
    %463 = vector.extract_strided_slice %450 {offsets = [0, 128], sizes = [8, 128], strides = [1, 1]} : vector<8x384xf32> to vector<8x128xf32>
    %464 = vector.extract_strided_slice %451 {offsets = [0, 128], sizes = [8, 128], strides = [1, 1]} : vector<8x384xf32> to vector<8x128xf32>
    %465 = arith.addf %463, %464 : vector<8x128xf32>
    %cst_169 = arith.constant 0.000000e+00 : f32
    %466 = vector.broadcast %cst_169 : f32 to vector<8x128xf32>
    %467 = arith.subf %466, %465 : vector<8x128xf32>
    %468 = math.exp %467 : vector<8x128xf32>
    %cst_170 = arith.constant 1.000000e+00 : f32
    %469 = vector.broadcast %cst_170 : f32 to vector<8x128xf32>
    %470 = arith.addf %469, %468 : vector<8x128xf32>
    %cst_171 = arith.constant 1.000000e+00 : f32
    %471 = vector.broadcast %cst_171 : f32 to vector<8x128xf32>
    %472 = arith.divf %471, %470 : vector<8x128xf32>
    %473 = vector.extract_strided_slice %450 {offsets = [0, 256], sizes = [8, 128], strides = [1, 1]} : vector<8x384xf32> to vector<8x128xf32>
    %474 = vector.extract_strided_slice %451 {offsets = [0, 256], sizes = [8, 128], strides = [1, 1]} : vector<8x384xf32> to vector<8x128xf32>
    %475 = vector.broadcast %18 : vector<1x128xf32> to vector<8x128xf32>
    %476 = arith.addf %474, %475 : vector<8x128xf32>
    %477 = arith.mulf %462, %476 : vector<8x128xf32>
    %478 = arith.addf %473, %477 : vector<8x128xf32>
    %479 = math.tanh %478 : vector<8x128xf32>
    %cst_172 = arith.constant 1.000000e+00 : f32
    %480 = vector.broadcast %cst_172 : f32 to vector<8x128xf32>
    %481 = arith.subf %480, %472 : vector<8x128xf32>
    %482 = arith.mulf %481, %479 : vector<8x128xf32>
    %483 = arith.mulf %472, %452 : vector<8x128xf32>
    %484 = arith.addf %482, %483 : vector<8x128xf32>
    %c7_i32_173 = arith.constant 7 : i32
    %485 = arith.subi %c7_i32_173, %c5_i32 : i32
    %c8_i32_174 = arith.constant 8 : i32
    %486 = arith.muli %485, %c8_i32_174 : i32
    %487 = tpu.assume_multiple %486, 8 : i32
    %488 = arith.index_cast %487 : i32 to index
    %c0_175 = arith.constant 0 : index
    %489 = vector.load %arg14[%488, %c0_175] : memref<64x384xf32, #tpu.memory_space<vmem>>, vector<8x384xf32>
    %490 = vector.extract_strided_slice %446 {offsets = [8, 384], sizes = [8, 384], strides = [1, 1]} : vector<16x768xf32> to vector<8x384xf32>
    %491 = vector.extract_strided_slice %445 {offsets = [8, 0], sizes = [8, 128], strides = [1, 1]} : vector<16x128xf32> to vector<8x128xf32>
    %492 = vector.extract_strided_slice %489 {offsets = [0, 0], sizes = [8, 128], strides = [1, 1]} : vector<8x384xf32> to vector<8x128xf32>
    %493 = vector.extract_strided_slice %490 {offsets = [0, 0], sizes = [8, 128], strides = [1, 1]} : vector<8x384xf32> to vector<8x128xf32>
    %494 = arith.addf %492, %493 : vector<8x128xf32>
    %cst_176 = arith.constant 0.000000e+00 : f32
    %495 = vector.broadcast %cst_176 : f32 to vector<8x128xf32>
    %496 = arith.subf %495, %494 : vector<8x128xf32>
    %497 = math.exp %496 : vector<8x128xf32>
    %cst_177 = arith.constant 1.000000e+00 : f32
    %498 = vector.broadcast %cst_177 : f32 to vector<8x128xf32>
    %499 = arith.addf %498, %497 : vector<8x128xf32>
    %cst_178 = arith.constant 1.000000e+00 : f32
    %500 = vector.broadcast %cst_178 : f32 to vector<8x128xf32>
    %501 = arith.divf %500, %499 : vector<8x128xf32>
    %502 = vector.extract_strided_slice %489 {offsets = [0, 128], sizes = [8, 128], strides = [1, 1]} : vector<8x384xf32> to vector<8x128xf32>
    %503 = vector.extract_strided_slice %490 {offsets = [0, 128], sizes = [8, 128], strides = [1, 1]} : vector<8x384xf32> to vector<8x128xf32>
    %504 = arith.addf %502, %503 : vector<8x128xf32>
    %cst_179 = arith.constant 0.000000e+00 : f32
    %505 = vector.broadcast %cst_179 : f32 to vector<8x128xf32>
    %506 = arith.subf %505, %504 : vector<8x128xf32>
    %507 = math.exp %506 : vector<8x128xf32>
    %cst_180 = arith.constant 1.000000e+00 : f32
    %508 = vector.broadcast %cst_180 : f32 to vector<8x128xf32>
    %509 = arith.addf %508, %507 : vector<8x128xf32>
    %cst_181 = arith.constant 1.000000e+00 : f32
    %510 = vector.broadcast %cst_181 : f32 to vector<8x128xf32>
    %511 = arith.divf %510, %509 : vector<8x128xf32>
    %512 = vector.extract_strided_slice %489 {offsets = [0, 256], sizes = [8, 128], strides = [1, 1]} : vector<8x384xf32> to vector<8x128xf32>
    %513 = vector.extract_strided_slice %490 {offsets = [0, 256], sizes = [8, 128], strides = [1, 1]} : vector<8x384xf32> to vector<8x128xf32>
    %514 = vector.broadcast %19 : vector<1x128xf32> to vector<8x128xf32>
    %515 = arith.addf %513, %514 : vector<8x128xf32>
    %516 = arith.mulf %501, %515 : vector<8x128xf32>
    %517 = arith.addf %512, %516 : vector<8x128xf32>
    %518 = math.tanh %517 : vector<8x128xf32>
    %cst_182 = arith.constant 1.000000e+00 : f32
    %519 = vector.broadcast %cst_182 : f32 to vector<8x128xf32>
    %520 = arith.subf %519, %511 : vector<8x128xf32>
    %521 = arith.mulf %520, %518 : vector<8x128xf32>
    %522 = arith.mulf %511, %491 : vector<8x128xf32>
    %523 = arith.addf %521, %522 : vector<8x128xf32>
    %c0_183 = arith.constant 0 : index
    %c0_184 = arith.constant 0 : index
    %524 = vector.load %arg12[%c0_183, %c0_184] : memref<16x128xf32, #tpu.memory_space<vmem>>, vector<8x128xf32>
    tpu.vector_store %arg12[%c0_183, %c0_184], %484 {strides = array<i32>} : memref<16x128xf32, #tpu.memory_space<vmem>>, vector<8x128xf32>,
    %c8_185 = arith.constant 8 : index
    %c0_186 = arith.constant 0 : index
    %525 = vector.load %arg12[%c8_185, %c0_186] : memref<16x128xf32, #tpu.memory_space<vmem>>, vector<8x128xf32>
    tpu.vector_store %arg12[%c8_185, %c0_186], %523 {strides = array<i32>} : memref<16x128xf32, #tpu.memory_space<vmem>>, vector<8x128xf32>,
    %526 = arith.index_cast %448 : i32 to index
    %c0_187 = arith.constant 0 : index
    %527 = vector.load %arg10[%526, %c0_187] : memref<64x128xf32, #tpu.memory_space<vmem>>, vector<8x128xf32>
    tpu.vector_store %arg10[%526, %c0_187], %484 {strides = array<i32>} : memref<64x128xf32, #tpu.memory_space<vmem>>, vector<8x128xf32>,
    %528 = arith.index_cast %487 : i32 to index
    %c0_188 = arith.constant 0 : index
    %529 = vector.load %arg11[%528, %c0_188] : memref<64x128xf32, #tpu.memory_space<vmem>>, vector<8x128xf32>
    tpu.vector_store %arg11[%528, %c0_188], %523 {strides = array<i32>} : memref<64x128xf32, #tpu.memory_space<vmem>>, vector<8x128xf32>,
    %c6_i32 = arith.constant 6 : i32
    %c0_189 = arith.constant 0 : index
    %c0_190 = arith.constant 0 : index
    %530 = vector.load %arg12[%c0_189, %c0_190] : memref<16x128xf32, #tpu.memory_space<vmem>>, vector<16x128xf32>
    %cst_191 = arith.constant dense<0.000000e+00> : vector<16x768xf32>
    %531 = tpu.matmul %530, %17, %cst_191 {dimension_numbers = #tpu.dot_dimension_numbers<[1], [0], [0], [1], [0, 0, 1, 1], [], []>} : vector<16x128xf32>, vector<128x768xf32>, vector<16x768xf32> -> vector<16x768xf32>
    %c8_i32_192 = arith.constant 8 : i32
    %532 = arith.muli %c6_i32, %c8_i32_192 : i32
    %533 = tpu.assume_multiple %532, 8 : i32
    %534 = arith.index_cast %533 : i32 to index
    %c0_193 = arith.constant 0 : index
    %535 = vector.load %arg13[%534, %c0_193] : memref<64x384xf32, #tpu.memory_space<vmem>>, vector<8x384xf32>
    %536 = vector.extract_strided_slice %531 {offsets = [0, 0], sizes = [8, 384], strides = [1, 1]} : vector<16x768xf32> to vector<8x384xf32>
    %537 = vector.extract_strided_slice %530 {offsets = [0, 0], sizes = [8, 128], strides = [1, 1]} : vector<16x128xf32> to vector<8x128xf32>
    %538 = vector.extract_strided_slice %535 {offsets = [0, 0], sizes = [8, 128], strides = [1, 1]} : vector<8x384xf32> to vector<8x128xf32>
    %539 = vector.extract_strided_slice %536 {offsets = [0, 0], sizes = [8, 128], strides = [1, 1]} : vector<8x384xf32> to vector<8x128xf32>
    %540 = arith.addf %538, %539 : vector<8x128xf32>
    %cst_194 = arith.constant 0.000000e+00 : f32
    %541 = vector.broadcast %cst_194 : f32 to vector<8x128xf32>
    %542 = arith.subf %541, %540 : vector<8x128xf32>
    %543 = math.exp %542 : vector<8x128xf32>
    %cst_195 = arith.constant 1.000000e+00 : f32
    %544 = vector.broadcast %cst_195 : f32 to vector<8x128xf32>
    %545 = arith.addf %544, %543 : vector<8x128xf32>
    %cst_196 = arith.constant 1.000000e+00 : f32
    %546 = vector.broadcast %cst_196 : f32 to vector<8x128xf32>
    %547 = arith.divf %546, %545 : vector<8x128xf32>
    %548 = vector.extract_strided_slice %535 {offsets = [0, 128], sizes = [8, 128], strides = [1, 1]} : vector<8x384xf32> to vector<8x128xf32>
    %549 = vector.extract_strided_slice %536 {offsets = [0, 128], sizes = [8, 128], strides = [1, 1]} : vector<8x384xf32> to vector<8x128xf32>
    %550 = arith.addf %548, %549 : vector<8x128xf32>
    %cst_197 = arith.constant 0.000000e+00 : f32
    %551 = vector.broadcast %cst_197 : f32 to vector<8x128xf32>
    %552 = arith.subf %551, %550 : vector<8x128xf32>
    %553 = math.exp %552 : vector<8x128xf32>
    %cst_198 = arith.constant 1.000000e+00 : f32
    %554 = vector.broadcast %cst_198 : f32 to vector<8x128xf32>
    %555 = arith.addf %554, %553 : vector<8x128xf32>
    %cst_199 = arith.constant 1.000000e+00 : f32
    %556 = vector.broadcast %cst_199 : f32 to vector<8x128xf32>
    %557 = arith.divf %556, %555 : vector<8x128xf32>
    %558 = vector.extract_strided_slice %535 {offsets = [0, 256], sizes = [8, 128], strides = [1, 1]} : vector<8x384xf32> to vector<8x128xf32>
    %559 = vector.extract_strided_slice %536 {offsets = [0, 256], sizes = [8, 128], strides = [1, 1]} : vector<8x384xf32> to vector<8x128xf32>
    %560 = vector.broadcast %18 : vector<1x128xf32> to vector<8x128xf32>
    %561 = arith.addf %559, %560 : vector<8x128xf32>
    %562 = arith.mulf %547, %561 : vector<8x128xf32>
    %563 = arith.addf %558, %562 : vector<8x128xf32>
    %564 = math.tanh %563 : vector<8x128xf32>
    %cst_200 = arith.constant 1.000000e+00 : f32
    %565 = vector.broadcast %cst_200 : f32 to vector<8x128xf32>
    %566 = arith.subf %565, %557 : vector<8x128xf32>
    %567 = arith.mulf %566, %564 : vector<8x128xf32>
    %568 = arith.mulf %557, %537 : vector<8x128xf32>
    %569 = arith.addf %567, %568 : vector<8x128xf32>
    %c7_i32_201 = arith.constant 7 : i32
    %570 = arith.subi %c7_i32_201, %c6_i32 : i32
    %c8_i32_202 = arith.constant 8 : i32
    %571 = arith.muli %570, %c8_i32_202 : i32
    %572 = tpu.assume_multiple %571, 8 : i32
    %573 = arith.index_cast %572 : i32 to index
    %c0_203 = arith.constant 0 : index
    %574 = vector.load %arg14[%573, %c0_203] : memref<64x384xf32, #tpu.memory_space<vmem>>, vector<8x384xf32>
    %575 = vector.extract_strided_slice %531 {offsets = [8, 384], sizes = [8, 384], strides = [1, 1]} : vector<16x768xf32> to vector<8x384xf32>
    %576 = vector.extract_strided_slice %530 {offsets = [8, 0], sizes = [8, 128], strides = [1, 1]} : vector<16x128xf32> to vector<8x128xf32>
    %577 = vector.extract_strided_slice %574 {offsets = [0, 0], sizes = [8, 128], strides = [1, 1]} : vector<8x384xf32> to vector<8x128xf32>
    %578 = vector.extract_strided_slice %575 {offsets = [0, 0], sizes = [8, 128], strides = [1, 1]} : vector<8x384xf32> to vector<8x128xf32>
    %579 = arith.addf %577, %578 : vector<8x128xf32>
    %cst_204 = arith.constant 0.000000e+00 : f32
    %580 = vector.broadcast %cst_204 : f32 to vector<8x128xf32>
    %581 = arith.subf %580, %579 : vector<8x128xf32>
    %582 = math.exp %581 : vector<8x128xf32>
    %cst_205 = arith.constant 1.000000e+00 : f32
    %583 = vector.broadcast %cst_205 : f32 to vector<8x128xf32>
    %584 = arith.addf %583, %582 : vector<8x128xf32>
    %cst_206 = arith.constant 1.000000e+00 : f32
    %585 = vector.broadcast %cst_206 : f32 to vector<8x128xf32>
    %586 = arith.divf %585, %584 : vector<8x128xf32>
    %587 = vector.extract_strided_slice %574 {offsets = [0, 128], sizes = [8, 128], strides = [1, 1]} : vector<8x384xf32> to vector<8x128xf32>
    %588 = vector.extract_strided_slice %575 {offsets = [0, 128], sizes = [8, 128], strides = [1, 1]} : vector<8x384xf32> to vector<8x128xf32>
    %589 = arith.addf %587, %588 : vector<8x128xf32>
    %cst_207 = arith.constant 0.000000e+00 : f32
    %590 = vector.broadcast %cst_207 : f32 to vector<8x128xf32>
    %591 = arith.subf %590, %589 : vector<8x128xf32>
    %592 = math.exp %591 : vector<8x128xf32>
    %cst_208 = arith.constant 1.000000e+00 : f32
    %593 = vector.broadcast %cst_208 : f32 to vector<8x128xf32>
    %594 = arith.addf %593, %592 : vector<8x128xf32>
    %cst_209 = arith.constant 1.000000e+00 : f32
    %595 = vector.broadcast %cst_209 : f32 to vector<8x128xf32>
    %596 = arith.divf %595, %594 : vector<8x128xf32>
    %597 = vector.extract_strided_slice %574 {offsets = [0, 256], sizes = [8, 128], strides = [1, 1]} : vector<8x384xf32> to vector<8x128xf32>
    %598 = vector.extract_strided_slice %575 {offsets = [0, 256], sizes = [8, 128], strides = [1, 1]} : vector<8x384xf32> to vector<8x128xf32>
    %599 = vector.broadcast %19 : vector<1x128xf32> to vector<8x128xf32>
    %600 = arith.addf %598, %599 : vector<8x128xf32>
    %601 = arith.mulf %586, %600 : vector<8x128xf32>
    %602 = arith.addf %597, %601 : vector<8x128xf32>
    %603 = math.tanh %602 : vector<8x128xf32>
    %cst_210 = arith.constant 1.000000e+00 : f32
    %604 = vector.broadcast %cst_210 : f32 to vector<8x128xf32>
    %605 = arith.subf %604, %596 : vector<8x128xf32>
    %606 = arith.mulf %605, %603 : vector<8x128xf32>
    %607 = arith.mulf %596, %576 : vector<8x128xf32>
    %608 = arith.addf %606, %607 : vector<8x128xf32>
    %c0_211 = arith.constant 0 : index
    %c0_212 = arith.constant 0 : index
    %609 = vector.load %arg12[%c0_211, %c0_212] : memref<16x128xf32, #tpu.memory_space<vmem>>, vector<8x128xf32>
    tpu.vector_store %arg12[%c0_211, %c0_212], %569 {strides = array<i32>} : memref<16x128xf32, #tpu.memory_space<vmem>>, vector<8x128xf32>,
    %c8_213 = arith.constant 8 : index
    %c0_214 = arith.constant 0 : index
    %610 = vector.load %arg12[%c8_213, %c0_214] : memref<16x128xf32, #tpu.memory_space<vmem>>, vector<8x128xf32>
    tpu.vector_store %arg12[%c8_213, %c0_214], %608 {strides = array<i32>} : memref<16x128xf32, #tpu.memory_space<vmem>>, vector<8x128xf32>,
    %611 = arith.index_cast %533 : i32 to index
    %c0_215 = arith.constant 0 : index
    %612 = vector.load %arg10[%611, %c0_215] : memref<64x128xf32, #tpu.memory_space<vmem>>, vector<8x128xf32>
    tpu.vector_store %arg10[%611, %c0_215], %569 {strides = array<i32>} : memref<64x128xf32, #tpu.memory_space<vmem>>, vector<8x128xf32>,
    %613 = arith.index_cast %572 : i32 to index
    %c0_216 = arith.constant 0 : index
    %614 = vector.load %arg11[%613, %c0_216] : memref<64x128xf32, #tpu.memory_space<vmem>>, vector<8x128xf32>
    tpu.vector_store %arg11[%613, %c0_216], %608 {strides = array<i32>} : memref<64x128xf32, #tpu.memory_space<vmem>>, vector<8x128xf32>,
    %c7_i32_217 = arith.constant 7 : i32
    %c0_218 = arith.constant 0 : index
    %c0_219 = arith.constant 0 : index
    %615 = vector.load %arg12[%c0_218, %c0_219] : memref<16x128xf32, #tpu.memory_space<vmem>>, vector<16x128xf32>
    %cst_220 = arith.constant dense<0.000000e+00> : vector<16x768xf32>
    %616 = tpu.matmul %615, %17, %cst_220 {dimension_numbers = #tpu.dot_dimension_numbers<[1], [0], [0], [1], [0, 0, 1, 1], [], []>} : vector<16x128xf32>, vector<128x768xf32>, vector<16x768xf32> -> vector<16x768xf32>
    %c8_i32_221 = arith.constant 8 : i32
    %617 = arith.muli %c7_i32_217, %c8_i32_221 : i32
    %618 = tpu.assume_multiple %617, 8 : i32
    %619 = arith.index_cast %618 : i32 to index
    %c0_222 = arith.constant 0 : index
    %620 = vector.load %arg13[%619, %c0_222] : memref<64x384xf32, #tpu.memory_space<vmem>>, vector<8x384xf32>
    %621 = vector.extract_strided_slice %616 {offsets = [0, 0], sizes = [8, 384], strides = [1, 1]} : vector<16x768xf32> to vector<8x384xf32>
    %622 = vector.extract_strided_slice %615 {offsets = [0, 0], sizes = [8, 128], strides = [1, 1]} : vector<16x128xf32> to vector<8x128xf32>
    %623 = vector.extract_strided_slice %620 {offsets = [0, 0], sizes = [8, 128], strides = [1, 1]} : vector<8x384xf32> to vector<8x128xf32>
    %624 = vector.extract_strided_slice %621 {offsets = [0, 0], sizes = [8, 128], strides = [1, 1]} : vector<8x384xf32> to vector<8x128xf32>
    %625 = arith.addf %623, %624 : vector<8x128xf32>
    %cst_223 = arith.constant 0.000000e+00 : f32
    %626 = vector.broadcast %cst_223 : f32 to vector<8x128xf32>
    %627 = arith.subf %626, %625 : vector<8x128xf32>
    %628 = math.exp %627 : vector<8x128xf32>
    %cst_224 = arith.constant 1.000000e+00 : f32
    %629 = vector.broadcast %cst_224 : f32 to vector<8x128xf32>
    %630 = arith.addf %629, %628 : vector<8x128xf32>
    %cst_225 = arith.constant 1.000000e+00 : f32
    %631 = vector.broadcast %cst_225 : f32 to vector<8x128xf32>
    %632 = arith.divf %631, %630 : vector<8x128xf32>
    %633 = vector.extract_strided_slice %620 {offsets = [0, 128], sizes = [8, 128], strides = [1, 1]} : vector<8x384xf32> to vector<8x128xf32>
    %634 = vector.extract_strided_slice %621 {offsets = [0, 128], sizes = [8, 128], strides = [1, 1]} : vector<8x384xf32> to vector<8x128xf32>
    %635 = arith.addf %633, %634 : vector<8x128xf32>
    %cst_226 = arith.constant 0.000000e+00 : f32
    %636 = vector.broadcast %cst_226 : f32 to vector<8x128xf32>
    %637 = arith.subf %636, %635 : vector<8x128xf32>
    %638 = math.exp %637 : vector<8x128xf32>
    %cst_227 = arith.constant 1.000000e+00 : f32
    %639 = vector.broadcast %cst_227 : f32 to vector<8x128xf32>
    %640 = arith.addf %639, %638 : vector<8x128xf32>
    %cst_228 = arith.constant 1.000000e+00 : f32
    %641 = vector.broadcast %cst_228 : f32 to vector<8x128xf32>
    %642 = arith.divf %641, %640 : vector<8x128xf32>
    %643 = vector.extract_strided_slice %620 {offsets = [0, 256], sizes = [8, 128], strides = [1, 1]} : vector<8x384xf32> to vector<8x128xf32>
    %644 = vector.extract_strided_slice %621 {offsets = [0, 256], sizes = [8, 128], strides = [1, 1]} : vector<8x384xf32> to vector<8x128xf32>
    %645 = vector.broadcast %18 : vector<1x128xf32> to vector<8x128xf32>
    %646 = arith.addf %644, %645 : vector<8x128xf32>
    %647 = arith.mulf %632, %646 : vector<8x128xf32>
    %648 = arith.addf %643, %647 : vector<8x128xf32>
    %649 = math.tanh %648 : vector<8x128xf32>
    %cst_229 = arith.constant 1.000000e+00 : f32
    %650 = vector.broadcast %cst_229 : f32 to vector<8x128xf32>
    %651 = arith.subf %650, %642 : vector<8x128xf32>
    %652 = arith.mulf %651, %649 : vector<8x128xf32>
    %653 = arith.mulf %642, %622 : vector<8x128xf32>
    %654 = arith.addf %652, %653 : vector<8x128xf32>
    %c7_i32_230 = arith.constant 7 : i32
    %655 = arith.subi %c7_i32_230, %c7_i32_217 : i32
    %c8_i32_231 = arith.constant 8 : i32
    %656 = arith.muli %655, %c8_i32_231 : i32
    %657 = tpu.assume_multiple %656, 8 : i32
    %658 = arith.index_cast %657 : i32 to index
    %c0_232 = arith.constant 0 : index
    %659 = vector.load %arg14[%658, %c0_232] : memref<64x384xf32, #tpu.memory_space<vmem>>, vector<8x384xf32>
    %660 = vector.extract_strided_slice %616 {offsets = [8, 384], sizes = [8, 384], strides = [1, 1]} : vector<16x768xf32> to vector<8x384xf32>
    %661 = vector.extract_strided_slice %615 {offsets = [8, 0], sizes = [8, 128], strides = [1, 1]} : vector<16x128xf32> to vector<8x128xf32>
    %662 = vector.extract_strided_slice %659 {offsets = [0, 0], sizes = [8, 128], strides = [1, 1]} : vector<8x384xf32> to vector<8x128xf32>
    %663 = vector.extract_strided_slice %660 {offsets = [0, 0], sizes = [8, 128], strides = [1, 1]} : vector<8x384xf32> to vector<8x128xf32>
    %664 = arith.addf %662, %663 : vector<8x128xf32>
    %cst_233 = arith.constant 0.000000e+00 : f32
    %665 = vector.broadcast %cst_233 : f32 to vector<8x128xf32>
    %666 = arith.subf %665, %664 : vector<8x128xf32>
    %667 = math.exp %666 : vector<8x128xf32>
    %cst_234 = arith.constant 1.000000e+00 : f32
    %668 = vector.broadcast %cst_234 : f32 to vector<8x128xf32>
    %669 = arith.addf %668, %667 : vector<8x128xf32>
    %cst_235 = arith.constant 1.000000e+00 : f32
    %670 = vector.broadcast %cst_235 : f32 to vector<8x128xf32>
    %671 = arith.divf %670, %669 : vector<8x128xf32>
    %672 = vector.extract_strided_slice %659 {offsets = [0, 128], sizes = [8, 128], strides = [1, 1]} : vector<8x384xf32> to vector<8x128xf32>
    %673 = vector.extract_strided_slice %660 {offsets = [0, 128], sizes = [8, 128], strides = [1, 1]} : vector<8x384xf32> to vector<8x128xf32>
    %674 = arith.addf %672, %673 : vector<8x128xf32>
    %cst_236 = arith.constant 0.000000e+00 : f32
    %675 = vector.broadcast %cst_236 : f32 to vector<8x128xf32>
    %676 = arith.subf %675, %674 : vector<8x128xf32>
    %677 = math.exp %676 : vector<8x128xf32>
    %cst_237 = arith.constant 1.000000e+00 : f32
    %678 = vector.broadcast %cst_237 : f32 to vector<8x128xf32>
    %679 = arith.addf %678, %677 : vector<8x128xf32>
    %cst_238 = arith.constant 1.000000e+00 : f32
    %680 = vector.broadcast %cst_238 : f32 to vector<8x128xf32>
    %681 = arith.divf %680, %679 : vector<8x128xf32>
    %682 = vector.extract_strided_slice %659 {offsets = [0, 256], sizes = [8, 128], strides = [1, 1]} : vector<8x384xf32> to vector<8x128xf32>
    %683 = vector.extract_strided_slice %660 {offsets = [0, 256], sizes = [8, 128], strides = [1, 1]} : vector<8x384xf32> to vector<8x128xf32>
    %684 = vector.broadcast %19 : vector<1x128xf32> to vector<8x128xf32>
    %685 = arith.addf %683, %684 : vector<8x128xf32>
    %686 = arith.mulf %671, %685 : vector<8x128xf32>
    %687 = arith.addf %682, %686 : vector<8x128xf32>
    %688 = math.tanh %687 : vector<8x128xf32>
    %cst_239 = arith.constant 1.000000e+00 : f32
    %689 = vector.broadcast %cst_239 : f32 to vector<8x128xf32>
    %690 = arith.subf %689, %681 : vector<8x128xf32>
    %691 = arith.mulf %690, %688 : vector<8x128xf32>
    %692 = arith.mulf %681, %661 : vector<8x128xf32>
    %693 = arith.addf %691, %692 : vector<8x128xf32>
    %c0_240 = arith.constant 0 : index
    %c0_241 = arith.constant 0 : index
    %694 = vector.load %arg12[%c0_240, %c0_241] : memref<16x128xf32, #tpu.memory_space<vmem>>, vector<8x128xf32>
    tpu.vector_store %arg12[%c0_240, %c0_241], %654 {strides = array<i32>} : memref<16x128xf32, #tpu.memory_space<vmem>>, vector<8x128xf32>,
    %c8_242 = arith.constant 8 : index
    %c0_243 = arith.constant 0 : index
    %695 = vector.load %arg12[%c8_242, %c0_243] : memref<16x128xf32, #tpu.memory_space<vmem>>, vector<8x128xf32>
    tpu.vector_store %arg12[%c8_242, %c0_243], %693 {strides = array<i32>} : memref<16x128xf32, #tpu.memory_space<vmem>>, vector<8x128xf32>,
    %696 = arith.index_cast %618 : i32 to index
    %c0_244 = arith.constant 0 : index
    %697 = vector.load %arg10[%696, %c0_244] : memref<64x128xf32, #tpu.memory_space<vmem>>, vector<8x128xf32>
    tpu.vector_store %arg10[%696, %c0_244], %654 {strides = array<i32>} : memref<64x128xf32, #tpu.memory_space<vmem>>, vector<8x128xf32>,
    %698 = arith.index_cast %657 : i32 to index
    %c0_245 = arith.constant 0 : index
    %699 = vector.load %arg11[%698, %c0_245] : memref<64x128xf32, #tpu.memory_space<vmem>>, vector<8x128xf32>
    tpu.vector_store %arg11[%698, %c0_245], %693 {strides = array<i32>} : memref<64x128xf32, #tpu.memory_space<vmem>>, vector<8x128xf32>,
    %c8_i32_246 = arith.constant 8 : i32
    return
  }
  func.func @transform_0(%arg0: i32) -> (i32, i32) {
    %c0_i32 = arith.constant 0 : i32
    %c0_i32_0 = arith.constant 0 : i32
    return %arg0, %c0_i32 : i32, i32
  }
  func.func @transform_1(%arg0: i32) -> (i32, i32) {
    %c0_i32 = arith.constant 0 : i32
    %0 = arith.subi %c0_i32, %arg0 : i32
    %c0_i32_0 = arith.constant 0 : i32
    %c0_i32_1 = arith.constant 0 : i32
    return %0, %c0_i32_0 : i32, i32
  }
  func.func @transform_2(%arg0: i32) -> (i32, i32) {
    %c0_i32 = arith.constant 0 : i32
    %c0_i32_0 = arith.constant 0 : i32
    %c0_i32_1 = arith.constant 0 : i32
    return %c0_i32, %c0_i32_0 : i32, i32
  }
  func.func @transform_3(%arg0: i32) -> (i32, i32) {
    %c0_i32 = arith.constant 0 : i32
    %c0_i32_0 = arith.constant 0 : i32
    %c0_i32_1 = arith.constant 0 : i32
    return %c0_i32, %c0_i32_0 : i32, i32
  }
  func.func @transform_4(%arg0: i32) -> (i32, i32) {
    %c0_i32 = arith.constant 0 : i32
    %c0_i32_0 = arith.constant 0 : i32
    %c0_i32_1 = arith.constant 0 : i32
    return %c0_i32, %c0_i32_0 : i32, i32
  }
  func.func @transform_5(%arg0: i32) -> (i32, i32) {
    %c0_i32 = arith.constant 0 : i32
    %c0_i32_0 = arith.constant 0 : i32
    %c0_i32_1 = arith.constant 0 : i32
    return %c0_i32, %c0_i32_0 : i32, i32
  }
  func.func @transform_6(%arg0: i32) -> (i32, i32) {
    %c0_i32 = arith.constant 0 : i32
    %c0_i32_0 = arith.constant 0 : i32
    %c0_i32_1 = arith.constant 0 : i32
    return %c0_i32, %c0_i32_0 : i32, i32
  }
  func.func @transform_7(%arg0: i32) -> (i32, i32) {
    %c0_i32 = arith.constant 0 : i32
    %c0_i32_0 = arith.constant 0 : i32
    %c0_i32_1 = arith.constant 0 : i32
    return %c0_i32, %c0_i32_0 : i32, i32
  }
  func.func @transform_8(%arg0: i32) -> (i32, i32) {
    %c0_i32 = arith.constant 0 : i32
    %c0_i32_0 = arith.constant 0 : i32
    %c0_i32_1 = arith.constant 0 : i32
    return %c0_i32, %c0_i32_0 : i32, i32
  }
  func.func @transform_9(%arg0: i32) -> (i32, i32) {
    %c0_i32 = arith.constant 0 : i32
    %c0_i32_0 = arith.constant 0 : i32
    return %arg0, %c0_i32 : i32, i32
  }
  func.func @transform_10(%arg0: i32) -> (i32, i32) {
    %c0_i32 = arith.constant 0 : i32
    %0 = arith.subi %c0_i32, %arg0 : i32
    %c0_i32_0 = arith.constant 0 : i32
    %c0_i32_1 = arith.constant 0 : i32
    return %0, %c0_i32_0 : i32, i32
  }
}

module attributes {stable_mosaic.version = 11 : i64} {
  func.func @kernel(%arg0: i32, %arg1: memref<64x128xf32, #tpu.memory_space<vmem>>, %arg2: memref<64x128xf32, #tpu.memory_space<vmem>>, %arg3: memref<64x128xf32, #tpu.memory_space<vmem>>, %arg4: memref<64x128xf32, #tpu.memory_space<vmem>>, %arg5: memref<256x384xf32, #tpu.memory_space<vmem>>, %arg6: memref<256x384xf32, #tpu.memory_space<vmem>>, %arg7: memref<128x768xf32, #tpu.memory_space<vmem>>, %arg8: memref<1x384xf32, #tpu.memory_space<vmem>>, %arg9: memref<1x384xf32, #tpu.memory_space<vmem>>, %arg10: memref<1x128xf32, #tpu.memory_space<vmem>>, %arg11: memref<1x128xf32, #tpu.memory_space<vmem>>, %arg12: memref<64x128xf32, #tpu.memory_space<vmem>>, %arg13: memref<64x128xf32, #tpu.memory_space<vmem>>, %arg14: memref<16x128xf32, #tpu.memory_space<vmem>>, %arg15: memref<64x384xf32, #tpu.memory_space<vmem>>, %arg16: memref<64x384xf32, #tpu.memory_space<vmem>>) attributes {dimension_semantics = [#tpu.dimension_semantics<arbitrary>], iteration_bounds = array<i64: 1>, scalar_prefetch = 0 : i64, scratch_operands = 3 : i64, tpu.core_type = #tpu.core_type<tc>, window_params = [{transform_indices = @transform_0, window_bounds = array<i64: 64, 128>}, {transform_indices = @transform_1, window_bounds = array<i64: 64, 128>}, {transform_indices = @transform_2, window_bounds = array<i64: 64, 128>}, {transform_indices = @transform_3, window_bounds = array<i64: 64, 128>}, {pipeline_mode = #tpu.pipeline_mode<synchronous>, transform_indices = @transform_4, window_bounds = array<i64: 256, 384>}, {pipeline_mode = #tpu.pipeline_mode<synchronous>, transform_indices = @transform_5, window_bounds = array<i64: 256, 384>}, {pipeline_mode = #tpu.pipeline_mode<synchronous>, transform_indices = @transform_6, window_bounds = array<i64: 128, 768>}, {pipeline_mode = #tpu.pipeline_mode<synchronous>, transform_indices = @transform_7, window_bounds = array<i64: 1, 384>}, {pipeline_mode = #tpu.pipeline_mode<synchronous>, transform_indices = @transform_8, window_bounds = array<i64: 1, 384>}, {pipeline_mode = #tpu.pipeline_mode<synchronous>, transform_indices = @transform_9, window_bounds = array<i64: 1, 128>}, {pipeline_mode = #tpu.pipeline_mode<synchronous>, transform_indices = @transform_10, window_bounds = array<i64: 1, 128>}, {transform_indices = @transform_11, window_bounds = array<i64: 64, 128>}, {transform_indices = @transform_12, window_bounds = array<i64: 64, 128>}]} {
    %c0_i32 = arith.constant 0 : i32
    %0 = arith.cmpi eq, %arg0, %c0_i32 : i32
    %1 = arith.extui %0 : i1 to i32
    %c0_i32_0 = arith.constant 0 : i32
    %2 = arith.cmpi ne, %1, %c0_i32_0 : i32
    scf.if %2 {
      %cst_256 = arith.constant 0.000000e+00 : f32
      %708 = vector.broadcast %cst_256 : f32 to vector<16x128xf32>
      %c0_257 = arith.constant 0 : index
      %c0_258 = arith.constant 0 : index
      %709 = vector.load %arg14[%c0_257, %c0_258] : memref<16x128xf32, #tpu.memory_space<vmem>>, vector<16x128xf32>
      tpu.vector_store %arg14[%c0_257, %c0_258], %708 {strides = array<i32>} : memref<16x128xf32, #tpu.memory_space<vmem>>, vector<16x128xf32>,
    } else {
    }
    %c0 = arith.constant 0 : index
    %c0_1 = arith.constant 0 : index
    %3 = vector.load %arg1[%c0, %c0_1] : memref<64x128xf32, #tpu.memory_space<vmem>>, vector<64x128xf32>
    %c0_2 = arith.constant 0 : index
    %c0_3 = arith.constant 0 : index
    %4 = vector.load %arg5[%c0_2, %c0_3] : memref<256x384xf32, #tpu.memory_space<vmem>>, vector<128x384xf32>
    %cst = arith.constant dense<0.000000e+00> : vector<64x384xf32>
    %5 = tpu.matmul %3, %4, %cst {dimension_numbers = #tpu.dot_dimension_numbers<[1], [0], [0], [1], [0, 0, 1, 1], [], []>} : vector<64x128xf32>, vector<128x384xf32>, vector<64x384xf32> -> vector<64x384xf32>
    %c0_4 = arith.constant 0 : index
    %c0_5 = arith.constant 0 : index
    %6 = vector.load %arg2[%c0_4, %c0_5] : memref<64x128xf32, #tpu.memory_space<vmem>>, vector<64x128xf32>
    %c128 = arith.constant 128 : index
    %c0_6 = arith.constant 0 : index
    %7 = vector.load %arg5[%c128, %c0_6] : memref<256x384xf32, #tpu.memory_space<vmem>>, vector<128x384xf32>
    %cst_7 = arith.constant dense<0.000000e+00> : vector<64x384xf32>
    %8 = tpu.matmul %6, %7, %cst_7 {dimension_numbers = #tpu.dot_dimension_numbers<[1], [0], [0], [1], [0, 0, 1, 1], [], []>} : vector<64x128xf32>, vector<128x384xf32>, vector<64x384xf32> -> vector<64x384xf32>
    %9 = arith.addf %5, %8 : vector<64x384xf32>
    %c0_8 = arith.constant 0 : index
    %c0_9 = arith.constant 0 : index
    %10 = vector.load %arg8[%c0_8, %c0_9] : memref<1x384xf32, #tpu.memory_space<vmem>>, vector<1x384xf32>
    %11 = vector.broadcast %10 : vector<1x384xf32> to vector<64x384xf32>
    %12 = arith.addf %9, %11 : vector<64x384xf32>
    %c0_10 = arith.constant 0 : index
    %c0_11 = arith.constant 0 : index
    %13 = vector.load %arg15[%c0_10, %c0_11] : memref<64x384xf32, #tpu.memory_space<vmem>>, vector<64x384xf32>
    tpu.vector_store %arg15[%c0_10, %c0_11], %12 {strides = array<i32>} : memref<64x384xf32, #tpu.memory_space<vmem>>, vector<64x384xf32>,
    %c0_12 = arith.constant 0 : index
    %c0_13 = arith.constant 0 : index
    %14 = vector.load %arg3[%c0_12, %c0_13] : memref<64x128xf32, #tpu.memory_space<vmem>>, vector<64x128xf32>
    %c0_14 = arith.constant 0 : index
    %c0_15 = arith.constant 0 : index
    %15 = vector.load %arg6[%c0_14, %c0_15] : memref<256x384xf32, #tpu.memory_space<vmem>>, vector<128x384xf32>
    %cst_16 = arith.constant dense<0.000000e+00> : vector<64x384xf32>
    %16 = tpu.matmul %14, %15, %cst_16 {dimension_numbers = #tpu.dot_dimension_numbers<[1], [0], [0], [1], [0, 0, 1, 1], [], []>} : vector<64x128xf32>, vector<128x384xf32>, vector<64x384xf32> -> vector<64x384xf32>
    %c0_17 = arith.constant 0 : index
    %c0_18 = arith.constant 0 : index
    %17 = vector.load %arg4[%c0_17, %c0_18] : memref<64x128xf32, #tpu.memory_space<vmem>>, vector<64x128xf32>
    %c128_19 = arith.constant 128 : index
    %c0_20 = arith.constant 0 : index
    %18 = vector.load %arg6[%c128_19, %c0_20] : memref<256x384xf32, #tpu.memory_space<vmem>>, vector<128x384xf32>
    %cst_21 = arith.constant dense<0.000000e+00> : vector<64x384xf32>
    %19 = tpu.matmul %17, %18, %cst_21 {dimension_numbers = #tpu.dot_dimension_numbers<[1], [0], [0], [1], [0, 0, 1, 1], [], []>} : vector<64x128xf32>, vector<128x384xf32>, vector<64x384xf32> -> vector<64x384xf32>
    %20 = arith.addf %16, %19 : vector<64x384xf32>
    %c0_22 = arith.constant 0 : index
    %c0_23 = arith.constant 0 : index
    %21 = vector.load %arg9[%c0_22, %c0_23] : memref<1x384xf32, #tpu.memory_space<vmem>>, vector<1x384xf32>
    %22 = vector.broadcast %21 : vector<1x384xf32> to vector<64x384xf32>
    %23 = arith.addf %20, %22 : vector<64x384xf32>
    %c0_24 = arith.constant 0 : index
    %c0_25 = arith.constant 0 : index
    %24 = vector.load %arg16[%c0_24, %c0_25] : memref<64x384xf32, #tpu.memory_space<vmem>>, vector<64x384xf32>
    tpu.vector_store %arg16[%c0_24, %c0_25], %23 {strides = array<i32>} : memref<64x384xf32, #tpu.memory_space<vmem>>, vector<64x384xf32>,
    %c0_26 = arith.constant 0 : index
    %c0_27 = arith.constant 0 : index
    %25 = vector.load %arg7[%c0_26, %c0_27] : memref<128x768xf32, #tpu.memory_space<vmem>>, vector<128x768xf32>
    %c0_28 = arith.constant 0 : index
    %c0_29 = arith.constant 0 : index
    %26 = vector.load %arg10[%c0_28, %c0_29] : memref<1x128xf32, #tpu.memory_space<vmem>>, vector<1x128xf32>
    %c0_30 = arith.constant 0 : index
    %c0_31 = arith.constant 0 : index
    %27 = vector.load %arg11[%c0_30, %c0_31] : memref<1x128xf32, #tpu.memory_space<vmem>>, vector<1x128xf32>
    %c0_i32_32 = arith.constant 0 : i32
    %c0_33 = arith.constant 0 : index
    %c0_34 = arith.constant 0 : index
    %28 = vector.load %arg14[%c0_33, %c0_34] : memref<16x128xf32, #tpu.memory_space<vmem>>, vector<16x128xf32>
    %cst_35 = arith.constant dense<0.000000e+00> : vector<16x768xf32>
    %29 = tpu.matmul %28, %25, %cst_35 {dimension_numbers = #tpu.dot_dimension_numbers<[1], [0], [0], [1], [0, 0, 1, 1], [], []>} : vector<16x128xf32>, vector<128x768xf32>, vector<16x768xf32> -> vector<16x768xf32>
    %c8_i32 = arith.constant 8 : i32
    %30 = arith.muli %c0_i32_32, %c8_i32 : i32
    %31 = tpu.assume_multiple %30, 8 : i32
    %32 = arith.index_cast %31 : i32 to index
    %c0_36 = arith.constant 0 : index
    %33 = vector.load %arg15[%32, %c0_36] : memref<64x384xf32, #tpu.memory_space<vmem>>, vector<8x384xf32>
    %34 = vector.extract_strided_slice %29 {offsets = [0, 0], sizes = [8, 384], strides = [1, 1]} : vector<16x768xf32> to vector<8x384xf32>
    %35 = vector.extract_strided_slice %28 {offsets = [0, 0], sizes = [8, 128], strides = [1, 1]} : vector<16x128xf32> to vector<8x128xf32>
    %36 = vector.extract_strided_slice %33 {offsets = [0, 0], sizes = [8, 128], strides = [1, 1]} : vector<8x384xf32> to vector<8x128xf32>
    %37 = vector.extract_strided_slice %34 {offsets = [0, 0], sizes = [8, 128], strides = [1, 1]} : vector<8x384xf32> to vector<8x128xf32>
    %38 = arith.addf %36, %37 : vector<8x128xf32>
    %cst_37 = arith.constant 0.000000e+00 : f32
    %39 = vector.broadcast %cst_37 : f32 to vector<8x128xf32>
    %40 = arith.subf %39, %38 : vector<8x128xf32>
    %41 = math.exp %40 : vector<8x128xf32>
    %cst_38 = arith.constant 1.000000e+00 : f32
    %42 = vector.broadcast %cst_38 : f32 to vector<8x128xf32>
    %43 = arith.addf %42, %41 : vector<8x128xf32>
    %cst_39 = arith.constant 1.000000e+00 : f32
    %44 = vector.broadcast %cst_39 : f32 to vector<8x128xf32>
    %45 = arith.divf %44, %43 : vector<8x128xf32>
    %46 = vector.extract_strided_slice %33 {offsets = [0, 128], sizes = [8, 128], strides = [1, 1]} : vector<8x384xf32> to vector<8x128xf32>
    %47 = vector.extract_strided_slice %34 {offsets = [0, 128], sizes = [8, 128], strides = [1, 1]} : vector<8x384xf32> to vector<8x128xf32>
    %48 = arith.addf %46, %47 : vector<8x128xf32>
    %cst_40 = arith.constant 0.000000e+00 : f32
    %49 = vector.broadcast %cst_40 : f32 to vector<8x128xf32>
    %50 = arith.subf %49, %48 : vector<8x128xf32>
    %51 = math.exp %50 : vector<8x128xf32>
    %cst_41 = arith.constant 1.000000e+00 : f32
    %52 = vector.broadcast %cst_41 : f32 to vector<8x128xf32>
    %53 = arith.addf %52, %51 : vector<8x128xf32>
    %cst_42 = arith.constant 1.000000e+00 : f32
    %54 = vector.broadcast %cst_42 : f32 to vector<8x128xf32>
    %55 = arith.divf %54, %53 : vector<8x128xf32>
    %56 = vector.extract_strided_slice %33 {offsets = [0, 256], sizes = [8, 128], strides = [1, 1]} : vector<8x384xf32> to vector<8x128xf32>
    %57 = vector.extract_strided_slice %34 {offsets = [0, 256], sizes = [8, 128], strides = [1, 1]} : vector<8x384xf32> to vector<8x128xf32>
    %58 = vector.broadcast %26 : vector<1x128xf32> to vector<8x128xf32>
    %59 = arith.addf %57, %58 : vector<8x128xf32>
    %60 = arith.mulf %45, %59 : vector<8x128xf32>
    %61 = arith.addf %56, %60 : vector<8x128xf32>
    %62 = math.tanh %61 : vector<8x128xf32>
    %cst_43 = arith.constant 1.000000e+00 : f32
    %63 = vector.broadcast %cst_43 : f32 to vector<8x128xf32>
    %64 = arith.subf %63, %55 : vector<8x128xf32>
    %65 = arith.mulf %64, %62 : vector<8x128xf32>
    %66 = arith.mulf %55, %35 : vector<8x128xf32>
    %67 = arith.addf %65, %66 : vector<8x128xf32>
    %c7_i32 = arith.constant 7 : i32
    %68 = arith.subi %c7_i32, %c0_i32_32 : i32
    %c8_i32_44 = arith.constant 8 : i32
    %69 = arith.muli %68, %c8_i32_44 : i32
    %70 = tpu.assume_multiple %69, 8 : i32
    %71 = arith.index_cast %70 : i32 to index
    %c0_45 = arith.constant 0 : index
    %72 = vector.load %arg16[%71, %c0_45] : memref<64x384xf32, #tpu.memory_space<vmem>>, vector<8x384xf32>
    %73 = vector.extract_strided_slice %29 {offsets = [8, 384], sizes = [8, 384], strides = [1, 1]} : vector<16x768xf32> to vector<8x384xf32>
    %74 = vector.extract_strided_slice %28 {offsets = [8, 0], sizes = [8, 128], strides = [1, 1]} : vector<16x128xf32> to vector<8x128xf32>
    %75 = vector.extract_strided_slice %72 {offsets = [0, 0], sizes = [8, 128], strides = [1, 1]} : vector<8x384xf32> to vector<8x128xf32>
    %76 = vector.extract_strided_slice %73 {offsets = [0, 0], sizes = [8, 128], strides = [1, 1]} : vector<8x384xf32> to vector<8x128xf32>
    %77 = arith.addf %75, %76 : vector<8x128xf32>
    %cst_46 = arith.constant 0.000000e+00 : f32
    %78 = vector.broadcast %cst_46 : f32 to vector<8x128xf32>
    %79 = arith.subf %78, %77 : vector<8x128xf32>
    %80 = math.exp %79 : vector<8x128xf32>
    %cst_47 = arith.constant 1.000000e+00 : f32
    %81 = vector.broadcast %cst_47 : f32 to vector<8x128xf32>
    %82 = arith.addf %81, %80 : vector<8x128xf32>
    %cst_48 = arith.constant 1.000000e+00 : f32
    %83 = vector.broadcast %cst_48 : f32 to vector<8x128xf32>
    %84 = arith.divf %83, %82 : vector<8x128xf32>
    %85 = vector.extract_strided_slice %72 {offsets = [0, 128], sizes = [8, 128], strides = [1, 1]} : vector<8x384xf32> to vector<8x128xf32>
    %86 = vector.extract_strided_slice %73 {offsets = [0, 128], sizes = [8, 128], strides = [1, 1]} : vector<8x384xf32> to vector<8x128xf32>
    %87 = arith.addf %85, %86 : vector<8x128xf32>
    %cst_49 = arith.constant 0.000000e+00 : f32
    %88 = vector.broadcast %cst_49 : f32 to vector<8x128xf32>
    %89 = arith.subf %88, %87 : vector<8x128xf32>
    %90 = math.exp %89 : vector<8x128xf32>
    %cst_50 = arith.constant 1.000000e+00 : f32
    %91 = vector.broadcast %cst_50 : f32 to vector<8x128xf32>
    %92 = arith.addf %91, %90 : vector<8x128xf32>
    %cst_51 = arith.constant 1.000000e+00 : f32
    %93 = vector.broadcast %cst_51 : f32 to vector<8x128xf32>
    %94 = arith.divf %93, %92 : vector<8x128xf32>
    %95 = vector.extract_strided_slice %72 {offsets = [0, 256], sizes = [8, 128], strides = [1, 1]} : vector<8x384xf32> to vector<8x128xf32>
    %96 = vector.extract_strided_slice %73 {offsets = [0, 256], sizes = [8, 128], strides = [1, 1]} : vector<8x384xf32> to vector<8x128xf32>
    %97 = vector.broadcast %27 : vector<1x128xf32> to vector<8x128xf32>
    %98 = arith.addf %96, %97 : vector<8x128xf32>
    %99 = arith.mulf %84, %98 : vector<8x128xf32>
    %100 = arith.addf %95, %99 : vector<8x128xf32>
    %101 = math.tanh %100 : vector<8x128xf32>
    %cst_52 = arith.constant 1.000000e+00 : f32
    %102 = vector.broadcast %cst_52 : f32 to vector<8x128xf32>
    %103 = arith.subf %102, %94 : vector<8x128xf32>
    %104 = arith.mulf %103, %101 : vector<8x128xf32>
    %105 = arith.mulf %94, %74 : vector<8x128xf32>
    %106 = arith.addf %104, %105 : vector<8x128xf32>
    %c0_53 = arith.constant 0 : index
    %c0_54 = arith.constant 0 : index
    %107 = vector.load %arg14[%c0_53, %c0_54] : memref<16x128xf32, #tpu.memory_space<vmem>>, vector<8x128xf32>
    tpu.vector_store %arg14[%c0_53, %c0_54], %67 {strides = array<i32>} : memref<16x128xf32, #tpu.memory_space<vmem>>, vector<8x128xf32>,
    %c8 = arith.constant 8 : index
    %c0_55 = arith.constant 0 : index
    %108 = vector.load %arg14[%c8, %c0_55] : memref<16x128xf32, #tpu.memory_space<vmem>>, vector<8x128xf32>
    tpu.vector_store %arg14[%c8, %c0_55], %106 {strides = array<i32>} : memref<16x128xf32, #tpu.memory_space<vmem>>, vector<8x128xf32>,
    %109 = arith.index_cast %31 : i32 to index
    %c0_56 = arith.constant 0 : index
    %110 = vector.load %arg12[%109, %c0_56] : memref<64x128xf32, #tpu.memory_space<vmem>>, vector<8x128xf32>
    tpu.vector_store %arg12[%109, %c0_56], %67 {strides = array<i32>} : memref<64x128xf32, #tpu.memory_space<vmem>>, vector<8x128xf32>,
    %111 = arith.index_cast %70 : i32 to index
    %c0_57 = arith.constant 0 : index
    %112 = vector.load %arg13[%111, %c0_57] : memref<64x128xf32, #tpu.memory_space<vmem>>, vector<8x128xf32>
    tpu.vector_store %arg13[%111, %c0_57], %106 {strides = array<i32>} : memref<64x128xf32, #tpu.memory_space<vmem>>, vector<8x128xf32>,
    %c1_i32 = arith.constant 1 : i32
    %c0_58 = arith.constant 0 : index
    %c0_59 = arith.constant 0 : index
    %113 = vector.load %arg14[%c0_58, %c0_59] : memref<16x128xf32, #tpu.memory_space<vmem>>, vector<16x128xf32>
    %cst_60 = arith.constant dense<0.000000e+00> : vector<16x768xf32>
    %114 = tpu.matmul %113, %25, %cst_60 {dimension_numbers = #tpu.dot_dimension_numbers<[1], [0], [0], [1], [0, 0, 1, 1], [], []>} : vector<16x128xf32>, vector<128x768xf32>, vector<16x768xf32> -> vector<16x768xf32>
    %c8_i32_61 = arith.constant 8 : i32
    %115 = arith.muli %c1_i32, %c8_i32_61 : i32
    %116 = tpu.assume_multiple %115, 8 : i32
    %117 = arith.index_cast %116 : i32 to index
    %c0_62 = arith.constant 0 : index
    %118 = vector.load %arg15[%117, %c0_62] : memref<64x384xf32, #tpu.memory_space<vmem>>, vector<8x384xf32>
    %119 = vector.extract_strided_slice %114 {offsets = [0, 0], sizes = [8, 384], strides = [1, 1]} : vector<16x768xf32> to vector<8x384xf32>
    %120 = vector.extract_strided_slice %113 {offsets = [0, 0], sizes = [8, 128], strides = [1, 1]} : vector<16x128xf32> to vector<8x128xf32>
    %121 = vector.extract_strided_slice %118 {offsets = [0, 0], sizes = [8, 128], strides = [1, 1]} : vector<8x384xf32> to vector<8x128xf32>
    %122 = vector.extract_strided_slice %119 {offsets = [0, 0], sizes = [8, 128], strides = [1, 1]} : vector<8x384xf32> to vector<8x128xf32>
    %123 = arith.addf %121, %122 : vector<8x128xf32>
    %cst_63 = arith.constant 0.000000e+00 : f32
    %124 = vector.broadcast %cst_63 : f32 to vector<8x128xf32>
    %125 = arith.subf %124, %123 : vector<8x128xf32>
    %126 = math.exp %125 : vector<8x128xf32>
    %cst_64 = arith.constant 1.000000e+00 : f32
    %127 = vector.broadcast %cst_64 : f32 to vector<8x128xf32>
    %128 = arith.addf %127, %126 : vector<8x128xf32>
    %cst_65 = arith.constant 1.000000e+00 : f32
    %129 = vector.broadcast %cst_65 : f32 to vector<8x128xf32>
    %130 = arith.divf %129, %128 : vector<8x128xf32>
    %131 = vector.extract_strided_slice %118 {offsets = [0, 128], sizes = [8, 128], strides = [1, 1]} : vector<8x384xf32> to vector<8x128xf32>
    %132 = vector.extract_strided_slice %119 {offsets = [0, 128], sizes = [8, 128], strides = [1, 1]} : vector<8x384xf32> to vector<8x128xf32>
    %133 = arith.addf %131, %132 : vector<8x128xf32>
    %cst_66 = arith.constant 0.000000e+00 : f32
    %134 = vector.broadcast %cst_66 : f32 to vector<8x128xf32>
    %135 = arith.subf %134, %133 : vector<8x128xf32>
    %136 = math.exp %135 : vector<8x128xf32>
    %cst_67 = arith.constant 1.000000e+00 : f32
    %137 = vector.broadcast %cst_67 : f32 to vector<8x128xf32>
    %138 = arith.addf %137, %136 : vector<8x128xf32>
    %cst_68 = arith.constant 1.000000e+00 : f32
    %139 = vector.broadcast %cst_68 : f32 to vector<8x128xf32>
    %140 = arith.divf %139, %138 : vector<8x128xf32>
    %141 = vector.extract_strided_slice %118 {offsets = [0, 256], sizes = [8, 128], strides = [1, 1]} : vector<8x384xf32> to vector<8x128xf32>
    %142 = vector.extract_strided_slice %119 {offsets = [0, 256], sizes = [8, 128], strides = [1, 1]} : vector<8x384xf32> to vector<8x128xf32>
    %143 = vector.broadcast %26 : vector<1x128xf32> to vector<8x128xf32>
    %144 = arith.addf %142, %143 : vector<8x128xf32>
    %145 = arith.mulf %130, %144 : vector<8x128xf32>
    %146 = arith.addf %141, %145 : vector<8x128xf32>
    %147 = math.tanh %146 : vector<8x128xf32>
    %cst_69 = arith.constant 1.000000e+00 : f32
    %148 = vector.broadcast %cst_69 : f32 to vector<8x128xf32>
    %149 = arith.subf %148, %140 : vector<8x128xf32>
    %150 = arith.mulf %149, %147 : vector<8x128xf32>
    %151 = arith.mulf %140, %120 : vector<8x128xf32>
    %152 = arith.addf %150, %151 : vector<8x128xf32>
    %c7_i32_70 = arith.constant 7 : i32
    %153 = arith.subi %c7_i32_70, %c1_i32 : i32
    %c8_i32_71 = arith.constant 8 : i32
    %154 = arith.muli %153, %c8_i32_71 : i32
    %155 = tpu.assume_multiple %154, 8 : i32
    %156 = arith.index_cast %155 : i32 to index
    %c0_72 = arith.constant 0 : index
    %157 = vector.load %arg16[%156, %c0_72] : memref<64x384xf32, #tpu.memory_space<vmem>>, vector<8x384xf32>
    %158 = vector.extract_strided_slice %114 {offsets = [8, 384], sizes = [8, 384], strides = [1, 1]} : vector<16x768xf32> to vector<8x384xf32>
    %159 = vector.extract_strided_slice %113 {offsets = [8, 0], sizes = [8, 128], strides = [1, 1]} : vector<16x128xf32> to vector<8x128xf32>
    %160 = vector.extract_strided_slice %157 {offsets = [0, 0], sizes = [8, 128], strides = [1, 1]} : vector<8x384xf32> to vector<8x128xf32>
    %161 = vector.extract_strided_slice %158 {offsets = [0, 0], sizes = [8, 128], strides = [1, 1]} : vector<8x384xf32> to vector<8x128xf32>
    %162 = arith.addf %160, %161 : vector<8x128xf32>
    %cst_73 = arith.constant 0.000000e+00 : f32
    %163 = vector.broadcast %cst_73 : f32 to vector<8x128xf32>
    %164 = arith.subf %163, %162 : vector<8x128xf32>
    %165 = math.exp %164 : vector<8x128xf32>
    %cst_74 = arith.constant 1.000000e+00 : f32
    %166 = vector.broadcast %cst_74 : f32 to vector<8x128xf32>
    %167 = arith.addf %166, %165 : vector<8x128xf32>
    %cst_75 = arith.constant 1.000000e+00 : f32
    %168 = vector.broadcast %cst_75 : f32 to vector<8x128xf32>
    %169 = arith.divf %168, %167 : vector<8x128xf32>
    %170 = vector.extract_strided_slice %157 {offsets = [0, 128], sizes = [8, 128], strides = [1, 1]} : vector<8x384xf32> to vector<8x128xf32>
    %171 = vector.extract_strided_slice %158 {offsets = [0, 128], sizes = [8, 128], strides = [1, 1]} : vector<8x384xf32> to vector<8x128xf32>
    %172 = arith.addf %170, %171 : vector<8x128xf32>
    %cst_76 = arith.constant 0.000000e+00 : f32
    %173 = vector.broadcast %cst_76 : f32 to vector<8x128xf32>
    %174 = arith.subf %173, %172 : vector<8x128xf32>
    %175 = math.exp %174 : vector<8x128xf32>
    %cst_77 = arith.constant 1.000000e+00 : f32
    %176 = vector.broadcast %cst_77 : f32 to vector<8x128xf32>
    %177 = arith.addf %176, %175 : vector<8x128xf32>
    %cst_78 = arith.constant 1.000000e+00 : f32
    %178 = vector.broadcast %cst_78 : f32 to vector<8x128xf32>
    %179 = arith.divf %178, %177 : vector<8x128xf32>
    %180 = vector.extract_strided_slice %157 {offsets = [0, 256], sizes = [8, 128], strides = [1, 1]} : vector<8x384xf32> to vector<8x128xf32>
    %181 = vector.extract_strided_slice %158 {offsets = [0, 256], sizes = [8, 128], strides = [1, 1]} : vector<8x384xf32> to vector<8x128xf32>
    %182 = vector.broadcast %27 : vector<1x128xf32> to vector<8x128xf32>
    %183 = arith.addf %181, %182 : vector<8x128xf32>
    %184 = arith.mulf %169, %183 : vector<8x128xf32>
    %185 = arith.addf %180, %184 : vector<8x128xf32>
    %186 = math.tanh %185 : vector<8x128xf32>
    %cst_79 = arith.constant 1.000000e+00 : f32
    %187 = vector.broadcast %cst_79 : f32 to vector<8x128xf32>
    %188 = arith.subf %187, %179 : vector<8x128xf32>
    %189 = arith.mulf %188, %186 : vector<8x128xf32>
    %190 = arith.mulf %179, %159 : vector<8x128xf32>
    %191 = arith.addf %189, %190 : vector<8x128xf32>
    %c0_80 = arith.constant 0 : index
    %c0_81 = arith.constant 0 : index
    %192 = vector.load %arg14[%c0_80, %c0_81] : memref<16x128xf32, #tpu.memory_space<vmem>>, vector<8x128xf32>
    tpu.vector_store %arg14[%c0_80, %c0_81], %152 {strides = array<i32>} : memref<16x128xf32, #tpu.memory_space<vmem>>, vector<8x128xf32>,
    %c8_82 = arith.constant 8 : index
    %c0_83 = arith.constant 0 : index
    %193 = vector.load %arg14[%c8_82, %c0_83] : memref<16x128xf32, #tpu.memory_space<vmem>>, vector<8x128xf32>
    tpu.vector_store %arg14[%c8_82, %c0_83], %191 {strides = array<i32>} : memref<16x128xf32, #tpu.memory_space<vmem>>, vector<8x128xf32>,
    %194 = arith.index_cast %116 : i32 to index
    %c0_84 = arith.constant 0 : index
    %195 = vector.load %arg12[%194, %c0_84] : memref<64x128xf32, #tpu.memory_space<vmem>>, vector<8x128xf32>
    tpu.vector_store %arg12[%194, %c0_84], %152 {strides = array<i32>} : memref<64x128xf32, #tpu.memory_space<vmem>>, vector<8x128xf32>,
    %196 = arith.index_cast %155 : i32 to index
    %c0_85 = arith.constant 0 : index
    %197 = vector.load %arg13[%196, %c0_85] : memref<64x128xf32, #tpu.memory_space<vmem>>, vector<8x128xf32>
    tpu.vector_store %arg13[%196, %c0_85], %191 {strides = array<i32>} : memref<64x128xf32, #tpu.memory_space<vmem>>, vector<8x128xf32>,
    %c2_i32 = arith.constant 2 : i32
    %c0_86 = arith.constant 0 : index
    %c0_87 = arith.constant 0 : index
    %198 = vector.load %arg14[%c0_86, %c0_87] : memref<16x128xf32, #tpu.memory_space<vmem>>, vector<16x128xf32>
    %cst_88 = arith.constant dense<0.000000e+00> : vector<16x768xf32>
    %199 = tpu.matmul %198, %25, %cst_88 {dimension_numbers = #tpu.dot_dimension_numbers<[1], [0], [0], [1], [0, 0, 1, 1], [], []>} : vector<16x128xf32>, vector<128x768xf32>, vector<16x768xf32> -> vector<16x768xf32>
    %c8_i32_89 = arith.constant 8 : i32
    %200 = arith.muli %c2_i32, %c8_i32_89 : i32
    %201 = tpu.assume_multiple %200, 8 : i32
    %202 = arith.index_cast %201 : i32 to index
    %c0_90 = arith.constant 0 : index
    %203 = vector.load %arg15[%202, %c0_90] : memref<64x384xf32, #tpu.memory_space<vmem>>, vector<8x384xf32>
    %204 = vector.extract_strided_slice %199 {offsets = [0, 0], sizes = [8, 384], strides = [1, 1]} : vector<16x768xf32> to vector<8x384xf32>
    %205 = vector.extract_strided_slice %198 {offsets = [0, 0], sizes = [8, 128], strides = [1, 1]} : vector<16x128xf32> to vector<8x128xf32>
    %206 = vector.extract_strided_slice %203 {offsets = [0, 0], sizes = [8, 128], strides = [1, 1]} : vector<8x384xf32> to vector<8x128xf32>
    %207 = vector.extract_strided_slice %204 {offsets = [0, 0], sizes = [8, 128], strides = [1, 1]} : vector<8x384xf32> to vector<8x128xf32>
    %208 = arith.addf %206, %207 : vector<8x128xf32>
    %cst_91 = arith.constant 0.000000e+00 : f32
    %209 = vector.broadcast %cst_91 : f32 to vector<8x128xf32>
    %210 = arith.subf %209, %208 : vector<8x128xf32>
    %211 = math.exp %210 : vector<8x128xf32>
    %cst_92 = arith.constant 1.000000e+00 : f32
    %212 = vector.broadcast %cst_92 : f32 to vector<8x128xf32>
    %213 = arith.addf %212, %211 : vector<8x128xf32>
    %cst_93 = arith.constant 1.000000e+00 : f32
    %214 = vector.broadcast %cst_93 : f32 to vector<8x128xf32>
    %215 = arith.divf %214, %213 : vector<8x128xf32>
    %216 = vector.extract_strided_slice %203 {offsets = [0, 128], sizes = [8, 128], strides = [1, 1]} : vector<8x384xf32> to vector<8x128xf32>
    %217 = vector.extract_strided_slice %204 {offsets = [0, 128], sizes = [8, 128], strides = [1, 1]} : vector<8x384xf32> to vector<8x128xf32>
    %218 = arith.addf %216, %217 : vector<8x128xf32>
    %cst_94 = arith.constant 0.000000e+00 : f32
    %219 = vector.broadcast %cst_94 : f32 to vector<8x128xf32>
    %220 = arith.subf %219, %218 : vector<8x128xf32>
    %221 = math.exp %220 : vector<8x128xf32>
    %cst_95 = arith.constant 1.000000e+00 : f32
    %222 = vector.broadcast %cst_95 : f32 to vector<8x128xf32>
    %223 = arith.addf %222, %221 : vector<8x128xf32>
    %cst_96 = arith.constant 1.000000e+00 : f32
    %224 = vector.broadcast %cst_96 : f32 to vector<8x128xf32>
    %225 = arith.divf %224, %223 : vector<8x128xf32>
    %226 = vector.extract_strided_slice %203 {offsets = [0, 256], sizes = [8, 128], strides = [1, 1]} : vector<8x384xf32> to vector<8x128xf32>
    %227 = vector.extract_strided_slice %204 {offsets = [0, 256], sizes = [8, 128], strides = [1, 1]} : vector<8x384xf32> to vector<8x128xf32>
    %228 = vector.broadcast %26 : vector<1x128xf32> to vector<8x128xf32>
    %229 = arith.addf %227, %228 : vector<8x128xf32>
    %230 = arith.mulf %215, %229 : vector<8x128xf32>
    %231 = arith.addf %226, %230 : vector<8x128xf32>
    %232 = math.tanh %231 : vector<8x128xf32>
    %cst_97 = arith.constant 1.000000e+00 : f32
    %233 = vector.broadcast %cst_97 : f32 to vector<8x128xf32>
    %234 = arith.subf %233, %225 : vector<8x128xf32>
    %235 = arith.mulf %234, %232 : vector<8x128xf32>
    %236 = arith.mulf %225, %205 : vector<8x128xf32>
    %237 = arith.addf %235, %236 : vector<8x128xf32>
    %c7_i32_98 = arith.constant 7 : i32
    %238 = arith.subi %c7_i32_98, %c2_i32 : i32
    %c8_i32_99 = arith.constant 8 : i32
    %239 = arith.muli %238, %c8_i32_99 : i32
    %240 = tpu.assume_multiple %239, 8 : i32
    %241 = arith.index_cast %240 : i32 to index
    %c0_100 = arith.constant 0 : index
    %242 = vector.load %arg16[%241, %c0_100] : memref<64x384xf32, #tpu.memory_space<vmem>>, vector<8x384xf32>
    %243 = vector.extract_strided_slice %199 {offsets = [8, 384], sizes = [8, 384], strides = [1, 1]} : vector<16x768xf32> to vector<8x384xf32>
    %244 = vector.extract_strided_slice %198 {offsets = [8, 0], sizes = [8, 128], strides = [1, 1]} : vector<16x128xf32> to vector<8x128xf32>
    %245 = vector.extract_strided_slice %242 {offsets = [0, 0], sizes = [8, 128], strides = [1, 1]} : vector<8x384xf32> to vector<8x128xf32>
    %246 = vector.extract_strided_slice %243 {offsets = [0, 0], sizes = [8, 128], strides = [1, 1]} : vector<8x384xf32> to vector<8x128xf32>
    %247 = arith.addf %245, %246 : vector<8x128xf32>
    %cst_101 = arith.constant 0.000000e+00 : f32
    %248 = vector.broadcast %cst_101 : f32 to vector<8x128xf32>
    %249 = arith.subf %248, %247 : vector<8x128xf32>
    %250 = math.exp %249 : vector<8x128xf32>
    %cst_102 = arith.constant 1.000000e+00 : f32
    %251 = vector.broadcast %cst_102 : f32 to vector<8x128xf32>
    %252 = arith.addf %251, %250 : vector<8x128xf32>
    %cst_103 = arith.constant 1.000000e+00 : f32
    %253 = vector.broadcast %cst_103 : f32 to vector<8x128xf32>
    %254 = arith.divf %253, %252 : vector<8x128xf32>
    %255 = vector.extract_strided_slice %242 {offsets = [0, 128], sizes = [8, 128], strides = [1, 1]} : vector<8x384xf32> to vector<8x128xf32>
    %256 = vector.extract_strided_slice %243 {offsets = [0, 128], sizes = [8, 128], strides = [1, 1]} : vector<8x384xf32> to vector<8x128xf32>
    %257 = arith.addf %255, %256 : vector<8x128xf32>
    %cst_104 = arith.constant 0.000000e+00 : f32
    %258 = vector.broadcast %cst_104 : f32 to vector<8x128xf32>
    %259 = arith.subf %258, %257 : vector<8x128xf32>
    %260 = math.exp %259 : vector<8x128xf32>
    %cst_105 = arith.constant 1.000000e+00 : f32
    %261 = vector.broadcast %cst_105 : f32 to vector<8x128xf32>
    %262 = arith.addf %261, %260 : vector<8x128xf32>
    %cst_106 = arith.constant 1.000000e+00 : f32
    %263 = vector.broadcast %cst_106 : f32 to vector<8x128xf32>
    %264 = arith.divf %263, %262 : vector<8x128xf32>
    %265 = vector.extract_strided_slice %242 {offsets = [0, 256], sizes = [8, 128], strides = [1, 1]} : vector<8x384xf32> to vector<8x128xf32>
    %266 = vector.extract_strided_slice %243 {offsets = [0, 256], sizes = [8, 128], strides = [1, 1]} : vector<8x384xf32> to vector<8x128xf32>
    %267 = vector.broadcast %27 : vector<1x128xf32> to vector<8x128xf32>
    %268 = arith.addf %266, %267 : vector<8x128xf32>
    %269 = arith.mulf %254, %268 : vector<8x128xf32>
    %270 = arith.addf %265, %269 : vector<8x128xf32>
    %271 = math.tanh %270 : vector<8x128xf32>
    %cst_107 = arith.constant 1.000000e+00 : f32
    %272 = vector.broadcast %cst_107 : f32 to vector<8x128xf32>
    %273 = arith.subf %272, %264 : vector<8x128xf32>
    %274 = arith.mulf %273, %271 : vector<8x128xf32>
    %275 = arith.mulf %264, %244 : vector<8x128xf32>
    %276 = arith.addf %274, %275 : vector<8x128xf32>
    %c0_108 = arith.constant 0 : index
    %c0_109 = arith.constant 0 : index
    %277 = vector.load %arg14[%c0_108, %c0_109] : memref<16x128xf32, #tpu.memory_space<vmem>>, vector<8x128xf32>
    tpu.vector_store %arg14[%c0_108, %c0_109], %237 {strides = array<i32>} : memref<16x128xf32, #tpu.memory_space<vmem>>, vector<8x128xf32>,
    %c8_110 = arith.constant 8 : index
    %c0_111 = arith.constant 0 : index
    %278 = vector.load %arg14[%c8_110, %c0_111] : memref<16x128xf32, #tpu.memory_space<vmem>>, vector<8x128xf32>
    tpu.vector_store %arg14[%c8_110, %c0_111], %276 {strides = array<i32>} : memref<16x128xf32, #tpu.memory_space<vmem>>, vector<8x128xf32>,
    %279 = arith.index_cast %201 : i32 to index
    %c0_112 = arith.constant 0 : index
    %280 = vector.load %arg12[%279, %c0_112] : memref<64x128xf32, #tpu.memory_space<vmem>>, vector<8x128xf32>
    tpu.vector_store %arg12[%279, %c0_112], %237 {strides = array<i32>} : memref<64x128xf32, #tpu.memory_space<vmem>>, vector<8x128xf32>,
    %281 = arith.index_cast %240 : i32 to index
    %c0_113 = arith.constant 0 : index
    %282 = vector.load %arg13[%281, %c0_113] : memref<64x128xf32, #tpu.memory_space<vmem>>, vector<8x128xf32>
    tpu.vector_store %arg13[%281, %c0_113], %276 {strides = array<i32>} : memref<64x128xf32, #tpu.memory_space<vmem>>, vector<8x128xf32>,
    %c3_i32 = arith.constant 3 : i32
    %c0_114 = arith.constant 0 : index
    %c0_115 = arith.constant 0 : index
    %283 = vector.load %arg14[%c0_114, %c0_115] : memref<16x128xf32, #tpu.memory_space<vmem>>, vector<16x128xf32>
    %cst_116 = arith.constant dense<0.000000e+00> : vector<16x768xf32>
    %284 = tpu.matmul %283, %25, %cst_116 {dimension_numbers = #tpu.dot_dimension_numbers<[1], [0], [0], [1], [0, 0, 1, 1], [], []>} : vector<16x128xf32>, vector<128x768xf32>, vector<16x768xf32> -> vector<16x768xf32>
    %c8_i32_117 = arith.constant 8 : i32
    %285 = arith.muli %c3_i32, %c8_i32_117 : i32
    %286 = tpu.assume_multiple %285, 8 : i32
    %287 = arith.index_cast %286 : i32 to index
    %c0_118 = arith.constant 0 : index
    %288 = vector.load %arg15[%287, %c0_118] : memref<64x384xf32, #tpu.memory_space<vmem>>, vector<8x384xf32>
    %289 = vector.extract_strided_slice %284 {offsets = [0, 0], sizes = [8, 384], strides = [1, 1]} : vector<16x768xf32> to vector<8x384xf32>
    %290 = vector.extract_strided_slice %283 {offsets = [0, 0], sizes = [8, 128], strides = [1, 1]} : vector<16x128xf32> to vector<8x128xf32>
    %291 = vector.extract_strided_slice %288 {offsets = [0, 0], sizes = [8, 128], strides = [1, 1]} : vector<8x384xf32> to vector<8x128xf32>
    %292 = vector.extract_strided_slice %289 {offsets = [0, 0], sizes = [8, 128], strides = [1, 1]} : vector<8x384xf32> to vector<8x128xf32>
    %293 = arith.addf %291, %292 : vector<8x128xf32>
    %cst_119 = arith.constant 0.000000e+00 : f32
    %294 = vector.broadcast %cst_119 : f32 to vector<8x128xf32>
    %295 = arith.subf %294, %293 : vector<8x128xf32>
    %296 = math.exp %295 : vector<8x128xf32>
    %cst_120 = arith.constant 1.000000e+00 : f32
    %297 = vector.broadcast %cst_120 : f32 to vector<8x128xf32>
    %298 = arith.addf %297, %296 : vector<8x128xf32>
    %cst_121 = arith.constant 1.000000e+00 : f32
    %299 = vector.broadcast %cst_121 : f32 to vector<8x128xf32>
    %300 = arith.divf %299, %298 : vector<8x128xf32>
    %301 = vector.extract_strided_slice %288 {offsets = [0, 128], sizes = [8, 128], strides = [1, 1]} : vector<8x384xf32> to vector<8x128xf32>
    %302 = vector.extract_strided_slice %289 {offsets = [0, 128], sizes = [8, 128], strides = [1, 1]} : vector<8x384xf32> to vector<8x128xf32>
    %303 = arith.addf %301, %302 : vector<8x128xf32>
    %cst_122 = arith.constant 0.000000e+00 : f32
    %304 = vector.broadcast %cst_122 : f32 to vector<8x128xf32>
    %305 = arith.subf %304, %303 : vector<8x128xf32>
    %306 = math.exp %305 : vector<8x128xf32>
    %cst_123 = arith.constant 1.000000e+00 : f32
    %307 = vector.broadcast %cst_123 : f32 to vector<8x128xf32>
    %308 = arith.addf %307, %306 : vector<8x128xf32>
    %cst_124 = arith.constant 1.000000e+00 : f32
    %309 = vector.broadcast %cst_124 : f32 to vector<8x128xf32>
    %310 = arith.divf %309, %308 : vector<8x128xf32>
    %311 = vector.extract_strided_slice %288 {offsets = [0, 256], sizes = [8, 128], strides = [1, 1]} : vector<8x384xf32> to vector<8x128xf32>
    %312 = vector.extract_strided_slice %289 {offsets = [0, 256], sizes = [8, 128], strides = [1, 1]} : vector<8x384xf32> to vector<8x128xf32>
    %313 = vector.broadcast %26 : vector<1x128xf32> to vector<8x128xf32>
    %314 = arith.addf %312, %313 : vector<8x128xf32>
    %315 = arith.mulf %300, %314 : vector<8x128xf32>
    %316 = arith.addf %311, %315 : vector<8x128xf32>
    %317 = math.tanh %316 : vector<8x128xf32>
    %cst_125 = arith.constant 1.000000e+00 : f32
    %318 = vector.broadcast %cst_125 : f32 to vector<8x128xf32>
    %319 = arith.subf %318, %310 : vector<8x128xf32>
    %320 = arith.mulf %319, %317 : vector<8x128xf32>
    %321 = arith.mulf %310, %290 : vector<8x128xf32>
    %322 = arith.addf %320, %321 : vector<8x128xf32>
    %c7_i32_126 = arith.constant 7 : i32
    %323 = arith.subi %c7_i32_126, %c3_i32 : i32
    %c8_i32_127 = arith.constant 8 : i32
    %324 = arith.muli %323, %c8_i32_127 : i32
    %325 = tpu.assume_multiple %324, 8 : i32
    %326 = arith.index_cast %325 : i32 to index
    %c0_128 = arith.constant 0 : index
    %327 = vector.load %arg16[%326, %c0_128] : memref<64x384xf32, #tpu.memory_space<vmem>>, vector<8x384xf32>
    %328 = vector.extract_strided_slice %284 {offsets = [8, 384], sizes = [8, 384], strides = [1, 1]} : vector<16x768xf32> to vector<8x384xf32>
    %329 = vector.extract_strided_slice %283 {offsets = [8, 0], sizes = [8, 128], strides = [1, 1]} : vector<16x128xf32> to vector<8x128xf32>
    %330 = vector.extract_strided_slice %327 {offsets = [0, 0], sizes = [8, 128], strides = [1, 1]} : vector<8x384xf32> to vector<8x128xf32>
    %331 = vector.extract_strided_slice %328 {offsets = [0, 0], sizes = [8, 128], strides = [1, 1]} : vector<8x384xf32> to vector<8x128xf32>
    %332 = arith.addf %330, %331 : vector<8x128xf32>
    %cst_129 = arith.constant 0.000000e+00 : f32
    %333 = vector.broadcast %cst_129 : f32 to vector<8x128xf32>
    %334 = arith.subf %333, %332 : vector<8x128xf32>
    %335 = math.exp %334 : vector<8x128xf32>
    %cst_130 = arith.constant 1.000000e+00 : f32
    %336 = vector.broadcast %cst_130 : f32 to vector<8x128xf32>
    %337 = arith.addf %336, %335 : vector<8x128xf32>
    %cst_131 = arith.constant 1.000000e+00 : f32
    %338 = vector.broadcast %cst_131 : f32 to vector<8x128xf32>
    %339 = arith.divf %338, %337 : vector<8x128xf32>
    %340 = vector.extract_strided_slice %327 {offsets = [0, 128], sizes = [8, 128], strides = [1, 1]} : vector<8x384xf32> to vector<8x128xf32>
    %341 = vector.extract_strided_slice %328 {offsets = [0, 128], sizes = [8, 128], strides = [1, 1]} : vector<8x384xf32> to vector<8x128xf32>
    %342 = arith.addf %340, %341 : vector<8x128xf32>
    %cst_132 = arith.constant 0.000000e+00 : f32
    %343 = vector.broadcast %cst_132 : f32 to vector<8x128xf32>
    %344 = arith.subf %343, %342 : vector<8x128xf32>
    %345 = math.exp %344 : vector<8x128xf32>
    %cst_133 = arith.constant 1.000000e+00 : f32
    %346 = vector.broadcast %cst_133 : f32 to vector<8x128xf32>
    %347 = arith.addf %346, %345 : vector<8x128xf32>
    %cst_134 = arith.constant 1.000000e+00 : f32
    %348 = vector.broadcast %cst_134 : f32 to vector<8x128xf32>
    %349 = arith.divf %348, %347 : vector<8x128xf32>
    %350 = vector.extract_strided_slice %327 {offsets = [0, 256], sizes = [8, 128], strides = [1, 1]} : vector<8x384xf32> to vector<8x128xf32>
    %351 = vector.extract_strided_slice %328 {offsets = [0, 256], sizes = [8, 128], strides = [1, 1]} : vector<8x384xf32> to vector<8x128xf32>
    %352 = vector.broadcast %27 : vector<1x128xf32> to vector<8x128xf32>
    %353 = arith.addf %351, %352 : vector<8x128xf32>
    %354 = arith.mulf %339, %353 : vector<8x128xf32>
    %355 = arith.addf %350, %354 : vector<8x128xf32>
    %356 = math.tanh %355 : vector<8x128xf32>
    %cst_135 = arith.constant 1.000000e+00 : f32
    %357 = vector.broadcast %cst_135 : f32 to vector<8x128xf32>
    %358 = arith.subf %357, %349 : vector<8x128xf32>
    %359 = arith.mulf %358, %356 : vector<8x128xf32>
    %360 = arith.mulf %349, %329 : vector<8x128xf32>
    %361 = arith.addf %359, %360 : vector<8x128xf32>
    %c0_136 = arith.constant 0 : index
    %c0_137 = arith.constant 0 : index
    %362 = vector.load %arg14[%c0_136, %c0_137] : memref<16x128xf32, #tpu.memory_space<vmem>>, vector<8x128xf32>
    tpu.vector_store %arg14[%c0_136, %c0_137], %322 {strides = array<i32>} : memref<16x128xf32, #tpu.memory_space<vmem>>, vector<8x128xf32>,
    %c8_138 = arith.constant 8 : index
    %c0_139 = arith.constant 0 : index
    %363 = vector.load %arg14[%c8_138, %c0_139] : memref<16x128xf32, #tpu.memory_space<vmem>>, vector<8x128xf32>
    tpu.vector_store %arg14[%c8_138, %c0_139], %361 {strides = array<i32>} : memref<16x128xf32, #tpu.memory_space<vmem>>, vector<8x128xf32>,
    %364 = arith.index_cast %286 : i32 to index
    %c0_140 = arith.constant 0 : index
    %365 = vector.load %arg12[%364, %c0_140] : memref<64x128xf32, #tpu.memory_space<vmem>>, vector<8x128xf32>
    tpu.vector_store %arg12[%364, %c0_140], %322 {strides = array<i32>} : memref<64x128xf32, #tpu.memory_space<vmem>>, vector<8x128xf32>,
    %366 = arith.index_cast %325 : i32 to index
    %c0_141 = arith.constant 0 : index
    %367 = vector.load %arg13[%366, %c0_141] : memref<64x128xf32, #tpu.memory_space<vmem>>, vector<8x128xf32>
    tpu.vector_store %arg13[%366, %c0_141], %361 {strides = array<i32>} : memref<64x128xf32, #tpu.memory_space<vmem>>, vector<8x128xf32>,
    %c4_i32 = arith.constant 4 : i32
    %c0_142 = arith.constant 0 : index
    %c0_143 = arith.constant 0 : index
    %368 = vector.load %arg14[%c0_142, %c0_143] : memref<16x128xf32, #tpu.memory_space<vmem>>, vector<16x128xf32>
    %cst_144 = arith.constant dense<0.000000e+00> : vector<16x768xf32>
    %369 = tpu.matmul %368, %25, %cst_144 {dimension_numbers = #tpu.dot_dimension_numbers<[1], [0], [0], [1], [0, 0, 1, 1], [], []>} : vector<16x128xf32>, vector<128x768xf32>, vector<16x768xf32> -> vector<16x768xf32>
    %c8_i32_145 = arith.constant 8 : i32
    %370 = arith.muli %c4_i32, %c8_i32_145 : i32
    %371 = tpu.assume_multiple %370, 8 : i32
    %372 = arith.index_cast %371 : i32 to index
    %c0_146 = arith.constant 0 : index
    %373 = vector.load %arg15[%372, %c0_146] : memref<64x384xf32, #tpu.memory_space<vmem>>, vector<8x384xf32>
    %374 = vector.extract_strided_slice %369 {offsets = [0, 0], sizes = [8, 384], strides = [1, 1]} : vector<16x768xf32> to vector<8x384xf32>
    %375 = vector.extract_strided_slice %368 {offsets = [0, 0], sizes = [8, 128], strides = [1, 1]} : vector<16x128xf32> to vector<8x128xf32>
    %376 = vector.extract_strided_slice %373 {offsets = [0, 0], sizes = [8, 128], strides = [1, 1]} : vector<8x384xf32> to vector<8x128xf32>
    %377 = vector.extract_strided_slice %374 {offsets = [0, 0], sizes = [8, 128], strides = [1, 1]} : vector<8x384xf32> to vector<8x128xf32>
    %378 = arith.addf %376, %377 : vector<8x128xf32>
    %cst_147 = arith.constant 0.000000e+00 : f32
    %379 = vector.broadcast %cst_147 : f32 to vector<8x128xf32>
    %380 = arith.subf %379, %378 : vector<8x128xf32>
    %381 = math.exp %380 : vector<8x128xf32>
    %cst_148 = arith.constant 1.000000e+00 : f32
    %382 = vector.broadcast %cst_148 : f32 to vector<8x128xf32>
    %383 = arith.addf %382, %381 : vector<8x128xf32>
    %cst_149 = arith.constant 1.000000e+00 : f32
    %384 = vector.broadcast %cst_149 : f32 to vector<8x128xf32>
    %385 = arith.divf %384, %383 : vector<8x128xf32>
    %386 = vector.extract_strided_slice %373 {offsets = [0, 128], sizes = [8, 128], strides = [1, 1]} : vector<8x384xf32> to vector<8x128xf32>
    %387 = vector.extract_strided_slice %374 {offsets = [0, 128], sizes = [8, 128], strides = [1, 1]} : vector<8x384xf32> to vector<8x128xf32>
    %388 = arith.addf %386, %387 : vector<8x128xf32>
    %cst_150 = arith.constant 0.000000e+00 : f32
    %389 = vector.broadcast %cst_150 : f32 to vector<8x128xf32>
    %390 = arith.subf %389, %388 : vector<8x128xf32>
    %391 = math.exp %390 : vector<8x128xf32>
    %cst_151 = arith.constant 1.000000e+00 : f32
    %392 = vector.broadcast %cst_151 : f32 to vector<8x128xf32>
    %393 = arith.addf %392, %391 : vector<8x128xf32>
    %cst_152 = arith.constant 1.000000e+00 : f32
    %394 = vector.broadcast %cst_152 : f32 to vector<8x128xf32>
    %395 = arith.divf %394, %393 : vector<8x128xf32>
    %396 = vector.extract_strided_slice %373 {offsets = [0, 256], sizes = [8, 128], strides = [1, 1]} : vector<8x384xf32> to vector<8x128xf32>
    %397 = vector.extract_strided_slice %374 {offsets = [0, 256], sizes = [8, 128], strides = [1, 1]} : vector<8x384xf32> to vector<8x128xf32>
    %398 = vector.broadcast %26 : vector<1x128xf32> to vector<8x128xf32>
    %399 = arith.addf %397, %398 : vector<8x128xf32>
    %400 = arith.mulf %385, %399 : vector<8x128xf32>
    %401 = arith.addf %396, %400 : vector<8x128xf32>
    %402 = math.tanh %401 : vector<8x128xf32>
    %cst_153 = arith.constant 1.000000e+00 : f32
    %403 = vector.broadcast %cst_153 : f32 to vector<8x128xf32>
    %404 = arith.subf %403, %395 : vector<8x128xf32>
    %405 = arith.mulf %404, %402 : vector<8x128xf32>
    %406 = arith.mulf %395, %375 : vector<8x128xf32>
    %407 = arith.addf %405, %406 : vector<8x128xf32>
    %c7_i32_154 = arith.constant 7 : i32
    %408 = arith.subi %c7_i32_154, %c4_i32 : i32
    %c8_i32_155 = arith.constant 8 : i32
    %409 = arith.muli %408, %c8_i32_155 : i32
    %410 = tpu.assume_multiple %409, 8 : i32
    %411 = arith.index_cast %410 : i32 to index
    %c0_156 = arith.constant 0 : index
    %412 = vector.load %arg16[%411, %c0_156] : memref<64x384xf32, #tpu.memory_space<vmem>>, vector<8x384xf32>
    %413 = vector.extract_strided_slice %369 {offsets = [8, 384], sizes = [8, 384], strides = [1, 1]} : vector<16x768xf32> to vector<8x384xf32>
    %414 = vector.extract_strided_slice %368 {offsets = [8, 0], sizes = [8, 128], strides = [1, 1]} : vector<16x128xf32> to vector<8x128xf32>
    %415 = vector.extract_strided_slice %412 {offsets = [0, 0], sizes = [8, 128], strides = [1, 1]} : vector<8x384xf32> to vector<8x128xf32>
    %416 = vector.extract_strided_slice %413 {offsets = [0, 0], sizes = [8, 128], strides = [1, 1]} : vector<8x384xf32> to vector<8x128xf32>
    %417 = arith.addf %415, %416 : vector<8x128xf32>
    %cst_157 = arith.constant 0.000000e+00 : f32
    %418 = vector.broadcast %cst_157 : f32 to vector<8x128xf32>
    %419 = arith.subf %418, %417 : vector<8x128xf32>
    %420 = math.exp %419 : vector<8x128xf32>
    %cst_158 = arith.constant 1.000000e+00 : f32
    %421 = vector.broadcast %cst_158 : f32 to vector<8x128xf32>
    %422 = arith.addf %421, %420 : vector<8x128xf32>
    %cst_159 = arith.constant 1.000000e+00 : f32
    %423 = vector.broadcast %cst_159 : f32 to vector<8x128xf32>
    %424 = arith.divf %423, %422 : vector<8x128xf32>
    %425 = vector.extract_strided_slice %412 {offsets = [0, 128], sizes = [8, 128], strides = [1, 1]} : vector<8x384xf32> to vector<8x128xf32>
    %426 = vector.extract_strided_slice %413 {offsets = [0, 128], sizes = [8, 128], strides = [1, 1]} : vector<8x384xf32> to vector<8x128xf32>
    %427 = arith.addf %425, %426 : vector<8x128xf32>
    %cst_160 = arith.constant 0.000000e+00 : f32
    %428 = vector.broadcast %cst_160 : f32 to vector<8x128xf32>
    %429 = arith.subf %428, %427 : vector<8x128xf32>
    %430 = math.exp %429 : vector<8x128xf32>
    %cst_161 = arith.constant 1.000000e+00 : f32
    %431 = vector.broadcast %cst_161 : f32 to vector<8x128xf32>
    %432 = arith.addf %431, %430 : vector<8x128xf32>
    %cst_162 = arith.constant 1.000000e+00 : f32
    %433 = vector.broadcast %cst_162 : f32 to vector<8x128xf32>
    %434 = arith.divf %433, %432 : vector<8x128xf32>
    %435 = vector.extract_strided_slice %412 {offsets = [0, 256], sizes = [8, 128], strides = [1, 1]} : vector<8x384xf32> to vector<8x128xf32>
    %436 = vector.extract_strided_slice %413 {offsets = [0, 256], sizes = [8, 128], strides = [1, 1]} : vector<8x384xf32> to vector<8x128xf32>
    %437 = vector.broadcast %27 : vector<1x128xf32> to vector<8x128xf32>
    %438 = arith.addf %436, %437 : vector<8x128xf32>
    %439 = arith.mulf %424, %438 : vector<8x128xf32>
    %440 = arith.addf %435, %439 : vector<8x128xf32>
    %441 = math.tanh %440 : vector<8x128xf32>
    %cst_163 = arith.constant 1.000000e+00 : f32
    %442 = vector.broadcast %cst_163 : f32 to vector<8x128xf32>
    %443 = arith.subf %442, %434 : vector<8x128xf32>
    %444 = arith.mulf %443, %441 : vector<8x128xf32>
    %445 = arith.mulf %434, %414 : vector<8x128xf32>
    %446 = arith.addf %444, %445 : vector<8x128xf32>
    %c0_164 = arith.constant 0 : index
    %c0_165 = arith.constant 0 : index
    %447 = vector.load %arg14[%c0_164, %c0_165] : memref<16x128xf32, #tpu.memory_space<vmem>>, vector<8x128xf32>
    tpu.vector_store %arg14[%c0_164, %c0_165], %407 {strides = array<i32>} : memref<16x128xf32, #tpu.memory_space<vmem>>, vector<8x128xf32>,
    %c8_166 = arith.constant 8 : index
    %c0_167 = arith.constant 0 : index
    %448 = vector.load %arg14[%c8_166, %c0_167] : memref<16x128xf32, #tpu.memory_space<vmem>>, vector<8x128xf32>
    tpu.vector_store %arg14[%c8_166, %c0_167], %446 {strides = array<i32>} : memref<16x128xf32, #tpu.memory_space<vmem>>, vector<8x128xf32>,
    %449 = arith.index_cast %371 : i32 to index
    %c0_168 = arith.constant 0 : index
    %450 = vector.load %arg12[%449, %c0_168] : memref<64x128xf32, #tpu.memory_space<vmem>>, vector<8x128xf32>
    tpu.vector_store %arg12[%449, %c0_168], %407 {strides = array<i32>} : memref<64x128xf32, #tpu.memory_space<vmem>>, vector<8x128xf32>,
    %451 = arith.index_cast %410 : i32 to index
    %c0_169 = arith.constant 0 : index
    %452 = vector.load %arg13[%451, %c0_169] : memref<64x128xf32, #tpu.memory_space<vmem>>, vector<8x128xf32>
    tpu.vector_store %arg13[%451, %c0_169], %446 {strides = array<i32>} : memref<64x128xf32, #tpu.memory_space<vmem>>, vector<8x128xf32>,
    %c5_i32 = arith.constant 5 : i32
    %c0_170 = arith.constant 0 : index
    %c0_171 = arith.constant 0 : index
    %453 = vector.load %arg14[%c0_170, %c0_171] : memref<16x128xf32, #tpu.memory_space<vmem>>, vector<16x128xf32>
    %cst_172 = arith.constant dense<0.000000e+00> : vector<16x768xf32>
    %454 = tpu.matmul %453, %25, %cst_172 {dimension_numbers = #tpu.dot_dimension_numbers<[1], [0], [0], [1], [0, 0, 1, 1], [], []>} : vector<16x128xf32>, vector<128x768xf32>, vector<16x768xf32> -> vector<16x768xf32>
    %c8_i32_173 = arith.constant 8 : i32
    %455 = arith.muli %c5_i32, %c8_i32_173 : i32
    %456 = tpu.assume_multiple %455, 8 : i32
    %457 = arith.index_cast %456 : i32 to index
    %c0_174 = arith.constant 0 : index
    %458 = vector.load %arg15[%457, %c0_174] : memref<64x384xf32, #tpu.memory_space<vmem>>, vector<8x384xf32>
    %459 = vector.extract_strided_slice %454 {offsets = [0, 0], sizes = [8, 384], strides = [1, 1]} : vector<16x768xf32> to vector<8x384xf32>
    %460 = vector.extract_strided_slice %453 {offsets = [0, 0], sizes = [8, 128], strides = [1, 1]} : vector<16x128xf32> to vector<8x128xf32>
    %461 = vector.extract_strided_slice %458 {offsets = [0, 0], sizes = [8, 128], strides = [1, 1]} : vector<8x384xf32> to vector<8x128xf32>
    %462 = vector.extract_strided_slice %459 {offsets = [0, 0], sizes = [8, 128], strides = [1, 1]} : vector<8x384xf32> to vector<8x128xf32>
    %463 = arith.addf %461, %462 : vector<8x128xf32>
    %cst_175 = arith.constant 0.000000e+00 : f32
    %464 = vector.broadcast %cst_175 : f32 to vector<8x128xf32>
    %465 = arith.subf %464, %463 : vector<8x128xf32>
    %466 = math.exp %465 : vector<8x128xf32>
    %cst_176 = arith.constant 1.000000e+00 : f32
    %467 = vector.broadcast %cst_176 : f32 to vector<8x128xf32>
    %468 = arith.addf %467, %466 : vector<8x128xf32>
    %cst_177 = arith.constant 1.000000e+00 : f32
    %469 = vector.broadcast %cst_177 : f32 to vector<8x128xf32>
    %470 = arith.divf %469, %468 : vector<8x128xf32>
    %471 = vector.extract_strided_slice %458 {offsets = [0, 128], sizes = [8, 128], strides = [1, 1]} : vector<8x384xf32> to vector<8x128xf32>
    %472 = vector.extract_strided_slice %459 {offsets = [0, 128], sizes = [8, 128], strides = [1, 1]} : vector<8x384xf32> to vector<8x128xf32>
    %473 = arith.addf %471, %472 : vector<8x128xf32>
    %cst_178 = arith.constant 0.000000e+00 : f32
    %474 = vector.broadcast %cst_178 : f32 to vector<8x128xf32>
    %475 = arith.subf %474, %473 : vector<8x128xf32>
    %476 = math.exp %475 : vector<8x128xf32>
    %cst_179 = arith.constant 1.000000e+00 : f32
    %477 = vector.broadcast %cst_179 : f32 to vector<8x128xf32>
    %478 = arith.addf %477, %476 : vector<8x128xf32>
    %cst_180 = arith.constant 1.000000e+00 : f32
    %479 = vector.broadcast %cst_180 : f32 to vector<8x128xf32>
    %480 = arith.divf %479, %478 : vector<8x128xf32>
    %481 = vector.extract_strided_slice %458 {offsets = [0, 256], sizes = [8, 128], strides = [1, 1]} : vector<8x384xf32> to vector<8x128xf32>
    %482 = vector.extract_strided_slice %459 {offsets = [0, 256], sizes = [8, 128], strides = [1, 1]} : vector<8x384xf32> to vector<8x128xf32>
    %483 = vector.broadcast %26 : vector<1x128xf32> to vector<8x128xf32>
    %484 = arith.addf %482, %483 : vector<8x128xf32>
    %485 = arith.mulf %470, %484 : vector<8x128xf32>
    %486 = arith.addf %481, %485 : vector<8x128xf32>
    %487 = math.tanh %486 : vector<8x128xf32>
    %cst_181 = arith.constant 1.000000e+00 : f32
    %488 = vector.broadcast %cst_181 : f32 to vector<8x128xf32>
    %489 = arith.subf %488, %480 : vector<8x128xf32>
    %490 = arith.mulf %489, %487 : vector<8x128xf32>
    %491 = arith.mulf %480, %460 : vector<8x128xf32>
    %492 = arith.addf %490, %491 : vector<8x128xf32>
    %c7_i32_182 = arith.constant 7 : i32
    %493 = arith.subi %c7_i32_182, %c5_i32 : i32
    %c8_i32_183 = arith.constant 8 : i32
    %494 = arith.muli %493, %c8_i32_183 : i32
    %495 = tpu.assume_multiple %494, 8 : i32
    %496 = arith.index_cast %495 : i32 to index
    %c0_184 = arith.constant 0 : index
    %497 = vector.load %arg16[%496, %c0_184] : memref<64x384xf32, #tpu.memory_space<vmem>>, vector<8x384xf32>
    %498 = vector.extract_strided_slice %454 {offsets = [8, 384], sizes = [8, 384], strides = [1, 1]} : vector<16x768xf32> to vector<8x384xf32>
    %499 = vector.extract_strided_slice %453 {offsets = [8, 0], sizes = [8, 128], strides = [1, 1]} : vector<16x128xf32> to vector<8x128xf32>
    %500 = vector.extract_strided_slice %497 {offsets = [0, 0], sizes = [8, 128], strides = [1, 1]} : vector<8x384xf32> to vector<8x128xf32>
    %501 = vector.extract_strided_slice %498 {offsets = [0, 0], sizes = [8, 128], strides = [1, 1]} : vector<8x384xf32> to vector<8x128xf32>
    %502 = arith.addf %500, %501 : vector<8x128xf32>
    %cst_185 = arith.constant 0.000000e+00 : f32
    %503 = vector.broadcast %cst_185 : f32 to vector<8x128xf32>
    %504 = arith.subf %503, %502 : vector<8x128xf32>
    %505 = math.exp %504 : vector<8x128xf32>
    %cst_186 = arith.constant 1.000000e+00 : f32
    %506 = vector.broadcast %cst_186 : f32 to vector<8x128xf32>
    %507 = arith.addf %506, %505 : vector<8x128xf32>
    %cst_187 = arith.constant 1.000000e+00 : f32
    %508 = vector.broadcast %cst_187 : f32 to vector<8x128xf32>
    %509 = arith.divf %508, %507 : vector<8x128xf32>
    %510 = vector.extract_strided_slice %497 {offsets = [0, 128], sizes = [8, 128], strides = [1, 1]} : vector<8x384xf32> to vector<8x128xf32>
    %511 = vector.extract_strided_slice %498 {offsets = [0, 128], sizes = [8, 128], strides = [1, 1]} : vector<8x384xf32> to vector<8x128xf32>
    %512 = arith.addf %510, %511 : vector<8x128xf32>
    %cst_188 = arith.constant 0.000000e+00 : f32
    %513 = vector.broadcast %cst_188 : f32 to vector<8x128xf32>
    %514 = arith.subf %513, %512 : vector<8x128xf32>
    %515 = math.exp %514 : vector<8x128xf32>
    %cst_189 = arith.constant 1.000000e+00 : f32
    %516 = vector.broadcast %cst_189 : f32 to vector<8x128xf32>
    %517 = arith.addf %516, %515 : vector<8x128xf32>
    %cst_190 = arith.constant 1.000000e+00 : f32
    %518 = vector.broadcast %cst_190 : f32 to vector<8x128xf32>
    %519 = arith.divf %518, %517 : vector<8x128xf32>
    %520 = vector.extract_strided_slice %497 {offsets = [0, 256], sizes = [8, 128], strides = [1, 1]} : vector<8x384xf32> to vector<8x128xf32>
    %521 = vector.extract_strided_slice %498 {offsets = [0, 256], sizes = [8, 128], strides = [1, 1]} : vector<8x384xf32> to vector<8x128xf32>
    %522 = vector.broadcast %27 : vector<1x128xf32> to vector<8x128xf32>
    %523 = arith.addf %521, %522 : vector<8x128xf32>
    %524 = arith.mulf %509, %523 : vector<8x128xf32>
    %525 = arith.addf %520, %524 : vector<8x128xf32>
    %526 = math.tanh %525 : vector<8x128xf32>
    %cst_191 = arith.constant 1.000000e+00 : f32
    %527 = vector.broadcast %cst_191 : f32 to vector<8x128xf32>
    %528 = arith.subf %527, %519 : vector<8x128xf32>
    %529 = arith.mulf %528, %526 : vector<8x128xf32>
    %530 = arith.mulf %519, %499 : vector<8x128xf32>
    %531 = arith.addf %529, %530 : vector<8x128xf32>
    %c0_192 = arith.constant 0 : index
    %c0_193 = arith.constant 0 : index
    %532 = vector.load %arg14[%c0_192, %c0_193] : memref<16x128xf32, #tpu.memory_space<vmem>>, vector<8x128xf32>
    tpu.vector_store %arg14[%c0_192, %c0_193], %492 {strides = array<i32>} : memref<16x128xf32, #tpu.memory_space<vmem>>, vector<8x128xf32>,
    %c8_194 = arith.constant 8 : index
    %c0_195 = arith.constant 0 : index
    %533 = vector.load %arg14[%c8_194, %c0_195] : memref<16x128xf32, #tpu.memory_space<vmem>>, vector<8x128xf32>
    tpu.vector_store %arg14[%c8_194, %c0_195], %531 {strides = array<i32>} : memref<16x128xf32, #tpu.memory_space<vmem>>, vector<8x128xf32>,
    %534 = arith.index_cast %456 : i32 to index
    %c0_196 = arith.constant 0 : index
    %535 = vector.load %arg12[%534, %c0_196] : memref<64x128xf32, #tpu.memory_space<vmem>>, vector<8x128xf32>
    tpu.vector_store %arg12[%534, %c0_196], %492 {strides = array<i32>} : memref<64x128xf32, #tpu.memory_space<vmem>>, vector<8x128xf32>,
    %536 = arith.index_cast %495 : i32 to index
    %c0_197 = arith.constant 0 : index
    %537 = vector.load %arg13[%536, %c0_197] : memref<64x128xf32, #tpu.memory_space<vmem>>, vector<8x128xf32>
    tpu.vector_store %arg13[%536, %c0_197], %531 {strides = array<i32>} : memref<64x128xf32, #tpu.memory_space<vmem>>, vector<8x128xf32>,
    %c6_i32 = arith.constant 6 : i32
    %c0_198 = arith.constant 0 : index
    %c0_199 = arith.constant 0 : index
    %538 = vector.load %arg14[%c0_198, %c0_199] : memref<16x128xf32, #tpu.memory_space<vmem>>, vector<16x128xf32>
    %cst_200 = arith.constant dense<0.000000e+00> : vector<16x768xf32>
    %539 = tpu.matmul %538, %25, %cst_200 {dimension_numbers = #tpu.dot_dimension_numbers<[1], [0], [0], [1], [0, 0, 1, 1], [], []>} : vector<16x128xf32>, vector<128x768xf32>, vector<16x768xf32> -> vector<16x768xf32>
    %c8_i32_201 = arith.constant 8 : i32
    %540 = arith.muli %c6_i32, %c8_i32_201 : i32
    %541 = tpu.assume_multiple %540, 8 : i32
    %542 = arith.index_cast %541 : i32 to index
    %c0_202 = arith.constant 0 : index
    %543 = vector.load %arg15[%542, %c0_202] : memref<64x384xf32, #tpu.memory_space<vmem>>, vector<8x384xf32>
    %544 = vector.extract_strided_slice %539 {offsets = [0, 0], sizes = [8, 384], strides = [1, 1]} : vector<16x768xf32> to vector<8x384xf32>
    %545 = vector.extract_strided_slice %538 {offsets = [0, 0], sizes = [8, 128], strides = [1, 1]} : vector<16x128xf32> to vector<8x128xf32>
    %546 = vector.extract_strided_slice %543 {offsets = [0, 0], sizes = [8, 128], strides = [1, 1]} : vector<8x384xf32> to vector<8x128xf32>
    %547 = vector.extract_strided_slice %544 {offsets = [0, 0], sizes = [8, 128], strides = [1, 1]} : vector<8x384xf32> to vector<8x128xf32>
    %548 = arith.addf %546, %547 : vector<8x128xf32>
    %cst_203 = arith.constant 0.000000e+00 : f32
    %549 = vector.broadcast %cst_203 : f32 to vector<8x128xf32>
    %550 = arith.subf %549, %548 : vector<8x128xf32>
    %551 = math.exp %550 : vector<8x128xf32>
    %cst_204 = arith.constant 1.000000e+00 : f32
    %552 = vector.broadcast %cst_204 : f32 to vector<8x128xf32>
    %553 = arith.addf %552, %551 : vector<8x128xf32>
    %cst_205 = arith.constant 1.000000e+00 : f32
    %554 = vector.broadcast %cst_205 : f32 to vector<8x128xf32>
    %555 = arith.divf %554, %553 : vector<8x128xf32>
    %556 = vector.extract_strided_slice %543 {offsets = [0, 128], sizes = [8, 128], strides = [1, 1]} : vector<8x384xf32> to vector<8x128xf32>
    %557 = vector.extract_strided_slice %544 {offsets = [0, 128], sizes = [8, 128], strides = [1, 1]} : vector<8x384xf32> to vector<8x128xf32>
    %558 = arith.addf %556, %557 : vector<8x128xf32>
    %cst_206 = arith.constant 0.000000e+00 : f32
    %559 = vector.broadcast %cst_206 : f32 to vector<8x128xf32>
    %560 = arith.subf %559, %558 : vector<8x128xf32>
    %561 = math.exp %560 : vector<8x128xf32>
    %cst_207 = arith.constant 1.000000e+00 : f32
    %562 = vector.broadcast %cst_207 : f32 to vector<8x128xf32>
    %563 = arith.addf %562, %561 : vector<8x128xf32>
    %cst_208 = arith.constant 1.000000e+00 : f32
    %564 = vector.broadcast %cst_208 : f32 to vector<8x128xf32>
    %565 = arith.divf %564, %563 : vector<8x128xf32>
    %566 = vector.extract_strided_slice %543 {offsets = [0, 256], sizes = [8, 128], strides = [1, 1]} : vector<8x384xf32> to vector<8x128xf32>
    %567 = vector.extract_strided_slice %544 {offsets = [0, 256], sizes = [8, 128], strides = [1, 1]} : vector<8x384xf32> to vector<8x128xf32>
    %568 = vector.broadcast %26 : vector<1x128xf32> to vector<8x128xf32>
    %569 = arith.addf %567, %568 : vector<8x128xf32>
    %570 = arith.mulf %555, %569 : vector<8x128xf32>
    %571 = arith.addf %566, %570 : vector<8x128xf32>
    %572 = math.tanh %571 : vector<8x128xf32>
    %cst_209 = arith.constant 1.000000e+00 : f32
    %573 = vector.broadcast %cst_209 : f32 to vector<8x128xf32>
    %574 = arith.subf %573, %565 : vector<8x128xf32>
    %575 = arith.mulf %574, %572 : vector<8x128xf32>
    %576 = arith.mulf %565, %545 : vector<8x128xf32>
    %577 = arith.addf %575, %576 : vector<8x128xf32>
    %c7_i32_210 = arith.constant 7 : i32
    %578 = arith.subi %c7_i32_210, %c6_i32 : i32
    %c8_i32_211 = arith.constant 8 : i32
    %579 = arith.muli %578, %c8_i32_211 : i32
    %580 = tpu.assume_multiple %579, 8 : i32
    %581 = arith.index_cast %580 : i32 to index
    %c0_212 = arith.constant 0 : index
    %582 = vector.load %arg16[%581, %c0_212] : memref<64x384xf32, #tpu.memory_space<vmem>>, vector<8x384xf32>
    %583 = vector.extract_strided_slice %539 {offsets = [8, 384], sizes = [8, 384], strides = [1, 1]} : vector<16x768xf32> to vector<8x384xf32>
    %584 = vector.extract_strided_slice %538 {offsets = [8, 0], sizes = [8, 128], strides = [1, 1]} : vector<16x128xf32> to vector<8x128xf32>
    %585 = vector.extract_strided_slice %582 {offsets = [0, 0], sizes = [8, 128], strides = [1, 1]} : vector<8x384xf32> to vector<8x128xf32>
    %586 = vector.extract_strided_slice %583 {offsets = [0, 0], sizes = [8, 128], strides = [1, 1]} : vector<8x384xf32> to vector<8x128xf32>
    %587 = arith.addf %585, %586 : vector<8x128xf32>
    %cst_213 = arith.constant 0.000000e+00 : f32
    %588 = vector.broadcast %cst_213 : f32 to vector<8x128xf32>
    %589 = arith.subf %588, %587 : vector<8x128xf32>
    %590 = math.exp %589 : vector<8x128xf32>
    %cst_214 = arith.constant 1.000000e+00 : f32
    %591 = vector.broadcast %cst_214 : f32 to vector<8x128xf32>
    %592 = arith.addf %591, %590 : vector<8x128xf32>
    %cst_215 = arith.constant 1.000000e+00 : f32
    %593 = vector.broadcast %cst_215 : f32 to vector<8x128xf32>
    %594 = arith.divf %593, %592 : vector<8x128xf32>
    %595 = vector.extract_strided_slice %582 {offsets = [0, 128], sizes = [8, 128], strides = [1, 1]} : vector<8x384xf32> to vector<8x128xf32>
    %596 = vector.extract_strided_slice %583 {offsets = [0, 128], sizes = [8, 128], strides = [1, 1]} : vector<8x384xf32> to vector<8x128xf32>
    %597 = arith.addf %595, %596 : vector<8x128xf32>
    %cst_216 = arith.constant 0.000000e+00 : f32
    %598 = vector.broadcast %cst_216 : f32 to vector<8x128xf32>
    %599 = arith.subf %598, %597 : vector<8x128xf32>
    %600 = math.exp %599 : vector<8x128xf32>
    %cst_217 = arith.constant 1.000000e+00 : f32
    %601 = vector.broadcast %cst_217 : f32 to vector<8x128xf32>
    %602 = arith.addf %601, %600 : vector<8x128xf32>
    %cst_218 = arith.constant 1.000000e+00 : f32
    %603 = vector.broadcast %cst_218 : f32 to vector<8x128xf32>
    %604 = arith.divf %603, %602 : vector<8x128xf32>
    %605 = vector.extract_strided_slice %582 {offsets = [0, 256], sizes = [8, 128], strides = [1, 1]} : vector<8x384xf32> to vector<8x128xf32>
    %606 = vector.extract_strided_slice %583 {offsets = [0, 256], sizes = [8, 128], strides = [1, 1]} : vector<8x384xf32> to vector<8x128xf32>
    %607 = vector.broadcast %27 : vector<1x128xf32> to vector<8x128xf32>
    %608 = arith.addf %606, %607 : vector<8x128xf32>
    %609 = arith.mulf %594, %608 : vector<8x128xf32>
    %610 = arith.addf %605, %609 : vector<8x128xf32>
    %611 = math.tanh %610 : vector<8x128xf32>
    %cst_219 = arith.constant 1.000000e+00 : f32
    %612 = vector.broadcast %cst_219 : f32 to vector<8x128xf32>
    %613 = arith.subf %612, %604 : vector<8x128xf32>
    %614 = arith.mulf %613, %611 : vector<8x128xf32>
    %615 = arith.mulf %604, %584 : vector<8x128xf32>
    %616 = arith.addf %614, %615 : vector<8x128xf32>
    %c0_220 = arith.constant 0 : index
    %c0_221 = arith.constant 0 : index
    %617 = vector.load %arg14[%c0_220, %c0_221] : memref<16x128xf32, #tpu.memory_space<vmem>>, vector<8x128xf32>
    tpu.vector_store %arg14[%c0_220, %c0_221], %577 {strides = array<i32>} : memref<16x128xf32, #tpu.memory_space<vmem>>, vector<8x128xf32>,
    %c8_222 = arith.constant 8 : index
    %c0_223 = arith.constant 0 : index
    %618 = vector.load %arg14[%c8_222, %c0_223] : memref<16x128xf32, #tpu.memory_space<vmem>>, vector<8x128xf32>
    tpu.vector_store %arg14[%c8_222, %c0_223], %616 {strides = array<i32>} : memref<16x128xf32, #tpu.memory_space<vmem>>, vector<8x128xf32>,
    %619 = arith.index_cast %541 : i32 to index
    %c0_224 = arith.constant 0 : index
    %620 = vector.load %arg12[%619, %c0_224] : memref<64x128xf32, #tpu.memory_space<vmem>>, vector<8x128xf32>
    tpu.vector_store %arg12[%619, %c0_224], %577 {strides = array<i32>} : memref<64x128xf32, #tpu.memory_space<vmem>>, vector<8x128xf32>,
    %621 = arith.index_cast %580 : i32 to index
    %c0_225 = arith.constant 0 : index
    %622 = vector.load %arg13[%621, %c0_225] : memref<64x128xf32, #tpu.memory_space<vmem>>, vector<8x128xf32>
    tpu.vector_store %arg13[%621, %c0_225], %616 {strides = array<i32>} : memref<64x128xf32, #tpu.memory_space<vmem>>, vector<8x128xf32>,
    %c7_i32_226 = arith.constant 7 : i32
    %c0_227 = arith.constant 0 : index
    %c0_228 = arith.constant 0 : index
    %623 = vector.load %arg14[%c0_227, %c0_228] : memref<16x128xf32, #tpu.memory_space<vmem>>, vector<16x128xf32>
    %cst_229 = arith.constant dense<0.000000e+00> : vector<16x768xf32>
    %624 = tpu.matmul %623, %25, %cst_229 {dimension_numbers = #tpu.dot_dimension_numbers<[1], [0], [0], [1], [0, 0, 1, 1], [], []>} : vector<16x128xf32>, vector<128x768xf32>, vector<16x768xf32> -> vector<16x768xf32>
    %c8_i32_230 = arith.constant 8 : i32
    %625 = arith.muli %c7_i32_226, %c8_i32_230 : i32
    %626 = tpu.assume_multiple %625, 8 : i32
    %627 = arith.index_cast %626 : i32 to index
    %c0_231 = arith.constant 0 : index
    %628 = vector.load %arg15[%627, %c0_231] : memref<64x384xf32, #tpu.memory_space<vmem>>, vector<8x384xf32>
    %629 = vector.extract_strided_slice %624 {offsets = [0, 0], sizes = [8, 384], strides = [1, 1]} : vector<16x768xf32> to vector<8x384xf32>
    %630 = vector.extract_strided_slice %623 {offsets = [0, 0], sizes = [8, 128], strides = [1, 1]} : vector<16x128xf32> to vector<8x128xf32>
    %631 = vector.extract_strided_slice %628 {offsets = [0, 0], sizes = [8, 128], strides = [1, 1]} : vector<8x384xf32> to vector<8x128xf32>
    %632 = vector.extract_strided_slice %629 {offsets = [0, 0], sizes = [8, 128], strides = [1, 1]} : vector<8x384xf32> to vector<8x128xf32>
    %633 = arith.addf %631, %632 : vector<8x128xf32>
    %cst_232 = arith.constant 0.000000e+00 : f32
    %634 = vector.broadcast %cst_232 : f32 to vector<8x128xf32>
    %635 = arith.subf %634, %633 : vector<8x128xf32>
    %636 = math.exp %635 : vector<8x128xf32>
    %cst_233 = arith.constant 1.000000e+00 : f32
    %637 = vector.broadcast %cst_233 : f32 to vector<8x128xf32>
    %638 = arith.addf %637, %636 : vector<8x128xf32>
    %cst_234 = arith.constant 1.000000e+00 : f32
    %639 = vector.broadcast %cst_234 : f32 to vector<8x128xf32>
    %640 = arith.divf %639, %638 : vector<8x128xf32>
    %641 = vector.extract_strided_slice %628 {offsets = [0, 128], sizes = [8, 128], strides = [1, 1]} : vector<8x384xf32> to vector<8x128xf32>
    %642 = vector.extract_strided_slice %629 {offsets = [0, 128], sizes = [8, 128], strides = [1, 1]} : vector<8x384xf32> to vector<8x128xf32>
    %643 = arith.addf %641, %642 : vector<8x128xf32>
    %cst_235 = arith.constant 0.000000e+00 : f32
    %644 = vector.broadcast %cst_235 : f32 to vector<8x128xf32>
    %645 = arith.subf %644, %643 : vector<8x128xf32>
    %646 = math.exp %645 : vector<8x128xf32>
    %cst_236 = arith.constant 1.000000e+00 : f32
    %647 = vector.broadcast %cst_236 : f32 to vector<8x128xf32>
    %648 = arith.addf %647, %646 : vector<8x128xf32>
    %cst_237 = arith.constant 1.000000e+00 : f32
    %649 = vector.broadcast %cst_237 : f32 to vector<8x128xf32>
    %650 = arith.divf %649, %648 : vector<8x128xf32>
    %651 = vector.extract_strided_slice %628 {offsets = [0, 256], sizes = [8, 128], strides = [1, 1]} : vector<8x384xf32> to vector<8x128xf32>
    %652 = vector.extract_strided_slice %629 {offsets = [0, 256], sizes = [8, 128], strides = [1, 1]} : vector<8x384xf32> to vector<8x128xf32>
    %653 = vector.broadcast %26 : vector<1x128xf32> to vector<8x128xf32>
    %654 = arith.addf %652, %653 : vector<8x128xf32>
    %655 = arith.mulf %640, %654 : vector<8x128xf32>
    %656 = arith.addf %651, %655 : vector<8x128xf32>
    %657 = math.tanh %656 : vector<8x128xf32>
    %cst_238 = arith.constant 1.000000e+00 : f32
    %658 = vector.broadcast %cst_238 : f32 to vector<8x128xf32>
    %659 = arith.subf %658, %650 : vector<8x128xf32>
    %660 = arith.mulf %659, %657 : vector<8x128xf32>
    %661 = arith.mulf %650, %630 : vector<8x128xf32>
    %662 = arith.addf %660, %661 : vector<8x128xf32>
    %c7_i32_239 = arith.constant 7 : i32
    %663 = arith.subi %c7_i32_239, %c7_i32_226 : i32
    %c8_i32_240 = arith.constant 8 : i32
    %664 = arith.muli %663, %c8_i32_240 : i32
    %665 = tpu.assume_multiple %664, 8 : i32
    %666 = arith.index_cast %665 : i32 to index
    %c0_241 = arith.constant 0 : index
    %667 = vector.load %arg16[%666, %c0_241] : memref<64x384xf32, #tpu.memory_space<vmem>>, vector<8x384xf32>
    %668 = vector.extract_strided_slice %624 {offsets = [8, 384], sizes = [8, 384], strides = [1, 1]} : vector<16x768xf32> to vector<8x384xf32>
    %669 = vector.extract_strided_slice %623 {offsets = [8, 0], sizes = [8, 128], strides = [1, 1]} : vector<16x128xf32> to vector<8x128xf32>
    %670 = vector.extract_strided_slice %667 {offsets = [0, 0], sizes = [8, 128], strides = [1, 1]} : vector<8x384xf32> to vector<8x128xf32>
    %671 = vector.extract_strided_slice %668 {offsets = [0, 0], sizes = [8, 128], strides = [1, 1]} : vector<8x384xf32> to vector<8x128xf32>
    %672 = arith.addf %670, %671 : vector<8x128xf32>
    %cst_242 = arith.constant 0.000000e+00 : f32
    %673 = vector.broadcast %cst_242 : f32 to vector<8x128xf32>
    %674 = arith.subf %673, %672 : vector<8x128xf32>
    %675 = math.exp %674 : vector<8x128xf32>
    %cst_243 = arith.constant 1.000000e+00 : f32
    %676 = vector.broadcast %cst_243 : f32 to vector<8x128xf32>
    %677 = arith.addf %676, %675 : vector<8x128xf32>
    %cst_244 = arith.constant 1.000000e+00 : f32
    %678 = vector.broadcast %cst_244 : f32 to vector<8x128xf32>
    %679 = arith.divf %678, %677 : vector<8x128xf32>
    %680 = vector.extract_strided_slice %667 {offsets = [0, 128], sizes = [8, 128], strides = [1, 1]} : vector<8x384xf32> to vector<8x128xf32>
    %681 = vector.extract_strided_slice %668 {offsets = [0, 128], sizes = [8, 128], strides = [1, 1]} : vector<8x384xf32> to vector<8x128xf32>
    %682 = arith.addf %680, %681 : vector<8x128xf32>
    %cst_245 = arith.constant 0.000000e+00 : f32
    %683 = vector.broadcast %cst_245 : f32 to vector<8x128xf32>
    %684 = arith.subf %683, %682 : vector<8x128xf32>
    %685 = math.exp %684 : vector<8x128xf32>
    %cst_246 = arith.constant 1.000000e+00 : f32
    %686 = vector.broadcast %cst_246 : f32 to vector<8x128xf32>
    %687 = arith.addf %686, %685 : vector<8x128xf32>
    %cst_247 = arith.constant 1.000000e+00 : f32
    %688 = vector.broadcast %cst_247 : f32 to vector<8x128xf32>
    %689 = arith.divf %688, %687 : vector<8x128xf32>
    %690 = vector.extract_strided_slice %667 {offsets = [0, 256], sizes = [8, 128], strides = [1, 1]} : vector<8x384xf32> to vector<8x128xf32>
    %691 = vector.extract_strided_slice %668 {offsets = [0, 256], sizes = [8, 128], strides = [1, 1]} : vector<8x384xf32> to vector<8x128xf32>
    %692 = vector.broadcast %27 : vector<1x128xf32> to vector<8x128xf32>
    %693 = arith.addf %691, %692 : vector<8x128xf32>
    %694 = arith.mulf %679, %693 : vector<8x128xf32>
    %695 = arith.addf %690, %694 : vector<8x128xf32>
    %696 = math.tanh %695 : vector<8x128xf32>
    %cst_248 = arith.constant 1.000000e+00 : f32
    %697 = vector.broadcast %cst_248 : f32 to vector<8x128xf32>
    %698 = arith.subf %697, %689 : vector<8x128xf32>
    %699 = arith.mulf %698, %696 : vector<8x128xf32>
    %700 = arith.mulf %689, %669 : vector<8x128xf32>
    %701 = arith.addf %699, %700 : vector<8x128xf32>
    %c0_249 = arith.constant 0 : index
    %c0_250 = arith.constant 0 : index
    %702 = vector.load %arg14[%c0_249, %c0_250] : memref<16x128xf32, #tpu.memory_space<vmem>>, vector<8x128xf32>
    tpu.vector_store %arg14[%c0_249, %c0_250], %662 {strides = array<i32>} : memref<16x128xf32, #tpu.memory_space<vmem>>, vector<8x128xf32>,
    %c8_251 = arith.constant 8 : index
    %c0_252 = arith.constant 0 : index
    %703 = vector.load %arg14[%c8_251, %c0_252] : memref<16x128xf32, #tpu.memory_space<vmem>>, vector<8x128xf32>
    tpu.vector_store %arg14[%c8_251, %c0_252], %701 {strides = array<i32>} : memref<16x128xf32, #tpu.memory_space<vmem>>, vector<8x128xf32>,
    %704 = arith.index_cast %626 : i32 to index
    %c0_253 = arith.constant 0 : index
    %705 = vector.load %arg12[%704, %c0_253] : memref<64x128xf32, #tpu.memory_space<vmem>>, vector<8x128xf32>
    tpu.vector_store %arg12[%704, %c0_253], %662 {strides = array<i32>} : memref<64x128xf32, #tpu.memory_space<vmem>>, vector<8x128xf32>,
    %706 = arith.index_cast %665 : i32 to index
    %c0_254 = arith.constant 0 : index
    %707 = vector.load %arg13[%706, %c0_254] : memref<64x128xf32, #tpu.memory_space<vmem>>, vector<8x128xf32>
    tpu.vector_store %arg13[%706, %c0_254], %701 {strides = array<i32>} : memref<64x128xf32, #tpu.memory_space<vmem>>, vector<8x128xf32>,
    %c8_i32_255 = arith.constant 8 : i32
    return
  }
  func.func @transform_0(%arg0: i32) -> (i32, i32) {
    %c0_i32 = arith.constant 0 : i32
    %c0_i32_0 = arith.constant 0 : i32
    return %arg0, %c0_i32 : i32, i32
  }
  func.func @transform_1(%arg0: i32) -> (i32, i32) {
    %c0_i32 = arith.constant 0 : i32
    %c0_i32_0 = arith.constant 0 : i32
    return %arg0, %c0_i32 : i32, i32
  }
  func.func @transform_2(%arg0: i32) -> (i32, i32) {
    %c0_i32 = arith.constant 0 : i32
    %0 = arith.subi %c0_i32, %arg0 : i32
    %c0_i32_0 = arith.constant 0 : i32
    %c0_i32_1 = arith.constant 0 : i32
    return %0, %c0_i32_0 : i32, i32
  }
  func.func @transform_3(%arg0: i32) -> (i32, i32) {
    %c0_i32 = arith.constant 0 : i32
    %0 = arith.subi %c0_i32, %arg0 : i32
    %c0_i32_0 = arith.constant 0 : i32
    %c0_i32_1 = arith.constant 0 : i32
    return %0, %c0_i32_0 : i32, i32
  }
  func.func @transform_4(%arg0: i32) -> (i32, i32) {
    %c0_i32 = arith.constant 0 : i32
    %c0_i32_0 = arith.constant 0 : i32
    %c0_i32_1 = arith.constant 0 : i32
    return %c0_i32, %c0_i32_0 : i32, i32
  }
  func.func @transform_5(%arg0: i32) -> (i32, i32) {
    %c0_i32 = arith.constant 0 : i32
    %c0_i32_0 = arith.constant 0 : i32
    %c0_i32_1 = arith.constant 0 : i32
    return %c0_i32, %c0_i32_0 : i32, i32
  }
  func.func @transform_6(%arg0: i32) -> (i32, i32) {
    %c0_i32 = arith.constant 0 : i32
    %c0_i32_0 = arith.constant 0 : i32
    %c0_i32_1 = arith.constant 0 : i32
    return %c0_i32, %c0_i32_0 : i32, i32
  }
  func.func @transform_7(%arg0: i32) -> (i32, i32) {
    %c0_i32 = arith.constant 0 : i32
    %c0_i32_0 = arith.constant 0 : i32
    %c0_i32_1 = arith.constant 0 : i32
    return %c0_i32, %c0_i32_0 : i32, i32
  }
  func.func @transform_8(%arg0: i32) -> (i32, i32) {
    %c0_i32 = arith.constant 0 : i32
    %c0_i32_0 = arith.constant 0 : i32
    %c0_i32_1 = arith.constant 0 : i32
    return %c0_i32, %c0_i32_0 : i32, i32
  }
  func.func @transform_9(%arg0: i32) -> (i32, i32) {
    %c0_i32 = arith.constant 0 : i32
    %c0_i32_0 = arith.constant 0 : i32
    %c0_i32_1 = arith.constant 0 : i32
    return %c0_i32, %c0_i32_0 : i32, i32
  }
  func.func @transform_10(%arg0: i32) -> (i32, i32) {
    %c0_i32 = arith.constant 0 : i32
    %c0_i32_0 = arith.constant 0 : i32
    %c0_i32_1 = arith.constant 0 : i32
    return %c0_i32, %c0_i32_0 : i32, i32
  }
  func.func @transform_11(%arg0: i32) -> (i32, i32) {
    %c0_i32 = arith.constant 0 : i32
    %c0_i32_0 = arith.constant 0 : i32
    return %arg0, %c0_i32 : i32, i32
  }
  func.func @transform_12(%arg0: i32) -> (i32, i32) {
    %c0_i32 = arith.constant 0 : i32
    %0 = arith.subi %c0_i32, %arg0 : i32
    %c0_i32_0 = arith.constant 0 : i32
    %c0_i32_1 = arith.constant 0 : i32
    return %0, %c0_i32_0 : i32, i32
  }
}

</mosaic_0001>

<llo_original>
// kernel: enh_model_forward.3
$region0: #{enh_model_forward.3}
  #allocation0 [shape = 'u32[]', space=smem, size = 0x4, offset = 0x4, fixed_abs, tag = 'smem constant byte address 0x4 - core index']
  #allocation1 [shape = 'u32[144,128]{1,0:T(1,128)}', space=vmem, size = 0x12000, scoped, tag = 'internal scratch']
  #allocation2 [shape = 'f32[16,128]{1,0:T(8,128)}', space=vmem, size = 0x2000, scoped, tag = 'scratch operand']
  #allocation3 [shape = 'f32[64,384]{1,0:T(8,128)}', space=vmem, size = 0x18000, scoped, tag = 'scratch operand']
  #allocation4 [shape = 'f32[64,384]{1,0:T(8,128)}', space=vmem, size = 0x18000, scoped, tag = 'scratch operand']
  %s0 = inlined_call_operand.vmem [shape: f32[64,128], index: 0, kind: input, shape index: {}, may-alias: {0,1}]
  %s1 = inlined_call_operand.vmem [shape: f32[64,128], index: 1, kind: input, shape index: {}, may-alias: {0,1}]
  %s2 = inlined_call_operand.vmem [shape: f32[128,384], index: 2, kind: input, shape index: {}]
  %s3 = inlined_call_operand.vmem [shape: f32[128,384], index: 3, kind: input, shape index: {}]
  %s4 = inlined_call_operand.vmem [shape: f32[128,768], index: 4, kind: input, shape index: {}]
  %s5 = inlined_call_operand.vmem [shape: f32[1,384], index: 5, kind: input, shape index: {}]
  %s6 = inlined_call_operand.vmem [shape: f32[1,384], index: 6, kind: input, shape index: {}]
  %s7 = inlined_call_operand.vmem [shape: f32[1,128], index: 7, kind: input, shape index: {}]
  %s8 = inlined_call_operand.vmem [shape: f32[1,128], index: 8, kind: input, shape index: {}]
  %s9 = inlined_call_operand.vmem [shape: f32[64,128], index: 9, kind: output, shape index: {0}]
  %s10 = inlined_call_operand.vmem [shape: f32[64,128], index: 10, kind: output, shape index: {1}]
  %11 = xla_tuple %s9, %s10
  %s12 = sld [smem:[#allocation0]]
  $region58: #{enh_model_forward.3} parent=0
    _
  %s14 = ssub.s32 1, %s12
  %s15 = scalar_select 0, %s14, %s12
  // Predicated region
  $region2: #{enh_model_forward.3} parent=0 // pred_check
    _
  $region3: #{enh_model_forward.3} parent=0 // pred_check_branch
    %17 = sbr.rel (0) target = $region5
  $region4: #{enh_model_forward.3} parent=0 // pred_region
    _
  $region5: #{enh_model_forward.3} parent=0 // pred_fallthru
    _
  // Predicated region
  $region6: #{enh_model_forward.3} parent=0 // pred_check
    _
  $region7: #{enh_model_forward.3} parent=0 // pred_check_branch
    %19 = sbr.rel (0) target = $region9
  $region8: #{enh_model_forward.3} parent=0 // pred_region
    %s20 = ssub.s32 0, 0
    %s21 = smul.u32 8, %s20
    %p22 = scmp.lt.s32.totalorder %s21, 7
    %s23 = scalar_select %p22, %s21, 7
    %s24 = smul.addr %s23, 8
    %s25 = scalar_lea.vmem %s1, %s24
    %s26 = ssub.s32 0, 0
    %s27 = smul.u32 8, %s26
  $region9: #{enh_model_forward.3} parent=0 // pred_fallthru
    _
  // Predicated region
  $region10: #{enh_model_forward.3} parent=0 // pred_check
    _
  $region11: #{enh_model_forward.3} parent=0 // pred_check_branch
    %29 = sbr.rel (0) target = $region13
  $region12: #{enh_model_forward.3} parent=0 // pred_region
    _
  $region13: #{enh_model_forward.3} parent=0 // pred_fallthru
    _
  // Predicated region
  $region14: #{enh_model_forward.3} parent=0 // pred_check
    _
  $region15: #{enh_model_forward.3} parent=0 // pred_check_branch
    %31 = sbr.rel (0) target = $region17
  $region16: #{enh_model_forward.3} parent=0 // pred_region
    _
  $region17: #{enh_model_forward.3} parent=0 // pred_fallthru
    _
  // Predicated region
  $region18: #{enh_model_forward.3} parent=0 // pred_check
    _
  $region19: #{enh_model_forward.3} parent=0 // pred_check_branch
    %33 = sbr.rel (0) target = $region21
  $region20: #{enh_model_forward.3} parent=0 // pred_region
    _
  $region21: #{enh_model_forward.3} parent=0 // pred_fallthru
    _
  // Predicated region
  $region22: #{enh_model_forward.3} parent=0 // pred_check
    _
  $region23: #{enh_model_forward.3} parent=0 // pred_check_branch
    %35 = sbr.rel (0) target = $region25
  $region24: #{enh_model_forward.3} parent=0 // pred_region
    _
  $region25: #{enh_model_forward.3} parent=0 // pred_fallthru
    _
  // Predicated region
  $region26: #{enh_model_forward.3} parent=0 // pred_check
    _
  $region27: #{enh_model_forward.3} parent=0 // pred_check_branch
    %37 = sbr.rel (0) target = $region29
  $region28: #{enh_model_forward.3} parent=0 // pred_region
    _
  $region29: #{enh_model_forward.3} parent=0 // pred_fallthru
    _
  // Predicated region
  $region30: #{enh_model_forward.3} parent=0 // pred_check
    _
  $region31: #{enh_model_forward.3} parent=0 // pred_check_branch
    %39 = sbr.rel (0) target = $region33
  $region32: #{enh_model_forward.3} parent=0 // pred_region
    _
  $region33: #{enh_model_forward.3} parent=0 // pred_fallthru
    _
  // Predicated region
  $region34: #{enh_model_forward.3} parent=0 // pred_check
    _
  $region35: #{enh_model_forward.3} parent=0 // pred_check_branch
    %41 = sbr.rel (0) target = $region37
  $region36: #{enh_model_forward.3} parent=0 // pred_region
    _
  $region37: #{enh_model_forward.3} parent=0 // pred_fallthru
    _
  %s42 = ssub.s32 0, 0
  %s43 = smul.u32 8, %s42
  %p44 = scmp.lt.s32.totalorder %s43, 7
  %s45 = scalar_select %p44, %s43, 7
  %s46 = smul.addr %s45, 8
  %s47 = scalar_lea.vmem %s1, %s46
  %s48 = ssub.s32 0, 0
  %s49 = smul.u32 8, %s48
  %p50 = scmp.lt.s32.totalorder %s49, 7
  %s51 = scalar_select %p50, %s49, 7
  %s52 = smul.addr %s51, 8
  %s53 = scalar_lea.vmem %s10, %s52
  %s54 = ssub.s32 0, 0
  %s55 = smul.u32 8, %s54
  %p56 = scmp.lt.s32.totalorder %s55, 7
  %s57 = scalar_select %p56, %s55, 7
  %s58 = smul.addr %s57, 8
  %s59 = scalar_lea.vmem %s1, %s58
  %s60 = ssub.s32 0, 0
  %s61 = smul.u32 8, %s60
  %s62 = ssub.s32 0, 0
  %s63 = smul.u32 8, %s62
  %p64 = scmp.lt.s32.totalorder %s63, 7
  %s65 = scalar_select %p64, %s63, 7
  %s66 = smul.addr %s65, 8
  %s67 = scalar_lea.vmem %s10, %s66
  %s68 = ssub.s32 0, 0
  %s69 = smul.u32 8, %s68
  %p70 = scmp.eq.s32.totalorder 0, 0
  // Predicated region
  $region38: #{enh_model_forward.3} parent=0 // pred_check
    %p71 = pneg %p70
  $region39: #{enh_model_forward.3} parent=0 // pred_check_branch
    %73 = sbr.rel (%p71) target = $region41
  $region40: #{enh_model_forward.3} parent=0 // pred_region
    %74 = vst [vmem:[#allocation2] sm:$0xff] 0.0
    %75 = vst [vmem:[#allocation2 + $0x8] sm:$0xff] 0.0
  $region41: #{enh_model_forward.3} parent=0 // pred_fallthru
    _
  %v76 = vld [vmem:[%s0] sm:$0xff]
  %v77 = vld [vmem:[%s0 + $0x8] sm:$0xff]
  %v78 = vld [vmem:[%s0 + $0x10] sm:$0xff]
  %v79 = vld [vmem:[%s0 + $0x18] sm:$0xff]
  %v80 = vld [vmem:[%s0 + $0x20] sm:$0xff]
  %v81 = vld [vmem:[%s0 + $0x28] sm:$0xff]
  %v82 = vld [vmem:[%s0 + $0x30] sm:$0xff]
  %v83 = vld [vmem:[%s0 + $0x38] sm:$0xff]
  %v84 = vld [vmem:[%s2] sm:$0xff]
  %v85 = vld [vmem:[%s2 + $0x8] sm:$0xff]
  %v86 = vld [vmem:[%s2 + $0x10] sm:$0xff]
  %v87 = vld [vmem:[%s2 + $0x18] sm:$0xff]
  %v88 = vld [vmem:[%s2 + $0x20] sm:$0xff]
  %v89 = vld [vmem:[%s2 + $0x28] sm:$0xff]
  %v90 = vld [vmem:[%s2 + $0x30] sm:$0xff]
  %v91 = vld [vmem:[%s2 + $0x38] sm:$0xff]
  %v92 = vld [vmem:[%s2 + $0x40] sm:$0xff]
  %v93 = vld [vmem:[%s2 + $0x48] sm:$0xff]
  %v94 = vld [vmem:[%s2 + $0x50] sm:$0xff]
  %v95 = vld [vmem:[%s2 + $0x58] sm:$0xff]
  %v96 = vld [vmem:[%s2 + $0x60] sm:$0xff]
  %v97 = vld [vmem:[%s2 + $0x68] sm:$0xff]
  %v98 = vld [vmem:[%s2 + $0x70] sm:$0xff]
  %v99 = vld [vmem:[%s2 + $0x78] sm:$0xff]
  %v100 = vld [vmem:[%s2 + $0x80] sm:$0xff]
  %v101 = vld [vmem:[%s2 + $0x88] sm:$0xff]
  %v102 = vld [vmem:[%s2 + $0x90] sm:$0xff]
  %v103 = vld [vmem:[%s2 + $0x98] sm:$0xff]
  %v104 = vld [vmem:[%s2 + $0xa0] sm:$0xff]
  %v105 = vld [vmem:[%s2 + $0xa8] sm:$0xff]
  %v106 = vld [vmem:[%s2 + $0xb0] sm:$0xff]
  %v107 = vld [vmem:[%s2 + $0xb8] sm:$0xff]
  %v108 = vld [vmem:[%s2 + $0xc0] sm:$0xff]
  %v109 = vld [vmem:[%s2 + $0xc8] sm:$0xff]
  %v110 = vld [vmem:[%s2 + $0xd0] sm:$0xff]
  %v111 = vld [vmem:[%s2 + $0xd8] sm:$0xff]
  %v112 = vld [vmem:[%s2 + $0xe0] sm:$0xff]
  %v113 = vld [vmem:[%s2 + $0xe8] sm:$0xff]
  %v114 = vld [vmem:[%s2 + $0xf0] sm:$0xff]
  %v115 = vld [vmem:[%s2 + $0xf8] sm:$0xff]
  %v116 = vld [vmem:[%s2 + $0x100] sm:$0xff]
  %v117 = vld [vmem:[%s2 + $0x108] sm:$0xff]
  %v118 = vld [vmem:[%s2 + $0x110] sm:$0xff]
  %v119 = vld [vmem:[%s2 + $0x118] sm:$0xff]
  %v120 = vld [vmem:[%s2 + $0x120] sm:$0xff]
  %v121 = vld [vmem:[%s2 + $0x128] sm:$0xff]
  %v122 = vld [vmem:[%s2 + $0x130] sm:$0xff]
  %v123 = vld [vmem:[%s2 + $0x138] sm:$0xff]
  %v124 = vld [vmem:[%s2 + $0x140] sm:$0xff]
  %v125 = vld [vmem:[%s2 + $0x148] sm:$0xff]
  %v126 = vld [vmem:[%s2 + $0x150] sm:$0xff]
  %v127 = vld [vmem:[%s2 + $0x158] sm:$0xff]
  %v128 = vld [vmem:[%s2 + $0x160] sm:$0xff]
  %v129 = vld [vmem:[%s2 + $0x168] sm:$0xff]
  %v130 = vld [vmem:[%s2 + $0x170] sm:$0xff]
  %v131 = vld [vmem:[%s2 + $0x178] sm:$0xff]
  %v132 = vld [vmem:[%s5] sm:$0x7]
  %v134 = vlaneseq
  %v135 = vshrl.u32 %v134, 7
  %v136 = vsub.s32 0, %v135
  %v137 = vrot.slane %v132, %v136
  %v138 = vlaneseq
  %v139 = vshrl.u32 %v138, 7
  %v140 = vsub.s32 1, %v139
  %v141 = vrot.slane %v132, %v140
  %v142 = vlaneseq
  %v143 = vshrl.u32 %v142, 7
  %v144 = vsub.s32 2, %v143
  %v145 = vrot.slane %v132, %v144
  %149 = vmatprep.subr.mxu0 %v85
  %150 = vmatpush1.msra.mxu0 %v84
  %151 = vmatprep.subr.mxu0 %v88
  %152 = vmatpush1.msra.mxu0 %v87
  %153 = vmatprep.subr.mxu0 %v91
  %154 = vmatpush1.msra.mxu0 %v90
  %155 = vmatprep.subr.mxu0 %v94
  %156 = vmatpush1.msra.mxu0 %v93
  %157 = vmatprep.subr.mxu0 %v97
  %158 = vmatpush1.msra.mxu0 %v96
  %159 = vmatprep.subr.mxu0 %v100
  %160 = vmatpush1.msra.mxu0 %v99
  %161 = vmatprep.subr.mxu0 %v103
  %162 = vmatpush1.msra.mxu0 %v102
  %163 = vmatprep.subr.mxu0 %v106
  %164 = vmatpush1.msra.mxu0 %v105
  %165 = vmatprep.subr.mxu0 %v109
  %166 = vmatpush1.msra.mxu0 %v108
  %167 = vmatprep.subr.mxu0 %v112
  %168 = vmatpush1.msra.mxu0 %v111
  %169 = vmatprep.subr.mxu0 %v115
  %170 = vmatpush1.msra.mxu0 %v114
  %171 = vmatprep.subr.mxu0 %v118
  %172 = vmatpush1.msra.mxu0 %v117
  %173 = vmatprep.subr.mxu0 %v121
  %174 = vmatpush1.msra.mxu0 %v120
  %175 = vmatprep.subr.mxu0 %v124
  %176 = vmatpush1.msra.mxu0 %v123
  %177 = vmatprep.subr.mxu0 %v127
  %178 = vmatpush1.msra.mxu0 %v126
  %179 = vmatprep.subr.mxu0 %v130
  %180 = vmatpush1.msra.mxu0 %v129
  %181 = vmatprep.subr.mxu0 0.0
  %182 = vmatpush1.msra.mxu0 0.0
  %183 = vmatprep.subr.mxu0 0.0
  %184 = vmatpush1.msra.mxu0 0.0
  %185 = vmatprep.subr.mxu0 0.0
  %186 = vmatpush1.msra.mxu0 0.0
  %187 = vmatprep.subr.mxu0 0.0
  %188 = vmatpush1.msra.mxu0 0.0
  %189 = vmatprep.subr.mxu0 0.0
  %190 = vmatpush1.msra.mxu0 0.0
  %191 = vmatprep.subr.mxu0 0.0
  %192 = vmatpush1.msra.mxu0 0.0
  %193 = vmatprep.subr.mxu0 0.0
  %194 = vmatpush1.msra.mxu0 0.0
  %195 = vmatprep.subr.mxu0 0.0
  %196 = vmatpush1.msra.mxu0 0.0
  %197 = vmatprep.subr.mxu0 0.0
  %198 = vmatpush1.msra.mxu0 0.0
  %199 = vmatprep.subr.mxu0 0.0
  %200 = vmatpush1.msra.mxu0 0.0
  %201 = vmatprep.subr.mxu0 0.0
  %202 = vmatpush1.msra.mxu0 0.0
  %203 = vmatprep.subr.mxu0 0.0
  %204 = vmatpush1.msra.mxu0 0.0
  %205 = vmatprep.subr.mxu0 0.0
  %206 = vmatpush1.msra.mxu0 0.0
  %207 = vmatprep.subr.mxu0 0.0
  %208 = vmatpush1.msra.mxu0 0.0
  %209 = vmatprep.subr.mxu0 0.0
  %210 = vmatpush1.msra.mxu0 0.0
  %211 = vmatprep.subr.mxu0 0.0
  %212 = vmatpush1.msra.mxu0 0.0
  %213 = vmatprep.mubr.f32.mxu0 0.0
  %214 = vmatmul.mubr.f32.gmra.mrb[0].mxu0 %v76
  %v215 = vpop.f32.mrb[0].mxu0
  %v216 = vadd.f32 %v137, %v215
  %v217 = vpop.f32.mrb[0].mxu0
  %v218 = vadd.f32 %v141, %v217
  %219 = vmatprep.mubr.f32.mxu0 0.0
  %220 = vmatmul.mubr.f32.gmra.mrb[0].mxu0 %v77
  %v221 = vpop.f32.mrb[0].mxu0
  %v222 = vadd.f32 %v137, %v221
  %v223 = vpop.f32.mrb[0].mxu0
  %v224 = vadd.f32 %v141, %v223
  %225 = vmatprep.mubr.f32.mxu0 0.0
  %226 = vmatmul.mubr.f32.gmra.mrb[0].mxu0 %v78
  %v227 = vpop.f32.mrb[0].mxu0
  %v228 = vadd.f32 %v137, %v227
  %v229 = vpop.f32.mrb[0].mxu0
  %v230 = vadd.f32 %v141, %v229
  %231 = vmatprep.mubr.f32.mxu0 0.0
  %232 = vmatmul.mubr.f32.gmra.mrb[0].mxu0 %v79
  %v233 = vpop.f32.mrb[0].mxu0
  %v234 = vadd.f32 %v137, %v233
  %v235 = vpop.f32.mrb[0].mxu0
  %v236 = vadd.f32 %v141, %v235
  %237 = vmatprep.mubr.f32.mxu0 0.0
  %238 = vmatmul.mubr.f32.gmra.mrb[0].mxu0 %v80
  %v239 = vpop.f32.mrb[0].mxu0
  %v240 = vadd.f32 %v137, %v239
  %v241 = vpop.f32.mrb[0].mxu0
  %v242 = vadd.f32 %v141, %v241
  %243 = vmatprep.mubr.f32.mxu0 0.0
  %244 = vmatmul.mubr.f32.gmra.mrb[0].mxu0 %v81
  %v245 = vpop.f32.mrb[0].mxu0
  %v246 = vadd.f32 %v137, %v245
  %v247 = vpop.f32.mrb[0].mxu0
  %v248 = vadd.f32 %v141, %v247
  %249 = vmatprep.mubr.f32.mxu0 0.0
  %250 = vmatmul.mubr.f32.gmra.mrb[0].mxu0 %v82
  %v251 = vpop.f32.mrb[0].mxu0
  %v252 = vadd.f32 %v137, %v251
  %v253 = vpop.f32.mrb[0].mxu0
  %v254 = vadd.f32 %v141, %v253
  %255 = vmatprep.mubr.f32.mxu0 0.0
  %256 = vmatmul.mubr.f32.gmra.mrb[0].mxu0 %v83
  %v257 = vpop.f32.mrb[0].mxu0
  %v258 = vadd.f32 %v137, %v257
  %v259 = vpop.f32.mrb[0].mxu0
  %v260 = vadd.f32 %v141, %v259
  %261 = vdwg.mxu0
  %262 = vmatprep.subr.mxu0 0.0
  %263 = vmatpush1.msra.mxu0 %v86
  %264 = vmatprep.subr.mxu0 0.0
  %265 = vmatpush1.msra.mxu0 %v89
  %266 = vmatprep.subr.mxu0 0.0
  %267 = vmatpush1.msra.mxu0 %v92
  %268 = vmatprep.subr.mxu0 0.0
  %269 = vmatpush1.msra.mxu0 %v95
  %270 = vmatprep.subr.mxu0 0.0
  %271 = vmatpush1.msra.mxu0 %v98
  %272 = vmatprep.subr.mxu0 0.0
  %273 = vmatpush1.msra.mxu0 %v101
  %274 = vmatprep.subr.mxu0 0.0
  %275 = vmatpush1.msra.mxu0 %v104
  %276 = vmatprep.subr.mxu0 0.0
  %277 = vmatpush1.msra.mxu0 %v107
  %278 = vmatprep.subr.mxu0 0.0
  %279 = vmatpush1.msra.mxu0 %v110
  %280 = vmatprep.subr.mxu0 0.0
  %281 = vmatpush1.msra.mxu0 %v113
  %282 = vmatprep.subr.mxu0 0.0
  %283 = vmatpush1.msra.mxu0 %v116
  %284 = vmatprep.subr.mxu0 0.0
  %285 = vmatpush1.msra.mxu0 %v119
  %286 = vmatprep.subr.mxu0 0.0
  %287 = vmatpush1.msra.mxu0 %v122
  %288 = vmatprep.subr.mxu0 0.0
  %289 = vmatpush1.msra.mxu0 %v125
  %290 = vmatprep.subr.mxu0 0.0
  %291 = vmatpush1.msra.mxu0 %v128
  %292 = vmatprep.subr.mxu0 0.0
  %293 = vmatpush1.msra.mxu0 %v131
  %294 = vmatprep.subr.mxu0 0.0
  %295 = vmatpush1.msra.mxu0 0.0
  %296 = vmatprep.subr.mxu0 0.0
  %297 = vmatpush1.msra.mxu0 0.0
  %298 = vmatprep.subr.mxu0 0.0
  %299 = vmatpush1.msra.mxu0 0.0
  %300 = vmatprep.subr.mxu0 0.0
  %301 = vmatpush1.msra.mxu0 0.0
  %302 = vmatprep.subr.mxu0 0.0
  %303 = vmatpush1.msra.mxu0 0.0
  %304 = vmatprep.subr.mxu0 0.0
  %305 = vmatpush1.msra.mxu0 0.0
  %306 = vmatprep.subr.mxu0 0.0
  %307 = vmatpush1.msra.mxu0 0.0
  %308 = vmatprep.subr.mxu0 0.0
  %309 = vmatpush1.msra.mxu0 0.0
  %310 = vmatprep.subr.mxu0 0.0
  %311 = vmatpush1.msra.mxu0 0.0
  %312 = vmatprep.subr.mxu0 0.0
  %313 = vmatpush1.msra.mxu0 0.0
  %314 = vmatprep.subr.mxu0 0.0
  %315 = vmatpush1.msra.mxu0 0.0
  %316 = vmatprep.subr.mxu0 0.0
  %317 = vmatpush1.msra.mxu0 0.0
  %318 = vmatprep.subr.mxu0 0.0
  %319 = vmatpush1.msra.mxu0 0.0
  %320 = vmatprep.subr.mxu0 0.0
  %321 = vmatpush1.msra.mxu0 0.0
  %322 = vmatprep.subr.mxu0 0.0
  %323 = vmatpush1.msra.mxu0 0.0
  %324 = vmatprep.subr.mxu0 0.0
  %325 = vmatpush1.msra.mxu0 0.0
  %326 = vmatprep.mubr.f32.mxu0 0.0
  %327 = vmatmul.mubr.f32.gmra.mrb[0].mxu0 %v76
  %v328 = vpop.f32.mrb[0].mxu0
  %v329 = vadd.f32 %v145, %v328
  %v330 = vpop.f32.mrb[0].mxu0
  %331 = vmatprep.mubr.f32.mxu0 0.0
  %332 = vmatmul.mubr.f32.gmra.mrb[0].mxu0 %v77
  %v333 = vpop.f32.mrb[0].mxu0
  %v334 = vadd.f32 %v145, %v333
  %v335 = vpop.f32.mrb[0].mxu0
  %336 = vmatprep.mubr.f32.mxu0 0.0
  %337 = vmatmul.mubr.f32.gmra.mrb[0].mxu0 %v78
  %v338 = vpop.f32.mrb[0].mxu0
  %v339 = vadd.f32 %v145, %v338
  %v340 = vpop.f32.mrb[0].mxu0
  %341 = vmatprep.mubr.f32.mxu0 0.0
  %342 = vmatmul.mubr.f32.gmra.mrb[0].mxu0 %v79
  %v343 = vpop.f32.mrb[0].mxu0
  %v344 = vadd.f32 %v145, %v343
  %v345 = vpop.f32.mrb[0].mxu0
  %346 = vmatprep.mubr.f32.mxu0 0.0
  %347 = vmatmul.mubr.f32.gmra.mrb[0].mxu0 %v80
  %v348 = vpop.f32.mrb[0].mxu0
  %v349 = vadd.f32 %v145, %v348
  %v350 = vpop.f32.mrb[0].mxu0
  %351 = vmatprep.mubr.f32.mxu0 0.0
  %352 = vmatmul.mubr.f32.gmra.mrb[0].mxu0 %v81
  %v353 = vpop.f32.mrb[0].mxu0
  %v354 = vadd.f32 %v145, %v353
  %v355 = vpop.f32.mrb[0].mxu0
  %356 = vmatprep.mubr.f32.mxu0 0.0
  %357 = vmatmul.mubr.f32.gmra.mrb[0].mxu0 %v82
  %v358 = vpop.f32.mrb[0].mxu0
  %v359 = vadd.f32 %v145, %v358
  %v360 = vpop.f32.mrb[0].mxu0
  %361 = vmatprep.mubr.f32.mxu0 0.0
  %362 = vmatmul.mubr.f32.gmra.mrb[0].mxu0 %v83
  %v363 = vpop.f32.mrb[0].mxu0
  %v364 = vadd.f32 %v145, %v363
  %v365 = vpop.f32.mrb[0].mxu0
  %366 = vdwg.mxu0
  %367 = vst [vmem:[#allocation3] sm:$0xff] %v216
  %368 = vst [vmem:[#allocation3 + $0x8] sm:$0xff] %v218
  %369 = vst [vmem:[#allocation3 + $0x10] sm:$0xff] %v329
  %370 = vst [vmem:[#allocation3 + $0x18] sm:$0xff] %v222
  %371 = vst [vmem:[#allocation3 + $0x20] sm:$0xff] %v224
  %372 = vst [vmem:[#allocation3 + $0x28] sm:$0xff] %v334
  %373 = vst [vmem:[#allocation3 + $0x30] sm:$0xff] %v228
  %374 = vst [vmem:[#allocation3 + $0x38] sm:$0xff] %v230
  %375 = vst [vmem:[#allocation3 + $0x40] sm:$0xff] %v339
  %376 = vst [vmem:[#allocation3 + $0x48] sm:$0xff] %v234
  %377 = vst [vmem:[#allocation3 + $0x50] sm:$0xff] %v236
  %378 = vst [vmem:[#allocation3 + $0x58] sm:$0xff] %v344
  %379 = vst [vmem:[#allocation3 + $0x60] sm:$0xff] %v240
  %380 = vst [vmem:[#allocation3 + $0x68] sm:$0xff] %v242
  %381 = vst [vmem:[#allocation3 + $0x70] sm:$0xff] %v349
  %382 = vst [vmem:[#allocation3 + $0x78] sm:$0xff] %v246
  %383 = vst [vmem:[#allocation3 + $0x80] sm:$0xff] %v248
  %384 = vst [vmem:[#allocation3 + $0x88] sm:$0xff] %v354
  %385 = vst [vmem:[#allocation3 + $0x90] sm:$0xff] %v252
  %386 = vst [vmem:[#allocation3 + $0x98] sm:$0xff] %v254
  %387 = vst [vmem:[#allocation3 + $0xa0] sm:$0xff] %v359
  %388 = vst [vmem:[#allocation3 + $0xa8] sm:$0xff] %v258
  %389 = vst [vmem:[#allocation3 + $0xb0] sm:$0xff] %v260
  %390 = vst [vmem:[#allocation3 + $0xb8] sm:$0xff] %v364
  %v391 = vld [vmem:[%s59] sm:$0xff]
  %v392 = vld [vmem:[%s59 + $0x8] sm:$0xff]
  %v393 = vld [vmem:[%s59 + $0x10] sm:$0xff]
  %v394 = vld [vmem:[%s59 + $0x18] sm:$0xff]
  %v395 = vld [vmem:[%s59 + $0x20] sm:$0xff]
  %v396 = vld [vmem:[%s59 + $0x28] sm:$0xff]
  %v397 = vld [vmem:[%s59 + $0x30] sm:$0xff]
  %v398 = vld [vmem:[%s59 + $0x38] sm:$0xff]
  %v399 = vld [vmem:[%s3] sm:$0xff]
  %v400 = vld [vmem:[%s3 + $0x8] sm:$0xff]
  %v401 = vld [vmem:[%s3 + $0x10] sm:$0xff]
  %v402 = vld [vmem:[%s3 + $0x18] sm:$0xff]
  %v403 = vld [vmem:[%s3 + $0x20] sm:$0xff]
  %v404 = vld [vmem:[%s3 + $0x28] sm:$0xff]
  %v405 = vld [vmem:[%s3 + $0x30] sm:$0xff]
  %v406 = vld [vmem:[%s3 + $0x38] sm:$0xff]
  %v407 = vld [vmem:[%s3 + $0x40] sm:$0xff]
  %v408 = vld [vmem:[%s3 + $0x48] sm:$0xff]
  %v409 = vld [vmem:[%s3 + $0x50] sm:$0xff]
  %v410 = vld [vmem:[%s3 + $0x58] sm:$0xff]
  %v411 = vld [vmem:[%s3 + $0x60] sm:$0xff]
  %v412 = vld [vmem:[%s3 + $0x68] sm:$0xff]
  %v413 = vld [vmem:[%s3 + $0x70] sm:$0xff]
  %v414 = vld [vmem:[%s3 + $0x78] sm:$0xff]
  %v415 = vld [vmem:[%s3 + $0x80] sm:$0xff]
  %v416 = vld [vmem:[%s3 + $0x88] sm:$0xff]
  %v417 = vld [vmem:[%s3 + $0x90] sm:$0xff]
  %v418 = vld [vmem:[%s3 + $0x98] sm:$0xff]
  %v419 = vld [vmem:[%s3 + $0xa0] sm:$0xff]
  %v420 = vld [vmem:[%s3 + $0xa8] sm:$0xff]
  %v421 = vld [vmem:[%s3 + $0xb0] sm:$0xff]
  %v422 = vld [vmem:[%s3 + $0xb8] sm:$0xff]
  %v423 = vld [vmem:[%s3 + $0xc0] sm:$0xff]
  %v424 = vld [vmem:[%s3 + $0xc8] sm:$0xff]
  %v425 = vld [vmem:[%s3 + $0xd0] sm:$0xff]
  %v426 = vld [vmem:[%s3 + $0xd8] sm:$0xff]
  %v427 = vld [vmem:[%s3 + $0xe0] sm:$0xff]
  %v428 = vld [vmem:[%s3 + $0xe8] sm:$0xff]
  %v429 = vld [vmem:[%s3 + $0xf0] sm:$0xff]
  %v430 = vld [vmem:[%s3 + $0xf8] sm:$0xff]
  %v431 = vld [vmem:[%s3 + $0x100] sm:$0xff]
  %v432 = vld [vmem:[%s3 + $0x108] sm:$0xff]
  %v433 = vld [vmem:[%s3 + $0x110] sm:$0xff]
  %v434 = vld [vmem:[%s3 + $0x118] sm:$0xff]
  %v435 = vld [vmem:[%s3 + $0x120] sm:$0xff]
  %v436 = vld [vmem:[%s3 + $0x128] sm:$0xff]
  %v437 = vld [vmem:[%s3 + $0x130] sm:$0xff]
  %v438 = vld [vmem:[%s3 + $0x138] sm:$0xff]
  %v439 = vld [vmem:[%s3 + $0x140] sm:$0xff]
  %v440 = vld [vmem:[%s3 + $0x148] sm:$0xff]
  %v441 = vld [vmem:[%s3 + $0x150] sm:$0xff]
  %v442 = vld [vmem:[%s3 + $0x158] sm:$0xff]
  %v443 = vld [vmem:[%s3 + $0x160] sm:$0xff]
  %v444 = vld [vmem:[%s3 + $0x168] sm:$0xff]
  %v445 = vld [vmem:[%s3 + $0x170] sm:$0xff]
  %v446 = vld [vmem:[%s3 + $0x178] sm:$0xff]
  %v447 = vld [vmem:[%s6] sm:$0x7]
  %v449 = vlaneseq
  %v450 = vshrl.u32 %v449, 7
  %v451 = vsub.s32 0, %v450
  %v452 = vrot.slane %v447, %v451
  %v453 = vlaneseq
  %v454 = vshrl.u32 %v453, 7
  %v455 = vsub.s32 1, %v454
  %v456 = vrot.slane %v447, %v455
  %v457 = vlaneseq
  %v458 = vshrl.u32 %v457, 7
  %v459 = vsub.s32 2, %v458
  %v460 = vrot.slane %v447, %v459
  %464 = vmatprep.subr.mxu0 %v400
  %465 = vmatpush1.msra.mxu0 %v399
  %466 = vmatprep.subr.mxu0 %v403
  %467 = vmatpush1.msra.mxu0 %v402
  %468 = vmatprep.subr.mxu0 %v406
  %469 = vmatpush1.msra.mxu0 %v405
  %470 = vmatprep.subr.mxu0 %v409
  %471 = vmatpush1.msra.mxu0 %v408
  %472 = vmatprep.subr.mxu0 %v412
  %473 = vmatpush1.msra.mxu0 %v411
  %474 = vmatprep.subr.mxu0 %v415
  %475 = vmatpush1.msra.mxu0 %v414
  %476 = vmatprep.subr.mxu0 %v418
  %477 = vmatpush1.msra.mxu0 %v417
  %478 = vmatprep.subr.mxu0 %v421
  %479 = vmatpush1.msra.mxu0 %v420
  %480 = vmatprep.subr.mxu0 %v424
  %481 = vmatpush1.msra.mxu0 %v423
  %482 = vmatprep.subr.mxu0 %v427
  %483 = vmatpush1.msra.mxu0 %v426
  %484 = vmatprep.subr.mxu0 %v430
  %485 = vmatpush1.msra.mxu0 %v429
  %486 = vmatprep.subr.mxu0 %v433
  %487 = vmatpush1.msra.mxu0 %v432
  %488 = vmatprep.subr.mxu0 %v436
  %489 = vmatpush1.msra.mxu0 %v435
  %490 = vmatprep.subr.mxu0 %v439
  %491 = vmatpush1.msra.mxu0 %v438
  %492 = vmatprep.subr.mxu0 %v442
  %493 = vmatpush1.msra.mxu0 %v441
  %494 = vmatprep.subr.mxu0 %v445
  %495 = vmatpush1.msra.mxu0 %v444
  %496 = vmatprep.subr.mxu0 0.0
  %497 = vmatpush1.msra.mxu0 0.0
  %498 = vmatprep.subr.mxu0 0.0
  %499 = vmatpush1.msra.mxu0 0.0
  %500 = vmatprep.subr.mxu0 0.0
  %501 = vmatpush1.msra.mxu0 0.0
  %502 = vmatprep.subr.mxu0 0.0
  %503 = vmatpush1.msra.mxu0 0.0
  %504 = vmatprep.subr.mxu0 0.0
  %505 = vmatpush1.msra.mxu0 0.0
  %506 = vmatprep.subr.mxu0 0.0
  %507 = vmatpush1.msra.mxu0 0.0
  %508 = vmatprep.subr.mxu0 0.0
  %509 = vmatpush1.msra.mxu0 0.0
  %510 = vmatprep.subr.mxu0 0.0
  %511 = vmatpush1.msra.mxu0 0.0
  %512 = vmatprep.subr.mxu0 0.0
  %513 = vmatpush1.msra.mxu0 0.0
  %514 = vmatprep.subr.mxu0 0.0
  %515 = vmatpush1.msra.mxu0 0.0
  %516 = vmatprep.subr.mxu0 0.0
  %517 = vmatpush1.msra.mxu0 0.0
  %518 = vmatprep.subr.mxu0 0.0
  %519 = vmatpush1.msra.mxu0 0.0
  %520 = vmatprep.subr.mxu0 0.0
  %521 = vmatpush1.msra.mxu0 0.0
  %522 = vmatprep.subr.mxu0 0.0
  %523 = vmatpush1.msra.mxu0 0.0
  %524 = vmatprep.subr.mxu0 0.0
  %525 = vmatpush1.msra.mxu0 0.0
  %526 = vmatprep.subr.mxu0 0.0
  %527 = vmatpush1.msra.mxu0 0.0
  %528 = vmatprep.mubr.f32.mxu0 0.0
  %529 = vmatmul.mubr.f32.gmra.mrb[0].mxu0 %v391
  %v530 = vpop.f32.mrb[0].mxu0
  %v531 = vadd.f32 %v452, %v530
  %v532 = vpop.f32.mrb[0].mxu0
  %v533 = vadd.f32 %v456, %v532
  %534 = vmatprep.mubr.f32.mxu0 0.0
  %535 = vmatmul.mubr.f32.gmra.mrb[0].mxu0 %v392
  %v536 = vpop.f32.mrb[0].mxu0
  %v537 = vadd.f32 %v452, %v536
  %v538 = vpop.f32.mrb[0].mxu0
  %v539 = vadd.f32 %v456, %v538
  %540 = vmatprep.mubr.f32.mxu0 0.0
  %541 = vmatmul.mubr.f32.gmra.mrb[0].mxu0 %v393
  %v542 = vpop.f32.mrb[0].mxu0
  %v543 = vadd.f32 %v452, %v542
  %v544 = vpop.f32.mrb[0].mxu0
  %v545 = vadd.f32 %v456, %v544
  %546 = vmatprep.mubr.f32.mxu0 0.0
  %547 = vmatmul.mubr.f32.gmra.mrb[0].mxu0 %v394
  %v548 = vpop.f32.mrb[0].mxu0
  %v549 = vadd.f32 %v452, %v548
  %v550 = vpop.f32.mrb[0].mxu0
  %v551 = vadd.f32 %v456, %v550
  %552 = vmatprep.mubr.f32.mxu0 0.0
  %553 = vmatmul.mubr.f32.gmra.mrb[0].mxu0 %v395
  %v554 = vpop.f32.mrb[0].mxu0
  %v555 = vadd.f32 %v452, %v554
  %v556 = vpop.f32.mrb[0].mxu0
  %v557 = vadd.f32 %v456, %v556
  %558 = vmatprep.mubr.f32.mxu0 0.0
  %559 = vmatmul.mubr.f32.gmra.mrb[0].mxu0 %v396
  %v560 = vpop.f32.mrb[0].mxu0
  %v561 = vadd.f32 %v452, %v560
  %v562 = vpop.f32.mrb[0].mxu0
  %v563 = vadd.f32 %v456, %v562
  %564 = vmatprep.mubr.f32.mxu0 0.0
  %565 = vmatmul.mubr.f32.gmra.mrb[0].mxu0 %v397
  %v566 = vpop.f32.mrb[0].mxu0
  %v567 = vadd.f32 %v452, %v566
  %v568 = vpop.f32.mrb[0].mxu0
  %v569 = vadd.f32 %v456, %v568
  %570 = vmatprep.mubr.f32.mxu0 0.0
  %571 = vmatmul.mubr.f32.gmra.mrb[0].mxu0 %v398
  %v572 = vpop.f32.mrb[0].mxu0
  %v573 = vadd.f32 %v452, %v572
  %v574 = vpop.f32.mrb[0].mxu0
  %v575 = vadd.f32 %v456, %v574
  %576 = vdwg.mxu0
  %577 = vmatprep.subr.mxu0 0.0
  %578 = vmatpush1.msra.mxu0 %v401
  %579 = vmatprep.subr.mxu0 0.0
  %580 = vmatpush1.msra.mxu0 %v404
  %581 = vmatprep.subr.mxu0 0.0
  %582 = vmatpush1.msra.mxu0 %v407
  %583 = vmatprep.subr.mxu0 0.0
  %584 = vmatpush1.msra.mxu0 %v410
  %585 = vmatprep.subr.mxu0 0.0
  %586 = vmatpush1.msra.mxu0 %v413
  %587 = vmatprep.subr.mxu0 0.0
  %588 = vmatpush1.msra.mxu0 %v416
  %589 = vmatprep.subr.mxu0 0.0
  %590 = vmatpush1.msra.mxu0 %v419
  %591 = vmatprep.subr.mxu0 0.0
  %592 = vmatpush1.msra.mxu0 %v422
  %593 = vmatprep.subr.mxu0 0.0
  %594 = vmatpush1.msra.mxu0 %v425
  %595 = vmatprep.subr.mxu0 0.0
  %596 = vmatpush1.msra.mxu0 %v428
  %597 = vmatprep.subr.mxu0 0.0
  %598 = vmatpush1.msra.mxu0 %v431
  %599 = vmatprep.subr.mxu0 0.0
  %600 = vmatpush1.msra.mxu0 %v434
  %601 = vmatprep.subr.mxu0 0.0
  %602 = vmatpush1.msra.mxu0 %v437
  %603 = vmatprep.subr.mxu0 0.0
  %604 = vmatpush1.msra.mxu0 %v440
  %605 = vmatprep.subr.mxu0 0.0
  %606 = vmatpush1.msra.mxu0 %v443
  %607 = vmatprep.subr.mxu0 0.0
  %608 = vmatpush1.msra.mxu0 %v446
  %609 = vmatprep.subr.mxu0 0.0
  %610 = vmatpush1.msra.mxu0 0.0
  %611 = vmatprep.subr.mxu0 0.0
  %612 = vmatpush1.msra.mxu0 0.0
  %613 = vmatprep.subr.mxu0 0.0
  %614 = vmatpush1.msra.mxu0 0.0
  %615 = vmatprep.subr.mxu0 0.0
  %616 = vmatpush1.msra.mxu0 0.0
  %617 = vmatprep.subr.mxu0 0.0
  %618 = vmatpush1.msra.mxu0 0.0
  %619 = vmatprep.subr.mxu0 0.0
  %620 = vmatpush1.msra.mxu0 0.0
  %621 = vmatprep.subr.mxu0 0.0
  %622 = vmatpush1.msra.mxu0 0.0
  %623 = vmatprep.subr.mxu0 0.0
  %624 = vmatpush1.msra.mxu0 0.0
  %625 = vmatprep.subr.mxu0 0.0
  %626 = vmatpush1.msra.mxu0 0.0
  %627 = vmatprep.subr.mxu0 0.0
  %628 = vmatpush1.msra.mxu0 0.0
  %629 = vmatprep.subr.mxu0 0.0
  %630 = vmatpush1.msra.mxu0 0.0
  %631 = vmatprep.subr.mxu0 0.0
  %632 = vmatpush1.msra.mxu0 0.0
  %633 = vmatprep.subr.mxu0 0.0
  %634 = vmatpush1.msra.mxu0 0.0
  %635 = vmatprep.subr.mxu0 0.0
  %636 = vmatpush1.msra.mxu0 0.0
  %637 = vmatprep.subr.mxu0 0.0
  %638 = vmatpush1.msra.mxu0 0.0
  %639 = vmatprep.subr.mxu0 0.0
  %640 = vmatpush1.msra.mxu0 0.0
  %641 = vmatprep.mubr.f32.mxu0 0.0
  %642 = vmatmul.mubr.f32.gmra.mrb[0].mxu0 %v391
  %v643 = vpop.f32.mrb[0].mxu0
  %v644 = vadd.f32 %v460, %v643
  %v645 = vpop.f32.mrb[0].mxu0
  %646 = vmatprep.mubr.f32.mxu0 0.0
  %647 = vmatmul.mubr.f32.gmra.mrb[0].mxu0 %v392
  %v648 = vpop.f32.mrb[0].mxu0
  %v649 = vadd.f32 %v460, %v648
  %v650 = vpop.f32.mrb[0].mxu0
  %651 = vmatprep.mubr.f32.mxu0 0.0
  %652 = vmatmul.mubr.f32.gmra.mrb[0].mxu0 %v393
  %v653 = vpop.f32.mrb[0].mxu0
  %v654 = vadd.f32 %v460, %v653
  %v655 = vpop.f32.mrb[0].mxu0
  %656 = vmatprep.mubr.f32.mxu0 0.0
  %657 = vmatmul.mubr.f32.gmra.mrb[0].mxu0 %v394
  %v658 = vpop.f32.mrb[0].mxu0
  %v659 = vadd.f32 %v460, %v658
  %v660 = vpop.f32.mrb[0].mxu0
  %661 = vmatprep.mubr.f32.mxu0 0.0
  %662 = vmatmul.mubr.f32.gmra.mrb[0].mxu0 %v395
  %v663 = vpop.f32.mrb[0].mxu0
  %v664 = vadd.f32 %v460, %v663
  %v665 = vpop.f32.mrb[0].mxu0
  %666 = vmatprep.mubr.f32.mxu0 0.0
  %667 = vmatmul.mubr.f32.gmra.mrb[0].mxu0 %v396
  %v668 = vpop.f32.mrb[0].mxu0
  %v669 = vadd.f32 %v460, %v668
  %v670 = vpop.f32.mrb[0].mxu0
  %671 = vmatprep.mubr.f32.mxu0 0.0
  %672 = vmatmul.mubr.f32.gmra.mrb[0].mxu0 %v397
  %v673 = vpop.f32.mrb[0].mxu0
  %v674 = vadd.f32 %v460, %v673
  %v675 = vpop.f32.mrb[0].mxu0
  %676 = vmatprep.mubr.f32.mxu0 0.0
  %677 = vmatmul.mubr.f32.gmra.mrb[0].mxu0 %v398
  %v678 = vpop.f32.mrb[0].mxu0
  %v679 = vadd.f32 %v460, %v678
  %v680 = vpop.f32.mrb[0].mxu0
  %681 = vdwg.mxu0
  %682 = vst [vmem:[#allocation4] sm:$0xff] %v531
  %683 = vst [vmem:[#allocation4 + $0x8] sm:$0xff] %v533
  %684 = vst [vmem:[#allocation4 + $0x10] sm:$0xff] %v644
  %685 = vst [vmem:[#allocation4 + $0x18] sm:$0xff] %v537
  %686 = vst [vmem:[#allocation4 + $0x20] sm:$0xff] %v539
  %687 = vst [vmem:[#allocation4 + $0x28] sm:$0xff] %v649
  %688 = vst [vmem:[#allocation4 + $0x30] sm:$0xff] %v543
  %689 = vst [vmem:[#allocation4 + $0x38] sm:$0xff] %v545
  %690 = vst [vmem:[#allocation4 + $0x40] sm:$0xff] %v654
  %691 = vst [vmem:[#allocation4 + $0x48] sm:$0xff] %v549
  %692 = vst [vmem:[#allocation4 + $0x50] sm:$0xff] %v551
  %693 = vst [vmem:[#allocation4 + $0x58] sm:$0xff] %v659
  %694 = vst [vmem:[#allocation4 + $0x60] sm:$0xff] %v555
  %695 = vst [vmem:[#allocation4 + $0x68] sm:$0xff] %v557
  %696 = vst [vmem:[#allocation4 + $0x70] sm:$0xff] %v664
  %697 = vst [vmem:[#allocation4 + $0x78] sm:$0xff] %v561
  %698 = vst [vmem:[#allocation4 + $0x80] sm:$0xff] %v563
  %699 = vst [vmem:[#allocation4 + $0x88] sm:$0xff] %v669
  %700 = vst [vmem:[#allocation4 + $0x90] sm:$0xff] %v567
  %701 = vst [vmem:[#allocation4 + $0x98] sm:$0xff] %v569
  %702 = vst [vmem:[#allocation4 + $0xa0] sm:$0xff] %v674
  %703 = vst [vmem:[#allocation4 + $0xa8] sm:$0xff] %v573
  %704 = vst [vmem:[#allocation4 + $0xb0] sm:$0xff] %v575
  %705 = vst [vmem:[#allocation4 + $0xb8] sm:$0xff] %v679
  %v706 = vld [vmem:[%s4] sm:$0xff]
  %v707 = vld [vmem:[%s4 + $0x8] sm:$0xff]
  %v708 = vld [vmem:[%s4 + $0x10] sm:$0xff]
  %v709 = vld [vmem:[%s4 + $0x18] sm:$0xff]
  %v710 = vld [vmem:[%s4 + $0x20] sm:$0xff]
  %v711 = vld [vmem:[%s4 + $0x28] sm:$0xff]
  %v712 = vld [vmem:[%s4 + $0x30] sm:$0xff]
  %v713 = vld [vmem:[%s4 + $0x38] sm:$0xff]
  %v714 = vld [vmem:[%s4 + $0x40] sm:$0xff]
  %v715 = vld [vmem:[%s4 + $0x48] sm:$0xff]
  %v716 = vld [vmem:[%s4 + $0x50] sm:$0xff]
  %v717 = vld [vmem:[%s4 + $0x58] sm:$0xff]
  %v718 = vld [vmem:[%s4 + $0x60] sm:$0xff]
  %v719 = vld [vmem:[%s4 + $0x68] sm:$0xff]
  %v720 = vld [vmem:[%s4 + $0x70] sm:$0xff]
  %v721 = vld [vmem:[%s4 + $0x78] sm:$0xff]
  %v722 = vld [vmem:[%s4 + $0x80] sm:$0xff]
  %v723 = vld [vmem:[%s4 + $0x88] sm:$0xff]
  %v724 = vld [vmem:[%s4 + $0x90] sm:$0xff]
  %v725 = vld [vmem:[%s4 + $0x98] sm:$0xff]
  %v726 = vld [vmem:[%s4 + $0xa0] sm:$0xff]
  %v727 = vld [vmem:[%s4 + $0xa8] sm:$0xff]
  %v728 = vld [vmem:[%s4 + $0xb0] sm:$0xff]
  %v729 = vld [vmem:[%s4 + $0xb8] sm:$0xff]
  %v730 = vld [vmem:[%s4 + $0xc0] sm:$0xff]
  %v731 = vld [vmem:[%s4 + $0xc8] sm:$0xff]
  %v732 = vld [vmem:[%s4 + $0xd0] sm:$0xff]
  %v733 = vld [vmem:[%s4 + $0xd8] sm:$0xff]
  %v734 = vld [vmem:[%s4 + $0xe0] sm:$0xff]
  %v735 = vld [vmem:[%s4 + $0xe8] sm:$0xff]
  %v736 = vld [vmem:[%s4 + $0xf0] sm:$0xff]
  %v737 = vld [vmem:[%s4 + $0xf8] sm:$0xff]
  %v738 = vld [vmem:[%s4 + $0x100] sm:$0xff]
  %v739 = vld [vmem:[%s4 + $0x108] sm:$0xff]
  %v740 = vld [vmem:[%s4 + $0x110] sm:$0xff]
  %v741 = vld [vmem:[%s4 + $0x118] sm:$0xff]
  %v742 = vld [vmem:[%s4 + $0x120] sm:$0xff]
  %v743 = vld [vmem:[%s4 + $0x128] sm:$0xff]
  %v744 = vld [vmem:[%s4 + $0x130] sm:$0xff]
  %v745 = vld [vmem:[%s4 + $0x138] sm:$0xff]
  %v746 = vld [vmem:[%s4 + $0x140] sm:$0xff]
  %v747 = vld [vmem:[%s4 + $0x148] sm:$0xff]
  %v748 = vld [vmem:[%s4 + $0x150] sm:$0xff]
  %v749 = vld [vmem:[%s4 + $0x158] sm:$0xff]
  %v750 = vld [vmem:[%s4 + $0x160] sm:$0xff]
  %v751 = vld [vmem:[%s4 + $0x168] sm:$0xff]
  %v752 = vld [vmem:[%s4 + $0x170] sm:$0xff]
  %v753 = vld [vmem:[%s4 + $0x178] sm:$0xff]
  %v754 = vld [vmem:[%s4 + $0x180] sm:$0xff]
  %v755 = vld [vmem:[%s4 + $0x188] sm:$0xff]
  %v756 = vld [vmem:[%s4 + $0x190] sm:$0xff]
  %v757 = vld [vmem:[%s4 + $0x198] sm:$0xff]
  %v758 = vld [vmem:[%s4 + $0x1a0] sm:$0xff]
  %v759 = vld [vmem:[%s4 + $0x1a8] sm:$0xff]
  %v760 = vld [vmem:[%s4 + $0x1b0] sm:$0xff]
  %v761 = vld [vmem:[%s4 + $0x1b8] sm:$0xff]
  %v762 = vld [vmem:[%s4 + $0x1c0] sm:$0xff]
  %v763 = vld [vmem:[%s4 + $0x1c8] sm:$0xff]
  %v764 = vld [vmem:[%s4 + $0x1d0] sm:$0xff]
  %v765 = vld [vmem:[%s4 + $0x1d8] sm:$0xff]
  %v766 = vld [vmem:[%s4 + $0x1e0] sm:$0xff]
  %v767 = vld [vmem:[%s4 + $0x1e8] sm:$0xff]
  %v768 = vld [vmem:[%s4 + $0x1f0] sm:$0xff]
  %v769 = vld [vmem:[%s4 + $0x1f8] sm:$0xff]
  %v770 = vld [vmem:[%s4 + $0x200] sm:$0xff]
  %v771 = vld [vmem:[%s4 + $0x208] sm:$0xff]
  %v772 = vld [vmem:[%s4 + $0x210] sm:$0xff]
  %v773 = vld [vmem:[%s4 + $0x218] sm:$0xff]
  %v774 = vld [vmem:[%s4 + $0x220] sm:$0xff]
  %v775 = vld [vmem:[%s4 + $0x228] sm:$0xff]
  %v776 = vld [vmem:[%s4 + $0x230] sm:$0xff]
  %v777 = vld [vmem:[%s4 + $0x238] sm:$0xff]
  %v778 = vld [vmem:[%s4 + $0x240] sm:$0xff]
  %v779 = vld [vmem:[%s4 + $0x248] sm:$0xff]
  %v780 = vld [vmem:[%s4 + $0x250] sm:$0xff]
  %v781 = vld [vmem:[%s4 + $0x258] sm:$0xff]
  %v782 = vld [vmem:[%s4 + $0x260] sm:$0xff]
  %v783 = vld [vmem:[%s4 + $0x268] sm:$0xff]
  %v784 = vld [vmem:[%s4 + $0x270] sm:$0xff]
  %v785 = vld [vmem:[%s4 + $0x278] sm:$0xff]
  %v786 = vld [vmem:[%s4 + $0x280] sm:$0xff]
  %v787 = vld [vmem:[%s4 + $0x288] sm:$0xff]
  %v788 = vld [vmem:[%s4 + $0x290] sm:$0xff]
  %v789 = vld [vmem:[%s4 + $0x298] sm:$0xff]
  %v790 = vld [vmem:[%s4 + $0x2a0] sm:$0xff]
  %v791 = vld [vmem:[%s4 + $0x2a8] sm:$0xff]
  %v792 = vld [vmem:[%s4 + $0x2b0] sm:$0xff]
  %v793 = vld [vmem:[%s4 + $0x2b8] sm:$0xff]
  %v794 = vld [vmem:[%s4 + $0x2c0] sm:$0xff]
  %v795 = vld [vmem:[%s4 + $0x2c8] sm:$0xff]
  %v796 = vld [vmem:[%s4 + $0x2d0] sm:$0xff]
  %v797 = vld [vmem:[%s4 + $0x2d8] sm:$0xff]
  %v798 = vld [vmem:[%s4 + $0x2e0] sm:$0xff]
  %v799 = vld [vmem:[%s4 + $0x2e8] sm:$0xff]
  %v800 = vld [vmem:[%s4 + $0x2f0] sm:$0xff]
  %v801 = vld [vmem:[%s4 + $0x2f8] sm:$0xff]
  %v802 = vld [vmem:[%s7] sm:$0x1]
  %v803 = vld [vmem:[%s8] sm:$0x1]
  %v804 = vld [vmem:[#allocation2] sm:$0xff]
  %v805 = vld [vmem:[#allocation2 + $0x8] sm:$0xff]
  %806 = vmatprep.subr.mxu0 %v707
  %807 = vmatpush1.msra.mxu0 %v706
  %808 = vmatprep.subr.mxu0 %v713
  %809 = vmatpush1.msra.mxu0 %v712
  %810 = vmatprep.subr.mxu0 %v719
  %811 = vmatpush1.msra.mxu0 %v718
  %812 = vmatprep.subr.mxu0 %v725
  %813 = vmatpush1.msra.mxu0 %v724
  %814 = vmatprep.subr.mxu0 %v731
  %815 = vmatpush1.msra.mxu0 %v730
  %816 = vmatprep.subr.mxu0 %v737
  %817 = vmatpush1.msra.mxu0 %v736
  %818 = vmatprep.subr.mxu0 %v743
  %819 = vmatpush1.msra.mxu0 %v742
  %820 = vmatprep.subr.mxu0 %v749
  %821 = vmatpush1.msra.mxu0 %v748
  %822 = vmatprep.subr.mxu0 %v755
  %823 = vmatpush1.msra.mxu0 %v754
  %824 = vmatprep.subr.mxu0 %v761
  %825 = vmatpush1.msra.mxu0 %v760
  %826 = vmatprep.subr.mxu0 %v767
  %827 = vmatpush1.msra.mxu0 %v766
  %828 = vmatprep.subr.mxu0 %v773
  %829 = vmatpush1.msra.mxu0 %v772
  %830 = vmatprep.subr.mxu0 %v779
  %831 = vmatpush1.msra.mxu0 %v778
  %832 = vmatprep.subr.mxu0 %v785
  %833 = vmatpush1.msra.mxu0 %v784
  %834 = vmatprep.subr.mxu0 %v791
  %835 = vmatpush1.msra.mxu0 %v790
  %836 = vmatprep.subr.mxu0 %v797
  %837 = vmatpush1.msra.mxu0 %v796
  %838 = vmatprep.subr.mxu0 0.0
  %839 = vmatpush1.msra.mxu0 0.0
  %840 = vmatprep.subr.mxu0 0.0
  %841 = vmatpush1.msra.mxu0 0.0
  %842 = vmatprep.subr.mxu0 0.0
  %843 = vmatpush1.msra.mxu0 0.0
  %844 = vmatprep.subr.mxu0 0.0
  %845 = vmatpush1.msra.mxu0 0.0
  %846 = vmatprep.subr.mxu0 0.0
  %847 = vmatpush1.msra.mxu0 0.0
  %848 = vmatprep.subr.mxu0 0.0
  %849 = vmatpush1.msra.mxu0 0.0
  %850 = vmatprep.subr.mxu0 0.0
  %851 = vmatpush1.msra.mxu0 0.0
  %852 = vmatprep.subr.mxu0 0.0
  %853 = vmatpush1.msra.mxu0 0.0
  %854 = vmatprep.subr.mxu0 0.0
  %855 = vmatpush1.msra.mxu0 0.0
  %856 = vmatprep.subr.mxu0 0.0
  %857 = vmatpush1.msra.mxu0 0.0
  %858 = vmatprep.subr.mxu0 0.0
  %859 = vmatpush1.msra.mxu0 0.0
  %860 = vmatprep.subr.mxu0 0.0
  %861 = vmatpush1.msra.mxu0 0.0
  %862 = vmatprep.subr.mxu0 0.0
  %863 = vmatpush1.msra.mxu0 0.0
  %864 = vmatprep.subr.mxu0 0.0
  %865 = vmatpush1.msra.mxu0 0.0
  %866 = vmatprep.subr.mxu0 0.0
  %867 = vmatpush1.msra.mxu0 0.0
  %868 = vmatprep.subr.mxu0 0.0
  %869 = vmatpush1.msra.mxu0 0.0
  %870 = vmatprep.mubr.f32.mxu0 0.0
  %871 = vmatmul.mubr.f32.gmra.mrb[0].mxu0 %v804
  %v872 = vpop.f32.mrb[0].mxu0
  %v873 = vadd.f32 0.0, %v872
  %v874 = vpop.f32.mrb[0].mxu0
  %v875 = vadd.f32 0.0, %v874
  %876 = vmatprep.mubr.f32.mxu0 0.0
  %877 = vmatmul.mubr.f32.gmra.mrb[0].mxu0 %v805
  %v878 = vpop.f32.mrb[0].mxu0
  %v879 = vpop.f32.mrb[0].mxu0
  %880 = vdwg.mxu0
  %881 = vmatprep.subr.mxu0 %v709
  %882 = vmatpush1.msra.mxu0 %v708
  %883 = vmatprep.subr.mxu0 %v715
  %884 = vmatpush1.msra.mxu0 %v714
  %885 = vmatprep.subr.mxu0 %v721
  %886 = vmatpush1.msra.mxu0 %v720
  %887 = vmatprep.subr.mxu0 %v727
  %888 = vmatpush1.msra.mxu0 %v726
  %889 = vmatprep.subr.mxu0 %v733
  %890 = vmatpush1.msra.mxu0 %v732
  %891 = vmatprep.subr.mxu0 %v739
  %892 = vmatpush1.msra.mxu0 %v738
  %893 = vmatprep.subr.mxu0 %v745
  %894 = vmatpush1.msra.mxu0 %v744
  %895 = vmatprep.subr.mxu0 %v751
  %896 = vmatpush1.msra.mxu0 %v750
  %897 = vmatprep.subr.mxu0 %v757
  %898 = vmatpush1.msra.mxu0 %v756
  %899 = vmatprep.subr.mxu0 %v763
  %900 = vmatpush1.msra.mxu0 %v762
  %901 = vmatprep.subr.mxu0 %v769
  %902 = vmatpush1.msra.mxu0 %v768
  %903 = vmatprep.subr.mxu0 %v775
  %904 = vmatpush1.msra.mxu0 %v774
  %905 = vmatprep.subr.mxu0 %v781
  %906 = vmatpush1.msra.mxu0 %v780
  %907 = vmatprep.subr.mxu0 %v787
  %908 = vmatpush1.msra.mxu0 %v786
  %909 = vmatprep.subr.mxu0 %v793
  %910 = vmatpush1.msra.mxu0 %v792
  %911 = vmatprep.subr.mxu0 %v799
  %912 = vmatpush1.msra.mxu0 %v798
  %913 = vmatprep.subr.mxu0 0.0
  %914 = vmatpush1.msra.mxu0 0.0
  %915 = vmatprep.subr.mxu0 0.0
  %916 = vmatpush1.msra.mxu0 0.0
  %917 = vmatprep.subr.mxu0 0.0
  %918 = vmatpush1.msra.mxu0 0.0
  %919 = vmatprep.subr.mxu0 0.0
  %920 = vmatpush1.msra.mxu0 0.0
  %921 = vmatprep.subr.mxu0 0.0
  %922 = vmatpush1.msra.mxu0 0.0
  %923 = vmatprep.subr.mxu0 0.0
  %924 = vmatpush1.msra.mxu0 0.0
  %925 = vmatprep.subr.mxu0 0.0
  %926 = vmatpush1.msra.mxu0 0.0
  %927 = vmatprep.subr.mxu0 0.0
  %928 = vmatpush1.msra.mxu0 0.0
  %929 = vmatprep.subr.mxu0 0.0
  %930 = vmatpush1.msra.mxu0 0.0
  %931 = vmatprep.subr.mxu0 0.0
  %932 = vmatpush1.msra.mxu0 0.0
  %933 = vmatprep.subr.mxu0 0.0
  %934 = vmatpush1.msra.mxu0 0.0
  %935 = vmatprep.subr.mxu0 0.0
  %936 = vmatpush1.msra.mxu0 0.0
  %937 = vmatprep.subr.mxu0 0.0
  %938 = vmatpush1.msra.mxu0 0.0
  %939 = vmatprep.subr.mxu0 0.0
  %940 = vmatpush1.msra.mxu0 0.0
  %941 = vmatprep.subr.mxu0 0.0
  %942 = vmatpush1.msra.mxu0 0.0
  %943 = vmatprep.subr.mxu0 0.0
  %944 = vmatpush1.msra.mxu0 0.0
  %945 = vmatprep.mubr.f32.mxu0 0.0
  %946 = vmatmul.mubr.f32.gmra.mrb[0].mxu0 %v804
  %v947 = vpop.f32.mrb[0].mxu0
  %v948 = vadd.f32 0.0, %v947
  %v949 = vpop.f32.mrb[0].mxu0
  %950 = vmatprep.mubr.f32.mxu0 0.0
  %951 = vmatmul.mubr.f32.gmra.mrb[0].mxu0 %v805
  %v952 = vpop.f32.mrb[0].mxu0
  %v953 = vpop.f32.mrb[0].mxu0
  %v954 = vadd.f32 0.0, %v953
  %955 = vdwg.mxu0
  %956 = vmatprep.subr.mxu0 %v711
  %957 = vmatpush1.msra.mxu0 %v710
  %958 = vmatprep.subr.mxu0 %v717
  %959 = vmatpush1.msra.mxu0 %v716
  %960 = vmatprep.subr.mxu0 %v723
  %961 = vmatpush1.msra.mxu0 %v722
  %962 = vmatprep.subr.mxu0 %v729
  %963 = vmatpush1.msra.mxu0 %v728
  %964 = vmatprep.subr.mxu0 %v735
  %965 = vmatpush1.msra.mxu0 %v734
  %966 = vmatprep.subr.mxu0 %v741
  %967 = vmatpush1.msra.mxu0 %v740
  %968 = vmatprep.subr.mxu0 %v747
  %969 = vmatpush1.msra.mxu0 %v746
  %970 = vmatprep.subr.mxu0 %v753
  %971 = vmatpush1.msra.mxu0 %v752
  %972 = vmatprep.subr.mxu0 %v759
  %973 = vmatpush1.msra.mxu0 %v758
  %974 = vmatprep.subr.mxu0 %v765
  %975 = vmatpush1.msra.mxu0 %v764
  %976 = vmatprep.subr.mxu0 %v771
  %977 = vmatpush1.msra.mxu0 %v770
  %978 = vmatprep.subr.mxu0 %v777
  %979 = vmatpush1.msra.mxu0 %v776
  %980 = vmatprep.subr.mxu0 %v783
  %981 = vmatpush1.msra.mxu0 %v782
  %982 = vmatprep.subr.mxu0 %v789
  %983 = vmatpush1.msra.mxu0 %v788
  %984 = vmatprep.subr.mxu0 %v795
  %985 = vmatpush1.msra.mxu0 %v794
  %986 = vmatprep.subr.mxu0 %v801
  %987 = vmatpush1.msra.mxu0 %v800
  %988 = vmatprep.subr.mxu0 0.0
  %989 = vmatpush1.msra.mxu0 0.0
  %990 = vmatprep.subr.mxu0 0.0
  %991 = vmatpush1.msra.mxu0 0.0
  %992 = vmatprep.subr.mxu0 0.0
  %993 = vmatpush1.msra.mxu0 0.0
  %994 = vmatprep.subr.mxu0 0.0
  %995 = vmatpush1.msra.mxu0 0.0
  %996 = vmatprep.subr.mxu0 0.0
  %997 = vmatpush1.msra.mxu0 0.0
  %998 = vmatprep.subr.mxu0 0.0
  %999 = vmatpush1.msra.mxu0 0.0
  %1000 = vmatprep.subr.mxu0 0.0
  %1001 = vmatpush1.msra.mxu0 0.0
  %1002 = vmatprep.subr.mxu0 0.0
  %1003 = vmatpush1.msra.mxu0 0.0
  %1004 = vmatprep.subr.mxu0 0.0
  %1005 = vmatpush1.msra.mxu0 0.0
  %1006 = vmatprep.subr.mxu0 0.0
  %1007 = vmatpush1.msra.mxu0 0.0
  %1008 = vmatprep.subr.mxu0 0.0
  %1009 = vmatpush1.msra.mxu0 0.0
  %1010 = vmatprep.subr.mxu0 0.0
  %1011 = vmatpush1.msra.mxu0 0.0
  %1012 = vmatprep.subr.mxu0 0.0
  %1013 = vmatpush1.msra.mxu0 0.0
  %1014 = vmatprep.subr.mxu0 0.0
  %1015 = vmatpush1.msra.mxu0 0.0
  %1016 = vmatprep.subr.mxu0 0.0
  %1017 = vmatpush1.msra.mxu0 0.0
  %1018 = vmatprep.subr.mxu0 0.0
  %1019 = vmatpush1.msra.mxu0 0.0
  %1020 = vmatprep.mubr.f32.mxu0 0.0
  %1021 = vmatmul.mubr.f32.gmra.mrb[0].mxu0 %v804
  %v1022 = vpop.f32.mrb[0].mxu0
  %v1023 = vpop.f32.mrb[0].mxu0
  %1024 = vmatprep.mubr.f32.mxu0 0.0
  %1025 = vmatmul.mubr.f32.gmra.mrb[0].mxu0 %v805
  %v1026 = vpop.f32.mrb[0].mxu0
  %v1027 = vadd.f32 0.0, %v1026
  %v1028 = vpop.f32.mrb[0].mxu0
  %v1029 = vadd.f32 0.0, %v1028
  %1030 = vdwg.mxu0
  %s1031 = smul.u32 0, 3
  %s1032 = smul.addr %s1031, 8
  %s1033 = scalar_lea.vmem [#allocation3], %s1032
  %v1034 = vld [vmem:[%s1033] sm:$0xff]
  %v1035 = vld [vmem:[%s1033 + $0x8] sm:$0xff]
  %v1036 = vld [vmem:[%s1033 + $0x10] sm:$0xff]
  %v1037 = vadd.f32 %v1034, %v873
  %v1038 = vsub.f32 0.0, %v1037
  %v1039 = vmul.f32 %v1038, 1.442695
  %v1040 = vpow.pop %v1039
  %v1041 = vadd.f32 %v1040, 1.0
  %v1042 = vrcp.pop %v1041
  %v1043 = vmul.f32 1.0, %v1042
  %v1044 = vadd.f32 %v1035, %v875
  %v1045 = vsub.f32 0.0, %v1044
  %v1046 = vmul.f32 %v1045, 1.442695
  %v1047 = vpow.pop %v1046
  %v1048 = vadd.f32 %v1047, 1.0
  %v1049 = vrcp.pop %v1048
  %v1050 = vmul.f32 1.0, %v1049
  %v1052 = vlaneseq
  %v1053 = vshrl.u32 %v1052, 7
  %v1054 = vsub.s32 0, %v1053
  %v1055 = vrot.slane %v802, %v1054
  %v1057 = vadd.f32 %v948, %v1055
  %v1058 = vmul.f32 %v1043, %v1057
  %v1059 = vadd.f32 %v1036, %v1058
  %v1060 = vtanh.pop %v1059
  %v1061 = vsub.f32 1.0, %v1050
  %v1062 = vmul.f32 %v1061, %v1060
  %v1063 = vmul.f32 %v1050, %v804
  %v1064 = vadd.f32 %v1062, %v1063
  %s1065 = smul.u32 7, 3
  %s1066 = smul.addr %s1065, 8
  %s1067 = scalar_lea.vmem [#allocation4], %s1066
  %v1068 = vld [vmem:[%s1067] sm:$0xff]
  %v1069 = vld [vmem:[%s1067 + $0x8] sm:$0xff]
  %v1070 = vld [vmem:[%s1067 + $0x10] sm:$0xff]
  %v1071 = vadd.f32 %v1068, %v954
  %v1072 = vsub.f32 0.0, %v1071
  %v1073 = vmul.f32 %v1072, 1.442695
  %v1074 = vpow.pop %v1073
  %v1075 = vadd.f32 %v1074, 1.0
  %v1076 = vrcp.pop %v1075
  %v1077 = vmul.f32 1.0, %v1076
  %v1078 = vadd.f32 %v1069, %v1027
  %v1079 = vsub.f32 0.0, %v1078
  %v1080 = vmul.f32 %v1079, 1.442695
  %v1081 = vpow.pop %v1080
  %v1082 = vadd.f32 %v1081, 1.0
  %v1083 = vrcp.pop %v1082
  %v1084 = vmul.f32 1.0, %v1083
  %v1086 = vlaneseq
  %v1087 = vshrl.u32 %v1086, 7
  %v1088 = vsub.s32 0, %v1087
  %v1089 = vrot.slane %v803, %v1088
  %v1091 = vadd.f32 %v1029, %v1089
  %v1092 = vmul.f32 %v1077, %v1091
  %v1093 = vadd.f32 %v1070, %v1092
  %v1094 = vtanh.pop %v1093
  %v1095 = vsub.f32 1.0, %v1084
  %v1096 = vmul.f32 %v1095, %v1094
  %v1097 = vmul.f32 %v1084, %v805
  %v1098 = vadd.f32 %v1096, %v1097
  %1099 = vst [vmem:[#allocation2] sm:$0xff] %v1064
  %1100 = vst [vmem:[#allocation2 + $0x8] sm:$0xff] %v1098
  %1101 = vst [vmem:[%s9] sm:$0xff] %v1064
  %s1102 = scalar_lea.vmem %s67, 56
  %1103 = vst [vmem:[%s1102] sm:$0xff] %v1098
  %v1104 = vld [vmem:[#allocation2] sm:$0xff]
  %v1105 = vld [vmem:[#allocation2 + $0x8] sm:$0xff]
  %1106 = vmatprep.subr.mxu0 %v707
  %1107 = vmatpush1.msra.mxu0 %v706
  %1108 = vmatprep.subr.mxu0 %v713
  %1109 = vmatpush1.msra.mxu0 %v712
  %1110 = vmatprep.subr.mxu0 %v719
  %1111 = vmatpush1.msra.mxu0 %v718
  %1112 = vmatprep.subr.mxu0 %v725
  %1113 = vmatpush1.msra.mxu0 %v724
  %1114 = vmatprep.subr.mxu0 %v731
  %1115 = vmatpush1.msra.mxu0 %v730
  %1116 = vmatprep.subr.mxu0 %v737
  %1117 = vmatpush1.msra.mxu0 %v736
  %1118 = vmatprep.subr.mxu0 %v743
  %1119 = vmatpush1.msra.mxu0 %v742
  %1120 = vmatprep.subr.mxu0 %v749
  %1121 = vmatpush1.msra.mxu0 %v748
  %1122 = vmatprep.subr.mxu0 %v755
  %1123 = vmatpush1.msra.mxu0 %v754
  %1124 = vmatprep.subr.mxu0 %v761
  %1125 = vmatpush1.msra.mxu0 %v760
  %1126 = vmatprep.subr.mxu0 %v767
  %1127 = vmatpush1.msra.mxu0 %v766
  %1128 = vmatprep.subr.mxu0 %v773
  %1129 = vmatpush1.msra.mxu0 %v772
  %1130 = vmatprep.subr.mxu0 %v779
  %1131 = vmatpush1.msra.mxu0 %v778
  %1132 = vmatprep.subr.mxu0 %v785
  %1133 = vmatpush1.msra.mxu0 %v784
  %1134 = vmatprep.subr.mxu0 %v791
  %1135 = vmatpush1.msra.mxu0 %v790
  %1136 = vmatprep.subr.mxu0 %v797
  %1137 = vmatpush1.msra.mxu0 %v796
  %1138 = vmatprep.subr.mxu0 0.0
  %1139 = vmatpush1.msra.mxu0 0.0
  %1140 = vmatprep.subr.mxu0 0.0
  %1141 = vmatpush1.msra.mxu0 0.0
  %1142 = vmatprep.subr.mxu0 0.0
  %1143 = vmatpush1.msra.mxu0 0.0
  %1144 = vmatprep.subr.mxu0 0.0
  %1145 = vmatpush1.msra.mxu0 0.0
  %1146 = vmatprep.subr.mxu0 0.0
  %1147 = vmatpush1.msra.mxu0 0.0
  %1148 = vmatprep.subr.mxu0 0.0
  %1149 = vmatpush1.msra.mxu0 0.0
  %1150 = vmatprep.subr.mxu0 0.0
  %1151 = vmatpush1.msra.mxu0 0.0
  %1152 = vmatprep.subr.mxu0 0.0
  %1153 = vmatpush1.msra.mxu0 0.0
  %1154 = vmatprep.subr.mxu0 0.0
  %1155 = vmatpush1.msra.mxu0 0.0
  %1156 = vmatprep.subr.mxu0 0.0
  %1157 = vmatpush1.msra.mxu0 0.0
  %1158 = vmatprep.subr.mxu0 0.0
  %1159 = vmatpush1.msra.mxu0 0.0
  %1160 = vmatprep.subr.mxu0 0.0
  %1161 = vmatpush1.msra.mxu0 0.0
  %1162 = vmatprep.subr.mxu0 0.0
  %1163 = vmatpush1.msra.mxu0 0.0
  %1164 = vmatprep.subr.mxu0 0.0
  %1165 = vmatpush1.msra.mxu0 0.0
  %1166 = vmatprep.subr.mxu0 0.0
  %1167 = vmatpush1.msra.mxu0 0.0
  %1168 = vmatprep.subr.mxu0 0.0
  %1169 = vmatpush1.msra.mxu0 0.0
  %1170 = vmatprep.mubr.f32.mxu0 0.0
  %1171 = vmatmul.mubr.f32.gmra.mrb[0].mxu0 %v1104
  %v1172 = vpop.f32.mrb[0].mxu0
  %v1173 = vadd.f32 0.0, %v1172
  %v1174 = vpop.f32.mrb[0].mxu0
  %v1175 = vadd.f32 0.0, %v1174
  %1176 = vmatprep.mubr.f32.mxu0 0.0
  %1177 = vmatmul.mubr.f32.gmra.mrb[0].mxu0 %v1105
  %v1178 = vpop.f32.mrb[0].mxu0
  %v1179 = vpop.f32.mrb[0].mxu0
  %1180 = vdwg.mxu0
  %1181 = vmatprep.subr.mxu0 %v709
  %1182 = vmatpush1.msra.mxu0 %v708
  %1183 = vmatprep.subr.mxu0 %v715
  %1184 = vmatpush1.msra.mxu0 %v714
  %1185 = vmatprep.subr.mxu0 %v721
  %1186 = vmatpush1.msra.mxu0 %v720
  %1187 = vmatprep.subr.mxu0 %v727
  %1188 = vmatpush1.msra.mxu0 %v726
  %1189 = vmatprep.subr.mxu0 %v733
  %1190 = vmatpush1.msra.mxu0 %v732
  %1191 = vmatprep.subr.mxu0 %v739
  %1192 = vmatpush1.msra.mxu0 %v738
  %1193 = vmatprep.subr.mxu0 %v745
  %1194 = vmatpush1.msra.mxu0 %v744
  %1195 = vmatprep.subr.mxu0 %v751
  %1196 = vmatpush1.msra.mxu0 %v750
  %1197 = vmatprep.subr.mxu0 %v757
  %1198 = vmatpush1.msra.mxu0 %v756
  %1199 = vmatprep.subr.mxu0 %v763
  %1200 = vmatpush1.msra.mxu0 %v762
  %1201 = vmatprep.subr.mxu0 %v769
  %1202 = vmatpush1.msra.mxu0 %v768
  %1203 = vmatprep.subr.mxu0 %v775
  %1204 = vmatpush1.msra.mxu0 %v774
  %1205 = vmatprep.subr.mxu0 %v781
  %1206 = vmatpush1.msra.mxu0 %v780
  %1207 = vmatprep.subr.mxu0 %v787
  %1208 = vmatpush1.msra.mxu0 %v786
  %1209 = vmatprep.subr.mxu0 %v793
  %1210 = vmatpush1.msra.mxu0 %v792
  %1211 = vmatprep.subr.mxu0 %v799
  %1212 = vmatpush1.msra.mxu0 %v798
  %1213 = vmatprep.subr.mxu0 0.0
  %1214 = vmatpush1.msra.mxu0 0.0
  %1215 = vmatprep.subr.mxu0 0.0
  %1216 = vmatpush1.msra.mxu0 0.0
  %1217 = vmatprep.subr.mxu0 0.0
  %1218 = vmatpush1.msra.mxu0 0.0
  %1219 = vmatprep.subr.mxu0 0.0
  %1220 = vmatpush1.msra.mxu0 0.0
  %1221 = vmatprep.subr.mxu0 0.0
  %1222 = vmatpush1.msra.mxu0 0.0
  %1223 = vmatprep.subr.mxu0 0.0
  %1224 = vmatpush1.msra.mxu0 0.0
  %1225 = vmatprep.subr.mxu0 0.0
  %1226 = vmatpush1.msra.mxu0 0.0
  %1227 = vmatprep.subr.mxu0 0.0
  %1228 = vmatpush1.msra.mxu0 0.0
  %1229 = vmatprep.subr.mxu0 0.0
  %1230 = vmatpush1.msra.mxu0 0.0
  %1231 = vmatprep.subr.mxu0 0.0
  %1232 = vmatpush1.msra.mxu0 0.0
  %1233 = vmatprep.subr.mxu0 0.0
  %1234 = vmatpush1.msra.mxu0 0.0
  %1235 = vmatprep.subr.mxu0 0.0
  %1236 = vmatpush1.msra.mxu0 0.0
  %1237 = vmatprep.subr.mxu0 0.0
  %1238 = vmatpush1.msra.mxu0 0.0
  %1239 = vmatprep.subr.mxu0 0.0
  %1240 = vmatpush1.msra.mxu0 0.0
  %1241 = vmatprep.subr.mxu0 0.0
  %1242 = vmatpush1.msra.mxu0 0.0
  %1243 = vmatprep.subr.mxu0 0.0
  %1244 = vmatpush1.msra.mxu0 0.0
  %1245 = vmatprep.mubr.f32.mxu0 0.0
  %1246 = vmatmul.mubr.f32.gmra.mrb[0].mxu0 %v1104
  %v1247 = vpop.f32.mrb[0].mxu0
  %v1248 = vadd.f32 0.0, %v1247
  %v1249 = vpop.f32.mrb[0].mxu0
  %1250 = vmatprep.mubr.f32.mxu0 0.0
  %1251 = vmatmul.mubr.f32.gmra.mrb[0].mxu0 %v1105
  %v1252 = vpop.f32.mrb[0].mxu0
  %v1253 = vpop.f32.mrb[0].mxu0
  %v1254 = vadd.f32 0.0, %v1253
  %1255 = vdwg.mxu0
  %1256 = vmatprep.subr.mxu0 %v711
  %1257 = vmatpush1.msra.mxu0 %v710
  %1258 = vmatprep.subr.mxu0 %v717
  %1259 = vmatpush1.msra.mxu0 %v716
  %1260 = vmatprep.subr.mxu0 %v723
  %1261 = vmatpush1.msra.mxu0 %v722
  %1262 = vmatprep.subr.mxu0 %v729
  %1263 = vmatpush1.msra.mxu0 %v728
  %1264 = vmatprep.subr.mxu0 %v735
  %1265 = vmatpush1.msra.mxu0 %v734
  %1266 = vmatprep.subr.mxu0 %v741
  %1267 = vmatpush1.msra.mxu0 %v740
  %1268 = vmatprep.subr.mxu0 %v747
  %1269 = vmatpush1.msra.mxu0 %v746
  %1270 = vmatprep.subr.mxu0 %v753
  %1271 = vmatpush1.msra.mxu0 %v752
  %1272 = vmatprep.subr.mxu0 %v759
  %1273 = vmatpush1.msra.mxu0 %v758
  %1274 = vmatprep.subr.mxu0 %v765
  %1275 = vmatpush1.msra.mxu0 %v764
  %1276 = vmatprep.subr.mxu0 %v771
  %1277 = vmatpush1.msra.mxu0 %v770
  %1278 = vmatprep.subr.mxu0 %v777
  %1279 = vmatpush1.msra.mxu0 %v776
  %1280 = vmatprep.subr.mxu0 %v783
  %1281 = vmatpush1.msra.mxu0 %v782
  %1282 = vmatprep.subr.mxu0 %v789
  %1283 = vmatpush1.msra.mxu0 %v788
  %1284 = vmatprep.subr.mxu0 %v795
  %1285 = vmatpush1.msra.mxu0 %v794
  %1286 = vmatprep.subr.mxu0 %v801
  %1287 = vmatpush1.msra.mxu0 %v800
  %1288 = vmatprep.subr.mxu0 0.0
  %1289 = vmatpush1.msra.mxu0 0.0
  %1290 = vmatprep.subr.mxu0 0.0
  %1291 = vmatpush1.msra.mxu0 0.0
  %1292 = vmatprep.subr.mxu0 0.0
  %1293 = vmatpush1.msra.mxu0 0.0
  %1294 = vmatprep.subr.mxu0 0.0
  %1295 = vmatpush1.msra.mxu0 0.0
  %1296 = vmatprep.subr.mxu0 0.0
  %1297 = vmatpush1.msra.mxu0 0.0
  %1298 = vmatprep.subr.mxu0 0.0
  %1299 = vmatpush1.msra.mxu0 0.0
  %1300 = vmatprep.subr.mxu0 0.0
  %1301 = vmatpush1.msra.mxu0 0.0
  %1302 = vmatprep.subr.mxu0 0.0
  %1303 = vmatpush1.msra.mxu0 0.0
  %1304 = vmatprep.subr.mxu0 0.0
  %1305 = vmatpush1.msra.mxu0 0.0
  %1306 = vmatprep.subr.mxu0 0.0
  %1307 = vmatpush1.msra.mxu0 0.0
  %1308 = vmatprep.subr.mxu0 0.0
  %1309 = vmatpush1.msra.mxu0 0.0
  %1310 = vmatprep.subr.mxu0 0.0
  %1311 = vmatpush1.msra.mxu0 0.0
  %1312 = vmatprep.subr.mxu0 0.0
  %1313 = vmatpush1.msra.mxu0 0.0
  %1314 = vmatprep.subr.mxu0 0.0
  %1315 = vmatpush1.msra.mxu0 0.0
  %1316 = vmatprep.subr.mxu0 0.0
  %1317 = vmatpush1.msra.mxu0 0.0
  %1318 = vmatprep.subr.mxu0 0.0
  %1319 = vmatpush1.msra.mxu0 0.0
  %1320 = vmatprep.mubr.f32.mxu0 0.0
  %1321 = vmatmul.mubr.f32.gmra.mrb[0].mxu0 %v1104
  %v1322 = vpop.f32.mrb[0].mxu0
  %v1323 = vpop.f32.mrb[0].mxu0
  %1324 = vmatprep.mubr.f32.mxu0 0.0
  %1325 = vmatmul.mubr.f32.gmra.mrb[0].mxu0 %v1105
  %v1326 = vpop.f32.mrb[0].mxu0
  %v1327 = vadd.f32 0.0, %v1326
  %v1328 = vpop.f32.mrb[0].mxu0
  %v1329 = vadd.f32 0.0, %v1328
  %1330 = vdwg.mxu0
  %s1331 = smul.u32 1, 3
  %s1332 = smul.addr %s1331, 8
  %s1333 = scalar_lea.vmem [#allocation3], %s1332
  %v1334 = vld [vmem:[%s1333] sm:$0xff]
  %v1335 = vld [vmem:[%s1333 + $0x8] sm:$0xff]
  %v1336 = vld [vmem:[%s1333 + $0x10] sm:$0xff]
  %v1337 = vadd.f32 %v1334, %v1173
  %v1338 = vsub.f32 0.0, %v1337
  %v1339 = vmul.f32 %v1338, 1.442695
  %v1340 = vpow.pop %v1339
  %v1341 = vadd.f32 %v1340, 1.0
  %v1342 = vrcp.pop %v1341
  %v1343 = vmul.f32 1.0, %v1342
  %v1344 = vadd.f32 %v1335, %v1175
  %v1345 = vsub.f32 0.0, %v1344
  %v1346 = vmul.f32 %v1345, 1.442695
  %v1347 = vpow.pop %v1346
  %v1348 = vadd.f32 %v1347, 1.0
  %v1349 = vrcp.pop %v1348
  %v1350 = vmul.f32 1.0, %v1349
  %v1351 = vadd.f32 %v1248, %v1055
  %v1352 = vmul.f32 %v1343, %v1351
  %v1353 = vadd.f32 %v1336, %v1352
  %v1354 = vtanh.pop %v1353
  %v1355 = vsub.f32 1.0, %v1350
  %v1356 = vmul.f32 %v1355, %v1354
  %v1357 = vmul.f32 %v1350, %v1104
  %v1358 = vadd.f32 %v1356, %v1357
  %s1359 = smul.u32 6, 3
  %s1360 = smul.addr %s1359, 8
  %s1361 = scalar_lea.vmem [#allocation4], %s1360
  %v1362 = vld [vmem:[%s1361] sm:$0xff]
  %v1363 = vld [vmem:[%s1361 + $0x8] sm:$0xff]
  %v1364 = vld [vmem:[%s1361 + $0x10] sm:$0xff]
  %v1365 = vadd.f32 %v1362, %v1254
  %v1366 = vsub.f32 0.0, %v1365
  %v1367 = vmul.f32 %v1366, 1.442695
  %v1368 = vpow.pop %v1367
  %v1369 = vadd.f32 %v1368, 1.0
  %v1370 = vrcp.pop %v1369
  %v1371 = vmul.f32 1.0, %v1370
  %v1372 = vadd.f32 %v1363, %v1327
  %v1373 = vsub.f32 0.0, %v1372
  %v1374 = vmul.f32 %v1373, 1.442695
  %v1375 = vpow.pop %v1374
  %v1376 = vadd.f32 %v1375, 1.0
  %v1377 = vrcp.pop %v1376
  %v1378 = vmul.f32 1.0, %v1377
  %v1379 = vadd.f32 %v1329, %v1089
  %v1380 = vmul.f32 %v1371, %v1379
  %v1381 = vadd.f32 %v1364, %v1380
  %v1382 = vtanh.pop %v1381
  %v1383 = vsub.f32 1.0, %v1378
  %v1384 = vmul.f32 %v1383, %v1382
  %v1385 = vmul.f32 %v1378, %v1105
  %v1386 = vadd.f32 %v1384, %v1385
  %1387 = vst [vmem:[#allocation2] sm:$0xff] %v1358
  %1388 = vst [vmem:[#allocation2 + $0x8] sm:$0xff] %v1386
  %s1389 = scalar_lea.vmem %s9, 8
  %1390 = vst [vmem:[%s1389] sm:$0xff] %v1358
  %s1391 = scalar_lea.vmem %s67, 48
  %1392 = vst [vmem:[%s1391] sm:$0xff] %v1386
  %v1393 = vld [vmem:[#allocation2] sm:$0xff]
  %v1394 = vld [vmem:[#allocation2 + $0x8] sm:$0xff]
  %1395 = vmatprep.subr.mxu0 %v707
  %1396 = vmatpush1.msra.mxu0 %v706
  %1397 = vmatprep.subr.mxu0 %v713
  %1398 = vmatpush1.msra.mxu0 %v712
  %1399 = vmatprep.subr.mxu0 %v719
  %1400 = vmatpush1.msra.mxu0 %v718
  %1401 = vmatprep.subr.mxu0 %v725
  %1402 = vmatpush1.msra.mxu0 %v724
  %1403 = vmatprep.subr.mxu0 %v731
  %1404 = vmatpush1.msra.mxu0 %v730
  %1405 = vmatprep.subr.mxu0 %v737
  %1406 = vmatpush1.msra.mxu0 %v736
  %1407 = vmatprep.subr.mxu0 %v743
  %1408 = vmatpush1.msra.mxu0 %v742
  %1409 = vmatprep.subr.mxu0 %v749
  %1410 = vmatpush1.msra.mxu0 %v748
  %1411 = vmatprep.subr.mxu0 %v755
  %1412 = vmatpush1.msra.mxu0 %v754
  %1413 = vmatprep.subr.mxu0 %v761
  %1414 = vmatpush1.msra.mxu0 %v760
  %1415 = vmatprep.subr.mxu0 %v767
  %1416 = vmatpush1.msra.mxu0 %v766
  %1417 = vmatprep.subr.mxu0 %v773
  %1418 = vmatpush1.msra.mxu0 %v772
  %1419 = vmatprep.subr.mxu0 %v779
  %1420 = vmatpush1.msra.mxu0 %v778
  %1421 = vmatprep.subr.mxu0 %v785
  %1422 = vmatpush1.msra.mxu0 %v784
  %1423 = vmatprep.subr.mxu0 %v791
  %1424 = vmatpush1.msra.mxu0 %v790
  %1425 = vmatprep.subr.mxu0 %v797
  %1426 = vmatpush1.msra.mxu0 %v796
  %1427 = vmatprep.subr.mxu0 0.0
  %1428 = vmatpush1.msra.mxu0 0.0
  %1429 = vmatprep.subr.mxu0 0.0
  %1430 = vmatpush1.msra.mxu0 0.0
  %1431 = vmatprep.subr.mxu0 0.0
  %1432 = vmatpush1.msra.mxu0 0.0
  %1433 = vmatprep.subr.mxu0 0.0
  %1434 = vmatpush1.msra.mxu0 0.0
  %1435 = vmatprep.subr.mxu0 0.0
  %1436 = vmatpush1.msra.mxu0 0.0
  %1437 = vmatprep.subr.mxu0 0.0
  %1438 = vmatpush1.msra.mxu0 0.0
  %1439 = vmatprep.subr.mxu0 0.0
  %1440 = vmatpush1.msra.mxu0 0.0
  %1441 = vmatprep.subr.mxu0 0.0
  %1442 = vmatpush1.msra.mxu0 0.0
  %1443 = vmatprep.subr.mxu0 0.0
  %1444 = vmatpush1.msra.mxu0 0.0
  %1445 = vmatprep.subr.mxu0 0.0
  %1446 = vmatpush1.msra.mxu0 0.0
  %1447 = vmatprep.subr.mxu0 0.0
  %1448 = vmatpush1.msra.mxu0 0.0
  %1449 = vmatprep.subr.mxu0 0.0
  %1450 = vmatpush1.msra.mxu0 0.0
  %1451 = vmatprep.subr.mxu0 0.0
  %1452 = vmatpush1.msra.mxu0 0.0
  %1453 = vmatprep.subr.mxu0 0.0
  %1454 = vmatpush1.msra.mxu0 0.0
  %1455 = vmatprep.subr.mxu0 0.0
  %1456 = vmatpush1.msra.mxu0 0.0
  %1457 = vmatprep.subr.mxu0 0.0
  %1458 = vmatpush1.msra.mxu0 0.0
  %1459 = vmatprep.mubr.f32.mxu0 0.0
  %1460 = vmatmul.mubr.f32.gmra.mrb[0].mxu0 %v1393
  %v1461 = vpop.f32.mrb[0].mxu0
  %v1462 = vadd.f32 0.0, %v1461
  %v1463 = vpop.f32.mrb[0].mxu0
  %v1464 = vadd.f32 0.0, %v1463
  %1465 = vmatprep.mubr.f32.mxu0 0.0
  %1466 = vmatmul.mubr.f32.gmra.mrb[0].mxu0 %v1394
  %v1467 = vpop.f32.mrb[0].mxu0
  %v1468 = vpop.f32.mrb[0].mxu0
  %1469 = vdwg.mxu0
  %1470 = vmatprep.subr.mxu0 %v709
  %1471 = vmatpush1.msra.mxu0 %v708
  %1472 = vmatprep.subr.mxu0 %v715
  %1473 = vmatpush1.msra.mxu0 %v714
  %1474 = vmatprep.subr.mxu0 %v721
  %1475 = vmatpush1.msra.mxu0 %v720
  %1476 = vmatprep.subr.mxu0 %v727
  %1477 = vmatpush1.msra.mxu0 %v726
  %1478 = vmatprep.subr.mxu0 %v733
  %1479 = vmatpush1.msra.mxu0 %v732
  %1480 = vmatprep.subr.mxu0 %v739
  %1481 = vmatpush1.msra.mxu0 %v738
  %1482 = vmatprep.subr.mxu0 %v745
  %1483 = vmatpush1.msra.mxu0 %v744
  %1484 = vmatprep.subr.mxu0 %v751
  %1485 = vmatpush1.msra.mxu0 %v750
  %1486 = vmatprep.subr.mxu0 %v757
  %1487 = vmatpush1.msra.mxu0 %v756
  %1488 = vmatprep.subr.mxu0 %v763
  %1489 = vmatpush1.msra.mxu0 %v762
  %1490 = vmatprep.subr.mxu0 %v769
  %1491 = vmatpush1.msra.mxu0 %v768
  %1492 = vmatprep.subr.mxu0 %v775
  %1493 = vmatpush1.msra.mxu0 %v774
  %1494 = vmatprep.subr.mxu0 %v781
  %1495 = vmatpush1.msra.mxu0 %v780
  %1496 = vmatprep.subr.mxu0 %v787
  %1497 = vmatpush1.msra.mxu0 %v786
  %1498 = vmatprep.subr.mxu0 %v793
  %1499 = vmatpush1.msra.mxu0 %v792
  %1500 = vmatprep.subr.mxu0 %v799
  %1501 = vmatpush1.msra.mxu0 %v798
  %1502 = vmatprep.subr.mxu0 0.0
  %1503 = vmatpush1.msra.mxu0 0.0
  %1504 = vmatprep.subr.mxu0 0.0
  %1505 = vmatpush1.msra.mxu0 0.0
  %1506 = vmatprep.subr.mxu0 0.0
  %1507 = vmatpush1.msra.mxu0 0.0
  %1508 = vmatprep.subr.mxu0 0.0
  %1509 = vmatpush1.msra.mxu0 0.0
  %1510 = vmatprep.subr.mxu0 0.0
  %1511 = vmatpush1.msra.mxu0 0.0
  %1512 = vmatprep.subr.mxu0 0.0
  %1513 = vmatpush1.msra.mxu0 0.0
  %1514 = vmatprep.subr.mxu0 0.0
  %1515 = vmatpush1.msra.mxu0 0.0
  %1516 = vmatprep.subr.mxu0 0.0
  %1517 = vmatpush1.msra.mxu0 0.0
  %1518 = vmatprep.subr.mxu0 0.0
  %1519 = vmatpush1.msra.mxu0 0.0
  %1520 = vmatprep.subr.mxu0 0.0
  %1521 = vmatpush1.msra.mxu0 0.0
  %1522 = vmatprep.subr.mxu0 0.0
  %1523 = vmatpush1.msra.mxu0 0.0
  %1524 = vmatprep.subr.mxu0 0.0
  %1525 = vmatpush1.msra.mxu0 0.0
  %1526 = vmatprep.subr.mxu0 0.0
  %1527 = vmatpush1.msra.mxu0 0.0
  %1528 = vmatprep.subr.mxu0 0.0
  %1529 = vmatpush1.msra.mxu0 0.0
  %1530 = vmatprep.subr.mxu0 0.0
  %1531 = vmatpush1.msra.mxu0 0.0
  %1532 = vmatprep.subr.mxu0 0.0
  %1533 = vmatpush1.msra.mxu0 0.0
  %1534 = vmatprep.mubr.f32.mxu0 0.0
  %1535 = vmatmul.mubr.f32.gmra.mrb[0].mxu0 %v1393
  %v1536 = vpop.f32.mrb[0].mxu0
  %v1537 = vadd.f32 0.0, %v1536
  %v1538 = vpop.f32.mrb[0].mxu0
  %1539 = vmatprep.mubr.f32.mxu0 0.0
  %1540 = vmatmul.mubr.f32.gmra.mrb[0].mxu0 %v1394
  %v1541 = vpop.f32.mrb[0].mxu0
  %v1542 = vpop.f32.mrb[0].mxu0
  %v1543 = vadd.f32 0.0, %v1542
  %1544 = vdwg.mxu0
  %1545 = vmatprep.subr.mxu0 %v711
  %1546 = vmatpush1.msra.mxu0 %v710
  %1547 = vmatprep.subr.mxu0 %v717
  %1548 = vmatpush1.msra.mxu0 %v716
  %1549 = vmatprep.subr.mxu0 %v723
  %1550 = vmatpush1.msra.mxu0 %v722
  %1551 = vmatprep.subr.mxu0 %v729
  %1552 = vmatpush1.msra.mxu0 %v728
  %1553 = vmatprep.subr.mxu0 %v735
  %1554 = vmatpush1.msra.mxu0 %v734
  %1555 = vmatprep.subr.mxu0 %v741
  %1556 = vmatpush1.msra.mxu0 %v740
  %1557 = vmatprep.subr.mxu0 %v747
  %1558 = vmatpush1.msra.mxu0 %v746
  %1559 = vmatprep.subr.mxu0 %v753
  %1560 = vmatpush1.msra.mxu0 %v752
  %1561 = vmatprep.subr.mxu0 %v759
  %1562 = vmatpush1.msra.mxu0 %v758
  %1563 = vmatprep.subr.mxu0 %v765
  %1564 = vmatpush1.msra.mxu0 %v764
  %1565 = vmatprep.subr.mxu0 %v771
  %1566 = vmatpush1.msra.mxu0 %v770
  %1567 = vmatprep.subr.mxu0 %v777
  %1568 = vmatpush1.msra.mxu0 %v776
  %1569 = vmatprep.subr.mxu0 %v783
  %1570 = vmatpush1.msra.mxu0 %v782
  %1571 = vmatprep.subr.mxu0 %v789
  %1572 = vmatpush1.msra.mxu0 %v788
  %1573 = vmatprep.subr.mxu0 %v795
  %1574 = vmatpush1.msra.mxu0 %v794
  %1575 = vmatprep.subr.mxu0 %v801
  %1576 = vmatpush1.msra.mxu0 %v800
  %1577 = vmatprep.subr.mxu0 0.0
  %1578 = vmatpush1.msra.mxu0 0.0
  %1579 = vmatprep.subr.mxu0 0.0
  %1580 = vmatpush1.msra.mxu0 0.0
  %1581 = vmatprep.subr.mxu0 0.0
  %1582 = vmatpush1.msra.mxu0 0.0
  %1583 = vmatprep.subr.mxu0 0.0
  %1584 = vmatpush1.msra.mxu0 0.0
  %1585 = vmatprep.subr.mxu0 0.0
  %1586 = vmatpush1.msra.mxu0 0.0
  %1587 = vmatprep.subr.mxu0 0.0
  %1588 = vmatpush1.msra.mxu0 0.0
  %1589 = vmatprep.subr.mxu0 0.0
  %1590 = vmatpush1.msra.mxu0 0.0
  %1591 = vmatprep.subr.mxu0 0.0
  %1592 = vmatpush1.msra.mxu0 0.0
  %1593 = vmatprep.subr.mxu0 0.0
  %1594 = vmatpush1.msra.mxu0 0.0
  %1595 = vmatprep.subr.mxu0 0.0
  %1596 = vmatpush1.msra.mxu0 0.0
  %1597 = vmatprep.subr.mxu0 0.0
  %1598 = vmatpush1.msra.mxu0 0.0
  %1599 = vmatprep.subr.mxu0 0.0
  %1600 = vmatpush1.msra.mxu0 0.0
  %1601 = vmatprep.subr.mxu0 0.0
  %1602 = vmatpush1.msra.mxu0 0.0
  %1603 = vmatprep.subr.mxu0 0.0
  %1604 = vmatpush1.msra.mxu0 0.0
  %1605 = vmatprep.subr.mxu0 0.0
  %1606 = vmatpush1.msra.mxu0 0.0
  %1607 = vmatprep.subr.mxu0 0.0
  %1608 = vmatpush1.msra.mxu0 0.0
  %1609 = vmatprep.mubr.f32.mxu0 0.0
  %1610 = vmatmul.mubr.f32.gmra.mrb[0].mxu0 %v1393
  %v1611 = vpop.f32.mrb[0].mxu0
  %v1612 = vpop.f32.mrb[0].mxu0
  %1613 = vmatprep.mubr.f32.mxu0 0.0
  %1614 = vmatmul.mubr.f32.gmra.mrb[0].mxu0 %v1394
  %v1615 = vpop.f32.mrb[0].mxu0
  %v1616 = vadd.f32 0.0, %v1615
  %v1617 = vpop.f32.mrb[0].mxu0
  %v1618 = vadd.f32 0.0, %v1617
  %1619 = vdwg.mxu0
  %s1620 = smul.u32 2, 3
  %s1621 = smul.addr %s1620, 8
  %s1622 = scalar_lea.vmem [#allocation3], %s1621
  %v1623 = vld [vmem:[%s1622] sm:$0xff]
  %v1624 = vld [vmem:[%s1622 + $0x8] sm:$0xff]
  %v1625 = vld [vmem:[%s1622 + $0x10] sm:$0xff]
  %v1626 = vadd.f32 %v1623, %v1462
  %v1627 = vsub.f32 0.0, %v1626
  %v1628 = vmul.f32 %v1627, 1.442695
  %v1629 = vpow.pop %v1628
  %v1630 = vadd.f32 %v1629, 1.0
  %v1631 = vrcp.pop %v1630
  %v1632 = vmul.f32 1.0, %v1631
  %v1633 = vadd.f32 %v1624, %v1464
  %v1634 = vsub.f32 0.0, %v1633
  %v1635 = vmul.f32 %v1634, 1.442695
  %v1636 = vpow.pop %v1635
  %v1637 = vadd.f32 %v1636, 1.0
  %v1638 = vrcp.pop %v1637
  %v1639 = vmul.f32 1.0, %v1638
  %v1640 = vadd.f32 %v1537, %v1055
  %v1641 = vmul.f32 %v1632, %v1640
  %v1642 = vadd.f32 %v1625, %v1641
  %v1643 = vtanh.pop %v1642
  %v1644 = vsub.f32 1.0, %v1639
  %v1645 = vmul.f32 %v1644, %v1643
  %v1646 = vmul.f32 %v1639, %v1393
  %v1647 = vadd.f32 %v1645, %v1646
  %s1648 = smul.u32 5, 3
  %s1649 = smul.addr %s1648, 8
  %s1650 = scalar_lea.vmem [#allocation4], %s1649
  %v1651 = vld [vmem:[%s1650] sm:$0xff]
  %v1652 = vld [vmem:[%s1650 + $0x8] sm:$0xff]
  %v1653 = vld [vmem:[%s1650 + $0x10] sm:$0xff]
  %v1654 = vadd.f32 %v1651, %v1543
  %v1655 = vsub.f32 0.0, %v1654
  %v1656 = vmul.f32 %v1655, 1.442695
  %v1657 = vpow.pop %v1656
  %v1658 = vadd.f32 %v1657, 1.0
  %v1659 = vrcp.pop %v1658
  %v1660 = vmul.f32 1.0, %v1659
  %v1661 = vadd.f32 %v1652, %v1616
  %v1662 = vsub.f32 0.0, %v1661
  %v1663 = vmul.f32 %v1662, 1.442695
  %v1664 = vpow.pop %v1663
  %v1665 = vadd.f32 %v1664, 1.0
  %v1666 = vrcp.pop %v1665
  %v1667 = vmul.f32 1.0, %v1666
  %v1668 = vadd.f32 %v1618, %v1089
  %v1669 = vmul.f32 %v1660, %v1668
  %v1670 = vadd.f32 %v1653, %v1669
  %v1671 = vtanh.pop %v1670
  %v1672 = vsub.f32 1.0, %v1667
  %v1673 = vmul.f32 %v1672, %v1671
  %v1674 = vmul.f32 %v1667, %v1394
  %v1675 = vadd.f32 %v1673, %v1674
  %1676 = vst [vmem:[#allocation2] sm:$0xff] %v1647
  %1677 = vst [vmem:[#allocation2 + $0x8] sm:$0xff] %v1675
  %s1678 = scalar_lea.vmem %s9, 16
  %1679 = vst [vmem:[%s1678] sm:$0xff] %v1647
  %s1680 = scalar_lea.vmem %s67, 40
  %1681 = vst [vmem:[%s1680] sm:$0xff] %v1675
  %v1682 = vld [vmem:[#allocation2] sm:$0xff]
  %v1683 = vld [vmem:[#allocation2 + $0x8] sm:$0xff]
  %1684 = vmatprep.subr.mxu0 %v707
  %1685 = vmatpush1.msra.mxu0 %v706
  %1686 = vmatprep.subr.mxu0 %v713
  %1687 = vmatpush1.msra.mxu0 %v712
  %1688 = vmatprep.subr.mxu0 %v719
  %1689 = vmatpush1.msra.mxu0 %v718
  %1690 = vmatprep.subr.mxu0 %v725
  %1691 = vmatpush1.msra.mxu0 %v724
  %1692 = vmatprep.subr.mxu0 %v731
  %1693 = vmatpush1.msra.mxu0 %v730
  %1694 = vmatprep.subr.mxu0 %v737
  %1695 = vmatpush1.msra.mxu0 %v736
  %1696 = vmatprep.subr.mxu0 %v743
  %1697 = vmatpush1.msra.mxu0 %v742
  %1698 = vmatprep.subr.mxu0 %v749
  %1699 = vmatpush1.msra.mxu0 %v748
  %1700 = vmatprep.subr.mxu0 %v755
  %1701 = vmatpush1.msra.mxu0 %v754
  %1702 = vmatprep.subr.mxu0 %v761
  %1703 = vmatpush1.msra.mxu0 %v760
  %1704 = vmatprep.subr.mxu0 %v767
  %1705 = vmatpush1.msra.mxu0 %v766
  %1706 = vmatprep.subr.mxu0 %v773
  %1707 = vmatpush1.msra.mxu0 %v772
  %1708 = vmatprep.subr.mxu0 %v779
  %1709 = vmatpush1.msra.mxu0 %v778
  %1710 = vmatprep.subr.mxu0 %v785
  %1711 = vmatpush1.msra.mxu0 %v784
  %1712 = vmatprep.subr.mxu0 %v791
  %1713 = vmatpush1.msra.mxu0 %v790
  %1714 = vmatprep.subr.mxu0 %v797
  %1715 = vmatpush1.msra.mxu0 %v796
  %1716 = vmatprep.subr.mxu0 0.0
  %1717 = vmatpush1.msra.mxu0 0.0
  %1718 = vmatprep.subr.mxu0 0.0
  %1719 = vmatpush1.msra.mxu0 0.0
  %1720 = vmatprep.subr.mxu0 0.0
  %1721 = vmatpush1.msra.mxu0 0.0
  %1722 = vmatprep.subr.mxu0 0.0
  %1723 = vmatpush1.msra.mxu0 0.0
  %1724 = vmatprep.subr.mxu0 0.0
  %1725 = vmatpush1.msra.mxu0 0.0
  %1726 = vmatprep.subr.mxu0 0.0
  %1727 = vmatpush1.msra.mxu0 0.0
  %1728 = vmatprep.subr.mxu0 0.0
  %1729 = vmatpush1.msra.mxu0 0.0
  %1730 = vmatprep.subr.mxu0 0.0
  %1731 = vmatpush1.msra.mxu0 0.0
  %1732 = vmatprep.subr.mxu0 0.0
  %1733 = vmatpush1.msra.mxu0 0.0
  %1734 = vmatprep.subr.mxu0 0.0
  %1735 = vmatpush1.msra.mxu0 0.0
  %1736 = vmatprep.subr.mxu0 0.0
  %1737 = vmatpush1.msra.mxu0 0.0
  %1738 = vmatprep.subr.mxu0 0.0
  %1739 = vmatpush1.msra.mxu0 0.0
  %1740 = vmatprep.subr.mxu0 0.0
  %1741 = vmatpush1.msra.mxu0 0.0
  %1742 = vmatprep.subr.mxu0 0.0
  %1743 = vmatpush1.msra.mxu0 0.0
  %1744 = vmatprep.subr.mxu0 0.0
  %1745 = vmatpush1.msra.mxu0 0.0
  %1746 = vmatprep.subr.mxu0 0.0
  %1747 = vmatpush1.msra.mxu0 0.0
  %1748 = vmatprep.mubr.f32.mxu0 0.0
  %1749 = vmatmul.mubr.f32.gmra.mrb[0].mxu0 %v1682
  %v1750 = vpop.f32.mrb[0].mxu0
  %v1751 = vadd.f32 0.0, %v1750
  %v1752 = vpop.f32.mrb[0].mxu0
  %v1753 = vadd.f32 0.0, %v1752
  %1754 = vmatprep.mubr.f32.mxu0 0.0
  %1755 = vmatmul.mubr.f32.gmra.mrb[0].mxu0 %v1683
  %v1756 = vpop.f32.mrb[0].mxu0
  %v1757 = vpop.f32.mrb[0].mxu0
  %1758 = vdwg.mxu0
  %1759 = vmatprep.subr.mxu0 %v709
  %1760 = vmatpush1.msra.mxu0 %v708
  %1761 = vmatprep.subr.mxu0 %v715
  %1762 = vmatpush1.msra.mxu0 %v714
  %1763 = vmatprep.subr.mxu0 %v721
  %1764 = vmatpush1.msra.mxu0 %v720
  %1765 = vmatprep.subr.mxu0 %v727
  %1766 = vmatpush1.msra.mxu0 %v726
  %1767 = vmatprep.subr.mxu0 %v733
  %1768 = vmatpush1.msra.mxu0 %v732
  %1769 = vmatprep.subr.mxu0 %v739
  %1770 = vmatpush1.msra.mxu0 %v738
  %1771 = vmatprep.subr.mxu0 %v745
  %1772 = vmatpush1.msra.mxu0 %v744
  %1773 = vmatprep.subr.mxu0 %v751
  %1774 = vmatpush1.msra.mxu0 %v750
  %1775 = vmatprep.subr.mxu0 %v757
  %1776 = vmatpush1.msra.mxu0 %v756
  %1777 = vmatprep.subr.mxu0 %v763
  %1778 = vmatpush1.msra.mxu0 %v762
  %1779 = vmatprep.subr.mxu0 %v769
  %1780 = vmatpush1.msra.mxu0 %v768
  %1781 = vmatprep.subr.mxu0 %v775
  %1782 = vmatpush1.msra.mxu0 %v774
  %1783 = vmatprep.subr.mxu0 %v781
  %1784 = vmatpush1.msra.mxu0 %v780
  %1785 = vmatprep.subr.mxu0 %v787
  %1786 = vmatpush1.msra.mxu0 %v786
  %1787 = vmatprep.subr.mxu0 %v793
  %1788 = vmatpush1.msra.mxu0 %v792
  %1789 = vmatprep.subr.mxu0 %v799
  %1790 = vmatpush1.msra.mxu0 %v798
  %1791 = vmatprep.subr.mxu0 0.0
  %1792 = vmatpush1.msra.mxu0 0.0
  %1793 = vmatprep.subr.mxu0 0.0
  %1794 = vmatpush1.msra.mxu0 0.0
  %1795 = vmatprep.subr.mxu0 0.0
  %1796 = vmatpush1.msra.mxu0 0.0
  %1797 = vmatprep.subr.mxu0 0.0
  %1798 = vmatpush1.msra.mxu0 0.0
  %1799 = vmatprep.subr.mxu0 0.0
  %1800 = vmatpush1.msra.mxu0 0.0
  %1801 = vmatprep.subr.mxu0 0.0
  %1802 = vmatpush1.msra.mxu0 0.0
  %1803 = vmatprep.subr.mxu0 0.0
  %1804 = vmatpush1.msra.mxu0 0.0
  %1805 = vmatprep.subr.mxu0 0.0
  %1806 = vmatpush1.msra.mxu0 0.0
  %1807 = vmatprep.subr.mxu0 0.0
  %1808 = vmatpush1.msra.mxu0 0.0
  %1809 = vmatprep.subr.mxu0 0.0
  %1810 = vmatpush1.msra.mxu0 0.0
  %1811 = vmatprep.subr.mxu0 0.0
  %1812 = vmatpush1.msra.mxu0 0.0
  %1813 = vmatprep.subr.mxu0 0.0
  %1814 = vmatpush1.msra.mxu0 0.0
  %1815 = vmatprep.subr.mxu0 0.0
  %1816 = vmatpush1.msra.mxu0 0.0
  %1817 = vmatprep.subr.mxu0 0.0
  %1818 = vmatpush1.msra.mxu0 0.0
  %1819 = vmatprep.subr.mxu0 0.0
  %1820 = vmatpush1.msra.mxu0 0.0
  %1821 = vmatprep.subr.mxu0 0.0
  %1822 = vmatpush1.msra.mxu0 0.0
  %1823 = vmatprep.mubr.f32.mxu0 0.0
  %1824 = vmatmul.mubr.f32.gmra.mrb[0].mxu0 %v1682
  %v1825 = vpop.f32.mrb[0].mxu0
  %v1826 = vadd.f32 0.0, %v1825
  %v1827 = vpop.f32.mrb[0].mxu0
  %1828 = vmatprep.mubr.f32.mxu0 0.0
  %1829 = vmatmul.mubr.f32.gmra.mrb[0].mxu0 %v1683
  %v1830 = vpop.f32.mrb[0].mxu0
  %v1831 = vpop.f32.mrb[0].mxu0
  %v1832 = vadd.f32 0.0, %v1831
  %1833 = vdwg.mxu0
  %1834 = vmatprep.subr.mxu0 %v711
  %1835 = vmatpush1.msra.mxu0 %v710
  %1836 = vmatprep.subr.mxu0 %v717
  %1837 = vmatpush1.msra.mxu0 %v716
  %1838 = vmatprep.subr.mxu0 %v723
  %1839 = vmatpush1.msra.mxu0 %v722
  %1840 = vmatprep.subr.mxu0 %v729
  %1841 = vmatpush1.msra.mxu0 %v728
  %1842 = vmatprep.subr.mxu0 %v735
  %1843 = vmatpush1.msra.mxu0 %v734
  %1844 = vmatprep.subr.mxu0 %v741
  %1845 = vmatpush1.msra.mxu0 %v740
  %1846 = vmatprep.subr.mxu0 %v747
  %1847 = vmatpush1.msra.mxu0 %v746
  %1848 = vmatprep.subr.mxu0 %v753
  %1849 = vmatpush1.msra.mxu0 %v752
  %1850 = vmatprep.subr.mxu0 %v759
  %1851 = vmatpush1.msra.mxu0 %v758
  %1852 = vmatprep.subr.mxu0 %v765
  %1853 = vmatpush1.msra.mxu0 %v764
  %1854 = vmatprep.subr.mxu0 %v771
  %1855 = vmatpush1.msra.mxu0 %v770
  %1856 = vmatprep.subr.mxu0 %v777
  %1857 = vmatpush1.msra.mxu0 %v776
  %1858 = vmatprep.subr.mxu0 %v783
  %1859 = vmatpush1.msra.mxu0 %v782
  %1860 = vmatprep.subr.mxu0 %v789
  %1861 = vmatpush1.msra.mxu0 %v788
  %1862 = vmatprep.subr.mxu0 %v795
  %1863 = vmatpush1.msra.mxu0 %v794
  %1864 = vmatprep.subr.mxu0 %v801
  %1865 = vmatpush1.msra.mxu0 %v800
  %1866 = vmatprep.subr.mxu0 0.0
  %1867 = vmatpush1.msra.mxu0 0.0
  %1868 = vmatprep.subr.mxu0 0.0
  %1869 = vmatpush1.msra.mxu0 0.0
  %1870 = vmatprep.subr.mxu0 0.0
  %1871 = vmatpush1.msra.mxu0 0.0
  %1872 = vmatprep.subr.mxu0 0.0
  %1873 = vmatpush1.msra.mxu0 0.0
  %1874 = vmatprep.subr.mxu0 0.0
  %1875 = vmatpush1.msra.mxu0 0.0
  %1876 = vmatprep.subr.mxu0 0.0
  %1877 = vmatpush1.msra.mxu0 0.0
  %1878 = vmatprep.subr.mxu0 0.0
  %1879 = vmatpush1.msra.mxu0 0.0
  %1880 = vmatprep.subr.mxu0 0.0
  %1881 = vmatpush1.msra.mxu0 0.0
  %1882 = vmatprep.subr.mxu0 0.0
  %1883 = vmatpush1.msra.mxu0 0.0
  %1884 = vmatprep.subr.mxu0 0.0
  %1885 = vmatpush1.msra.mxu0 0.0
  %1886 = vmatprep.subr.mxu0 0.0
  %1887 = vmatpush1.msra.mxu0 0.0
  %1888 = vmatprep.subr.mxu0 0.0
  %1889 = vmatpush1.msra.mxu0 0.0
  %1890 = vmatprep.subr.mxu0 0.0
  %1891 = vmatpush1.msra.mxu0 0.0
  %1892 = vmatprep.subr.mxu0 0.0
  %1893 = vmatpush1.msra.mxu0 0.0
  %1894 = vmatprep.subr.mxu0 0.0
  %1895 = vmatpush1.msra.mxu0 0.0
  %1896 = vmatprep.subr.mxu0 0.0
  %1897 = vmatpush1.msra.mxu0 0.0
  %1898 = vmatprep.mubr.f32.mxu0 0.0
  %1899 = vmatmul.mubr.f32.gmra.mrb[0].mxu0 %v1682
  %v1900 = vpop.f32.mrb[0].mxu0
  %v1901 = vpop.f32.mrb[0].mxu0
  %1902 = vmatprep.mubr.f32.mxu0 0.0
  %1903 = vmatmul.mubr.f32.gmra.mrb[0].mxu0 %v1683
  %v1904 = vpop.f32.mrb[0].mxu0
  %v1905 = vadd.f32 0.0, %v1904
  %v1906 = vpop.f32.mrb[0].mxu0
  %v1907 = vadd.f32 0.0, %v1906
  %1908 = vdwg.mxu0
  %s1909 = smul.u32 3, 3
  %s1910 = smul.addr %s1909, 8
  %s1911 = scalar_lea.vmem [#allocation3], %s1910
  %v1912 = vld [vmem:[%s1911] sm:$0xff]
  %v1913 = vld [vmem:[%s1911 + $0x8] sm:$0xff]
  %v1914 = vld [vmem:[%s1911 + $0x10] sm:$0xff]
  %v1915 = vadd.f32 %v1912, %v1751
  %v1916 = vsub.f32 0.0, %v1915
  %v1917 = vmul.f32 %v1916, 1.442695
  %v1918 = vpow.pop %v1917
  %v1919 = vadd.f32 %v1918, 1.0
  %v1920 = vrcp.pop %v1919
  %v1921 = vmul.f32 1.0, %v1920
  %v1922 = vadd.f32 %v1913, %v1753
  %v1923 = vsub.f32 0.0, %v1922
  %v1924 = vmul.f32 %v1923, 1.442695
  %v1925 = vpow.pop %v1924
  %v1926 = vadd.f32 %v1925, 1.0
  %v1927 = vrcp.pop %v1926
  %v1928 = vmul.f32 1.0, %v1927
  %v1929 = vadd.f32 %v1826, %v1055
  %v1930 = vmul.f32 %v1921, %v1929
  %v1931 = vadd.f32 %v1914, %v1930
  %v1932 = vtanh.pop %v1931
  %v1933 = vsub.f32 1.0, %v1928
  %v1934 = vmul.f32 %v1933, %v1932
  %v1935 = vmul.f32 %v1928, %v1682
  %v1936 = vadd.f32 %v1934, %v1935
  %s1937 = smul.u32 4, 3
  %s1938 = smul.addr %s1937, 8
  %s1939 = scalar_lea.vmem [#allocation4], %s1938
  %v1940 = vld [vmem:[%s1939] sm:$0xff]
  %v1941 = vld [vmem:[%s1939 + $0x8] sm:$0xff]
  %v1942 = vld [vmem:[%s1939 + $0x10] sm:$0xff]
  %v1943 = vadd.f32 %v1940, %v1832
  %v1944 = vsub.f32 0.0, %v1943
  %v1945 = vmul.f32 %v1944, 1.442695
  %v1946 = vpow.pop %v1945
  %v1947 = vadd.f32 %v1946, 1.0
  %v1948 = vrcp.pop %v1947
  %v1949 = vmul.f32 1.0, %v1948
  %v1950 = vadd.f32 %v1941, %v1905
  %v1951 = vsub.f32 0.0, %v1950
  %v1952 = vmul.f32 %v1951, 1.442695
  %v1953 = vpow.pop %v1952
  %v1954 = vadd.f32 %v1953, 1.0
  %v1955 = vrcp.pop %v1954
  %v1956 = vmul.f32 1.0, %v1955
  %v1957 = vadd.f32 %v1907, %v1089
  %v1958 = vmul.f32 %v1949, %v1957
  %v1959 = vadd.f32 %v1942, %v1958
  %v1960 = vtanh.pop %v1959
  %v1961 = vsub.f32 1.0, %v1956
  %v1962 = vmul.f32 %v1961, %v1960
  %v1963 = vmul.f32 %v1956, %v1683
  %v1964 = vadd.f32 %v1962, %v1963
  %1965 = vst [vmem:[#allocation2] sm:$0xff] %v1936
  %1966 = vst [vmem:[#allocation2 + $0x8] sm:$0xff] %v1964
  %s1967 = scalar_lea.vmem %s9, 24
  %1968 = vst [vmem:[%s1967] sm:$0xff] %v1936
  %s1969 = scalar_lea.vmem %s67, 32
  %1970 = vst [vmem:[%s1969] sm:$0xff] %v1964
  %v1971 = vld [vmem:[#allocation2] sm:$0xff]
  %v1972 = vld [vmem:[#allocation2 + $0x8] sm:$0xff]
  %1973 = vmatprep.subr.mxu0 %v707
  %1974 = vmatpush1.msra.mxu0 %v706
  %1975 = vmatprep.subr.mxu0 %v713
  %1976 = vmatpush1.msra.mxu0 %v712
  %1977 = vmatprep.subr.mxu0 %v719
  %1978 = vmatpush1.msra.mxu0 %v718
  %1979 = vmatprep.subr.mxu0 %v725
  %1980 = vmatpush1.msra.mxu0 %v724
  %1981 = vmatprep.subr.mxu0 %v731
  %1982 = vmatpush1.msra.mxu0 %v730
  %1983 = vmatprep.subr.mxu0 %v737
  %1984 = vmatpush1.msra.mxu0 %v736
  %1985 = vmatprep.subr.mxu0 %v743
  %1986 = vmatpush1.msra.mxu0 %v742
  %1987 = vmatprep.subr.mxu0 %v749
  %1988 = vmatpush1.msra.mxu0 %v748
  %1989 = vmatprep.subr.mxu0 %v755
  %1990 = vmatpush1.msra.mxu0 %v754
  %1991 = vmatprep.subr.mxu0 %v761
  %1992 = vmatpush1.msra.mxu0 %v760
  %1993 = vmatprep.subr.mxu0 %v767
  %1994 = vmatpush1.msra.mxu0 %v766
  %1995 = vmatprep.subr.mxu0 %v773
  %1996 = vmatpush1.msra.mxu0 %v772
  %1997 = vmatprep.subr.mxu0 %v779
  %1998 = vmatpush1.msra.mxu0 %v778
  %1999 = vmatprep.subr.mxu0 %v785
  %2000 = vmatpush1.msra.mxu0 %v784
  %2001 = vmatprep.subr.mxu0 %v791
  %2002 = vmatpush1.msra.mxu0 %v790
  %2003 = vmatprep.subr.mxu0 %v797
  %2004 = vmatpush1.msra.mxu0 %v796
  %2005 = vmatprep.subr.mxu0 0.0
  %2006 = vmatpush1.msra.mxu0 0.0
  %2007 = vmatprep.subr.mxu0 0.0
  %2008 = vmatpush1.msra.mxu0 0.0
  %2009 = vmatprep.subr.mxu0 0.0
  %2010 = vmatpush1.msra.mxu0 0.0
  %2011 = vmatprep.subr.mxu0 0.0
  %2012 = vmatpush1.msra.mxu0 0.0
  %2013 = vmatprep.subr.mxu0 0.0
  %2014 = vmatpush1.msra.mxu0 0.0
  %2015 = vmatprep.subr.mxu0 0.0
  %2016 = vmatpush1.msra.mxu0 0.0
  %2017 = vmatprep.subr.mxu0 0.0
  %2018 = vmatpush1.msra.mxu0 0.0
  %2019 = vmatprep.subr.mxu0 0.0
  %2020 = vmatpush1.msra.mxu0 0.0
  %2021 = vmatprep.subr.mxu0 0.0
  %2022 = vmatpush1.msra.mxu0 0.0
  %2023 = vmatprep.subr.mxu0 0.0
  %2024 = vmatpush1.msra.mxu0 0.0
  %2025 = vmatprep.subr.mxu0 0.0
  %2026 = vmatpush1.msra.mxu0 0.0
  %2027 = vmatprep.subr.mxu0 0.0
  %2028 = vmatpush1.msra.mxu0 0.0
  %2029 = vmatprep.subr.mxu0 0.0
  %2030 = vmatpush1.msra.mxu0 0.0
  %2031 = vmatprep.subr.mxu0 0.0
  %2032 = vmatpush1.msra.mxu0 0.0
  %2033 = vmatprep.subr.mxu0 0.0
  %2034 = vmatpush1.msra.mxu0 0.0
  %2035 = vmatprep.subr.mxu0 0.0
  %2036 = vmatpush1.msra.mxu0 0.0
  %2037 = vmatprep.mubr.f32.mxu0 0.0
  %2038 = vmatmul.mubr.f32.gmra.mrb[0].mxu0 %v1971
  %v2039 = vpop.f32.mrb[0].mxu0
  %v2040 = vadd.f32 0.0, %v2039
  %v2041 = vpop.f32.mrb[0].mxu0
  %v2042 = vadd.f32 0.0, %v2041
  %2043 = vmatprep.mubr.f32.mxu0 0.0
  %2044 = vmatmul.mubr.f32.gmra.mrb[0].mxu0 %v1972
  %v2045 = vpop.f32.mrb[0].mxu0
  %v2046 = vpop.f32.mrb[0].mxu0
  %2047 = vdwg.mxu0
  %2048 = vmatprep.subr.mxu0 %v709
  %2049 = vmatpush1.msra.mxu0 %v708
  %2050 = vmatprep.subr.mxu0 %v715
  %2051 = vmatpush1.msra.mxu0 %v714
  %2052 = vmatprep.subr.mxu0 %v721
  %2053 = vmatpush1.msra.mxu0 %v720
  %2054 = vmatprep.subr.mxu0 %v727
  %2055 = vmatpush1.msra.mxu0 %v726
  %2056 = vmatprep.subr.mxu0 %v733
  %2057 = vmatpush1.msra.mxu0 %v732
  %2058 = vmatprep.subr.mxu0 %v739
  %2059 = vmatpush1.msra.mxu0 %v738
  %2060 = vmatprep.subr.mxu0 %v745
  %2061 = vmatpush1.msra.mxu0 %v744
  %2062 = vmatprep.subr.mxu0 %v751
  %2063 = vmatpush1.msra.mxu0 %v750
  %2064 = vmatprep.subr.mxu0 %v757
  %2065 = vmatpush1.msra.mxu0 %v756
  %2066 = vmatprep.subr.mxu0 %v763
  %2067 = vmatpush1.msra.mxu0 %v762
  %2068 = vmatprep.subr.mxu0 %v769
  %2069 = vmatpush1.msra.mxu0 %v768
  %2070 = vmatprep.subr.mxu0 %v775
  %2071 = vmatpush1.msra.mxu0 %v774
  %2072 = vmatprep.subr.mxu0 %v781
  %2073 = vmatpush1.msra.mxu0 %v780
  %2074 = vmatprep.subr.mxu0 %v787
  %2075 = vmatpush1.msra.mxu0 %v786
  %2076 = vmatprep.subr.mxu0 %v793
  %2077 = vmatpush1.msra.mxu0 %v792
  %2078 = vmatprep.subr.mxu0 %v799
  %2079 = vmatpush1.msra.mxu0 %v798
  %2080 = vmatprep.subr.mxu0 0.0
  %2081 = vmatpush1.msra.mxu0 0.0
  %2082 = vmatprep.subr.mxu0 0.0
  %2083 = vmatpush1.msra.mxu0 0.0
  %2084 = vmatprep.subr.mxu0 0.0
  %2085 = vmatpush1.msra.mxu0 0.0
  %2086 = vmatprep.subr.mxu0 0.0
  %2087 = vmatpush1.msra.mxu0 0.0
  %2088 = vmatprep.subr.mxu0 0.0
  %2089 = vmatpush1.msra.mxu0 0.0
  %2090 = vmatprep.subr.mxu0 0.0
  %2091 = vmatpush1.msra.mxu0 0.0
  %2092 = vmatprep.subr.mxu0 0.0
  %2093 = vmatpush1.msra.mxu0 0.0
  %2094 = vmatprep.subr.mxu0 0.0
  %2095 = vmatpush1.msra.mxu0 0.0
  %2096 = vmatprep.subr.mxu0 0.0
  %2097 = vmatpush1.msra.mxu0 0.0
  %2098 = vmatprep.subr.mxu0 0.0
  %2099 = vmatpush1.msra.mxu0 0.0
  %2100 = vmatprep.subr.mxu0 0.0
  %2101 = vmatpush1.msra.mxu0 0.0
  %2102 = vmatprep.subr.mxu0 0.0
  %2103 = vmatpush1.msra.mxu0 0.0
  %2104 = vmatprep.subr.mxu0 0.0
  %2105 = vmatpush1.msra.mxu0 0.0
  %2106 = vmatprep.subr.mxu0 0.0
  %2107 = vmatpush1.msra.mxu0 0.0
  %2108 = vmatprep.subr.mxu0 0.0
  %2109 = vmatpush1.msra.mxu0 0.0
  %2110 = vmatprep.subr.mxu0 0.0
  %2111 = vmatpush1.msra.mxu0 0.0
  %2112 = vmatprep.mubr.f32.mxu0 0.0
  %2113 = vmatmul.mubr.f32.gmra.mrb[0].mxu0 %v1971
  %v2114 = vpop.f32.mrb[0].mxu0
  %v2115 = vadd.f32 0.0, %v2114
  %v2116 = vpop.f32.mrb[0].mxu0
  %2117 = vmatprep.mubr.f32.mxu0 0.0
  %2118 = vmatmul.mubr.f32.gmra.mrb[0].mxu0 %v1972
  %v2119 = vpop.f32.mrb[0].mxu0
  %v2120 = vpop.f32.mrb[0].mxu0
  %v2121 = vadd.f32 0.0, %v2120
  %2122 = vdwg.mxu0
  %2123 = vmatprep.subr.mxu0 %v711
  %2124 = vmatpush1.msra.mxu0 %v710
  %2125 = vmatprep.subr.mxu0 %v717
  %2126 = vmatpush1.msra.mxu0 %v716
  %2127 = vmatprep.subr.mxu0 %v723
  %2128 = vmatpush1.msra.mxu0 %v722
  %2129 = vmatprep.subr.mxu0 %v729
  %2130 = vmatpush1.msra.mxu0 %v728
  %2131 = vmatprep.subr.mxu0 %v735
  %2132 = vmatpush1.msra.mxu0 %v734
  %2133 = vmatprep.subr.mxu0 %v741
  %2134 = vmatpush1.msra.mxu0 %v740
  %2135 = vmatprep.subr.mxu0 %v747
  %2136 = vmatpush1.msra.mxu0 %v746
  %2137 = vmatprep.subr.mxu0 %v753
  %2138 = vmatpush1.msra.mxu0 %v752
  %2139 = vmatprep.subr.mxu0 %v759
  %2140 = vmatpush1.msra.mxu0 %v758
  %2141 = vmatprep.subr.mxu0 %v765
  %2142 = vmatpush1.msra.mxu0 %v764
  %2143 = vmatprep.subr.mxu0 %v771
  %2144 = vmatpush1.msra.mxu0 %v770
  %2145 = vmatprep.subr.mxu0 %v777
  %2146 = vmatpush1.msra.mxu0 %v776
  %2147 = vmatprep.subr.mxu0 %v783
  %2148 = vmatpush1.msra.mxu0 %v782
  %2149 = vmatprep.subr.mxu0 %v789
  %2150 = vmatpush1.msra.mxu0 %v788
  %2151 = vmatprep.subr.mxu0 %v795
  %2152 = vmatpush1.msra.mxu0 %v794
  %2153 = vmatprep.subr.mxu0 %v801
  %2154 = vmatpush1.msra.mxu0 %v800
  %2155 = vmatprep.subr.mxu0 0.0
  %2156 = vmatpush1.msra.mxu0 0.0
  %2157 = vmatprep.subr.mxu0 0.0
  %2158 = vmatpush1.msra.mxu0 0.0
  %2159 = vmatprep.subr.mxu0 0.0
  %2160 = vmatpush1.msra.mxu0 0.0
  %2161 = vmatprep.subr.mxu0 0.0
  %2162 = vmatpush1.msra.mxu0 0.0
  %2163 = vmatprep.subr.mxu0 0.0
  %2164 = vmatpush1.msra.mxu0 0.0
  %2165 = vmatprep.subr.mxu0 0.0
  %2166 = vmatpush1.msra.mxu0 0.0
  %2167 = vmatprep.subr.mxu0 0.0
  %2168 = vmatpush1.msra.mxu0 0.0
  %2169 = vmatprep.subr.mxu0 0.0
  %2170 = vmatpush1.msra.mxu0 0.0
  %2171 = vmatprep.subr.mxu0 0.0
  %2172 = vmatpush1.msra.mxu0 0.0
  %2173 = vmatprep.subr.mxu0 0.0
  %2174 = vmatpush1.msra.mxu0 0.0
  %2175 = vmatprep.subr.mxu0 0.0
  %2176 = vmatpush1.msra.mxu0 0.0
  %2177 = vmatprep.subr.mxu0 0.0
  %2178 = vmatpush1.msra.mxu0 0.0
  %2179 = vmatprep.subr.mxu0 0.0
  %2180 = vmatpush1.msra.mxu0 0.0
  %2181 = vmatprep.subr.mxu0 0.0
  %2182 = vmatpush1.msra.mxu0 0.0
  %2183 = vmatprep.subr.mxu0 0.0
  %2184 = vmatpush1.msra.mxu0 0.0
  %2185 = vmatprep.subr.mxu0 0.0
  %2186 = vmatpush1.msra.mxu0 0.0
  %2187 = vmatprep.mubr.f32.mxu0 0.0
  %2188 = vmatmul.mubr.f32.gmra.mrb[0].mxu0 %v1971
  %v2189 = vpop.f32.mrb[0].mxu0
  %v2190 = vpop.f32.mrb[0].mxu0
  %2191 = vmatprep.mubr.f32.mxu0 0.0
  %2192 = vmatmul.mubr.f32.gmra.mrb[0].mxu0 %v1972
  %v2193 = vpop.f32.mrb[0].mxu0
  %v2194 = vadd.f32 0.0, %v2193
  %v2195 = vpop.f32.mrb[0].mxu0
  %v2196 = vadd.f32 0.0, %v2195
  %2197 = vdwg.mxu0
  %s2198 = smul.addr %s1937, 8
  %s2199 = scalar_lea.vmem [#allocation3], %s2198
  %v2200 = vld [vmem:[%s2199] sm:$0xff]
  %v2201 = vld [vmem:[%s2199 + $0x8] sm:$0xff]
  %v2202 = vld [vmem:[%s2199 + $0x10] sm:$0xff]
  %v2203 = vadd.f32 %v2200, %v2040
  %v2204 = vsub.f32 0.0, %v2203
  %v2205 = vmul.f32 %v2204, 1.442695
  %v2206 = vpow.pop %v2205
  %v2207 = vadd.f32 %v2206, 1.0
  %v2208 = vrcp.pop %v2207
  %v2209 = vmul.f32 1.0, %v2208
  %v2210 = vadd.f32 %v2201, %v2042
  %v2211 = vsub.f32 0.0, %v2210
  %v2212 = vmul.f32 %v2211, 1.442695
  %v2213 = vpow.pop %v2212
  %v2214 = vadd.f32 %v2213, 1.0
  %v2215 = vrcp.pop %v2214
  %v2216 = vmul.f32 1.0, %v2215
  %v2217 = vadd.f32 %v2115, %v1055
  %v2218 = vmul.f32 %v2209, %v2217
  %v2219 = vadd.f32 %v2202, %v2218
  %v2220 = vtanh.pop %v2219
  %v2221 = vsub.f32 1.0, %v2216
  %v2222 = vmul.f32 %v2221, %v2220
  %v2223 = vmul.f32 %v2216, %v1971
  %v2224 = vadd.f32 %v2222, %v2223
  %s2225 = smul.addr %s1909, 8
  %s2226 = scalar_lea.vmem [#allocation4], %s2225
  %v2227 = vld [vmem:[%s2226] sm:$0xff]
  %v2228 = vld [vmem:[%s2226 + $0x8] sm:$0xff]
  %v2229 = vld [vmem:[%s2226 + $0x10] sm:$0xff]
  %v2230 = vadd.f32 %v2227, %v2121
  %v2231 = vsub.f32 0.0, %v2230
  %v2232 = vmul.f32 %v2231, 1.442695
  %v2233 = vpow.pop %v2232
  %v2234 = vadd.f32 %v2233, 1.0
  %v2235 = vrcp.pop %v2234
  %v2236 = vmul.f32 1.0, %v2235
  %v2237 = vadd.f32 %v2228, %v2194
  %v2238 = vsub.f32 0.0, %v2237
  %v2239 = vmul.f32 %v2238, 1.442695
  %v2240 = vpow.pop %v2239
  %v2241 = vadd.f32 %v2240, 1.0
  %v2242 = vrcp.pop %v2241
  %v2243 = vmul.f32 1.0, %v2242
  %v2244 = vadd.f32 %v2196, %v1089
  %v2245 = vmul.f32 %v2236, %v2244
  %v2246 = vadd.f32 %v2229, %v2245
  %v2247 = vtanh.pop %v2246
  %v2248 = vsub.f32 1.0, %v2243
  %v2249 = vmul.f32 %v2248, %v2247
  %v2250 = vmul.f32 %v2243, %v1972
  %v2251 = vadd.f32 %v2249, %v2250
  %2252 = vst [vmem:[#allocation2] sm:$0xff] %v2224
  %2253 = vst [vmem:[#allocation2 + $0x8] sm:$0xff] %v2251
  %s2254 = scalar_lea.vmem %s9, 32
  %2255 = vst [vmem:[%s2254] sm:$0xff] %v2224
  %s2256 = scalar_lea.vmem %s67, 24
  %2257 = vst [vmem:[%s2256] sm:$0xff] %v2251
  %v2258 = vld [vmem:[#allocation2] sm:$0xff]
  %v2259 = vld [vmem:[#allocation2 + $0x8] sm:$0xff]
  %2260 = vmatprep.subr.mxu0 %v707
  %2261 = vmatpush1.msra.mxu0 %v706
  %2262 = vmatprep.subr.mxu0 %v713
  %2263 = vmatpush1.msra.mxu0 %v712
  %2264 = vmatprep.subr.mxu0 %v719
  %2265 = vmatpush1.msra.mxu0 %v718
  %2266 = vmatprep.subr.mxu0 %v725
  %2267 = vmatpush1.msra.mxu0 %v724
  %2268 = vmatprep.subr.mxu0 %v731
  %2269 = vmatpush1.msra.mxu0 %v730
  %2270 = vmatprep.subr.mxu0 %v737
  %2271 = vmatpush1.msra.mxu0 %v736
  %2272 = vmatprep.subr.mxu0 %v743
  %2273 = vmatpush1.msra.mxu0 %v742
  %2274 = vmatprep.subr.mxu0 %v749
  %2275 = vmatpush1.msra.mxu0 %v748
  %2276 = vmatprep.subr.mxu0 %v755
  %2277 = vmatpush1.msra.mxu0 %v754
  %2278 = vmatprep.subr.mxu0 %v761
  %2279 = vmatpush1.msra.mxu0 %v760
  %2280 = vmatprep.subr.mxu0 %v767
  %2281 = vmatpush1.msra.mxu0 %v766
  %2282 = vmatprep.subr.mxu0 %v773
  %2283 = vmatpush1.msra.mxu0 %v772
  %2284 = vmatprep.subr.mxu0 %v779
  %2285 = vmatpush1.msra.mxu0 %v778
  %2286 = vmatprep.subr.mxu0 %v785
  %2287 = vmatpush1.msra.mxu0 %v784
  %2288 = vmatprep.subr.mxu0 %v791
  %2289 = vmatpush1.msra.mxu0 %v790
  %2290 = vmatprep.subr.mxu0 %v797
  %2291 = vmatpush1.msra.mxu0 %v796
  %2292 = vmatprep.subr.mxu0 0.0
  %2293 = vmatpush1.msra.mxu0 0.0
  %2294 = vmatprep.subr.mxu0 0.0
  %2295 = vmatpush1.msra.mxu0 0.0
  %2296 = vmatprep.subr.mxu0 0.0
  %2297 = vmatpush1.msra.mxu0 0.0
  %2298 = vmatprep.subr.mxu0 0.0
  %2299 = vmatpush1.msra.mxu0 0.0
  %2300 = vmatprep.subr.mxu0 0.0
  %2301 = vmatpush1.msra.mxu0 0.0
  %2302 = vmatprep.subr.mxu0 0.0
  %2303 = vmatpush1.msra.mxu0 0.0
  %2304 = vmatprep.subr.mxu0 0.0
  %2305 = vmatpush1.msra.mxu0 0.0
  %2306 = vmatprep.subr.mxu0 0.0
  %2307 = vmatpush1.msra.mxu0 0.0
  %2308 = vmatprep.subr.mxu0 0.0
  %2309 = vmatpush1.msra.mxu0 0.0
  %2310 = vmatprep.subr.mxu0 0.0
  %2311 = vmatpush1.msra.mxu0 0.0
  %2312 = vmatprep.subr.mxu0 0.0
  %2313 = vmatpush1.msra.mxu0 0.0
  %2314 = vmatprep.subr.mxu0 0.0
  %2315 = vmatpush1.msra.mxu0 0.0
  %2316 = vmatprep.subr.mxu0 0.0
  %2317 = vmatpush1.msra.mxu0 0.0
  %2318 = vmatprep.subr.mxu0 0.0
  %2319 = vmatpush1.msra.mxu0 0.0
  %2320 = vmatprep.subr.mxu0 0.0
  %2321 = vmatpush1.msra.mxu0 0.0
  %2322 = vmatprep.subr.mxu0 0.0
  %2323 = vmatpush1.msra.mxu0 0.0
  %2324 = vmatprep.mubr.f32.mxu0 0.0
  %2325 = vmatmul.mubr.f32.gmra.mrb[0].mxu0 %v2258
  %v2326 = vpop.f32.mrb[0].mxu0
  %v2327 = vadd.f32 0.0, %v2326
  %v2328 = vpop.f32.mrb[0].mxu0
  %v2329 = vadd.f32 0.0, %v2328
  %2330 = vmatprep.mubr.f32.mxu0 0.0
  %2331 = vmatmul.mubr.f32.gmra.mrb[0].mxu0 %v2259
  %v2332 = vpop.f32.mrb[0].mxu0
  %v2333 = vpop.f32.mrb[0].mxu0
  %2334 = vdwg.mxu0
  %2335 = vmatprep.subr.mxu0 %v709
  %2336 = vmatpush1.msra.mxu0 %v708
  %2337 = vmatprep.subr.mxu0 %v715
  %2338 = vmatpush1.msra.mxu0 %v714
  %2339 = vmatprep.subr.mxu0 %v721
  %2340 = vmatpush1.msra.mxu0 %v720
  %2341 = vmatprep.subr.mxu0 %v727
  %2342 = vmatpush1.msra.mxu0 %v726
  %2343 = vmatprep.subr.mxu0 %v733
  %2344 = vmatpush1.msra.mxu0 %v732
  %2345 = vmatprep.subr.mxu0 %v739
  %2346 = vmatpush1.msra.mxu0 %v738
  %2347 = vmatprep.subr.mxu0 %v745
  %2348 = vmatpush1.msra.mxu0 %v744
  %2349 = vmatprep.subr.mxu0 %v751
  %2350 = vmatpush1.msra.mxu0 %v750
  %2351 = vmatprep.subr.mxu0 %v757
  %2352 = vmatpush1.msra.mxu0 %v756
  %2353 = vmatprep.subr.mxu0 %v763
  %2354 = vmatpush1.msra.mxu0 %v762
  %2355 = vmatprep.subr.mxu0 %v769
  %2356 = vmatpush1.msra.mxu0 %v768
  %2357 = vmatprep.subr.mxu0 %v775
  %2358 = vmatpush1.msra.mxu0 %v774
  %2359 = vmatprep.subr.mxu0 %v781
  %2360 = vmatpush1.msra.mxu0 %v780
  %2361 = vmatprep.subr.mxu0 %v787
  %2362 = vmatpush1.msra.mxu0 %v786
  %2363 = vmatprep.subr.mxu0 %v793
  %2364 = vmatpush1.msra.mxu0 %v792
  %2365 = vmatprep.subr.mxu0 %v799
  %2366 = vmatpush1.msra.mxu0 %v798
  %2367 = vmatprep.subr.mxu0 0.0
  %2368 = vmatpush1.msra.mxu0 0.0
  %2369 = vmatprep.subr.mxu0 0.0
  %2370 = vmatpush1.msra.mxu0 0.0
  %2371 = vmatprep.subr.mxu0 0.0
  %2372 = vmatpush1.msra.mxu0 0.0
  %2373 = vmatprep.subr.mxu0 0.0
  %2374 = vmatpush1.msra.mxu0 0.0
  %2375 = vmatprep.subr.mxu0 0.0
  %2376 = vmatpush1.msra.mxu0 0.0
  %2377 = vmatprep.subr.mxu0 0.0
  %2378 = vmatpush1.msra.mxu0 0.0
  %2379 = vmatprep.subr.mxu0 0.0
  %2380 = vmatpush1.msra.mxu0 0.0
  %2381 = vmatprep.subr.mxu0 0.0
  %2382 = vmatpush1.msra.mxu0 0.0
  %2383 = vmatprep.subr.mxu0 0.0
  %2384 = vmatpush1.msra.mxu0 0.0
  %2385 = vmatprep.subr.mxu0 0.0
  %2386 = vmatpush1.msra.mxu0 0.0
  %2387 = vmatprep.subr.mxu0 0.0
  %2388 = vmatpush1.msra.mxu0 0.0
  %2389 = vmatprep.subr.mxu0 0.0
  %2390 = vmatpush1.msra.mxu0 0.0
  %2391 = vmatprep.subr.mxu0 0.0
  %2392 = vmatpush1.msra.mxu0 0.0
  %2393 = vmatprep.subr.mxu0 0.0
  %2394 = vmatpush1.msra.mxu0 0.0
  %2395 = vmatprep.subr.mxu0 0.0
  %2396 = vmatpush1.msra.mxu0 0.0
  %2397 = vmatprep.subr.mxu0 0.0
  %2398 = vmatpush1.msra.mxu0 0.0
  %2399 = vmatprep.mubr.f32.mxu0 0.0
  %2400 = vmatmul.mubr.f32.gmra.mrb[0].mxu0 %v2258
  %v2401 = vpop.f32.mrb[0].mxu0
  %v2402 = vadd.f32 0.0, %v2401
  %v2403 = vpop.f32.mrb[0].mxu0
  %2404 = vmatprep.mubr.f32.mxu0 0.0
  %2405 = vmatmul.mubr.f32.gmra.mrb[0].mxu0 %v2259
  %v2406 = vpop.f32.mrb[0].mxu0
  %v2407 = vpop.f32.mrb[0].mxu0
  %v2408 = vadd.f32 0.0, %v2407
  %2409 = vdwg.mxu0
  %2410 = vmatprep.subr.mxu0 %v711
  %2411 = vmatpush1.msra.mxu0 %v710
  %2412 = vmatprep.subr.mxu0 %v717
  %2413 = vmatpush1.msra.mxu0 %v716
  %2414 = vmatprep.subr.mxu0 %v723
  %2415 = vmatpush1.msra.mxu0 %v722
  %2416 = vmatprep.subr.mxu0 %v729
  %2417 = vmatpush1.msra.mxu0 %v728
  %2418 = vmatprep.subr.mxu0 %v735
  %2419 = vmatpush1.msra.mxu0 %v734
  %2420 = vmatprep.subr.mxu0 %v741
  %2421 = vmatpush1.msra.mxu0 %v740
  %2422 = vmatprep.subr.mxu0 %v747
  %2423 = vmatpush1.msra.mxu0 %v746
  %2424 = vmatprep.subr.mxu0 %v753
  %2425 = vmatpush1.msra.mxu0 %v752
  %2426 = vmatprep.subr.mxu0 %v759
  %2427 = vmatpush1.msra.mxu0 %v758
  %2428 = vmatprep.subr.mxu0 %v765
  %2429 = vmatpush1.msra.mxu0 %v764
  %2430 = vmatprep.subr.mxu0 %v771
  %2431 = vmatpush1.msra.mxu0 %v770
  %2432 = vmatprep.subr.mxu0 %v777
  %2433 = vmatpush1.msra.mxu0 %v776
  %2434 = vmatprep.subr.mxu0 %v783
  %2435 = vmatpush1.msra.mxu0 %v782
  %2436 = vmatprep.subr.mxu0 %v789
  %2437 = vmatpush1.msra.mxu0 %v788
  %2438 = vmatprep.subr.mxu0 %v795
  %2439 = vmatpush1.msra.mxu0 %v794
  %2440 = vmatprep.subr.mxu0 %v801
  %2441 = vmatpush1.msra.mxu0 %v800
  %2442 = vmatprep.subr.mxu0 0.0
  %2443 = vmatpush1.msra.mxu0 0.0
  %2444 = vmatprep.subr.mxu0 0.0
  %2445 = vmatpush1.msra.mxu0 0.0
  %2446 = vmatprep.subr.mxu0 0.0
  %2447 = vmatpush1.msra.mxu0 0.0
  %2448 = vmatprep.subr.mxu0 0.0
  %2449 = vmatpush1.msra.mxu0 0.0
  %2450 = vmatprep.subr.mxu0 0.0
  %2451 = vmatpush1.msra.mxu0 0.0
  %2452 = vmatprep.subr.mxu0 0.0
  %2453 = vmatpush1.msra.mxu0 0.0
  %2454 = vmatprep.subr.mxu0 0.0
  %2455 = vmatpush1.msra.mxu0 0.0
  %2456 = vmatprep.subr.mxu0 0.0
  %2457 = vmatpush1.msra.mxu0 0.0
  %2458 = vmatprep.subr.mxu0 0.0
  %2459 = vmatpush1.msra.mxu0 0.0
  %2460 = vmatprep.subr.mxu0 0.0
  %2461 = vmatpush1.msra.mxu0 0.0
  %2462 = vmatprep.subr.mxu0 0.0
  %2463 = vmatpush1.msra.mxu0 0.0
  %2464 = vmatprep.subr.mxu0 0.0
  %2465 = vmatpush1.msra.mxu0 0.0
  %2466 = vmatprep.subr.mxu0 0.0
  %2467 = vmatpush1.msra.mxu0 0.0
  %2468 = vmatprep.subr.mxu0 0.0
  %2469 = vmatpush1.msra.mxu0 0.0
  %2470 = vmatprep.subr.mxu0 0.0
  %2471 = vmatpush1.msra.mxu0 0.0
  %2472 = vmatprep.subr.mxu0 0.0
  %2473 = vmatpush1.msra.mxu0 0.0
  %2474 = vmatprep.mubr.f32.mxu0 0.0
  %2475 = vmatmul.mubr.f32.gmra.mrb[0].mxu0 %v2258
  %v2476 = vpop.f32.mrb[0].mxu0
  %v2477 = vpop.f32.mrb[0].mxu0
  %2478 = vmatprep.mubr.f32.mxu0 0.0
  %2479 = vmatmul.mubr.f32.gmra.mrb[0].mxu0 %v2259
  %v2480 = vpop.f32.mrb[0].mxu0
  %v2481 = vadd.f32 0.0, %v2480
  %v2482 = vpop.f32.mrb[0].mxu0
  %v2483 = vadd.f32 0.0, %v2482
  %2484 = vdwg.mxu0
  %s2485 = smul.addr %s1648, 8
  %s2486 = scalar_lea.vmem [#allocation3], %s2485
  %v2487 = vld [vmem:[%s2486] sm:$0xff]
  %v2488 = vld [vmem:[%s2486 + $0x8] sm:$0xff]
  %v2489 = vld [vmem:[%s2486 + $0x10] sm:$0xff]
  %v2490 = vadd.f32 %v2487, %v2327
  %v2491 = vsub.f32 0.0, %v2490
  %v2492 = vmul.f32 %v2491, 1.442695
  %v2493 = vpow.pop %v2492
  %v2494 = vadd.f32 %v2493, 1.0
  %v2495 = vrcp.pop %v2494
  %v2496 = vmul.f32 1.0, %v2495
  %v2497 = vadd.f32 %v2488, %v2329
  %v2498 = vsub.f32 0.0, %v2497
  %v2499 = vmul.f32 %v2498, 1.442695
  %v2500 = vpow.pop %v2499
  %v2501 = vadd.f32 %v2500, 1.0
  %v2502 = vrcp.pop %v2501
  %v2503 = vmul.f32 1.0, %v2502
  %v2504 = vadd.f32 %v2402, %v1055
  %v2505 = vmul.f32 %v2496, %v2504
  %v2506 = vadd.f32 %v2489, %v2505
  %v2507 = vtanh.pop %v2506
  %v2508 = vsub.f32 1.0, %v2503
  %v2509 = vmul.f32 %v2508, %v2507
  %v2510 = vmul.f32 %v2503, %v2258
  %v2511 = vadd.f32 %v2509, %v2510
  %s2512 = smul.addr %s1620, 8
  %s2513 = scalar_lea.vmem [#allocation4], %s2512
  %v2514 = vld [vmem:[%s2513] sm:$0xff]
  %v2515 = vld [vmem:[%s2513 + $0x8] sm:$0xff]
  %v2516 = vld [vmem:[%s2513 + $0x10] sm:$0xff]
  %v2517 = vadd.f32 %v2514, %v2408
  %v2518 = vsub.f32 0.0, %v2517
  %v2519 = vmul.f32 %v2518, 1.442695
  %v2520 = vpow.pop %v2519
  %v2521 = vadd.f32 %v2520, 1.0
  %v2522 = vrcp.pop %v2521
  %v2523 = vmul.f32 1.0, %v2522
  %v2524 = vadd.f32 %v2515, %v2481
  %v2525 = vsub.f32 0.0, %v2524
  %v2526 = vmul.f32 %v2525, 1.442695
  %v2527 = vpow.pop %v2526
  %v2528 = vadd.f32 %v2527, 1.0
  %v2529 = vrcp.pop %v2528
  %v2530 = vmul.f32 1.0, %v2529
  %v2531 = vadd.f32 %v2483, %v1089
  %v2532 = vmul.f32 %v2523, %v2531
  %v2533 = vadd.f32 %v2516, %v2532
  %v2534 = vtanh.pop %v2533
  %v2535 = vsub.f32 1.0, %v2530
  %v2536 = vmul.f32 %v2535, %v2534
  %v2537 = vmul.f32 %v2530, %v2259
  %v2538 = vadd.f32 %v2536, %v2537
  %2539 = vst [vmem:[#allocation2] sm:$0xff] %v2511
  %2540 = vst [vmem:[#allocation2 + $0x8] sm:$0xff] %v2538
  %s2541 = scalar_lea.vmem %s9, 40
  %2542 = vst [vmem:[%s2541] sm:$0xff] %v2511
  %s2543 = scalar_lea.vmem %s67, 16
  %2544 = vst [vmem:[%s2543] sm:$0xff] %v2538
  %v2545 = vld [vmem:[#allocation2] sm:$0xff]
  %v2546 = vld [vmem:[#allocation2 + $0x8] sm:$0xff]
  %2547 = vmatprep.subr.mxu0 %v707
  %2548 = vmatpush1.msra.mxu0 %v706
  %2549 = vmatprep.subr.mxu0 %v713
  %2550 = vmatpush1.msra.mxu0 %v712
  %2551 = vmatprep.subr.mxu0 %v719
  %2552 = vmatpush1.msra.mxu0 %v718
  %2553 = vmatprep.subr.mxu0 %v725
  %2554 = vmatpush1.msra.mxu0 %v724
  %2555 = vmatprep.subr.mxu0 %v731
  %2556 = vmatpush1.msra.mxu0 %v730
  %2557 = vmatprep.subr.mxu0 %v737
  %2558 = vmatpush1.msra.mxu0 %v736
  %2559 = vmatprep.subr.mxu0 %v743
  %2560 = vmatpush1.msra.mxu0 %v742
  %2561 = vmatprep.subr.mxu0 %v749
  %2562 = vmatpush1.msra.mxu0 %v748
  %2563 = vmatprep.subr.mxu0 %v755
  %2564 = vmatpush1.msra.mxu0 %v754
  %2565 = vmatprep.subr.mxu0 %v761
  %2566 = vmatpush1.msra.mxu0 %v760
  %2567 = vmatprep.subr.mxu0 %v767
  %2568 = vmatpush1.msra.mxu0 %v766
  %2569 = vmatprep.subr.mxu0 %v773
  %2570 = vmatpush1.msra.mxu0 %v772
  %2571 = vmatprep.subr.mxu0 %v779
  %2572 = vmatpush1.msra.mxu0 %v778
  %2573 = vmatprep.subr.mxu0 %v785
  %2574 = vmatpush1.msra.mxu0 %v784
  %2575 = vmatprep.subr.mxu0 %v791
  %2576 = vmatpush1.msra.mxu0 %v790
  %2577 = vmatprep.subr.mxu0 %v797
  %2578 = vmatpush1.msra.mxu0 %v796
  %2579 = vmatprep.subr.mxu0 0.0
  %2580 = vmatpush1.msra.mxu0 0.0
  %2581 = vmatprep.subr.mxu0 0.0
  %2582 = vmatpush1.msra.mxu0 0.0
  %2583 = vmatprep.subr.mxu0 0.0
  %2584 = vmatpush1.msra.mxu0 0.0
  %2585 = vmatprep.subr.mxu0 0.0
  %2586 = vmatpush1.msra.mxu0 0.0
  %2587 = vmatprep.subr.mxu0 0.0
  %2588 = vmatpush1.msra.mxu0 0.0
  %2589 = vmatprep.subr.mxu0 0.0
  %2590 = vmatpush1.msra.mxu0 0.0
  %2591 = vmatprep.subr.mxu0 0.0
  %2592 = vmatpush1.msra.mxu0 0.0
  %2593 = vmatprep.subr.mxu0 0.0
  %2594 = vmatpush1.msra.mxu0 0.0
  %2595 = vmatprep.subr.mxu0 0.0
  %2596 = vmatpush1.msra.mxu0 0.0
  %2597 = vmatprep.subr.mxu0 0.0
  %2598 = vmatpush1.msra.mxu0 0.0
  %2599 = vmatprep.subr.mxu0 0.0
  %2600 = vmatpush1.msra.mxu0 0.0
  %2601 = vmatprep.subr.mxu0 0.0
  %2602 = vmatpush1.msra.mxu0 0.0
  %2603 = vmatprep.subr.mxu0 0.0
  %2604 = vmatpush1.msra.mxu0 0.0
  %2605 = vmatprep.subr.mxu0 0.0
  %2606 = vmatpush1.msra.mxu0 0.0
  %2607 = vmatprep.subr.mxu0 0.0
  %2608 = vmatpush1.msra.mxu0 0.0
  %2609 = vmatprep.subr.mxu0 0.0
  %2610 = vmatpush1.msra.mxu0 0.0
  %2611 = vmatprep.mubr.f32.mxu0 0.0
  %2612 = vmatmul.mubr.f32.gmra.mrb[0].mxu0 %v2545
  %v2613 = vpop.f32.mrb[0].mxu0
  %v2614 = vadd.f32 0.0, %v2613
  %v2615 = vpop.f32.mrb[0].mxu0
  %v2616 = vadd.f32 0.0, %v2615
  %2617 = vmatprep.mubr.f32.mxu0 0.0
  %2618 = vmatmul.mubr.f32.gmra.mrb[0].mxu0 %v2546
  %v2619 = vpop.f32.mrb[0].mxu0
  %v2620 = vpop.f32.mrb[0].mxu0
  %2621 = vdwg.mxu0
  %2622 = vmatprep.subr.mxu0 %v709
  %2623 = vmatpush1.msra.mxu0 %v708
  %2624 = vmatprep.subr.mxu0 %v715
  %2625 = vmatpush1.msra.mxu0 %v714
  %2626 = vmatprep.subr.mxu0 %v721
  %2627 = vmatpush1.msra.mxu0 %v720
  %2628 = vmatprep.subr.mxu0 %v727
  %2629 = vmatpush1.msra.mxu0 %v726
  %2630 = vmatprep.subr.mxu0 %v733
  %2631 = vmatpush1.msra.mxu0 %v732
  %2632 = vmatprep.subr.mxu0 %v739
  %2633 = vmatpush1.msra.mxu0 %v738
  %2634 = vmatprep.subr.mxu0 %v745
  %2635 = vmatpush1.msra.mxu0 %v744
  %2636 = vmatprep.subr.mxu0 %v751
  %2637 = vmatpush1.msra.mxu0 %v750
  %2638 = vmatprep.subr.mxu0 %v757
  %2639 = vmatpush1.msra.mxu0 %v756
  %2640 = vmatprep.subr.mxu0 %v763
  %2641 = vmatpush1.msra.mxu0 %v762
  %2642 = vmatprep.subr.mxu0 %v769
  %2643 = vmatpush1.msra.mxu0 %v768
  %2644 = vmatprep.subr.mxu0 %v775
  %2645 = vmatpush1.msra.mxu0 %v774
  %2646 = vmatprep.subr.mxu0 %v781
  %2647 = vmatpush1.msra.mxu0 %v780
  %2648 = vmatprep.subr.mxu0 %v787
  %2649 = vmatpush1.msra.mxu0 %v786
  %2650 = vmatprep.subr.mxu0 %v793
  %2651 = vmatpush1.msra.mxu0 %v792
  %2652 = vmatprep.subr.mxu0 %v799
  %2653 = vmatpush1.msra.mxu0 %v798
  %2654 = vmatprep.subr.mxu0 0.0
  %2655 = vmatpush1.msra.mxu0 0.0
  %2656 = vmatprep.subr.mxu0 0.0
  %2657 = vmatpush1.msra.mxu0 0.0
  %2658 = vmatprep.subr.mxu0 0.0
  %2659 = vmatpush1.msra.mxu0 0.0
  %2660 = vmatprep.subr.mxu0 0.0
  %2661 = vmatpush1.msra.mxu0 0.0
  %2662 = vmatprep.subr.mxu0 0.0
  %2663 = vmatpush1.msra.mxu0 0.0
  %2664 = vmatprep.subr.mxu0 0.0
  %2665 = vmatpush1.msra.mxu0 0.0
  %2666 = vmatprep.subr.mxu0 0.0
  %2667 = vmatpush1.msra.mxu0 0.0
  %2668 = vmatprep.subr.mxu0 0.0
  %2669 = vmatpush1.msra.mxu0 0.0
  %2670 = vmatprep.subr.mxu0 0.0
  %2671 = vmatpush1.msra.mxu0 0.0
  %2672 = vmatprep.subr.mxu0 0.0
  %2673 = vmatpush1.msra.mxu0 0.0
  %2674 = vmatprep.subr.mxu0 0.0
  %2675 = vmatpush1.msra.mxu0 0.0
  %2676 = vmatprep.subr.mxu0 0.0
  %2677 = vmatpush1.msra.mxu0 0.0
  %2678 = vmatprep.subr.mxu0 0.0
  %2679 = vmatpush1.msra.mxu0 0.0
  %2680 = vmatprep.subr.mxu0 0.0
  %2681 = vmatpush1.msra.mxu0 0.0
  %2682 = vmatprep.subr.mxu0 0.0
  %2683 = vmatpush1.msra.mxu0 0.0
  %2684 = vmatprep.subr.mxu0 0.0
  %2685 = vmatpush1.msra.mxu0 0.0
  %2686 = vmatprep.mubr.f32.mxu0 0.0
  %2687 = vmatmul.mubr.f32.gmra.mrb[0].mxu0 %v2545
  %v2688 = vpop.f32.mrb[0].mxu0
  %v2689 = vadd.f32 0.0, %v2688
  %v2690 = vpop.f32.mrb[0].mxu0
  %2691 = vmatprep.mubr.f32.mxu0 0.0
  %2692 = vmatmul.mubr.f32.gmra.mrb[0].mxu0 %v2546
  %v2693 = vpop.f32.mrb[0].mxu0
  %v2694 = vpop.f32.mrb[0].mxu0
  %v2695 = vadd.f32 0.0, %v2694
  %2696 = vdwg.mxu0
  %2697 = vmatprep.subr.mxu0 %v711
  %2698 = vmatpush1.msra.mxu0 %v710
  %2699 = vmatprep.subr.mxu0 %v717
  %2700 = vmatpush1.msra.mxu0 %v716
  %2701 = vmatprep.subr.mxu0 %v723
  %2702 = vmatpush1.msra.mxu0 %v722
  %2703 = vmatprep.subr.mxu0 %v729
  %2704 = vmatpush1.msra.mxu0 %v728
  %2705 = vmatprep.subr.mxu0 %v735
  %2706 = vmatpush1.msra.mxu0 %v734
  %2707 = vmatprep.subr.mxu0 %v741
  %2708 = vmatpush1.msra.mxu0 %v740
  %2709 = vmatprep.subr.mxu0 %v747
  %2710 = vmatpush1.msra.mxu0 %v746
  %2711 = vmatprep.subr.mxu0 %v753
  %2712 = vmatpush1.msra.mxu0 %v752
  %2713 = vmatprep.subr.mxu0 %v759
  %2714 = vmatpush1.msra.mxu0 %v758
  %2715 = vmatprep.subr.mxu0 %v765
  %2716 = vmatpush1.msra.mxu0 %v764
  %2717 = vmatprep.subr.mxu0 %v771
  %2718 = vmatpush1.msra.mxu0 %v770
  %2719 = vmatprep.subr.mxu0 %v777
  %2720 = vmatpush1.msra.mxu0 %v776
  %2721 = vmatprep.subr.mxu0 %v783
  %2722 = vmatpush1.msra.mxu0 %v782
  %2723 = vmatprep.subr.mxu0 %v789
  %2724 = vmatpush1.msra.mxu0 %v788
  %2725 = vmatprep.subr.mxu0 %v795
  %2726 = vmatpush1.msra.mxu0 %v794
  %2727 = vmatprep.subr.mxu0 %v801
  %2728 = vmatpush1.msra.mxu0 %v800
  %2729 = vmatprep.subr.mxu0 0.0
  %2730 = vmatpush1.msra.mxu0 0.0
  %2731 = vmatprep.subr.mxu0 0.0
  %2732 = vmatpush1.msra.mxu0 0.0
  %2733 = vmatprep.subr.mxu0 0.0
  %2734 = vmatpush1.msra.mxu0 0.0
  %2735 = vmatprep.subr.mxu0 0.0
  %2736 = vmatpush1.msra.mxu0 0.0
  %2737 = vmatprep.subr.mxu0 0.0
  %2738 = vmatpush1.msra.mxu0 0.0
  %2739 = vmatprep.subr.mxu0 0.0
  %2740 = vmatpush1.msra.mxu0 0.0
  %2741 = vmatprep.subr.mxu0 0.0
  %2742 = vmatpush1.msra.mxu0 0.0
  %2743 = vmatprep.subr.mxu0 0.0
  %2744 = vmatpush1.msra.mxu0 0.0
  %2745 = vmatprep.subr.mxu0 0.0
  %2746 = vmatpush1.msra.mxu0 0.0
  %2747 = vmatprep.subr.mxu0 0.0
  %2748 = vmatpush1.msra.mxu0 0.0
  %2749 = vmatprep.subr.mxu0 0.0
  %2750 = vmatpush1.msra.mxu0 0.0
  %2751 = vmatprep.subr.mxu0 0.0
  %2752 = vmatpush1.msra.mxu0 0.0
  %2753 = vmatprep.subr.mxu0 0.0
  %2754 = vmatpush1.msra.mxu0 0.0
  %2755 = vmatprep.subr.mxu0 0.0
  %2756 = vmatpush1.msra.mxu0 0.0
  %2757 = vmatprep.subr.mxu0 0.0
  %2758 = vmatpush1.msra.mxu0 0.0
  %2759 = vmatprep.subr.mxu0 0.0
  %2760 = vmatpush1.msra.mxu0 0.0
  %2761 = vmatprep.mubr.f32.mxu0 0.0
  %2762 = vmatmul.mubr.f32.gmra.mrb[0].mxu0 %v2545
  %v2763 = vpop.f32.mrb[0].mxu0
  %v2764 = vpop.f32.mrb[0].mxu0
  %2765 = vmatprep.mubr.f32.mxu0 0.0
  %2766 = vmatmul.mubr.f32.gmra.mrb[0].mxu0 %v2546
  %v2767 = vpop.f32.mrb[0].mxu0
  %v2768 = vadd.f32 0.0, %v2767
  %v2769 = vpop.f32.mrb[0].mxu0
  %v2770 = vadd.f32 0.0, %v2769
  %2771 = vdwg.mxu0
  %s2772 = smul.addr %s1359, 8
  %s2773 = scalar_lea.vmem [#allocation3], %s2772
  %v2774 = vld [vmem:[%s2773] sm:$0xff]
  %v2775 = vld [vmem:[%s2773 + $0x8] sm:$0xff]
  %v2776 = vld [vmem:[%s2773 + $0x10] sm:$0xff]
  %v2777 = vadd.f32 %v2774, %v2614
  %v2778 = vsub.f32 0.0, %v2777
  %v2779 = vmul.f32 %v2778, 1.442695
  %v2780 = vpow.pop %v2779
  %v2781 = vadd.f32 %v2780, 1.0
  %v2782 = vrcp.pop %v2781
  %v2783 = vmul.f32 1.0, %v2782
  %v2784 = vadd.f32 %v2775, %v2616
  %v2785 = vsub.f32 0.0, %v2784
  %v2786 = vmul.f32 %v2785, 1.442695
  %v2787 = vpow.pop %v2786
  %v2788 = vadd.f32 %v2787, 1.0
  %v2789 = vrcp.pop %v2788
  %v2790 = vmul.f32 1.0, %v2789
  %v2791 = vadd.f32 %v2689, %v1055
  %v2792 = vmul.f32 %v2783, %v2791
  %v2793 = vadd.f32 %v2776, %v2792
  %v2794 = vtanh.pop %v2793
  %v2795 = vsub.f32 1.0, %v2790
  %v2796 = vmul.f32 %v2795, %v2794
  %v2797 = vmul.f32 %v2790, %v2545
  %v2798 = vadd.f32 %v2796, %v2797
  %s2799 = smul.addr %s1331, 8
  %s2800 = scalar_lea.vmem [#allocation4], %s2799
  %v2801 = vld [vmem:[%s2800] sm:$0xff]
  %v2802 = vld [vmem:[%s2800 + $0x8] sm:$0xff]
  %v2803 = vld [vmem:[%s2800 + $0x10] sm:$0xff]
  %v2804 = vadd.f32 %v2801, %v2695
  %v2805 = vsub.f32 0.0, %v2804
  %v2806 = vmul.f32 %v2805, 1.442695
  %v2807 = vpow.pop %v2806
  %v2808 = vadd.f32 %v2807, 1.0
  %v2809 = vrcp.pop %v2808
  %v2810 = vmul.f32 1.0, %v2809
  %v2811 = vadd.f32 %v2802, %v2768
  %v2812 = vsub.f32 0.0, %v2811
  %v2813 = vmul.f32 %v2812, 1.442695
  %v2814 = vpow.pop %v2813
  %v2815 = vadd.f32 %v2814, 1.0
  %v2816 = vrcp.pop %v2815
  %v2817 = vmul.f32 1.0, %v2816
  %v2818 = vadd.f32 %v2770, %v1089
  %v2819 = vmul.f32 %v2810, %v2818
  %v2820 = vadd.f32 %v2803, %v2819
  %v2821 = vtanh.pop %v2820
  %v2822 = vsub.f32 1.0, %v2817
  %v2823 = vmul.f32 %v2822, %v2821
  %v2824 = vmul.f32 %v2817, %v2546
  %v2825 = vadd.f32 %v2823, %v2824
  %2826 = vst [vmem:[#allocation2] sm:$0xff] %v2798
  %2827 = vst [vmem:[#allocation2 + $0x8] sm:$0xff] %v2825
  %s2828 = scalar_lea.vmem %s9, 48
  %2829 = vst [vmem:[%s2828] sm:$0xff] %v2798
  %s2830 = scalar_lea.vmem %s67, 8
  %2831 = vst [vmem:[%s2830] sm:$0xff] %v2825
  %v2832 = vld [vmem:[#allocation2] sm:$0xff]
  %v2833 = vld [vmem:[#allocation2 + $0x8] sm:$0xff]
  %2834 = vmatprep.subr.mxu0 %v707
  %2835 = vmatpush1.msra.mxu0 %v706
  %2836 = vmatprep.subr.mxu0 %v713
  %2837 = vmatpush1.msra.mxu0 %v712
  %2838 = vmatprep.subr.mxu0 %v719
  %2839 = vmatpush1.msra.mxu0 %v718
  %2840 = vmatprep.subr.mxu0 %v725
  %2841 = vmatpush1.msra.mxu0 %v724
  %2842 = vmatprep.subr.mxu0 %v731
  %2843 = vmatpush1.msra.mxu0 %v730
  %2844 = vmatprep.subr.mxu0 %v737
  %2845 = vmatpush1.msra.mxu0 %v736
  %2846 = vmatprep.subr.mxu0 %v743
  %2847 = vmatpush1.msra.mxu0 %v742
  %2848 = vmatprep.subr.mxu0 %v749
  %2849 = vmatpush1.msra.mxu0 %v748
  %2850 = vmatprep.subr.mxu0 %v755
  %2851 = vmatpush1.msra.mxu0 %v754
  %2852 = vmatprep.subr.mxu0 %v761
  %2853 = vmatpush1.msra.mxu0 %v760
  %2854 = vmatprep.subr.mxu0 %v767
  %2855 = vmatpush1.msra.mxu0 %v766
  %2856 = vmatprep.subr.mxu0 %v773
  %2857 = vmatpush1.msra.mxu0 %v772
  %2858 = vmatprep.subr.mxu0 %v779
  %2859 = vmatpush1.msra.mxu0 %v778
  %2860 = vmatprep.subr.mxu0 %v785
  %2861 = vmatpush1.msra.mxu0 %v784
  %2862 = vmatprep.subr.mxu0 %v791
  %2863 = vmatpush1.msra.mxu0 %v790
  %2864 = vmatprep.subr.mxu0 %v797
  %2865 = vmatpush1.msra.mxu0 %v796
  %2866 = vmatprep.subr.mxu0 0.0
  %2867 = vmatpush1.msra.mxu0 0.0
  %2868 = vmatprep.subr.mxu0 0.0
  %2869 = vmatpush1.msra.mxu0 0.0
  %2870 = vmatprep.subr.mxu0 0.0
  %2871 = vmatpush1.msra.mxu0 0.0
  %2872 = vmatprep.subr.mxu0 0.0
  %2873 = vmatpush1.msra.mxu0 0.0
  %2874 = vmatprep.subr.mxu0 0.0
  %2875 = vmatpush1.msra.mxu0 0.0
  %2876 = vmatprep.subr.mxu0 0.0
  %2877 = vmatpush1.msra.mxu0 0.0
  %2878 = vmatprep.subr.mxu0 0.0
  %2879 = vmatpush1.msra.mxu0 0.0
  %2880 = vmatprep.subr.mxu0 0.0
  %2881 = vmatpush1.msra.mxu0 0.0
  %2882 = vmatprep.subr.mxu0 0.0
  %2883 = vmatpush1.msra.mxu0 0.0
  %2884 = vmatprep.subr.mxu0 0.0
  %2885 = vmatpush1.msra.mxu0 0.0
  %2886 = vmatprep.subr.mxu0 0.0
  %2887 = vmatpush1.msra.mxu0 0.0
  %2888 = vmatprep.subr.mxu0 0.0
  %2889 = vmatpush1.msra.mxu0 0.0
  %2890 = vmatprep.subr.mxu0 0.0
  %2891 = vmatpush1.msra.mxu0 0.0
  %2892 = vmatprep.subr.mxu0 0.0
  %2893 = vmatpush1.msra.mxu0 0.0
  %2894 = vmatprep.subr.mxu0 0.0
  %2895 = vmatpush1.msra.mxu0 0.0
  %2896 = vmatprep.subr.mxu0 0.0
  %2897 = vmatpush1.msra.mxu0 0.0
  %2898 = vmatprep.mubr.f32.mxu0 0.0
  %2899 = vmatmul.mubr.f32.gmra.mrb[0].mxu0 %v2832
  %v2900 = vpop.f32.mrb[0].mxu0
  %v2901 = vadd.f32 0.0, %v2900
  %v2902 = vpop.f32.mrb[0].mxu0
  %v2903 = vadd.f32 0.0, %v2902
  %2904 = vmatprep.mubr.f32.mxu0 0.0
  %2905 = vmatmul.mubr.f32.gmra.mrb[0].mxu0 %v2833
  %v2906 = vpop.f32.mrb[0].mxu0
  %v2907 = vpop.f32.mrb[0].mxu0
  %2908 = vdwg.mxu0
  %2909 = vmatprep.subr.mxu0 %v709
  %2910 = vmatpush1.msra.mxu0 %v708
  %2911 = vmatprep.subr.mxu0 %v715
  %2912 = vmatpush1.msra.mxu0 %v714
  %2913 = vmatprep.subr.mxu0 %v721
  %2914 = vmatpush1.msra.mxu0 %v720
  %2915 = vmatprep.subr.mxu0 %v727
  %2916 = vmatpush1.msra.mxu0 %v726
  %2917 = vmatprep.subr.mxu0 %v733
  %2918 = vmatpush1.msra.mxu0 %v732
  %2919 = vmatprep.subr.mxu0 %v739
  %2920 = vmatpush1.msra.mxu0 %v738
  %2921 = vmatprep.subr.mxu0 %v745
  %2922 = vmatpush1.msra.mxu0 %v744
  %2923 = vmatprep.subr.mxu0 %v751
  %2924 = vmatpush1.msra.mxu0 %v750
  %2925 = vmatprep.subr.mxu0 %v757
  %2926 = vmatpush1.msra.mxu0 %v756
  %2927 = vmatprep.subr.mxu0 %v763
  %2928 = vmatpush1.msra.mxu0 %v762
  %2929 = vmatprep.subr.mxu0 %v769
  %2930 = vmatpush1.msra.mxu0 %v768
  %2931 = vmatprep.subr.mxu0 %v775
  %2932 = vmatpush1.msra.mxu0 %v774
  %2933 = vmatprep.subr.mxu0 %v781
  %2934 = vmatpush1.msra.mxu0 %v780
  %2935 = vmatprep.subr.mxu0 %v787
  %2936 = vmatpush1.msra.mxu0 %v786
  %2937 = vmatprep.subr.mxu0 %v793
  %2938 = vmatpush1.msra.mxu0 %v792
  %2939 = vmatprep.subr.mxu0 %v799
  %2940 = vmatpush1.msra.mxu0 %v798
  %2941 = vmatprep.subr.mxu0 0.0
  %2942 = vmatpush1.msra.mxu0 0.0
  %2943 = vmatprep.subr.mxu0 0.0
  %2944 = vmatpush1.msra.mxu0 0.0
  %2945 = vmatprep.subr.mxu0 0.0
  %2946 = vmatpush1.msra.mxu0 0.0
  %2947 = vmatprep.subr.mxu0 0.0
  %2948 = vmatpush1.msra.mxu0 0.0
  %2949 = vmatprep.subr.mxu0 0.0
  %2950 = vmatpush1.msra.mxu0 0.0
  %2951 = vmatprep.subr.mxu0 0.0
  %2952 = vmatpush1.msra.mxu0 0.0
  %2953 = vmatprep.subr.mxu0 0.0
  %2954 = vmatpush1.msra.mxu0 0.0
  %2955 = vmatprep.subr.mxu0 0.0
  %2956 = vmatpush1.msra.mxu0 0.0
  %2957 = vmatprep.subr.mxu0 0.0
  %2958 = vmatpush1.msra.mxu0 0.0
  %2959 = vmatprep.subr.mxu0 0.0
  %2960 = vmatpush1.msra.mxu0 0.0
  %2961 = vmatprep.subr.mxu0 0.0
  %2962 = vmatpush1.msra.mxu0 0.0
  %2963 = vmatprep.subr.mxu0 0.0
  %2964 = vmatpush1.msra.mxu0 0.0
  %2965 = vmatprep.subr.mxu0 0.0
  %2966 = vmatpush1.msra.mxu0 0.0
  %2967 = vmatprep.subr.mxu0 0.0
  %2968 = vmatpush1.msra.mxu0 0.0
  %2969 = vmatprep.subr.mxu0 0.0
  %2970 = vmatpush1.msra.mxu0 0.0
  %2971 = vmatprep.subr.mxu0 0.0
  %2972 = vmatpush1.msra.mxu0 0.0
  %2973 = vmatprep.mubr.f32.mxu0 0.0
  %2974 = vmatmul.mubr.f32.gmra.mrb[0].mxu0 %v2832
  %v2975 = vpop.f32.mrb[0].mxu0
  %v2976 = vadd.f32 0.0, %v2975
  %v2977 = vpop.f32.mrb[0].mxu0
  %2978 = vmatprep.mubr.f32.mxu0 0.0
  %2979 = vmatmul.mubr.f32.gmra.mrb[0].mxu0 %v2833
  %v2980 = vpop.f32.mrb[0].mxu0
  %v2981 = vpop.f32.mrb[0].mxu0
  %v2982 = vadd.f32 0.0, %v2981
  %2983 = vdwg.mxu0
  %2984 = vmatprep.subr.mxu0 %v711
  %2985 = vmatpush1.msra.mxu0 %v710
  %2986 = vmatprep.subr.mxu0 %v717
  %2987 = vmatpush1.msra.mxu0 %v716
  %2988 = vmatprep.subr.mxu0 %v723
  %2989 = vmatpush1.msra.mxu0 %v722
  %2990 = vmatprep.subr.mxu0 %v729
  %2991 = vmatpush1.msra.mxu0 %v728
  %2992 = vmatprep.subr.mxu0 %v735
  %2993 = vmatpush1.msra.mxu0 %v734
  %2994 = vmatprep.subr.mxu0 %v741
  %2995 = vmatpush1.msra.mxu0 %v740
  %2996 = vmatprep.subr.mxu0 %v747
  %2997 = vmatpush1.msra.mxu0 %v746
  %2998 = vmatprep.subr.mxu0 %v753
  %2999 = vmatpush1.msra.mxu0 %v752
  %3000 = vmatprep.subr.mxu0 %v759
  %3001 = vmatpush1.msra.mxu0 %v758
  %3002 = vmatprep.subr.mxu0 %v765
  %3003 = vmatpush1.msra.mxu0 %v764
  %3004 = vmatprep.subr.mxu0 %v771
  %3005 = vmatpush1.msra.mxu0 %v770
  %3006 = vmatprep.subr.mxu0 %v777
  %3007 = vmatpush1.msra.mxu0 %v776
  %3008 = vmatprep.subr.mxu0 %v783
  %3009 = vmatpush1.msra.mxu0 %v782
  %3010 = vmatprep.subr.mxu0 %v789
  %3011 = vmatpush1.msra.mxu0 %v788
  %3012 = vmatprep.subr.mxu0 %v795
  %3013 = vmatpush1.msra.mxu0 %v794
  %3014 = vmatprep.subr.mxu0 %v801
  %3015 = vmatpush1.msra.mxu0 %v800
  %3016 = vmatprep.subr.mxu0 0.0
  %3017 = vmatpush1.msra.mxu0 0.0
  %3018 = vmatprep.subr.mxu0 0.0
  %3019 = vmatpush1.msra.mxu0 0.0
  %3020 = vmatprep.subr.mxu0 0.0
  %3021 = vmatpush1.msra.mxu0 0.0
  %3022 = vmatprep.subr.mxu0 0.0
  %3023 = vmatpush1.msra.mxu0 0.0
  %3024 = vmatprep.subr.mxu0 0.0
  %3025 = vmatpush1.msra.mxu0 0.0
  %3026 = vmatprep.subr.mxu0 0.0
  %3027 = vmatpush1.msra.mxu0 0.0
  %3028 = vmatprep.subr.mxu0 0.0
  %3029 = vmatpush1.msra.mxu0 0.0
  %3030 = vmatprep.subr.mxu0 0.0
  %3031 = vmatpush1.msra.mxu0 0.0
  %3032 = vmatprep.subr.mxu0 0.0
  %3033 = vmatpush1.msra.mxu0 0.0
  %3034 = vmatprep.subr.mxu0 0.0
  %3035 = vmatpush1.msra.mxu0 0.0
  %3036 = vmatprep.subr.mxu0 0.0
  %3037 = vmatpush1.msra.mxu0 0.0
  %3038 = vmatprep.subr.mxu0 0.0
  %3039 = vmatpush1.msra.mxu0 0.0
  %3040 = vmatprep.subr.mxu0 0.0
  %3041 = vmatpush1.msra.mxu0 0.0
  %3042 = vmatprep.subr.mxu0 0.0
  %3043 = vmatpush1.msra.mxu0 0.0
  %3044 = vmatprep.subr.mxu0 0.0
  %3045 = vmatpush1.msra.mxu0 0.0
  %3046 = vmatprep.subr.mxu0 0.0
  %3047 = vmatpush1.msra.mxu0 0.0
  %3048 = vmatprep.mubr.f32.mxu0 0.0
  %3049 = vmatmul.mubr.f32.gmra.mrb[0].mxu0 %v2832
  %v3050 = vpop.f32.mrb[0].mxu0
  %v3051 = vpop.f32.mrb[0].mxu0
  %3052 = vmatprep.mubr.f32.mxu0 0.0
  %3053 = vmatmul.mubr.f32.gmra.mrb[0].mxu0 %v2833
  %v3054 = vpop.f32.mrb[0].mxu0
  %v3055 = vadd.f32 0.0, %v3054
  %v3056 = vpop.f32.mrb[0].mxu0
  %v3057 = vadd.f32 0.0, %v3056
  %3058 = vdwg.mxu0
  %s3059 = smul.addr %s1065, 8
  %s3060 = scalar_lea.vmem [#allocation3], %s3059
  %v3061 = vld [vmem:[%s3060] sm:$0xff]
  %v3062 = vld [vmem:[%s3060 + $0x8] sm:$0xff]
  %v3063 = vld [vmem:[%s3060 + $0x10] sm:$0xff]
  %v3064 = vadd.f32 %v3061, %v2901
  %v3065 = vsub.f32 0.0, %v3064
  %v3066 = vmul.f32 %v3065, 1.442695
  %v3067 = vpow.pop %v3066
  %v3068 = vadd.f32 %v3067, 1.0
  %v3069 = vrcp.pop %v3068
  %v3070 = vmul.f32 1.0, %v3069
  %v3071 = vadd.f32 %v3062, %v2903
  %v3072 = vsub.f32 0.0, %v3071
  %v3073 = vmul.f32 %v3072, 1.442695
  %v3074 = vpow.pop %v3073
  %v3075 = vadd.f32 %v3074, 1.0
  %v3076 = vrcp.pop %v3075
  %v3077 = vmul.f32 1.0, %v3076
  %v3078 = vadd.f32 %v2976, %v1055
  %v3079 = vmul.f32 %v3070, %v3078
  %v3080 = vadd.f32 %v3063, %v3079
  %v3081 = vtanh.pop %v3080
  %v3082 = vsub.f32 1.0, %v3077
  %v3083 = vmul.f32 %v3082, %v3081
  %v3084 = vmul.f32 %v3077, %v2832
  %v3085 = vadd.f32 %v3083, %v3084
  %s3086 = smul.addr %s1031, 8
  %s3087 = scalar_lea.vmem [#allocation4], %s3086
  %v3088 = vld [vmem:[%s3087] sm:$0xff]
  %v3089 = vld [vmem:[%s3087 + $0x8] sm:$0xff]
  %v3090 = vld [vmem:[%s3087 + $0x10] sm:$0xff]
  %v3091 = vadd.f32 %v3088, %v2982
  %v3092 = vsub.f32 0.0, %v3091
  %v3093 = vmul.f32 %v3092, 1.442695
  %v3094 = vpow.pop %v3093
  %v3095 = vadd.f32 %v3094, 1.0
  %v3096 = vrcp.pop %v3095
  %v3097 = vmul.f32 1.0, %v3096
  %v3098 = vadd.f32 %v3089, %v3055
  %v3099 = vsub.f32 0.0, %v3098
  %v3100 = vmul.f32 %v3099, 1.442695
  %v3101 = vpow.pop %v3100
  %v3102 = vadd.f32 %v3101, 1.0
  %v3103 = vrcp.pop %v3102
  %v3104 = vmul.f32 1.0, %v3103
  %v3105 = vadd.f32 %v3057, %v1089
  %v3106 = vmul.f32 %v3097, %v3105
  %v3107 = vadd.f32 %v3090, %v3106
  %v3108 = vtanh.pop %v3107
  %v3109 = vsub.f32 1.0, %v3104
  %v3110 = vmul.f32 %v3109, %v3108
  %v3111 = vmul.f32 %v3104, %v2833
  %v3112 = vadd.f32 %v3110, %v3111
  %3113 = vst [vmem:[#allocation2] sm:$0xff] %v3085
  %3114 = vst [vmem:[#allocation2 + $0x8] sm:$0xff] %v3112
  %s3115 = scalar_lea.vmem %s9, 56
  %3116 = vst [vmem:[%s3115] sm:$0xff] %v3085
  %3117 = vst [vmem:[%s67] sm:$0xff] %v3112
  %s3118 = ssub.s32 0, 0
  %s3119 = smul.u32 8, %s3118
  %p3120 = scmp.lt.s32.totalorder %s3119, 7
  %s3121 = scalar_select %p3120, %s3119, 7
  %s3122 = smul.addr %s3121, 8
  %s3123 = scalar_lea.vmem %s10, %s3122
  // Predicated region
  $region42: #{enh_model_forward.3} parent=0 // pred_check
    _
  $region43: #{enh_model_forward.3} parent=0 // pred_check_branch
    %3125 = sbr.rel (0) target = $region45
  $region44: #{enh_model_forward.3} parent=0 // pred_region
    _
  $region45: #{enh_model_forward.3} parent=0 // pred_fallthru
    _
  // Predicated region
  $region46: #{enh_model_forward.3} parent=0 // pred_check
    _
  $region47: #{enh_model_forward.3} parent=0 // pred_check_branch
    %3127 = sbr.rel (0) target = $region49
  $region48: #{enh_model_forward.3} parent=0 // pred_region
    %s3128 = ssub.s32 0, 0
    %s3129 = smul.u32 8, %s3128
  $region49: #{enh_model_forward.3} parent=0 // pred_fallthru
    _
  // Predicated region
  $region50: #{enh_model_forward.3} parent=0 // pred_check
    _
  $region51: #{enh_model_forward.3} parent=0 // pred_check_branch
    %3131 = sbr.rel (0) target = $region53
  $region52: #{enh_model_forward.3} parent=0 // pred_region
    _
  $region53: #{enh_model_forward.3} parent=0 // pred_fallthru
    _
  // Predicated region
  $region54: #{enh_model_forward.3} parent=0 // pred_check
    _
  $region55: #{enh_model_forward.3} parent=0 // pred_check_branch
    %3133 = sbr.rel (0) target = $region57
  $region56: #{enh_model_forward.3} parent=0 // pred_region
    %s3134 = ssub.s32 0, 0
    %s3135 = smul.u32 8, %s3134
    %p3136 = scmp.lt.s32.totalorder %s3135, 7
    %s3137 = scalar_select %p3136, %s3135, 7
    %s3138 = smul.addr %s3137, 8
    %s3139 = scalar_lea.vmem %s10, %s3138
  $region57: #{enh_model_forward.3} parent=0 // pred_fallthru
    _

// kernel: enh_model_forward.4
$region0: #{enh_model_forward.4}
  #allocation0 [shape = 'u32[]', space=smem, size = 0x4, offset = 0x4, fixed_abs, tag = 'smem constant byte address 0x4 - core index']
  #allocation1 [shape = 'u32[144,128]{1,0:T(1,128)}', space=vmem, size = 0x12000, scoped, tag = 'internal scratch']
  #allocation2 [shape = 'f32[16,128]{1,0:T(8,128)}', space=vmem, size = 0x2000, scoped, tag = 'scratch operand']
  #allocation3 [shape = 'f32[64,384]{1,0:T(8,128)}', space=vmem, size = 0x18000, scoped, tag = 'scratch operand']
  #allocation4 [shape = 'f32[64,384]{1,0:T(8,128)}', space=vmem, size = 0x18000, scoped, tag = 'scratch operand']
  %s0 = inlined_call_operand.vmem [shape: f32[64,128], index: 0, kind: input, shape index: {}, may-alias: {0,2}]
  %s1 = inlined_call_operand.vmem [shape: f32[64,128], index: 1, kind: input, shape index: {}, may-alias: {1,3}]
  %s2 = inlined_call_operand.vmem [shape: f32[64,128], index: 2, kind: input, shape index: {}, may-alias: {0,2}]
  %s3 = inlined_call_operand.vmem [shape: f32[64,128], index: 3, kind: input, shape index: {}, may-alias: {1,3}]
  %s4 = inlined_call_operand.vmem [shape: f32[256,384], index: 4, kind: input, shape index: {}]
  %s5 = inlined_call_operand.vmem [shape: f32[256,384], index: 5, kind: input, shape index: {}]
  %s6 = inlined_call_operand.vmem [shape: f32[128,768], index: 6, kind: input, shape index: {}]
  %s7 = inlined_call_operand.vmem [shape: f32[1,384], index: 7, kind: input, shape index: {}]
  %s8 = inlined_call_operand.vmem [shape: f32[1,384], index: 8, kind: input, shape index: {}]
  %s9 = inlined_call_operand.vmem [shape: f32[1,128], index: 9, kind: input, shape index: {}]
  %s10 = inlined_call_operand.vmem [shape: f32[1,128], index: 10, kind: input, shape index: {}]
  %s11 = inlined_call_operand.vmem [shape: f32[64,128], index: 11, kind: output, shape index: {0}]
  %s12 = inlined_call_operand.vmem [shape: f32[64,128], index: 12, kind: output, shape index: {1}]
  %13 = xla_tuple %s11, %s12
  %s14 = sld [smem:[#allocation0]]
  $region66: #{enh_model_forward.4} parent=0
    _
  %s16 = ssub.s32 1, %s14
  %s17 = scalar_select 0, %s16, %s14
  // Predicated region
  $region2: #{enh_model_forward.4} parent=0 // pred_check
    _
  $region3: #{enh_model_forward.4} parent=0 // pred_check_branch
    %19 = sbr.rel (0) target = $region5
  $region4: #{enh_model_forward.4} parent=0 // pred_region
    _
  $region5: #{enh_model_forward.4} parent=0 // pred_fallthru
    _
  // Predicated region
  $region6: #{enh_model_forward.4} parent=0 // pred_check
    _
  $region7: #{enh_model_forward.4} parent=0 // pred_check_branch
    %21 = sbr.rel (0) target = $region9
  $region8: #{enh_model_forward.4} parent=0 // pred_region
    _
  $region9: #{enh_model_forward.4} parent=0 // pred_fallthru
    _
  // Predicated region
  $region10: #{enh_model_forward.4} parent=0 // pred_check
    _
  $region11: #{enh_model_forward.4} parent=0 // pred_check_branch
    %23 = sbr.rel (0) target = $region13
  $region12: #{enh_model_forward.4} parent=0 // pred_region
    %s24 = ssub.s32 0, 0
    %s25 = smul.u32 8, %s24
    %p26 = scmp.lt.s32.totalorder %s25, 7
    %s27 = scalar_select %p26, %s25, 7
    %s28 = smul.addr %s27, 8
    %s29 = scalar_lea.vmem %s2, %s28
    %s30 = ssub.s32 0, 0
    %s31 = smul.u32 8, %s30
  $region13: #{enh_model_forward.4} parent=0 // pred_fallthru
    _
  // Predicated region
  $region14: #{enh_model_forward.4} parent=0 // pred_check
    _
  $region15: #{enh_model_forward.4} parent=0 // pred_check_branch
    %33 = sbr.rel (0) target = $region17
  $region16: #{enh_model_forward.4} parent=0 // pred_region
    %s34 = ssub.s32 0, 0
    %s35 = smul.u32 8, %s34
    %p36 = scmp.lt.s32.totalorder %s35, 7
    %s37 = scalar_select %p36, %s35, 7
    %s38 = smul.addr %s37, 8
    %s39 = scalar_lea.vmem %s3, %s38
    %s40 = ssub.s32 0, 0
    %s41 = smul.u32 8, %s40
  $region17: #{enh_model_forward.4} parent=0 // pred_fallthru
    _
  // Predicated region
  $region18: #{enh_model_forward.4} parent=0 // pred_check
    _
  $region19: #{enh_model_forward.4} parent=0 // pred_check_branch
    %43 = sbr.rel (0) target = $region21
  $region20: #{enh_model_forward.4} parent=0 // pred_region
    _
  $region21: #{enh_model_forward.4} parent=0 // pred_fallthru
    _
  // Predicated region
  $region22: #{enh_model_forward.4} parent=0 // pred_check
    _
  $region23: #{enh_model_forward.4} parent=0 // pred_check_branch
    %45 = sbr.rel (0) target = $region25
  $region24: #{enh_model_forward.4} parent=0 // pred_region
    _
  $region25: #{enh_model_forward.4} parent=0 // pred_fallthru
    _
  // Predicated region
  $region26: #{enh_model_forward.4} parent=0 // pred_check
    _
  $region27: #{enh_model_forward.4} parent=0 // pred_check_branch
    %47 = sbr.rel (0) target = $region29
  $region28: #{enh_model_forward.4} parent=0 // pred_region
    _
  $region29: #{enh_model_forward.4} parent=0 // pred_fallthru
    _
  // Predicated region
  $region30: #{enh_model_forward.4} parent=0 // pred_check
    _
  $region31: #{enh_model_forward.4} parent=0 // pred_check_branch
    %49 = sbr.rel (0) target = $region33
  $region32: #{enh_model_forward.4} parent=0 // pred_region
    _
  $region33: #{enh_model_forward.4} parent=0 // pred_fallthru
    _
  // Predicated region
  $region34: #{enh_model_forward.4} parent=0 // pred_check
    _
  $region35: #{enh_model_forward.4} parent=0 // pred_check_branch
    %51 = sbr.rel (0) target = $region37
  $region36: #{enh_model_forward.4} parent=0 // pred_region
    _
  $region37: #{enh_model_forward.4} parent=0 // pred_fallthru
    _
  // Predicated region
  $region38: #{enh_model_forward.4} parent=0 // pred_check
    _
  $region39: #{enh_model_forward.4} parent=0 // pred_check_branch
    %53 = sbr.rel (0) target = $region41
  $region40: #{enh_model_forward.4} parent=0 // pred_region
    _
  $region41: #{enh_model_forward.4} parent=0 // pred_fallthru
    _
  // Predicated region
  $region42: #{enh_model_forward.4} parent=0 // pred_check
    _
  $region43: #{enh_model_forward.4} parent=0 // pred_check_branch
    %55 = sbr.rel (0) target = $region45
  $region44: #{enh_model_forward.4} parent=0 // pred_region
    _
  $region45: #{enh_model_forward.4} parent=0 // pred_fallthru
    _
  %s56 = ssub.s32 0, 0
  %s57 = smul.u32 8, %s56
  %p58 = scmp.lt.s32.totalorder %s57, 7
  %s59 = scalar_select %p58, %s57, 7
  %s60 = smul.addr %s59, 8
  %s61 = scalar_lea.vmem %s2, %s60
  %s62 = ssub.s32 0, 0
  %s63 = smul.u32 8, %s62
  %p64 = scmp.lt.s32.totalorder %s63, 7
  %s65 = scalar_select %p64, %s63, 7
  %s66 = smul.addr %s65, 8
  %s67 = scalar_lea.vmem %s3, %s66
  %s68 = ssub.s32 0, 0
  %s69 = smul.u32 8, %s68
  %p70 = scmp.lt.s32.totalorder %s69, 7
  %s71 = scalar_select %p70, %s69, 7
  %s72 = smul.addr %s71, 8
  %s73 = scalar_lea.vmem %s12, %s72
  %s74 = ssub.s32 0, 0
  %s75 = smul.u32 8, %s74
  %p76 = scmp.lt.s32.totalorder %s75, 7
  %s77 = scalar_select %p76, %s75, 7
  %s78 = smul.addr %s77, 8
  %s79 = scalar_lea.vmem %s2, %s78
  %s80 = ssub.s32 0, 0
  %s81 = smul.u32 8, %s80
  %s82 = ssub.s32 0, 0
  %s83 = smul.u32 8, %s82
  %p84 = scmp.lt.s32.totalorder %s83, 7
  %s85 = scalar_select %p84, %s83, 7
  %s86 = smul.addr %s85, 8
  %s87 = scalar_lea.vmem %s3, %s86
  %s88 = ssub.s32 0, 0
  %s89 = smul.u32 8, %s88
  %s90 = ssub.s32 0, 0
  %s91 = smul.u32 8, %s90
  %p92 = scmp.lt.s32.totalorder %s91, 7
  %s93 = scalar_select %p92, %s91, 7
  %s94 = smul.addr %s93, 8
  %s95 = scalar_lea.vmem %s12, %s94
  %s96 = ssub.s32 0, 0
  %s97 = smul.u32 8, %s96
  %p98 = scmp.eq.s32.totalorder 0, 0
  // Predicated region
  $region46: #{enh_model_forward.4} parent=0 // pred_check
    %p99 = pneg %p98
  $region47: #{enh_model_forward.4} parent=0 // pred_check_branch
    %101 = sbr.rel (%p99) target = $region49
  $region48: #{enh_model_forward.4} parent=0 // pred_region
    %102 = vst [vmem:[#allocation2] sm:$0xff] 0.0
    %103 = vst [vmem:[#allocation2 + $0x8] sm:$0xff] 0.0
  $region49: #{enh_model_forward.4} parent=0 // pred_fallthru
    _
  %v104 = vld [vmem:[%s0] sm:$0xff]
  %v105 = vld [vmem:[%s0 + $0x8] sm:$0xff]
  %v106 = vld [vmem:[%s0 + $0x10] sm:$0xff]
  %v107 = vld [vmem:[%s0 + $0x18] sm:$0xff]
  %v108 = vld [vmem:[%s0 + $0x20] sm:$0xff]
  %v109 = vld [vmem:[%s0 + $0x28] sm:$0xff]
  %v110 = vld [vmem:[%s0 + $0x30] sm:$0xff]
  %v111 = vld [vmem:[%s0 + $0x38] sm:$0xff]
  %v112 = vld [vmem:[%s4] sm:$0xff]
  %v113 = vld [vmem:[%s4 + $0x8] sm:$0xff]
  %v114 = vld [vmem:[%s4 + $0x10] sm:$0xff]
  %v115 = vld [vmem:[%s4 + $0x18] sm:$0xff]
  %v116 = vld [vmem:[%s4 + $0x20] sm:$0xff]
  %v117 = vld [vmem:[%s4 + $0x28] sm:$0xff]
  %v118 = vld [vmem:[%s4 + $0x30] sm:$0xff]
  %v119 = vld [vmem:[%s4 + $0x38] sm:$0xff]
  %v120 = vld [vmem:[%s4 + $0x40] sm:$0xff]
  %v121 = vld [vmem:[%s4 + $0x48] sm:$0xff]
  %v122 = vld [vmem:[%s4 + $0x50] sm:$0xff]
  %v123 = vld [vmem:[%s4 + $0x58] sm:$0xff]
  %v124 = vld [vmem:[%s4 + $0x60] sm:$0xff]
  %v125 = vld [vmem:[%s4 + $0x68] sm:$0xff]
  %v126 = vld [vmem:[%s4 + $0x70] sm:$0xff]
  %v127 = vld [vmem:[%s4 + $0x78] sm:$0xff]
  %v128 = vld [vmem:[%s4 + $0x80] sm:$0xff]
  %v129 = vld [vmem:[%s4 + $0x88] sm:$0xff]
  %v130 = vld [vmem:[%s4 + $0x90] sm:$0xff]
  %v131 = vld [vmem:[%s4 + $0x98] sm:$0xff]
  %v132 = vld [vmem:[%s4 + $0xa0] sm:$0xff]
  %v133 = vld [vmem:[%s4 + $0xa8] sm:$0xff]
  %v134 = vld [vmem:[%s4 + $0xb0] sm:$0xff]
  %v135 = vld [vmem:[%s4 + $0xb8] sm:$0xff]
  %v136 = vld [vmem:[%s4 + $0xc0] sm:$0xff]
  %v137 = vld [vmem:[%s4 + $0xc8] sm:$0xff]
  %v138 = vld [vmem:[%s4 + $0xd0] sm:$0xff]
  %v139 = vld [vmem:[%s4 + $0xd8] sm:$0xff]
  %v140 = vld [vmem:[%s4 + $0xe0] sm:$0xff]
  %v141 = vld [vmem:[%s4 + $0xe8] sm:$0xff]
  %v142 = vld [vmem:[%s4 + $0xf0] sm:$0xff]
  %v143 = vld [vmem:[%s4 + $0xf8] sm:$0xff]
  %v144 = vld [vmem:[%s4 + $0x100] sm:$0xff]
  %v145 = vld [vmem:[%s4 + $0x108] sm:$0xff]
  %v146 = vld [vmem:[%s4 + $0x110] sm:$0xff]
  %v147 = vld [vmem:[%s4 + $0x118] sm:$0xff]
  %v148 = vld [vmem:[%s4 + $0x120] sm:$0xff]
  %v149 = vld [vmem:[%s4 + $0x128] sm:$0xff]
  %v150 = vld [vmem:[%s4 + $0x130] sm:$0xff]
  %v151 = vld [vmem:[%s4 + $0x138] sm:$0xff]
  %v152 = vld [vmem:[%s4 + $0x140] sm:$0xff]
  %v153 = vld [vmem:[%s4 + $0x148] sm:$0xff]
  %v154 = vld [vmem:[%s4 + $0x150] sm:$0xff]
  %v155 = vld [vmem:[%s4 + $0x158] sm:$0xff]
  %v156 = vld [vmem:[%s4 + $0x160] sm:$0xff]
  %v157 = vld [vmem:[%s4 + $0x168] sm:$0xff]
  %v158 = vld [vmem:[%s4 + $0x170] sm:$0xff]
  %v159 = vld [vmem:[%s4 + $0x178] sm:$0xff]
  %v160 = vld [vmem:[%s1] sm:$0xff]
  %v161 = vld [vmem:[%s1 + $0x8] sm:$0xff]
  %v162 = vld [vmem:[%s1 + $0x10] sm:$0xff]
  %v163 = vld [vmem:[%s1 + $0x18] sm:$0xff]
  %v164 = vld [vmem:[%s1 + $0x20] sm:$0xff]
  %v165 = vld [vmem:[%s1 + $0x28] sm:$0xff]
  %v166 = vld [vmem:[%s1 + $0x30] sm:$0xff]
  %v167 = vld [vmem:[%s1 + $0x38] sm:$0xff]
  %v168 = vld [vmem:[%s4 + $0x180] sm:$0xff]
  %v169 = vld [vmem:[%s4 + $0x188] sm:$0xff]
  %v170 = vld [vmem:[%s4 + $0x190] sm:$0xff]
  %v171 = vld [vmem:[%s4 + $0x198] sm:$0xff]
  %v172 = vld [vmem:[%s4 + $0x1a0] sm:$0xff]
  %v173 = vld [vmem:[%s4 + $0x1a8] sm:$0xff]
  %v174 = vld [vmem:[%s4 + $0x1b0] sm:$0xff]
  %v175 = vld [vmem:[%s4 + $0x1b8] sm:$0xff]
  %v176 = vld [vmem:[%s4 + $0x1c0] sm:$0xff]
  %v177 = vld [vmem:[%s4 + $0x1c8] sm:$0xff]
  %v178 = vld [vmem:[%s4 + $0x1d0] sm:$0xff]
  %v179 = vld [vmem:[%s4 + $0x1d8] sm:$0xff]
  %v180 = vld [vmem:[%s4 + $0x1e0] sm:$0xff]
  %v181 = vld [vmem:[%s4 + $0x1e8] sm:$0xff]
  %v182 = vld [vmem:[%s4 + $0x1f0] sm:$0xff]
  %v183 = vld [vmem:[%s4 + $0x1f8] sm:$0xff]
  %v184 = vld [vmem:[%s4 + $0x200] sm:$0xff]
  %v185 = vld [vmem:[%s4 + $0x208] sm:$0xff]
  %v186 = vld [vmem:[%s4 + $0x210] sm:$0xff]
  %v187 = vld [vmem:[%s4 + $0x218] sm:$0xff]
  %v188 = vld [vmem:[%s4 + $0x220] sm:$0xff]
  %v189 = vld [vmem:[%s4 + $0x228] sm:$0xff]
  %v190 = vld [vmem:[%s4 + $0x230] sm:$0xff]
  %v191 = vld [vmem:[%s4 + $0x238] sm:$0xff]
  %v192 = vld [vmem:[%s4 + $0x240] sm:$0xff]
  %v193 = vld [vmem:[%s4 + $0x248] sm:$0xff]
  %v194 = vld [vmem:[%s4 + $0x250] sm:$0xff]
  %v195 = vld [vmem:[%s4 + $0x258] sm:$0xff]
  %v196 = vld [vmem:[%s4 + $0x260] sm:$0xff]
  %v197 = vld [vmem:[%s4 + $0x268] sm:$0xff]
  %v198 = vld [vmem:[%s4 + $0x270] sm:$0xff]
  %v199 = vld [vmem:[%s4 + $0x278] sm:$0xff]
  %v200 = vld [vmem:[%s4 + $0x280] sm:$0xff]
  %v201 = vld [vmem:[%s4 + $0x288] sm:$0xff]
  %v202 = vld [vmem:[%s4 + $0x290] sm:$0xff]
  %v203 = vld [vmem:[%s4 + $0x298] sm:$0xff]
  %v204 = vld [vmem:[%s4 + $0x2a0] sm:$0xff]
  %v205 = vld [vmem:[%s4 + $0x2a8] sm:$0xff]
  %v206 = vld [vmem:[%s4 + $0x2b0] sm:$0xff]
  %v207 = vld [vmem:[%s4 + $0x2b8] sm:$0xff]
  %v208 = vld [vmem:[%s4 + $0x2c0] sm:$0xff]
  %v209 = vld [vmem:[%s4 + $0x2c8] sm:$0xff]
  %v210 = vld [vmem:[%s4 + $0x2d0] sm:$0xff]
  %v211 = vld [vmem:[%s4 + $0x2d8] sm:$0xff]
  %v212 = vld [vmem:[%s4 + $0x2e0] sm:$0xff]
  %v213 = vld [vmem:[%s4 + $0x2e8] sm:$0xff]
  %v214 = vld [vmem:[%s4 + $0x2f0] sm:$0xff]
  %v215 = vld [vmem:[%s4 + $0x2f8] sm:$0xff]
  %216 = vmatprep.subr.mxu0 %v169
  %217 = vmatpush1.msra.mxu0 %v168
  %218 = vmatprep.subr.mxu0 %v172
  %219 = vmatpush1.msra.mxu0 %v171
  %220 = vmatprep.subr.mxu0 %v175
  %221 = vmatpush1.msra.mxu0 %v174
  %222 = vmatprep.subr.mxu0 %v178
  %223 = vmatpush1.msra.mxu0 %v177
  %224 = vmatprep.subr.mxu0 %v181
  %225 = vmatpush1.msra.mxu0 %v180
  %226 = vmatprep.subr.mxu0 %v184
  %227 = vmatpush1.msra.mxu0 %v183
  %228 = vmatprep.subr.mxu0 %v187
  %229 = vmatpush1.msra.mxu0 %v186
  %230 = vmatprep.subr.mxu0 %v190
  %231 = vmatpush1.msra.mxu0 %v189
  %232 = vmatprep.subr.mxu0 %v193
  %233 = vmatpush1.msra.mxu0 %v192
  %234 = vmatprep.subr.mxu0 %v196
  %235 = vmatpush1.msra.mxu0 %v195
  %236 = vmatprep.subr.mxu0 %v199
  %237 = vmatpush1.msra.mxu0 %v198
  %238 = vmatprep.subr.mxu0 %v202
  %239 = vmatpush1.msra.mxu0 %v201
  %240 = vmatprep.subr.mxu0 %v205
  %241 = vmatpush1.msra.mxu0 %v204
  %242 = vmatprep.subr.mxu0 %v208
  %243 = vmatpush1.msra.mxu0 %v207
  %244 = vmatprep.subr.mxu0 %v211
  %245 = vmatpush1.msra.mxu0 %v210
  %246 = vmatprep.subr.mxu0 %v214
  %247 = vmatpush1.msra.mxu0 %v213
  %248 = vmatprep.subr.mxu0 0.0
  %249 = vmatpush1.msra.mxu0 0.0
  %250 = vmatprep.subr.mxu0 0.0
  %251 = vmatpush1.msra.mxu0 0.0
  %252 = vmatprep.subr.mxu0 0.0
  %253 = vmatpush1.msra.mxu0 0.0
  %254 = vmatprep.subr.mxu0 0.0
  %255 = vmatpush1.msra.mxu0 0.0
  %256 = vmatprep.subr.mxu0 0.0
  %257 = vmatpush1.msra.mxu0 0.0
  %258 = vmatprep.subr.mxu0 0.0
  %259 = vmatpush1.msra.mxu0 0.0
  %260 = vmatprep.subr.mxu0 0.0
  %261 = vmatpush1.msra.mxu0 0.0
  %262 = vmatprep.subr.mxu0 0.0
  %263 = vmatpush1.msra.mxu0 0.0
  %264 = vmatprep.subr.mxu0 0.0
  %265 = vmatpush1.msra.mxu0 0.0
  %266 = vmatprep.subr.mxu0 0.0
  %267 = vmatpush1.msra.mxu0 0.0
  %268 = vmatprep.subr.mxu0 0.0
  %269 = vmatpush1.msra.mxu0 0.0
  %270 = vmatprep.subr.mxu0 0.0
  %271 = vmatpush1.msra.mxu0 0.0
  %272 = vmatprep.subr.mxu0 0.0
  %273 = vmatpush1.msra.mxu0 0.0
  %274 = vmatprep.subr.mxu0 0.0
  %275 = vmatpush1.msra.mxu0 0.0
  %276 = vmatprep.subr.mxu0 0.0
  %277 = vmatpush1.msra.mxu0 0.0
  %278 = vmatprep.subr.mxu0 0.0
  %279 = vmatpush1.msra.mxu0 0.0
  %280 = vmatprep.mubr.f32.mxu0 0.0
  %281 = vmatmul.mubr.f32.gmra.mrb[0].mxu0 %v160
  %v282 = vpop.f32.mrb[0].mxu0
  %v283 = vadd.f32 0.0, %v282
  %v284 = vpop.f32.mrb[0].mxu0
  %v285 = vadd.f32 0.0, %v284
  %286 = vmatprep.mubr.f32.mxu0 0.0
  %287 = vmatmul.mubr.f32.gmra.mrb[0].mxu0 %v161
  %v288 = vpop.f32.mrb[0].mxu0
  %v289 = vadd.f32 0.0, %v288
  %v290 = vpop.f32.mrb[0].mxu0
  %v291 = vadd.f32 0.0, %v290
  %292 = vmatprep.mubr.f32.mxu0 0.0
  %293 = vmatmul.mubr.f32.gmra.mrb[0].mxu0 %v162
  %v294 = vpop.f32.mrb[0].mxu0
  %v295 = vadd.f32 0.0, %v294
  %v296 = vpop.f32.mrb[0].mxu0
  %v297 = vadd.f32 0.0, %v296
  %298 = vmatprep.mubr.f32.mxu0 0.0
  %299 = vmatmul.mubr.f32.gmra.mrb[0].mxu0 %v163
  %v300 = vpop.f32.mrb[0].mxu0
  %v301 = vadd.f32 0.0, %v300
  %v302 = vpop.f32.mrb[0].mxu0
  %v303 = vadd.f32 0.0, %v302
  %304 = vmatprep.mubr.f32.mxu0 0.0
  %305 = vmatmul.mubr.f32.gmra.mrb[0].mxu0 %v164
  %v306 = vpop.f32.mrb[0].mxu0
  %v307 = vadd.f32 0.0, %v306
  %v308 = vpop.f32.mrb[0].mxu0
  %v309 = vadd.f32 0.0, %v308
  %310 = vmatprep.mubr.f32.mxu0 0.0
  %311 = vmatmul.mubr.f32.gmra.mrb[0].mxu0 %v165
  %v312 = vpop.f32.mrb[0].mxu0
  %v313 = vadd.f32 0.0, %v312
  %v314 = vpop.f32.mrb[0].mxu0
  %v315 = vadd.f32 0.0, %v314
  %316 = vmatprep.mubr.f32.mxu0 0.0
  %317 = vmatmul.mubr.f32.gmra.mrb[0].mxu0 %v166
  %v318 = vpop.f32.mrb[0].mxu0
  %v319 = vadd.f32 0.0, %v318
  %v320 = vpop.f32.mrb[0].mxu0
  %v321 = vadd.f32 0.0, %v320
  %322 = vmatprep.mubr.f32.mxu0 0.0
  %323 = vmatmul.mubr.f32.gmra.mrb[0].mxu0 %v167
  %v324 = vpop.f32.mrb[0].mxu0
  %v325 = vadd.f32 0.0, %v324
  %v326 = vpop.f32.mrb[0].mxu0
  %v327 = vadd.f32 0.0, %v326
  %328 = vdwg.mxu0
  %329 = vmatprep.subr.mxu0 0.0
  %330 = vmatpush1.msra.mxu0 %v170
  %331 = vmatprep.subr.mxu0 0.0
  %332 = vmatpush1.msra.mxu0 %v173
  %333 = vmatprep.subr.mxu0 0.0
  %334 = vmatpush1.msra.mxu0 %v176
  %335 = vmatprep.subr.mxu0 0.0
  %336 = vmatpush1.msra.mxu0 %v179
  %337 = vmatprep.subr.mxu0 0.0
  %338 = vmatpush1.msra.mxu0 %v182
  %339 = vmatprep.subr.mxu0 0.0
  %340 = vmatpush1.msra.mxu0 %v185
  %341 = vmatprep.subr.mxu0 0.0
  %342 = vmatpush1.msra.mxu0 %v188
  %343 = vmatprep.subr.mxu0 0.0
  %344 = vmatpush1.msra.mxu0 %v191
  %345 = vmatprep.subr.mxu0 0.0
  %346 = vmatpush1.msra.mxu0 %v194
  %347 = vmatprep.subr.mxu0 0.0
  %348 = vmatpush1.msra.mxu0 %v197
  %349 = vmatprep.subr.mxu0 0.0
  %350 = vmatpush1.msra.mxu0 %v200
  %351 = vmatprep.subr.mxu0 0.0
  %352 = vmatpush1.msra.mxu0 %v203
  %353 = vmatprep.subr.mxu0 0.0
  %354 = vmatpush1.msra.mxu0 %v206
  %355 = vmatprep.subr.mxu0 0.0
  %356 = vmatpush1.msra.mxu0 %v209
  %357 = vmatprep.subr.mxu0 0.0
  %358 = vmatpush1.msra.mxu0 %v212
  %359 = vmatprep.subr.mxu0 0.0
  %360 = vmatpush1.msra.mxu0 %v215
  %361 = vmatprep.subr.mxu0 0.0
  %362 = vmatpush1.msra.mxu0 0.0
  %363 = vmatprep.subr.mxu0 0.0
  %364 = vmatpush1.msra.mxu0 0.0
  %365 = vmatprep.subr.mxu0 0.0
  %366 = vmatpush1.msra.mxu0 0.0
  %367 = vmatprep.subr.mxu0 0.0
  %368 = vmatpush1.msra.mxu0 0.0
  %369 = vmatprep.subr.mxu0 0.0
  %370 = vmatpush1.msra.mxu0 0.0
  %371 = vmatprep.subr.mxu0 0.0
  %372 = vmatpush1.msra.mxu0 0.0
  %373 = vmatprep.subr.mxu0 0.0
  %374 = vmatpush1.msra.mxu0 0.0
  %375 = vmatprep.subr.mxu0 0.0
  %376 = vmatpush1.msra.mxu0 0.0
  %377 = vmatprep.subr.mxu0 0.0
  %378 = vmatpush1.msra.mxu0 0.0
  %379 = vmatprep.subr.mxu0 0.0
  %380 = vmatpush1.msra.mxu0 0.0
  %381 = vmatprep.subr.mxu0 0.0
  %382 = vmatpush1.msra.mxu0 0.0
  %383 = vmatprep.subr.mxu0 0.0
  %384 = vmatpush1.msra.mxu0 0.0
  %385 = vmatprep.subr.mxu0 0.0
  %386 = vmatpush1.msra.mxu0 0.0
  %387 = vmatprep.subr.mxu0 0.0
  %388 = vmatpush1.msra.mxu0 0.0
  %389 = vmatprep.subr.mxu0 0.0
  %390 = vmatpush1.msra.mxu0 0.0
  %391 = vmatprep.subr.mxu0 0.0
  %392 = vmatpush1.msra.mxu0 0.0
  %393 = vmatprep.mubr.f32.mxu0 0.0
  %394 = vmatmul.mubr.f32.gmra.mrb[0].mxu0 %v160
  %v395 = vpop.f32.mrb[0].mxu0
  %v396 = vadd.f32 0.0, %v395
  %v397 = vpop.f32.mrb[0].mxu0
  %398 = vmatprep.mubr.f32.mxu0 0.0
  %399 = vmatmul.mubr.f32.gmra.mrb[0].mxu0 %v161
  %v400 = vpop.f32.mrb[0].mxu0
  %v401 = vadd.f32 0.0, %v400
  %v402 = vpop.f32.mrb[0].mxu0
  %403 = vmatprep.mubr.f32.mxu0 0.0
  %404 = vmatmul.mubr.f32.gmra.mrb[0].mxu0 %v162
  %v405 = vpop.f32.mrb[0].mxu0
  %v406 = vadd.f32 0.0, %v405
  %v407 = vpop.f32.mrb[0].mxu0
  %408 = vmatprep.mubr.f32.mxu0 0.0
  %409 = vmatmul.mubr.f32.gmra.mrb[0].mxu0 %v163
  %v410 = vpop.f32.mrb[0].mxu0
  %v411 = vadd.f32 0.0, %v410
  %v412 = vpop.f32.mrb[0].mxu0
  %413 = vmatprep.mubr.f32.mxu0 0.0
  %414 = vmatmul.mubr.f32.gmra.mrb[0].mxu0 %v164
  %v415 = vpop.f32.mrb[0].mxu0
  %v416 = vadd.f32 0.0, %v415
  %v417 = vpop.f32.mrb[0].mxu0
  %418 = vmatprep.mubr.f32.mxu0 0.0
  %419 = vmatmul.mubr.f32.gmra.mrb[0].mxu0 %v165
  %v420 = vpop.f32.mrb[0].mxu0
  %v421 = vadd.f32 0.0, %v420
  %v422 = vpop.f32.mrb[0].mxu0
  %423 = vmatprep.mubr.f32.mxu0 0.0
  %424 = vmatmul.mubr.f32.gmra.mrb[0].mxu0 %v166
  %v425 = vpop.f32.mrb[0].mxu0
  %v426 = vadd.f32 0.0, %v425
  %v427 = vpop.f32.mrb[0].mxu0
  %428 = vmatprep.mubr.f32.mxu0 0.0
  %429 = vmatmul.mubr.f32.gmra.mrb[0].mxu0 %v167
  %v430 = vpop.f32.mrb[0].mxu0
  %v431 = vadd.f32 0.0, %v430
  %v432 = vpop.f32.mrb[0].mxu0
  %433 = vdwg.mxu0
  %434 = vmatprep.subr.mxu0 %v113
  %435 = vmatpush1.msra.mxu0 %v112
  %436 = vmatprep.subr.mxu0 %v116
  %437 = vmatpush1.msra.mxu0 %v115
  %438 = vmatprep.subr.mxu0 %v119
  %439 = vmatpush1.msra.mxu0 %v118
  %440 = vmatprep.subr.mxu0 %v122
  %441 = vmatpush1.msra.mxu0 %v121
  %442 = vmatprep.subr.mxu0 %v125
  %443 = vmatpush1.msra.mxu0 %v124
  %444 = vmatprep.subr.mxu0 %v128
  %445 = vmatpush1.msra.mxu0 %v127
  %446 = vmatprep.subr.mxu0 %v131
  %447 = vmatpush1.msra.mxu0 %v130
  %448 = vmatprep.subr.mxu0 %v134
  %449 = vmatpush1.msra.mxu0 %v133
  %450 = vmatprep.subr.mxu0 %v137
  %451 = vmatpush1.msra.mxu0 %v136
  %452 = vmatprep.subr.mxu0 %v140
  %453 = vmatpush1.msra.mxu0 %v139
  %454 = vmatprep.subr.mxu0 %v143
  %455 = vmatpush1.msra.mxu0 %v142
  %456 = vmatprep.subr.mxu0 %v146
  %457 = vmatpush1.msra.mxu0 %v145
  %458 = vmatprep.subr.mxu0 %v149
  %459 = vmatpush1.msra.mxu0 %v148
  %460 = vmatprep.subr.mxu0 %v152
  %461 = vmatpush1.msra.mxu0 %v151
  %462 = vmatprep.subr.mxu0 %v155
  %463 = vmatpush1.msra.mxu0 %v154
  %464 = vmatprep.subr.mxu0 %v158
  %465 = vmatpush1.msra.mxu0 %v157
  %466 = vmatprep.subr.mxu0 0.0
  %467 = vmatpush1.msra.mxu0 0.0
  %468 = vmatprep.subr.mxu0 0.0
  %469 = vmatpush1.msra.mxu0 0.0
  %470 = vmatprep.subr.mxu0 0.0
  %471 = vmatpush1.msra.mxu0 0.0
  %472 = vmatprep.subr.mxu0 0.0
  %473 = vmatpush1.msra.mxu0 0.0
  %474 = vmatprep.subr.mxu0 0.0
  %475 = vmatpush1.msra.mxu0 0.0
  %476 = vmatprep.subr.mxu0 0.0
  %477 = vmatpush1.msra.mxu0 0.0
  %478 = vmatprep.subr.mxu0 0.0
  %479 = vmatpush1.msra.mxu0 0.0
  %480 = vmatprep.subr.mxu0 0.0
  %481 = vmatpush1.msra.mxu0 0.0
  %482 = vmatprep.subr.mxu0 0.0
  %483 = vmatpush1.msra.mxu0 0.0
  %484 = vmatprep.subr.mxu0 0.0
  %485 = vmatpush1.msra.mxu0 0.0
  %486 = vmatprep.subr.mxu0 0.0
  %487 = vmatpush1.msra.mxu0 0.0
  %488 = vmatprep.subr.mxu0 0.0
  %489 = vmatpush1.msra.mxu0 0.0
  %490 = vmatprep.subr.mxu0 0.0
  %491 = vmatpush1.msra.mxu0 0.0
  %492 = vmatprep.subr.mxu0 0.0
  %493 = vmatpush1.msra.mxu0 0.0
  %494 = vmatprep.subr.mxu0 0.0
  %495 = vmatpush1.msra.mxu0 0.0
  %496 = vmatprep.subr.mxu0 0.0
  %497 = vmatpush1.msra.mxu0 0.0
  %498 = vmatprep.mubr.f32.mxu0 0.0
  %499 = vmatmul.mubr.f32.gmra.mrb[0].mxu0 %v104
  %v500 = vpop.f32.mrb[0].mxu0
  %v501 = vadd.f32 %v283, %v500
  %v502 = vpop.f32.mrb[0].mxu0
  %v503 = vadd.f32 %v285, %v502
  %504 = vmatprep.mubr.f32.mxu0 0.0
  %505 = vmatmul.mubr.f32.gmra.mrb[0].mxu0 %v105
  %v506 = vpop.f32.mrb[0].mxu0
  %v507 = vadd.f32 %v289, %v506
  %v508 = vpop.f32.mrb[0].mxu0
  %v509 = vadd.f32 %v291, %v508
  %510 = vmatprep.mubr.f32.mxu0 0.0
  %511 = vmatmul.mubr.f32.gmra.mrb[0].mxu0 %v106
  %v512 = vpop.f32.mrb[0].mxu0
  %v513 = vadd.f32 %v295, %v512
  %v514 = vpop.f32.mrb[0].mxu0
  %v515 = vadd.f32 %v297, %v514
  %516 = vmatprep.mubr.f32.mxu0 0.0
  %517 = vmatmul.mubr.f32.gmra.mrb[0].mxu0 %v107
  %v518 = vpop.f32.mrb[0].mxu0
  %v519 = vadd.f32 %v301, %v518
  %v520 = vpop.f32.mrb[0].mxu0
  %v521 = vadd.f32 %v303, %v520
  %522 = vmatprep.mubr.f32.mxu0 0.0
  %523 = vmatmul.mubr.f32.gmra.mrb[0].mxu0 %v108
  %v524 = vpop.f32.mrb[0].mxu0
  %v525 = vadd.f32 %v307, %v524
  %v526 = vpop.f32.mrb[0].mxu0
  %v527 = vadd.f32 %v309, %v526
  %528 = vmatprep.mubr.f32.mxu0 0.0
  %529 = vmatmul.mubr.f32.gmra.mrb[0].mxu0 %v109
  %v530 = vpop.f32.mrb[0].mxu0
  %v531 = vadd.f32 %v313, %v530
  %v532 = vpop.f32.mrb[0].mxu0
  %v533 = vadd.f32 %v315, %v532
  %534 = vmatprep.mubr.f32.mxu0 0.0
  %535 = vmatmul.mubr.f32.gmra.mrb[0].mxu0 %v110
  %v536 = vpop.f32.mrb[0].mxu0
  %v537 = vadd.f32 %v319, %v536
  %v538 = vpop.f32.mrb[0].mxu0
  %v539 = vadd.f32 %v321, %v538
  %540 = vmatprep.mubr.f32.mxu0 0.0
  %541 = vmatmul.mubr.f32.gmra.mrb[0].mxu0 %v111
  %v542 = vpop.f32.mrb[0].mxu0
  %v543 = vadd.f32 %v325, %v542
  %v544 = vpop.f32.mrb[0].mxu0
  %v545 = vadd.f32 %v327, %v544
  %546 = vdwg.mxu0
  %547 = vmatprep.subr.mxu0 0.0
  %548 = vmatpush1.msra.mxu0 %v114
  %549 = vmatprep.subr.mxu0 0.0
  %550 = vmatpush1.msra.mxu0 %v117
  %551 = vmatprep.subr.mxu0 0.0
  %552 = vmatpush1.msra.mxu0 %v120
  %553 = vmatprep.subr.mxu0 0.0
  %554 = vmatpush1.msra.mxu0 %v123
  %555 = vmatprep.subr.mxu0 0.0
  %556 = vmatpush1.msra.mxu0 %v126
  %557 = vmatprep.subr.mxu0 0.0
  %558 = vmatpush1.msra.mxu0 %v129
  %559 = vmatprep.subr.mxu0 0.0
  %560 = vmatpush1.msra.mxu0 %v132
  %561 = vmatprep.subr.mxu0 0.0
  %562 = vmatpush1.msra.mxu0 %v135
  %563 = vmatprep.subr.mxu0 0.0
  %564 = vmatpush1.msra.mxu0 %v138
  %565 = vmatprep.subr.mxu0 0.0
  %566 = vmatpush1.msra.mxu0 %v141
  %567 = vmatprep.subr.mxu0 0.0
  %568 = vmatpush1.msra.mxu0 %v144
  %569 = vmatprep.subr.mxu0 0.0
  %570 = vmatpush1.msra.mxu0 %v147
  %571 = vmatprep.subr.mxu0 0.0
  %572 = vmatpush1.msra.mxu0 %v150
  %573 = vmatprep.subr.mxu0 0.0
  %574 = vmatpush1.msra.mxu0 %v153
  %575 = vmatprep.subr.mxu0 0.0
  %576 = vmatpush1.msra.mxu0 %v156
  %577 = vmatprep.subr.mxu0 0.0
  %578 = vmatpush1.msra.mxu0 %v159
  %579 = vmatprep.subr.mxu0 0.0
  %580 = vmatpush1.msra.mxu0 0.0
  %581 = vmatprep.subr.mxu0 0.0
  %582 = vmatpush1.msra.mxu0 0.0
  %583 = vmatprep.subr.mxu0 0.0
  %584 = vmatpush1.msra.mxu0 0.0
  %585 = vmatprep.subr.mxu0 0.0
  %586 = vmatpush1.msra.mxu0 0.0
  %587 = vmatprep.subr.mxu0 0.0
  %588 = vmatpush1.msra.mxu0 0.0
  %589 = vmatprep.subr.mxu0 0.0
  %590 = vmatpush1.msra.mxu0 0.0
  %591 = vmatprep.subr.mxu0 0.0
  %592 = vmatpush1.msra.mxu0 0.0
  %593 = vmatprep.subr.mxu0 0.0
  %594 = vmatpush1.msra.mxu0 0.0
  %595 = vmatprep.subr.mxu0 0.0
  %596 = vmatpush1.msra.mxu0 0.0
  %597 = vmatprep.subr.mxu0 0.0
  %598 = vmatpush1.msra.mxu0 0.0
  %599 = vmatprep.subr.mxu0 0.0
  %600 = vmatpush1.msra.mxu0 0.0
  %601 = vmatprep.subr.mxu0 0.0
  %602 = vmatpush1.msra.mxu0 0.0
  %603 = vmatprep.subr.mxu0 0.0
  %604 = vmatpush1.msra.mxu0 0.0
  %605 = vmatprep.subr.mxu0 0.0
  %606 = vmatpush1.msra.mxu0 0.0
  %607 = vmatprep.subr.mxu0 0.0
  %608 = vmatpush1.msra.mxu0 0.0
  %609 = vmatprep.subr.mxu0 0.0
  %610 = vmatpush1.msra.mxu0 0.0
  %611 = vmatprep.mubr.f32.mxu0 0.0
  %612 = vmatmul.mubr.f32.gmra.mrb[0].mxu0 %v104
  %v613 = vpop.f32.mrb[0].mxu0
  %v614 = vadd.f32 %v396, %v613
  %v615 = vpop.f32.mrb[0].mxu0
  %616 = vmatprep.mubr.f32.mxu0 0.0
  %617 = vmatmul.mubr.f32.gmra.mrb[0].mxu0 %v105
  %v618 = vpop.f32.mrb[0].mxu0
  %v619 = vadd.f32 %v401, %v618
  %v620 = vpop.f32.mrb[0].mxu0
  %621 = vmatprep.mubr.f32.mxu0 0.0
  %622 = vmatmul.mubr.f32.gmra.mrb[0].mxu0 %v106
  %v623 = vpop.f32.mrb[0].mxu0
  %v624 = vadd.f32 %v406, %v623
  %v625 = vpop.f32.mrb[0].mxu0
  %626 = vmatprep.mubr.f32.mxu0 0.0
  %627 = vmatmul.mubr.f32.gmra.mrb[0].mxu0 %v107
  %v628 = vpop.f32.mrb[0].mxu0
  %v629 = vadd.f32 %v411, %v628
  %v630 = vpop.f32.mrb[0].mxu0
  %631 = vmatprep.mubr.f32.mxu0 0.0
  %632 = vmatmul.mubr.f32.gmra.mrb[0].mxu0 %v108
  %v633 = vpop.f32.mrb[0].mxu0
  %v634 = vadd.f32 %v416, %v633
  %v635 = vpop.f32.mrb[0].mxu0
  %636 = vmatprep.mubr.f32.mxu0 0.0
  %637 = vmatmul.mubr.f32.gmra.mrb[0].mxu0 %v109
  %v638 = vpop.f32.mrb[0].mxu0
  %v639 = vadd.f32 %v421, %v638
  %v640 = vpop.f32.mrb[0].mxu0
  %641 = vmatprep.mubr.f32.mxu0 0.0
  %642 = vmatmul.mubr.f32.gmra.mrb[0].mxu0 %v110
  %v643 = vpop.f32.mrb[0].mxu0
  %v644 = vadd.f32 %v426, %v643
  %v645 = vpop.f32.mrb[0].mxu0
  %646 = vmatprep.mubr.f32.mxu0 0.0
  %647 = vmatmul.mubr.f32.gmra.mrb[0].mxu0 %v111
  %v648 = vpop.f32.mrb[0].mxu0
  %v649 = vadd.f32 %v431, %v648
  %v650 = vpop.f32.mrb[0].mxu0
  %651 = vdwg.mxu0
  %v652 = vld [vmem:[%s7] sm:$0x7]
  %v654 = vlaneseq
  %v655 = vshrl.u32 %v654, 7
  %v656 = vsub.s32 0, %v655
  %v657 = vrot.slane %v652, %v656
  %v658 = vlaneseq
  %v659 = vshrl.u32 %v658, 7
  %v660 = vsub.s32 1, %v659
  %v661 = vrot.slane %v652, %v660
  %v662 = vlaneseq
  %v663 = vshrl.u32 %v662, 7
  %v664 = vsub.s32 2, %v663
  %v665 = vrot.slane %v652, %v664
  %v669 = vadd.f32 %v501, %v657
  %v670 = vadd.f32 %v503, %v661
  %v671 = vadd.f32 %v614, %v665
  %v672 = vadd.f32 %v507, %v657
  %v673 = vadd.f32 %v509, %v661
  %v674 = vadd.f32 %v619, %v665
  %v675 = vadd.f32 %v513, %v657
  %v676 = vadd.f32 %v515, %v661
  %v677 = vadd.f32 %v624, %v665
  %v678 = vadd.f32 %v519, %v657
  %v679 = vadd.f32 %v521, %v661
  %v680 = vadd.f32 %v629, %v665
  %v681 = vadd.f32 %v525, %v657
  %v682 = vadd.f32 %v527, %v661
  %v683 = vadd.f32 %v634, %v665
  %v684 = vadd.f32 %v531, %v657
  %v685 = vadd.f32 %v533, %v661
  %v686 = vadd.f32 %v639, %v665
  %v687 = vadd.f32 %v537, %v657
  %v688 = vadd.f32 %v539, %v661
  %v689 = vadd.f32 %v644, %v665
  %v690 = vadd.f32 %v543, %v657
  %v691 = vadd.f32 %v545, %v661
  %v692 = vadd.f32 %v649, %v665
  %693 = vst [vmem:[#allocation3] sm:$0xff] %v669
  %694 = vst [vmem:[#allocation3 + $0x8] sm:$0xff] %v670
  %695 = vst [vmem:[#allocation3 + $0x10] sm:$0xff] %v671
  %696 = vst [vmem:[#allocation3 + $0x18] sm:$0xff] %v672
  %697 = vst [vmem:[#allocation3 + $0x20] sm:$0xff] %v673
  %698 = vst [vmem:[#allocation3 + $0x28] sm:$0xff] %v674
  %699 = vst [vmem:[#allocation3 + $0x30] sm:$0xff] %v675
  %700 = vst [vmem:[#allocation3 + $0x38] sm:$0xff] %v676
  %701 = vst [vmem:[#allocation3 + $0x40] sm:$0xff] %v677
  %702 = vst [vmem:[#allocation3 + $0x48] sm:$0xff] %v678
  %703 = vst [vmem:[#allocation3 + $0x50] sm:$0xff] %v679
  %704 = vst [vmem:[#allocation3 + $0x58] sm:$0xff] %v680
  %705 = vst [vmem:[#allocation3 + $0x60] sm:$0xff] %v681
  %706 = vst [vmem:[#allocation3 + $0x68] sm:$0xff] %v682
  %707 = vst [vmem:[#allocation3 + $0x70] sm:$0xff] %v683
  %708 = vst [vmem:[#allocation3 + $0x78] sm:$0xff] %v684
  %709 = vst [vmem:[#allocation3 + $0x80] sm:$0xff] %v685
  %710 = vst [vmem:[#allocation3 + $0x88] sm:$0xff] %v686
  %711 = vst [vmem:[#allocation3 + $0x90] sm:$0xff] %v687
  %712 = vst [vmem:[#allocation3 + $0x98] sm:$0xff] %v688
  %713 = vst [vmem:[#allocation3 + $0xa0] sm:$0xff] %v689
  %714 = vst [vmem:[#allocation3 + $0xa8] sm:$0xff] %v690
  %715 = vst [vmem:[#allocation3 + $0xb0] sm:$0xff] %v691
  %716 = vst [vmem:[#allocation3 + $0xb8] sm:$0xff] %v692
  %v717 = vld [vmem:[%s79] sm:$0xff]
  %v718 = vld [vmem:[%s79 + $0x8] sm:$0xff]
  %v719 = vld [vmem:[%s79 + $0x10] sm:$0xff]
  %v720 = vld [vmem:[%s79 + $0x18] sm:$0xff]
  %v721 = vld [vmem:[%s79 + $0x20] sm:$0xff]
  %v722 = vld [vmem:[%s79 + $0x28] sm:$0xff]
  %v723 = vld [vmem:[%s79 + $0x30] sm:$0xff]
  %v724 = vld [vmem:[%s79 + $0x38] sm:$0xff]
  %v725 = vld [vmem:[%s5] sm:$0xff]
  %v726 = vld [vmem:[%s5 + $0x8] sm:$0xff]
  %v727 = vld [vmem:[%s5 + $0x10] sm:$0xff]
  %v728 = vld [vmem:[%s5 + $0x18] sm:$0xff]
  %v729 = vld [vmem:[%s5 + $0x20] sm:$0xff]
  %v730 = vld [vmem:[%s5 + $0x28] sm:$0xff]
  %v731 = vld [vmem:[%s5 + $0x30] sm:$0xff]
  %v732 = vld [vmem:[%s5 + $0x38] sm:$0xff]
  %v733 = vld [vmem:[%s5 + $0x40] sm:$0xff]
  %v734 = vld [vmem:[%s5 + $0x48] sm:$0xff]
  %v735 = vld [vmem:[%s5 + $0x50] sm:$0xff]
  %v736 = vld [vmem:[%s5 + $0x58] sm:$0xff]
  %v737 = vld [vmem:[%s5 + $0x60] sm:$0xff]
  %v738 = vld [vmem:[%s5 + $0x68] sm:$0xff]
  %v739 = vld [vmem:[%s5 + $0x70] sm:$0xff]
  %v740 = vld [vmem:[%s5 + $0x78] sm:$0xff]
  %v741 = vld [vmem:[%s5 + $0x80] sm:$0xff]
  %v742 = vld [vmem:[%s5 + $0x88] sm:$0xff]
  %v743 = vld [vmem:[%s5 + $0x90] sm:$0xff]
  %v744 = vld [vmem:[%s5 + $0x98] sm:$0xff]
  %v745 = vld [vmem:[%s5 + $0xa0] sm:$0xff]
  %v746 = vld [vmem:[%s5 + $0xa8] sm:$0xff]
  %v747 = vld [vmem:[%s5 + $0xb0] sm:$0xff]
  %v748 = vld [vmem:[%s5 + $0xb8] sm:$0xff]
  %v749 = vld [vmem:[%s5 + $0xc0] sm:$0xff]
  %v750 = vld [vmem:[%s5 + $0xc8] sm:$0xff]
  %v751 = vld [vmem:[%s5 + $0xd0] sm:$0xff]
  %v752 = vld [vmem:[%s5 + $0xd8] sm:$0xff]
  %v753 = vld [vmem:[%s5 + $0xe0] sm:$0xff]
  %v754 = vld [vmem:[%s5 + $0xe8] sm:$0xff]
  %v755 = vld [vmem:[%s5 + $0xf0] sm:$0xff]
  %v756 = vld [vmem:[%s5 + $0xf8] sm:$0xff]
  %v757 = vld [vmem:[%s5 + $0x100] sm:$0xff]
  %v758 = vld [vmem:[%s5 + $0x108] sm:$0xff]
  %v759 = vld [vmem:[%s5 + $0x110] sm:$0xff]
  %v760 = vld [vmem:[%s5 + $0x118] sm:$0xff]
  %v761 = vld [vmem:[%s5 + $0x120] sm:$0xff]
  %v762 = vld [vmem:[%s5 + $0x128] sm:$0xff]
  %v763 = vld [vmem:[%s5 + $0x130] sm:$0xff]
  %v764 = vld [vmem:[%s5 + $0x138] sm:$0xff]
  %v765 = vld [vmem:[%s5 + $0x140] sm:$0xff]
  %v766 = vld [vmem:[%s5 + $0x148] sm:$0xff]
  %v767 = vld [vmem:[%s5 + $0x150] sm:$0xff]
  %v768 = vld [vmem:[%s5 + $0x158] sm:$0xff]
  %v769 = vld [vmem:[%s5 + $0x160] sm:$0xff]
  %v770 = vld [vmem:[%s5 + $0x168] sm:$0xff]
  %v771 = vld [vmem:[%s5 + $0x170] sm:$0xff]
  %v772 = vld [vmem:[%s5 + $0x178] sm:$0xff]
  %v773 = vld [vmem:[%s87] sm:$0xff]
  %v774 = vld [vmem:[%s87 + $0x8] sm:$0xff]
  %v775 = vld [vmem:[%s87 + $0x10] sm:$0xff]
  %v776 = vld [vmem:[%s87 + $0x18] sm:$0xff]
  %v777 = vld [vmem:[%s87 + $0x20] sm:$0xff]
  %v778 = vld [vmem:[%s87 + $0x28] sm:$0xff]
  %v779 = vld [vmem:[%s87 + $0x30] sm:$0xff]
  %v780 = vld [vmem:[%s87 + $0x38] sm:$0xff]
  %v781 = vld [vmem:[%s5 + $0x180] sm:$0xff]
  %v782 = vld [vmem:[%s5 + $0x188] sm:$0xff]
  %v783 = vld [vmem:[%s5 + $0x190] sm:$0xff]
  %v784 = vld [vmem:[%s5 + $0x198] sm:$0xff]
  %v785 = vld [vmem:[%s5 + $0x1a0] sm:$0xff]
  %v786 = vld [vmem:[%s5 + $0x1a8] sm:$0xff]
  %v787 = vld [vmem:[%s5 + $0x1b0] sm:$0xff]
  %v788 = vld [vmem:[%s5 + $0x1b8] sm:$0xff]
  %v789 = vld [vmem:[%s5 + $0x1c0] sm:$0xff]
  %v790 = vld [vmem:[%s5 + $0x1c8] sm:$0xff]
  %v791 = vld [vmem:[%s5 + $0x1d0] sm:$0xff]
  %v792 = vld [vmem:[%s5 + $0x1d8] sm:$0xff]
  %v793 = vld [vmem:[%s5 + $0x1e0] sm:$0xff]
  %v794 = vld [vmem:[%s5 + $0x1e8] sm:$0xff]
  %v795 = vld [vmem:[%s5 + $0x1f0] sm:$0xff]
  %v796 = vld [vmem:[%s5 + $0x1f8] sm:$0xff]
  %v797 = vld [vmem:[%s5 + $0x200] sm:$0xff]
  %v798 = vld [vmem:[%s5 + $0x208] sm:$0xff]
  %v799 = vld [vmem:[%s5 + $0x210] sm:$0xff]
  %v800 = vld [vmem:[%s5 + $0x218] sm:$0xff]
  %v801 = vld [vmem:[%s5 + $0x220] sm:$0xff]
  %v802 = vld [vmem:[%s5 + $0x228] sm:$0xff]
  %v803 = vld [vmem:[%s5 + $0x230] sm:$0xff]
  %v804 = vld [vmem:[%s5 + $0x238] sm:$0xff]
  %v805 = vld [vmem:[%s5 + $0x240] sm:$0xff]
  %v806 = vld [vmem:[%s5 + $0x248] sm:$0xff]
  %v807 = vld [vmem:[%s5 + $0x250] sm:$0xff]
  %v808 = vld [vmem:[%s5 + $0x258] sm:$0xff]
  %v809 = vld [vmem:[%s5 + $0x260] sm:$0xff]
  %v810 = vld [vmem:[%s5 + $0x268] sm:$0xff]
  %v811 = vld [vmem:[%s5 + $0x270] sm:$0xff]
  %v812 = vld [vmem:[%s5 + $0x278] sm:$0xff]
  %v813 = vld [vmem:[%s5 + $0x280] sm:$0xff]
  %v814 = vld [vmem:[%s5 + $0x288] sm:$0xff]
  %v815 = vld [vmem:[%s5 + $0x290] sm:$0xff]
  %v816 = vld [vmem:[%s5 + $0x298] sm:$0xff]
  %v817 = vld [vmem:[%s5 + $0x2a0] sm:$0xff]
  %v818 = vld [vmem:[%s5 + $0x2a8] sm:$0xff]
  %v819 = vld [vmem:[%s5 + $0x2b0] sm:$0xff]
  %v820 = vld [vmem:[%s5 + $0x2b8] sm:$0xff]
  %v821 = vld [vmem:[%s5 + $0x2c0] sm:$0xff]
  %v822 = vld [vmem:[%s5 + $0x2c8] sm:$0xff]
  %v823 = vld [vmem:[%s5 + $0x2d0] sm:$0xff]
  %v824 = vld [vmem:[%s5 + $0x2d8] sm:$0xff]
  %v825 = vld [vmem:[%s5 + $0x2e0] sm:$0xff]
  %v826 = vld [vmem:[%s5 + $0x2e8] sm:$0xff]
  %v827 = vld [vmem:[%s5 + $0x2f0] sm:$0xff]
  %v828 = vld [vmem:[%s5 + $0x2f8] sm:$0xff]
  %829 = vmatprep.subr.mxu0 %v782
  %830 = vmatpush1.msra.mxu0 %v781
  %831 = vmatprep.subr.mxu0 %v785
  %832 = vmatpush1.msra.mxu0 %v784
  %833 = vmatprep.subr.mxu0 %v788
  %834 = vmatpush1.msra.mxu0 %v787
  %835 = vmatprep.subr.mxu0 %v791
  %836 = vmatpush1.msra.mxu0 %v790
  %837 = vmatprep.subr.mxu0 %v794
  %838 = vmatpush1.msra.mxu0 %v793
  %839 = vmatprep.subr.mxu0 %v797
  %840 = vmatpush1.msra.mxu0 %v796
  %841 = vmatprep.subr.mxu0 %v800
  %842 = vmatpush1.msra.mxu0 %v799
  %843 = vmatprep.subr.mxu0 %v803
  %844 = vmatpush1.msra.mxu0 %v802
  %845 = vmatprep.subr.mxu0 %v806
  %846 = vmatpush1.msra.mxu0 %v805
  %847 = vmatprep.subr.mxu0 %v809
  %848 = vmatpush1.msra.mxu0 %v808
  %849 = vmatprep.subr.mxu0 %v812
  %850 = vmatpush1.msra.mxu0 %v811
  %851 = vmatprep.subr.mxu0 %v815
  %852 = vmatpush1.msra.mxu0 %v814
  %853 = vmatprep.subr.mxu0 %v818
  %854 = vmatpush1.msra.mxu0 %v817
  %855 = vmatprep.subr.mxu0 %v821
  %856 = vmatpush1.msra.mxu0 %v820
  %857 = vmatprep.subr.mxu0 %v824
  %858 = vmatpush1.msra.mxu0 %v823
  %859 = vmatprep.subr.mxu0 %v827
  %860 = vmatpush1.msra.mxu0 %v826
  %861 = vmatprep.subr.mxu0 0.0
  %862 = vmatpush1.msra.mxu0 0.0
  %863 = vmatprep.subr.mxu0 0.0
  %864 = vmatpush1.msra.mxu0 0.0
  %865 = vmatprep.subr.mxu0 0.0
  %866 = vmatpush1.msra.mxu0 0.0
  %867 = vmatprep.subr.mxu0 0.0
  %868 = vmatpush1.msra.mxu0 0.0
  %869 = vmatprep.subr.mxu0 0.0
  %870 = vmatpush1.msra.mxu0 0.0
  %871 = vmatprep.subr.mxu0 0.0
  %872 = vmatpush1.msra.mxu0 0.0
  %873 = vmatprep.subr.mxu0 0.0
  %874 = vmatpush1.msra.mxu0 0.0
  %875 = vmatprep.subr.mxu0 0.0
  %876 = vmatpush1.msra.mxu0 0.0
  %877 = vmatprep.subr.mxu0 0.0
  %878 = vmatpush1.msra.mxu0 0.0
  %879 = vmatprep.subr.mxu0 0.0
  %880 = vmatpush1.msra.mxu0 0.0
  %881 = vmatprep.subr.mxu0 0.0
  %882 = vmatpush1.msra.mxu0 0.0
  %883 = vmatprep.subr.mxu0 0.0
  %884 = vmatpush1.msra.mxu0 0.0
  %885 = vmatprep.subr.mxu0 0.0
  %886 = vmatpush1.msra.mxu0 0.0
  %887 = vmatprep.subr.mxu0 0.0
  %888 = vmatpush1.msra.mxu0 0.0
  %889 = vmatprep.subr.mxu0 0.0
  %890 = vmatpush1.msra.mxu0 0.0
  %891 = vmatprep.subr.mxu0 0.0
  %892 = vmatpush1.msra.mxu0 0.0
  %893 = vmatprep.mubr.f32.mxu0 0.0
  %894 = vmatmul.mubr.f32.gmra.mrb[0].mxu0 %v773
  %v895 = vpop.f32.mrb[0].mxu0
  %v896 = vadd.f32 0.0, %v895
  %v897 = vpop.f32.mrb[0].mxu0
  %v898 = vadd.f32 0.0, %v897
  %899 = vmatprep.mubr.f32.mxu0 0.0
  %900 = vmatmul.mubr.f32.gmra.mrb[0].mxu0 %v774
  %v901 = vpop.f32.mrb[0].mxu0
  %v902 = vadd.f32 0.0, %v901
  %v903 = vpop.f32.mrb[0].mxu0
  %v904 = vadd.f32 0.0, %v903
  %905 = vmatprep.mubr.f32.mxu0 0.0
  %906 = vmatmul.mubr.f32.gmra.mrb[0].mxu0 %v775
  %v907 = vpop.f32.mrb[0].mxu0
  %v908 = vadd.f32 0.0, %v907
  %v909 = vpop.f32.mrb[0].mxu0
  %v910 = vadd.f32 0.0, %v909
  %911 = vmatprep.mubr.f32.mxu0 0.0
  %912 = vmatmul.mubr.f32.gmra.mrb[0].mxu0 %v776
  %v913 = vpop.f32.mrb[0].mxu0
  %v914 = vadd.f32 0.0, %v913
  %v915 = vpop.f32.mrb[0].mxu0
  %v916 = vadd.f32 0.0, %v915
  %917 = vmatprep.mubr.f32.mxu0 0.0
  %918 = vmatmul.mubr.f32.gmra.mrb[0].mxu0 %v777
  %v919 = vpop.f32.mrb[0].mxu0
  %v920 = vadd.f32 0.0, %v919
  %v921 = vpop.f32.mrb[0].mxu0
  %v922 = vadd.f32 0.0, %v921
  %923 = vmatprep.mubr.f32.mxu0 0.0
  %924 = vmatmul.mubr.f32.gmra.mrb[0].mxu0 %v778
  %v925 = vpop.f32.mrb[0].mxu0
  %v926 = vadd.f32 0.0, %v925
  %v927 = vpop.f32.mrb[0].mxu0
  %v928 = vadd.f32 0.0, %v927
  %929 = vmatprep.mubr.f32.mxu0 0.0
  %930 = vmatmul.mubr.f32.gmra.mrb[0].mxu0 %v779
  %v931 = vpop.f32.mrb[0].mxu0
  %v932 = vadd.f32 0.0, %v931
  %v933 = vpop.f32.mrb[0].mxu0
  %v934 = vadd.f32 0.0, %v933
  %935 = vmatprep.mubr.f32.mxu0 0.0
  %936 = vmatmul.mubr.f32.gmra.mrb[0].mxu0 %v780
  %v937 = vpop.f32.mrb[0].mxu0
  %v938 = vadd.f32 0.0, %v937
  %v939 = vpop.f32.mrb[0].mxu0
  %v940 = vadd.f32 0.0, %v939
  %941 = vdwg.mxu0
  %942 = vmatprep.subr.mxu0 0.0
  %943 = vmatpush1.msra.mxu0 %v783
  %944 = vmatprep.subr.mxu0 0.0
  %945 = vmatpush1.msra.mxu0 %v786
  %946 = vmatprep.subr.mxu0 0.0
  %947 = vmatpush1.msra.mxu0 %v789
  %948 = vmatprep.subr.mxu0 0.0
  %949 = vmatpush1.msra.mxu0 %v792
  %950 = vmatprep.subr.mxu0 0.0
  %951 = vmatpush1.msra.mxu0 %v795
  %952 = vmatprep.subr.mxu0 0.0
  %953 = vmatpush1.msra.mxu0 %v798
  %954 = vmatprep.subr.mxu0 0.0
  %955 = vmatpush1.msra.mxu0 %v801
  %956 = vmatprep.subr.mxu0 0.0
  %957 = vmatpush1.msra.mxu0 %v804
  %958 = vmatprep.subr.mxu0 0.0
  %959 = vmatpush1.msra.mxu0 %v807
  %960 = vmatprep.subr.mxu0 0.0
  %961 = vmatpush1.msra.mxu0 %v810
  %962 = vmatprep.subr.mxu0 0.0
  %963 = vmatpush1.msra.mxu0 %v813
  %964 = vmatprep.subr.mxu0 0.0
  %965 = vmatpush1.msra.mxu0 %v816
  %966 = vmatprep.subr.mxu0 0.0
  %967 = vmatpush1.msra.mxu0 %v819
  %968 = vmatprep.subr.mxu0 0.0
  %969 = vmatpush1.msra.mxu0 %v822
  %970 = vmatprep.subr.mxu0 0.0
  %971 = vmatpush1.msra.mxu0 %v825
  %972 = vmatprep.subr.mxu0 0.0
  %973 = vmatpush1.msra.mxu0 %v828
  %974 = vmatprep.subr.mxu0 0.0
  %975 = vmatpush1.msra.mxu0 0.0
  %976 = vmatprep.subr.mxu0 0.0
  %977 = vmatpush1.msra.mxu0 0.0
  %978 = vmatprep.subr.mxu0 0.0
  %979 = vmatpush1.msra.mxu0 0.0
  %980 = vmatprep.subr.mxu0 0.0
  %981 = vmatpush1.msra.mxu0 0.0
  %982 = vmatprep.subr.mxu0 0.0
  %983 = vmatpush1.msra.mxu0 0.0
  %984 = vmatprep.subr.mxu0 0.0
  %985 = vmatpush1.msra.mxu0 0.0
  %986 = vmatprep.subr.mxu0 0.0
  %987 = vmatpush1.msra.mxu0 0.0
  %988 = vmatprep.subr.mxu0 0.0
  %989 = vmatpush1.msra.mxu0 0.0
  %990 = vmatprep.subr.mxu0 0.0
  %991 = vmatpush1.msra.mxu0 0.0
  %992 = vmatprep.subr.mxu0 0.0
  %993 = vmatpush1.msra.mxu0 0.0
  %994 = vmatprep.subr.mxu0 0.0
  %995 = vmatpush1.msra.mxu0 0.0
  %996 = vmatprep.subr.mxu0 0.0
  %997 = vmatpush1.msra.mxu0 0.0
  %998 = vmatprep.subr.mxu0 0.0
  %999 = vmatpush1.msra.mxu0 0.0
  %1000 = vmatprep.subr.mxu0 0.0
  %1001 = vmatpush1.msra.mxu0 0.0
  %1002 = vmatprep.subr.mxu0 0.0
  %1003 = vmatpush1.msra.mxu0 0.0
  %1004 = vmatprep.subr.mxu0 0.0
  %1005 = vmatpush1.msra.mxu0 0.0
  %1006 = vmatprep.mubr.f32.mxu0 0.0
  %1007 = vmatmul.mubr.f32.gmra.mrb[0].mxu0 %v773
  %v1008 = vpop.f32.mrb[0].mxu0
  %v1009 = vadd.f32 0.0, %v1008
  %v1010 = vpop.f32.mrb[0].mxu0
  %1011 = vmatprep.mubr.f32.mxu0 0.0
  %1012 = vmatmul.mubr.f32.gmra.mrb[0].mxu0 %v774
  %v1013 = vpop.f32.mrb[0].mxu0
  %v1014 = vadd.f32 0.0, %v1013
  %v1015 = vpop.f32.mrb[0].mxu0
  %1016 = vmatprep.mubr.f32.mxu0 0.0
  %1017 = vmatmul.mubr.f32.gmra.mrb[0].mxu0 %v775
  %v1018 = vpop.f32.mrb[0].mxu0
  %v1019 = vadd.f32 0.0, %v1018
  %v1020 = vpop.f32.mrb[0].mxu0
  %1021 = vmatprep.mubr.f32.mxu0 0.0
  %1022 = vmatmul.mubr.f32.gmra.mrb[0].mxu0 %v776
  %v1023 = vpop.f32.mrb[0].mxu0
  %v1024 = vadd.f32 0.0, %v1023
  %v1025 = vpop.f32.mrb[0].mxu0
  %1026 = vmatprep.mubr.f32.mxu0 0.0
  %1027 = vmatmul.mubr.f32.gmra.mrb[0].mxu0 %v777
  %v1028 = vpop.f32.mrb[0].mxu0
  %v1029 = vadd.f32 0.0, %v1028
  %v1030 = vpop.f32.mrb[0].mxu0
  %1031 = vmatprep.mubr.f32.mxu0 0.0
  %1032 = vmatmul.mubr.f32.gmra.mrb[0].mxu0 %v778
  %v1033 = vpop.f32.mrb[0].mxu0
  %v1034 = vadd.f32 0.0, %v1033
  %v1035 = vpop.f32.mrb[0].mxu0
  %1036 = vmatprep.mubr.f32.mxu0 0.0
  %1037 = vmatmul.mubr.f32.gmra.mrb[0].mxu0 %v779
  %v1038 = vpop.f32.mrb[0].mxu0
  %v1039 = vadd.f32 0.0, %v1038
  %v1040 = vpop.f32.mrb[0].mxu0
  %1041 = vmatprep.mubr.f32.mxu0 0.0
  %1042 = vmatmul.mubr.f32.gmra.mrb[0].mxu0 %v780
  %v1043 = vpop.f32.mrb[0].mxu0
  %v1044 = vadd.f32 0.0, %v1043
  %v1045 = vpop.f32.mrb[0].mxu0
  %1046 = vdwg.mxu0
  %1047 = vmatprep.subr.mxu0 %v726
  %1048 = vmatpush1.msra.mxu0 %v725
  %1049 = vmatprep.subr.mxu0 %v729
  %1050 = vmatpush1.msra.mxu0 %v728
  %1051 = vmatprep.subr.mxu0 %v732
  %1052 = vmatpush1.msra.mxu0 %v731
  %1053 = vmatprep.subr.mxu0 %v735
  %1054 = vmatpush1.msra.mxu0 %v734
  %1055 = vmatprep.subr.mxu0 %v738
  %1056 = vmatpush1.msra.mxu0 %v737
  %1057 = vmatprep.subr.mxu0 %v741
  %1058 = vmatpush1.msra.mxu0 %v740
  %1059 = vmatprep.subr.mxu0 %v744
  %1060 = vmatpush1.msra.mxu0 %v743
  %1061 = vmatprep.subr.mxu0 %v747
  %1062 = vmatpush1.msra.mxu0 %v746
  %1063 = vmatprep.subr.mxu0 %v750
  %1064 = vmatpush1.msra.mxu0 %v749
  %1065 = vmatprep.subr.mxu0 %v753
  %1066 = vmatpush1.msra.mxu0 %v752
  %1067 = vmatprep.subr.mxu0 %v756
  %1068 = vmatpush1.msra.mxu0 %v755
  %1069 = vmatprep.subr.mxu0 %v759
  %1070 = vmatpush1.msra.mxu0 %v758
  %1071 = vmatprep.subr.mxu0 %v762
  %1072 = vmatpush1.msra.mxu0 %v761
  %1073 = vmatprep.subr.mxu0 %v765
  %1074 = vmatpush1.msra.mxu0 %v764
  %1075 = vmatprep.subr.mxu0 %v768
  %1076 = vmatpush1.msra.mxu0 %v767
  %1077 = vmatprep.subr.mxu0 %v771
  %1078 = vmatpush1.msra.mxu0 %v770
  %1079 = vmatprep.subr.mxu0 0.0
  %1080 = vmatpush1.msra.mxu0 0.0
  %1081 = vmatprep.subr.mxu0 0.0
  %1082 = vmatpush1.msra.mxu0 0.0
  %1083 = vmatprep.subr.mxu0 0.0
  %1084 = vmatpush1.msra.mxu0 0.0
  %1085 = vmatprep.subr.mxu0 0.0
  %1086 = vmatpush1.msra.mxu0 0.0
  %1087 = vmatprep.subr.mxu0 0.0
  %1088 = vmatpush1.msra.mxu0 0.0
  %1089 = vmatprep.subr.mxu0 0.0
  %1090 = vmatpush1.msra.mxu0 0.0
  %1091 = vmatprep.subr.mxu0 0.0
  %1092 = vmatpush1.msra.mxu0 0.0
  %1093 = vmatprep.subr.mxu0 0.0
  %1094 = vmatpush1.msra.mxu0 0.0
  %1095 = vmatprep.subr.mxu0 0.0
  %1096 = vmatpush1.msra.mxu0 0.0
  %1097 = vmatprep.subr.mxu0 0.0
  %1098 = vmatpush1.msra.mxu0 0.0
  %1099 = vmatprep.subr.mxu0 0.0
  %1100 = vmatpush1.msra.mxu0 0.0
  %1101 = vmatprep.subr.mxu0 0.0
  %1102 = vmatpush1.msra.mxu0 0.0
  %1103 = vmatprep.subr.mxu0 0.0
  %1104 = vmatpush1.msra.mxu0 0.0
  %1105 = vmatprep.subr.mxu0 0.0
  %1106 = vmatpush1.msra.mxu0 0.0
  %1107 = vmatprep.subr.mxu0 0.0
  %1108 = vmatpush1.msra.mxu0 0.0
  %1109 = vmatprep.subr.mxu0 0.0
  %1110 = vmatpush1.msra.mxu0 0.0
  %1111 = vmatprep.mubr.f32.mxu0 0.0
  %1112 = vmatmul.mubr.f32.gmra.mrb[0].mxu0 %v717
  %v1113 = vpop.f32.mrb[0].mxu0
  %v1114 = vadd.f32 %v896, %v1113
  %v1115 = vpop.f32.mrb[0].mxu0
  %v1116 = vadd.f32 %v898, %v1115
  %1117 = vmatprep.mubr.f32.mxu0 0.0
  %1118 = vmatmul.mubr.f32.gmra.mrb[0].mxu0 %v718
  %v1119 = vpop.f32.mrb[0].mxu0
  %v1120 = vadd.f32 %v902, %v1119
  %v1121 = vpop.f32.mrb[0].mxu0
  %v1122 = vadd.f32 %v904, %v1121
  %1123 = vmatprep.mubr.f32.mxu0 0.0
  %1124 = vmatmul.mubr.f32.gmra.mrb[0].mxu0 %v719
  %v1125 = vpop.f32.mrb[0].mxu0
  %v1126 = vadd.f32 %v908, %v1125
  %v1127 = vpop.f32.mrb[0].mxu0
  %v1128 = vadd.f32 %v910, %v1127
  %1129 = vmatprep.mubr.f32.mxu0 0.0
  %1130 = vmatmul.mubr.f32.gmra.mrb[0].mxu0 %v720
  %v1131 = vpop.f32.mrb[0].mxu0
  %v1132 = vadd.f32 %v914, %v1131
  %v1133 = vpop.f32.mrb[0].mxu0
  %v1134 = vadd.f32 %v916, %v1133
  %1135 = vmatprep.mubr.f32.mxu0 0.0
  %1136 = vmatmul.mubr.f32.gmra.mrb[0].mxu0 %v721
  %v1137 = vpop.f32.mrb[0].mxu0
  %v1138 = vadd.f32 %v920, %v1137
  %v1139 = vpop.f32.mrb[0].mxu0
  %v1140 = vadd.f32 %v922, %v1139
  %1141 = vmatprep.mubr.f32.mxu0 0.0
  %1142 = vmatmul.mubr.f32.gmra.mrb[0].mxu0 %v722
  %v1143 = vpop.f32.mrb[0].mxu0
  %v1144 = vadd.f32 %v926, %v1143
  %v1145 = vpop.f32.mrb[0].mxu0
  %v1146 = vadd.f32 %v928, %v1145
  %1147 = vmatprep.mubr.f32.mxu0 0.0
  %1148 = vmatmul.mubr.f32.gmra.mrb[0].mxu0 %v723
  %v1149 = vpop.f32.mrb[0].mxu0
  %v1150 = vadd.f32 %v932, %v1149
  %v1151 = vpop.f32.mrb[0].mxu0
  %v1152 = vadd.f32 %v934, %v1151
  %1153 = vmatprep.mubr.f32.mxu0 0.0
  %1154 = vmatmul.mubr.f32.gmra.mrb[0].mxu0 %v724
  %v1155 = vpop.f32.mrb[0].mxu0
  %v1156 = vadd.f32 %v938, %v1155
  %v1157 = vpop.f32.mrb[0].mxu0
  %v1158 = vadd.f32 %v940, %v1157
  %1159 = vdwg.mxu0
  %1160 = vmatprep.subr.mxu0 0.0
  %1161 = vmatpush1.msra.mxu0 %v727
  %1162 = vmatprep.subr.mxu0 0.0
  %1163 = vmatpush1.msra.mxu0 %v730
  %1164 = vmatprep.subr.mxu0 0.0
  %1165 = vmatpush1.msra.mxu0 %v733
  %1166 = vmatprep.subr.mxu0 0.0
  %1167 = vmatpush1.msra.mxu0 %v736
  %1168 = vmatprep.subr.mxu0 0.0
  %1169 = vmatpush1.msra.mxu0 %v739
  %1170 = vmatprep.subr.mxu0 0.0
  %1171 = vmatpush1.msra.mxu0 %v742
  %1172 = vmatprep.subr.mxu0 0.0
  %1173 = vmatpush1.msra.mxu0 %v745
  %1174 = vmatprep.subr.mxu0 0.0
  %1175 = vmatpush1.msra.mxu0 %v748
  %1176 = vmatprep.subr.mxu0 0.0
  %1177 = vmatpush1.msra.mxu0 %v751
  %1178 = vmatprep.subr.mxu0 0.0
  %1179 = vmatpush1.msra.mxu0 %v754
  %1180 = vmatprep.subr.mxu0 0.0
  %1181 = vmatpush1.msra.mxu0 %v757
  %1182 = vmatprep.subr.mxu0 0.0
  %1183 = vmatpush1.msra.mxu0 %v760
  %1184 = vmatprep.subr.mxu0 0.0
  %1185 = vmatpush1.msra.mxu0 %v763
  %1186 = vmatprep.subr.mxu0 0.0
  %1187 = vmatpush1.msra.mxu0 %v766
  %1188 = vmatprep.subr.mxu0 0.0
  %1189 = vmatpush1.msra.mxu0 %v769
  %1190 = vmatprep.subr.mxu0 0.0
  %1191 = vmatpush1.msra.mxu0 %v772
  %1192 = vmatprep.subr.mxu0 0.0
  %1193 = vmatpush1.msra.mxu0 0.0
  %1194 = vmatprep.subr.mxu0 0.0
  %1195 = vmatpush1.msra.mxu0 0.0
  %1196 = vmatprep.subr.mxu0 0.0
  %1197 = vmatpush1.msra.mxu0 0.0
  %1198 = vmatprep.subr.mxu0 0.0
  %1199 = vmatpush1.msra.mxu0 0.0
  %1200 = vmatprep.subr.mxu0 0.0
  %1201 = vmatpush1.msra.mxu0 0.0
  %1202 = vmatprep.subr.mxu0 0.0
  %1203 = vmatpush1.msra.mxu0 0.0
  %1204 = vmatprep.subr.mxu0 0.0
  %1205 = vmatpush1.msra.mxu0 0.0
  %1206 = vmatprep.subr.mxu0 0.0
  %1207 = vmatpush1.msra.mxu0 0.0
  %1208 = vmatprep.subr.mxu0 0.0
  %1209 = vmatpush1.msra.mxu0 0.0
  %1210 = vmatprep.subr.mxu0 0.0
  %1211 = vmatpush1.msra.mxu0 0.0
  %1212 = vmatprep.subr.mxu0 0.0
  %1213 = vmatpush1.msra.mxu0 0.0
  %1214 = vmatprep.subr.mxu0 0.0
  %1215 = vmatpush1.msra.mxu0 0.0
  %1216 = vmatprep.subr.mxu0 0.0
  %1217 = vmatpush1.msra.mxu0 0.0
  %1218 = vmatprep.subr.mxu0 0.0
  %1219 = vmatpush1.msra.mxu0 0.0
  %1220 = vmatprep.subr.mxu0 0.0
  %1221 = vmatpush1.msra.mxu0 0.0
  %1222 = vmatprep.subr.mxu0 0.0
  %1223 = vmatpush1.msra.mxu0 0.0
  %1224 = vmatprep.mubr.f32.mxu0 0.0
  %1225 = vmatmul.mubr.f32.gmra.mrb[0].mxu0 %v717
  %v1226 = vpop.f32.mrb[0].mxu0
  %v1227 = vadd.f32 %v1009, %v1226
  %v1228 = vpop.f32.mrb[0].mxu0
  %1229 = vmatprep.mubr.f32.mxu0 0.0
  %1230 = vmatmul.mubr.f32.gmra.mrb[0].mxu0 %v718
  %v1231 = vpop.f32.mrb[0].mxu0
  %v1232 = vadd.f32 %v1014, %v1231
  %v1233 = vpop.f32.mrb[0].mxu0
  %1234 = vmatprep.mubr.f32.mxu0 0.0
  %1235 = vmatmul.mubr.f32.gmra.mrb[0].mxu0 %v719
  %v1236 = vpop.f32.mrb[0].mxu0
  %v1237 = vadd.f32 %v1019, %v1236
  %v1238 = vpop.f32.mrb[0].mxu0
  %1239 = vmatprep.mubr.f32.mxu0 0.0
  %1240 = vmatmul.mubr.f32.gmra.mrb[0].mxu0 %v720
  %v1241 = vpop.f32.mrb[0].mxu0
  %v1242 = vadd.f32 %v1024, %v1241
  %v1243 = vpop.f32.mrb[0].mxu0
  %1244 = vmatprep.mubr.f32.mxu0 0.0
  %1245 = vmatmul.mubr.f32.gmra.mrb[0].mxu0 %v721
  %v1246 = vpop.f32.mrb[0].mxu0
  %v1247 = vadd.f32 %v1029, %v1246
  %v1248 = vpop.f32.mrb[0].mxu0
  %1249 = vmatprep.mubr.f32.mxu0 0.0
  %1250 = vmatmul.mubr.f32.gmra.mrb[0].mxu0 %v722
  %v1251 = vpop.f32.mrb[0].mxu0
  %v1252 = vadd.f32 %v1034, %v1251
  %v1253 = vpop.f32.mrb[0].mxu0
  %1254 = vmatprep.mubr.f32.mxu0 0.0
  %1255 = vmatmul.mubr.f32.gmra.mrb[0].mxu0 %v723
  %v1256 = vpop.f32.mrb[0].mxu0
  %v1257 = vadd.f32 %v1039, %v1256
  %v1258 = vpop.f32.mrb[0].mxu0
  %1259 = vmatprep.mubr.f32.mxu0 0.0
  %1260 = vmatmul.mubr.f32.gmra.mrb[0].mxu0 %v724
  %v1261 = vpop.f32.mrb[0].mxu0
  %v1262 = vadd.f32 %v1044, %v1261
  %v1263 = vpop.f32.mrb[0].mxu0
  %1264 = vdwg.mxu0
  %v1265 = vld [vmem:[%s8] sm:$0x7]
  %v1267 = vlaneseq
  %v1268 = vshrl.u32 %v1267, 7
  %v1269 = vsub.s32 0, %v1268
  %v1270 = vrot.slane %v1265, %v1269
  %v1271 = vlaneseq
  %v1272 = vshrl.u32 %v1271, 7
  %v1273 = vsub.s32 1, %v1272
  %v1274 = vrot.slane %v1265, %v1273
  %v1275 = vlaneseq
  %v1276 = vshrl.u32 %v1275, 7
  %v1277 = vsub.s32 2, %v1276
  %v1278 = vrot.slane %v1265, %v1277
  %v1282 = vadd.f32 %v1114, %v1270
  %v1283 = vadd.f32 %v1116, %v1274
  %v1284 = vadd.f32 %v1227, %v1278
  %v1285 = vadd.f32 %v1120, %v1270
  %v1286 = vadd.f32 %v1122, %v1274
  %v1287 = vadd.f32 %v1232, %v1278
  %v1288 = vadd.f32 %v1126, %v1270
  %v1289 = vadd.f32 %v1128, %v1274
  %v1290 = vadd.f32 %v1237, %v1278
  %v1291 = vadd.f32 %v1132, %v1270
  %v1292 = vadd.f32 %v1134, %v1274
  %v1293 = vadd.f32 %v1242, %v1278
  %v1294 = vadd.f32 %v1138, %v1270
  %v1295 = vadd.f32 %v1140, %v1274
  %v1296 = vadd.f32 %v1247, %v1278
  %v1297 = vadd.f32 %v1144, %v1270
  %v1298 = vadd.f32 %v1146, %v1274
  %v1299 = vadd.f32 %v1252, %v1278
  %v1300 = vadd.f32 %v1150, %v1270
  %v1301 = vadd.f32 %v1152, %v1274
  %v1302 = vadd.f32 %v1257, %v1278
  %v1303 = vadd.f32 %v1156, %v1270
  %v1304 = vadd.f32 %v1158, %v1274
  %v1305 = vadd.f32 %v1262, %v1278
  %1306 = vst [vmem:[#allocation4] sm:$0xff] %v1282
  %1307 = vst [vmem:[#allocation4 + $0x8] sm:$0xff] %v1283
  %1308 = vst [vmem:[#allocation4 + $0x10] sm:$0xff] %v1284
  %1309 = vst [vmem:[#allocation4 + $0x18] sm:$0xff] %v1285
  %1310 = vst [vmem:[#allocation4 + $0x20] sm:$0xff] %v1286
  %1311 = vst [vmem:[#allocation4 + $0x28] sm:$0xff] %v1287
  %1312 = vst [vmem:[#allocation4 + $0x30] sm:$0xff] %v1288
  %1313 = vst [vmem:[#allocation4 + $0x38] sm:$0xff] %v1289
  %1314 = vst [vmem:[#allocation4 + $0x40] sm:$0xff] %v1290
  %1315 = vst [vmem:[#allocation4 + $0x48] sm:$0xff] %v1291
  %1316 = vst [vmem:[#allocation4 + $0x50] sm:$0xff] %v1292
  %1317 = vst [vmem:[#allocation4 + $0x58] sm:$0xff] %v1293
  %1318 = vst [vmem:[#allocation4 + $0x60] sm:$0xff] %v1294
  %1319 = vst [vmem:[#allocation4 + $0x68] sm:$0xff] %v1295
  %1320 = vst [vmem:[#allocation4 + $0x70] sm:$0xff] %v1296
  %1321 = vst [vmem:[#allocation4 + $0x78] sm:$0xff] %v1297
  %1322 = vst [vmem:[#allocation4 + $0x80] sm:$0xff] %v1298
  %1323 = vst [vmem:[#allocation4 + $0x88] sm:$0xff] %v1299
  %1324 = vst [vmem:[#allocation4 + $0x90] sm:$0xff] %v1300
  %1325 = vst [vmem:[#allocation4 + $0x98] sm:$0xff] %v1301
  %1326 = vst [vmem:[#allocation4 + $0xa0] sm:$0xff] %v1302
  %1327 = vst [vmem:[#allocation4 + $0xa8] sm:$0xff] %v1303
  %1328 = vst [vmem:[#allocation4 + $0xb0] sm:$0xff] %v1304
  %1329 = vst [vmem:[#allocation4 + $0xb8] sm:$0xff] %v1305
  %v1330 = vld [vmem:[%s6] sm:$0xff]
  %v1331 = vld [vmem:[%s6 + $0x8] sm:$0xff]
  %v1332 = vld [vmem:[%s6 + $0x10] sm:$0xff]
  %v1333 = vld [vmem:[%s6 + $0x18] sm:$0xff]
  %v1334 = vld [vmem:[%s6 + $0x20] sm:$0xff]
  %v1335 = vld [vmem:[%s6 + $0x28] sm:$0xff]
  %v1336 = vld [vmem:[%s6 + $0x30] sm:$0xff]
  %v1337 = vld [vmem:[%s6 + $0x38] sm:$0xff]
  %v1338 = vld [vmem:[%s6 + $0x40] sm:$0xff]
  %v1339 = vld [vmem:[%s6 + $0x48] sm:$0xff]
  %v1340 = vld [vmem:[%s6 + $0x50] sm:$0xff]
  %v1341 = vld [vmem:[%s6 + $0x58] sm:$0xff]
  %v1342 = vld [vmem:[%s6 + $0x60] sm:$0xff]
  %v1343 = vld [vmem:[%s6 + $0x68] sm:$0xff]
  %v1344 = vld [vmem:[%s6 + $0x70] sm:$0xff]
  %v1345 = vld [vmem:[%s6 + $0x78] sm:$0xff]
  %v1346 = vld [vmem:[%s6 + $0x80] sm:$0xff]
  %v1347 = vld [vmem:[%s6 + $0x88] sm:$0xff]
  %v1348 = vld [vmem:[%s6 + $0x90] sm:$0xff]
  %v1349 = vld [vmem:[%s6 + $0x98] sm:$0xff]
  %v1350 = vld [vmem:[%s6 + $0xa0] sm:$0xff]
  %v1351 = vld [vmem:[%s6 + $0xa8] sm:$0xff]
  %v1352 = vld [vmem:[%s6 + $0xb0] sm:$0xff]
  %v1353 = vld [vmem:[%s6 + $0xb8] sm:$0xff]
  %v1354 = vld [vmem:[%s6 + $0xc0] sm:$0xff]
  %v1355 = vld [vmem:[%s6 + $0xc8] sm:$0xff]
  %v1356 = vld [vmem:[%s6 + $0xd0] sm:$0xff]
  %v1357 = vld [vmem:[%s6 + $0xd8] sm:$0xff]
  %v1358 = vld [vmem:[%s6 + $0xe0] sm:$0xff]
  %v1359 = vld [vmem:[%s6 + $0xe8] sm:$0xff]
  %v1360 = vld [vmem:[%s6 + $0xf0] sm:$0xff]
  %v1361 = vld [vmem:[%s6 + $0xf8] sm:$0xff]
  %v1362 = vld [vmem:[%s6 + $0x100] sm:$0xff]
  %v1363 = vld [vmem:[%s6 + $0x108] sm:$0xff]
  %v1364 = vld [vmem:[%s6 + $0x110] sm:$0xff]
  %v1365 = vld [vmem:[%s6 + $0x118] sm:$0xff]
  %v1366 = vld [vmem:[%s6 + $0x120] sm:$0xff]
  %v1367 = vld [vmem:[%s6 + $0x128] sm:$0xff]
  %v1368 = vld [vmem:[%s6 + $0x130] sm:$0xff]
  %v1369 = vld [vmem:[%s6 + $0x138] sm:$0xff]
  %v1370 = vld [vmem:[%s6 + $0x140] sm:$0xff]
  %v1371 = vld [vmem:[%s6 + $0x148] sm:$0xff]
  %v1372 = vld [vmem:[%s6 + $0x150] sm:$0xff]
  %v1373 = vld [vmem:[%s6 + $0x158] sm:$0xff]
  %v1374 = vld [vmem:[%s6 + $0x160] sm:$0xff]
  %v1375 = vld [vmem:[%s6 + $0x168] sm:$0xff]
  %v1376 = vld [vmem:[%s6 + $0x170] sm:$0xff]
  %v1377 = vld [vmem:[%s6 + $0x178] sm:$0xff]
  %v1378 = vld [vmem:[%s6 + $0x180] sm:$0xff]
  %v1379 = vld [vmem:[%s6 + $0x188] sm:$0xff]
  %v1380 = vld [vmem:[%s6 + $0x190] sm:$0xff]
  %v1381 = vld [vmem:[%s6 + $0x198] sm:$0xff]
  %v1382 = vld [vmem:[%s6 + $0x1a0] sm:$0xff]
  %v1383 = vld [vmem:[%s6 + $0x1a8] sm:$0xff]
  %v1384 = vld [vmem:[%s6 + $0x1b0] sm:$0xff]
  %v1385 = vld [vmem:[%s6 + $0x1b8] sm:$0xff]
  %v1386 = vld [vmem:[%s6 + $0x1c0] sm:$0xff]
  %v1387 = vld [vmem:[%s6 + $0x1c8] sm:$0xff]
  %v1388 = vld [vmem:[%s6 + $0x1d0] sm:$0xff]
  %v1389 = vld [vmem:[%s6 + $0x1d8] sm:$0xff]
  %v1390 = vld [vmem:[%s6 + $0x1e0] sm:$0xff]
  %v1391 = vld [vmem:[%s6 + $0x1e8] sm:$0xff]
  %v1392 = vld [vmem:[%s6 + $0x1f0] sm:$0xff]
  %v1393 = vld [vmem:[%s6 + $0x1f8] sm:$0xff]
  %v1394 = vld [vmem:[%s6 + $0x200] sm:$0xff]
  %v1395 = vld [vmem:[%s6 + $0x208] sm:$0xff]
  %v1396 = vld [vmem:[%s6 + $0x210] sm:$0xff]
  %v1397 = vld [vmem:[%s6 + $0x218] sm:$0xff]
  %v1398 = vld [vmem:[%s6 + $0x220] sm:$0xff]
  %v1399 = vld [vmem:[%s6 + $0x228] sm:$0xff]
  %v1400 = vld [vmem:[%s6 + $0x230] sm:$0xff]
  %v1401 = vld [vmem:[%s6 + $0x238] sm:$0xff]
  %v1402 = vld [vmem:[%s6 + $0x240] sm:$0xff]
  %v1403 = vld [vmem:[%s6 + $0x248] sm:$0xff]
  %v1404 = vld [vmem:[%s6 + $0x250] sm:$0xff]
  %v1405 = vld [vmem:[%s6 + $0x258] sm:$0xff]
  %v1406 = vld [vmem:[%s6 + $0x260] sm:$0xff]
  %v1407 = vld [vmem:[%s6 + $0x268] sm:$0xff]
  %v1408 = vld [vmem:[%s6 + $0x270] sm:$0xff]
  %v1409 = vld [vmem:[%s6 + $0x278] sm:$0xff]
  %v1410 = vld [vmem:[%s6 + $0x280] sm:$0xff]
  %v1411 = vld [vmem:[%s6 + $0x288] sm:$0xff]
  %v1412 = vld [vmem:[%s6 + $0x290] sm:$0xff]
  %v1413 = vld [vmem:[%s6 + $0x298] sm:$0xff]
  %v1414 = vld [vmem:[%s6 + $0x2a0] sm:$0xff]
  %v1415 = vld [vmem:[%s6 + $0x2a8] sm:$0xff]
  %v1416 = vld [vmem:[%s6 + $0x2b0] sm:$0xff]
  %v1417 = vld [vmem:[%s6 + $0x2b8] sm:$0xff]
  %v1418 = vld [vmem:[%s6 + $0x2c0] sm:$0xff]
  %v1419 = vld [vmem:[%s6 + $0x2c8] sm:$0xff]
  %v1420 = vld [vmem:[%s6 + $0x2d0] sm:$0xff]
  %v1421 = vld [vmem:[%s6 + $0x2d8] sm:$0xff]
  %v1422 = vld [vmem:[%s6 + $0x2e0] sm:$0xff]
  %v1423 = vld [vmem:[%s6 + $0x2e8] sm:$0xff]
  %v1424 = vld [vmem:[%s6 + $0x2f0] sm:$0xff]
  %v1425 = vld [vmem:[%s6 + $0x2f8] sm:$0xff]
  %v1426 = vld [vmem:[%s9] sm:$0x1]
  %v1427 = vld [vmem:[%s10] sm:$0x1]
  %v1428 = vld [vmem:[#allocation2] sm:$0xff]
  %v1429 = vld [vmem:[#allocation2 + $0x8] sm:$0xff]
  %1430 = vmatprep.subr.mxu0 %v1331
  %1431 = vmatpush1.msra.mxu0 %v1330
  %1432 = vmatprep.subr.mxu0 %v1337
  %1433 = vmatpush1.msra.mxu0 %v1336
  %1434 = vmatprep.subr.mxu0 %v1343
  %1435 = vmatpush1.msra.mxu0 %v1342
  %1436 = vmatprep.subr.mxu0 %v1349
  %1437 = vmatpush1.msra.mxu0 %v1348
  %1438 = vmatprep.subr.mxu0 %v1355
  %1439 = vmatpush1.msra.mxu0 %v1354
  %1440 = vmatprep.subr.mxu0 %v1361
  %1441 = vmatpush1.msra.mxu0 %v1360
  %1442 = vmatprep.subr.mxu0 %v1367
  %1443 = vmatpush1.msra.mxu0 %v1366
  %1444 = vmatprep.subr.mxu0 %v1373
  %1445 = vmatpush1.msra.mxu0 %v1372
  %1446 = vmatprep.subr.mxu0 %v1379
  %1447 = vmatpush1.msra.mxu0 %v1378
  %1448 = vmatprep.subr.mxu0 %v1385
  %1449 = vmatpush1.msra.mxu0 %v1384
  %1450 = vmatprep.subr.mxu0 %v1391
  %1451 = vmatpush1.msra.mxu0 %v1390
  %1452 = vmatprep.subr.mxu0 %v1397
  %1453 = vmatpush1.msra.mxu0 %v1396
  %1454 = vmatprep.subr.mxu0 %v1403
  %1455 = vmatpush1.msra.mxu0 %v1402
  %1456 = vmatprep.subr.mxu0 %v1409
  %1457 = vmatpush1.msra.mxu0 %v1408
  %1458 = vmatprep.subr.mxu0 %v1415
  %1459 = vmatpush1.msra.mxu0 %v1414
  %1460 = vmatprep.subr.mxu0 %v1421
  %1461 = vmatpush1.msra.mxu0 %v1420
  %1462 = vmatprep.subr.mxu0 0.0
  %1463 = vmatpush1.msra.mxu0 0.0
  %1464 = vmatprep.subr.mxu0 0.0
  %1465 = vmatpush1.msra.mxu0 0.0
  %1466 = vmatprep.subr.mxu0 0.0
  %1467 = vmatpush1.msra.mxu0 0.0
  %1468 = vmatprep.subr.mxu0 0.0
  %1469 = vmatpush1.msra.mxu0 0.0
  %1470 = vmatprep.subr.mxu0 0.0
  %1471 = vmatpush1.msra.mxu0 0.0
  %1472 = vmatprep.subr.mxu0 0.0
  %1473 = vmatpush1.msra.mxu0 0.0
  %1474 = vmatprep.subr.mxu0 0.0
  %1475 = vmatpush1.msra.mxu0 0.0
  %1476 = vmatprep.subr.mxu0 0.0
  %1477 = vmatpush1.msra.mxu0 0.0
  %1478 = vmatprep.subr.mxu0 0.0
  %1479 = vmatpush1.msra.mxu0 0.0
  %1480 = vmatprep.subr.mxu0 0.0
  %1481 = vmatpush1.msra.mxu0 0.0
  %1482 = vmatprep.subr.mxu0 0.0
  %1483 = vmatpush1.msra.mxu0 0.0
  %1484 = vmatprep.subr.mxu0 0.0
  %1485 = vmatpush1.msra.mxu0 0.0
  %1486 = vmatprep.subr.mxu0 0.0
  %1487 = vmatpush1.msra.mxu0 0.0
  %1488 = vmatprep.subr.mxu0 0.0
  %1489 = vmatpush1.msra.mxu0 0.0
  %1490 = vmatprep.subr.mxu0 0.0
  %1491 = vmatpush1.msra.mxu0 0.0
  %1492 = vmatprep.subr.mxu0 0.0
  %1493 = vmatpush1.msra.mxu0 0.0
  %1494 = vmatprep.mubr.f32.mxu0 0.0
  %1495 = vmatmul.mubr.f32.gmra.mrb[0].mxu0 %v1428
  %v1496 = vpop.f32.mrb[0].mxu0
  %v1497 = vadd.f32 0.0, %v1496
  %v1498 = vpop.f32.mrb[0].mxu0
  %v1499 = vadd.f32 0.0, %v1498
  %1500 = vmatprep.mubr.f32.mxu0 0.0
  %1501 = vmatmul.mubr.f32.gmra.mrb[0].mxu0 %v1429
  %v1502 = vpop.f32.mrb[0].mxu0
  %v1503 = vpop.f32.mrb[0].mxu0
  %1504 = vdwg.mxu0
  %1505 = vmatprep.subr.mxu0 %v1333
  %1506 = vmatpush1.msra.mxu0 %v1332
  %1507 = vmatprep.subr.mxu0 %v1339
  %1508 = vmatpush1.msra.mxu0 %v1338
  %1509 = vmatprep.subr.mxu0 %v1345
  %1510 = vmatpush1.msra.mxu0 %v1344
  %1511 = vmatprep.subr.mxu0 %v1351
  %1512 = vmatpush1.msra.mxu0 %v1350
  %1513 = vmatprep.subr.mxu0 %v1357
  %1514 = vmatpush1.msra.mxu0 %v1356
  %1515 = vmatprep.subr.mxu0 %v1363
  %1516 = vmatpush1.msra.mxu0 %v1362
  %1517 = vmatprep.subr.mxu0 %v1369
  %1518 = vmatpush1.msra.mxu0 %v1368
  %1519 = vmatprep.subr.mxu0 %v1375
  %1520 = vmatpush1.msra.mxu0 %v1374
  %1521 = vmatprep.subr.mxu0 %v1381
  %1522 = vmatpush1.msra.mxu0 %v1380
  %1523 = vmatprep.subr.mxu0 %v1387
  %1524 = vmatpush1.msra.mxu0 %v1386
  %1525 = vmatprep.subr.mxu0 %v1393
  %1526 = vmatpush1.msra.mxu0 %v1392
  %1527 = vmatprep.subr.mxu0 %v1399
  %1528 = vmatpush1.msra.mxu0 %v1398
  %1529 = vmatprep.subr.mxu0 %v1405
  %1530 = vmatpush1.msra.mxu0 %v1404
  %1531 = vmatprep.subr.mxu0 %v1411
  %1532 = vmatpush1.msra.mxu0 %v1410
  %1533 = vmatprep.subr.mxu0 %v1417
  %1534 = vmatpush1.msra.mxu0 %v1416
  %1535 = vmatprep.subr.mxu0 %v1423
  %1536 = vmatpush1.msra.mxu0 %v1422
  %1537 = vmatprep.subr.mxu0 0.0
  %1538 = vmatpush1.msra.mxu0 0.0
  %1539 = vmatprep.subr.mxu0 0.0
  %1540 = vmatpush1.msra.mxu0 0.0
  %1541 = vmatprep.subr.mxu0 0.0
  %1542 = vmatpush1.msra.mxu0 0.0
  %1543 = vmatprep.subr.mxu0 0.0
  %1544 = vmatpush1.msra.mxu0 0.0
  %1545 = vmatprep.subr.mxu0 0.0
  %1546 = vmatpush1.msra.mxu0 0.0
  %1547 = vmatprep.subr.mxu0 0.0
  %1548 = vmatpush1.msra.mxu0 0.0
  %1549 = vmatprep.subr.mxu0 0.0
  %1550 = vmatpush1.msra.mxu0 0.0
  %1551 = vmatprep.subr.mxu0 0.0
  %1552 = vmatpush1.msra.mxu0 0.0
  %1553 = vmatprep.subr.mxu0 0.0
  %1554 = vmatpush1.msra.mxu0 0.0
  %1555 = vmatprep.subr.mxu0 0.0
  %1556 = vmatpush1.msra.mxu0 0.0
  %1557 = vmatprep.subr.mxu0 0.0
  %1558 = vmatpush1.msra.mxu0 0.0
  %1559 = vmatprep.subr.mxu0 0.0
  %1560 = vmatpush1.msra.mxu0 0.0
  %1561 = vmatprep.subr.mxu0 0.0
  %1562 = vmatpush1.msra.mxu0 0.0
  %1563 = vmatprep.subr.mxu0 0.0
  %1564 = vmatpush1.msra.mxu0 0.0
  %1565 = vmatprep.subr.mxu0 0.0
  %1566 = vmatpush1.msra.mxu0 0.0
  %1567 = vmatprep.subr.mxu0 0.0
  %1568 = vmatpush1.msra.mxu0 0.0
  %1569 = vmatprep.mubr.f32.mxu0 0.0
  %1570 = vmatmul.mubr.f32.gmra.mrb[0].mxu0 %v1428
  %v1571 = vpop.f32.mrb[0].mxu0
  %v1572 = vadd.f32 0.0, %v1571
  %v1573 = vpop.f32.mrb[0].mxu0
  %1574 = vmatprep.mubr.f32.mxu0 0.0
  %1575 = vmatmul.mubr.f32.gmra.mrb[0].mxu0 %v1429
  %v1576 = vpop.f32.mrb[0].mxu0
  %v1577 = vpop.f32.mrb[0].mxu0
  %v1578 = vadd.f32 0.0, %v1577
  %1579 = vdwg.mxu0
  %1580 = vmatprep.subr.mxu0 %v1335
  %1581 = vmatpush1.msra.mxu0 %v1334
  %1582 = vmatprep.subr.mxu0 %v1341
  %1583 = vmatpush1.msra.mxu0 %v1340
  %1584 = vmatprep.subr.mxu0 %v1347
  %1585 = vmatpush1.msra.mxu0 %v1346
  %1586 = vmatprep.subr.mxu0 %v1353
  %1587 = vmatpush1.msra.mxu0 %v1352
  %1588 = vmatprep.subr.mxu0 %v1359
  %1589 = vmatpush1.msra.mxu0 %v1358
  %1590 = vmatprep.subr.mxu0 %v1365
  %1591 = vmatpush1.msra.mxu0 %v1364
  %1592 = vmatprep.subr.mxu0 %v1371
  %1593 = vmatpush1.msra.mxu0 %v1370
  %1594 = vmatprep.subr.mxu0 %v1377
  %1595 = vmatpush1.msra.mxu0 %v1376
  %1596 = vmatprep.subr.mxu0 %v1383
  %1597 = vmatpush1.msra.mxu0 %v1382
  %1598 = vmatprep.subr.mxu0 %v1389
  %1599 = vmatpush1.msra.mxu0 %v1388
  %1600 = vmatprep.subr.mxu0 %v1395
  %1601 = vmatpush1.msra.mxu0 %v1394
  %1602 = vmatprep.subr.mxu0 %v1401
  %1603 = vmatpush1.msra.mxu0 %v1400
  %1604 = vmatprep.subr.mxu0 %v1407
  %1605 = vmatpush1.msra.mxu0 %v1406
  %1606 = vmatprep.subr.mxu0 %v1413
  %1607 = vmatpush1.msra.mxu0 %v1412
  %1608 = vmatprep.subr.mxu0 %v1419
  %1609 = vmatpush1.msra.mxu0 %v1418
  %1610 = vmatprep.subr.mxu0 %v1425
  %1611 = vmatpush1.msra.mxu0 %v1424
  %1612 = vmatprep.subr.mxu0 0.0
  %1613 = vmatpush1.msra.mxu0 0.0
  %1614 = vmatprep.subr.mxu0 0.0
  %1615 = vmatpush1.msra.mxu0 0.0
  %1616 = vmatprep.subr.mxu0 0.0
  %1617 = vmatpush1.msra.mxu0 0.0
  %1618 = vmatprep.subr.mxu0 0.0
  %1619 = vmatpush1.msra.mxu0 0.0
  %1620 = vmatprep.subr.mxu0 0.0
  %1621 = vmatpush1.msra.mxu0 0.0
  %1622 = vmatprep.subr.mxu0 0.0
  %1623 = vmatpush1.msra.mxu0 0.0
  %1624 = vmatprep.subr.mxu0 0.0
  %1625 = vmatpush1.msra.mxu0 0.0
  %1626 = vmatprep.subr.mxu0 0.0
  %1627 = vmatpush1.msra.mxu0 0.0
  %1628 = vmatprep.subr.mxu0 0.0
  %1629 = vmatpush1.msra.mxu0 0.0
  %1630 = vmatprep.subr.mxu0 0.0
  %1631 = vmatpush1.msra.mxu0 0.0
  %1632 = vmatprep.subr.mxu0 0.0
  %1633 = vmatpush1.msra.mxu0 0.0
  %1634 = vmatprep.subr.mxu0 0.0
  %1635 = vmatpush1.msra.mxu0 0.0
  %1636 = vmatprep.subr.mxu0 0.0
  %1637 = vmatpush1.msra.mxu0 0.0
  %1638 = vmatprep.subr.mxu0 0.0
  %1639 = vmatpush1.msra.mxu0 0.0
  %1640 = vmatprep.subr.mxu0 0.0
  %1641 = vmatpush1.msra.mxu0 0.0
  %1642 = vmatprep.subr.mxu0 0.0
  %1643 = vmatpush1.msra.mxu0 0.0
  %1644 = vmatprep.mubr.f32.mxu0 0.0
  %1645 = vmatmul.mubr.f32.gmra.mrb[0].mxu0 %v1428
  %v1646 = vpop.f32.mrb[0].mxu0
  %v1647 = vpop.f32.mrb[0].mxu0
  %1648 = vmatprep.mubr.f32.mxu0 0.0
  %1649 = vmatmul.mubr.f32.gmra.mrb[0].mxu0 %v1429
  %v1650 = vpop.f32.mrb[0].mxu0
  %v1651 = vadd.f32 0.0, %v1650
  %v1652 = vpop.f32.mrb[0].mxu0
  %v1653 = vadd.f32 0.0, %v1652
  %1654 = vdwg.mxu0
  %s1655 = smul.u32 0, 3
  %s1656 = smul.addr %s1655, 8
  %s1657 = scalar_lea.vmem [#allocation3], %s1656
  %v1658 = vld [vmem:[%s1657] sm:$0xff]
  %v1659 = vld [vmem:[%s1657 + $0x8] sm:$0xff]
  %v1660 = vld [vmem:[%s1657 + $0x10] sm:$0xff]
  %v1661 = vadd.f32 %v1658, %v1497
  %v1662 = vsub.f32 0.0, %v1661
  %v1663 = vmul.f32 %v1662, 1.442695
  %v1664 = vpow.pop %v1663
  %v1665 = vadd.f32 %v1664, 1.0
  %v1666 = vrcp.pop %v1665
  %v1667 = vmul.f32 1.0, %v1666
  %v1668 = vadd.f32 %v1659, %v1499
  %v1669 = vsub.f32 0.0, %v1668
  %v1670 = vmul.f32 %v1669, 1.442695
  %v1671 = vpow.pop %v1670
  %v1672 = vadd.f32 %v1671, 1.0
  %v1673 = vrcp.pop %v1672
  %v1674 = vmul.f32 1.0, %v1673
  %v1676 = vlaneseq
  %v1677 = vshrl.u32 %v1676, 7
  %v1678 = vsub.s32 0, %v1677
  %v1679 = vrot.slane %v1426, %v1678
  %v1681 = vadd.f32 %v1572, %v1679
  %v1682 = vmul.f32 %v1667, %v1681
  %v1683 = vadd.f32 %v1660, %v1682
  %v1684 = vtanh.pop %v1683
  %v1685 = vsub.f32 1.0, %v1674
  %v1686 = vmul.f32 %v1685, %v1684
  %v1687 = vmul.f32 %v1674, %v1428
  %v1688 = vadd.f32 %v1686, %v1687
  %s1689 = smul.u32 7, 3
  %s1690 = smul.addr %s1689, 8
  %s1691 = scalar_lea.vmem [#allocation4], %s1690
  %v1692 = vld [vmem:[%s1691] sm:$0xff]
  %v1693 = vld [vmem:[%s1691 + $0x8] sm:$0xff]
  %v1694 = vld [vmem:[%s1691 + $0x10] sm:$0xff]
  %v1695 = vadd.f32 %v1692, %v1578
  %v1696 = vsub.f32 0.0, %v1695
  %v1697 = vmul.f32 %v1696, 1.442695
  %v1698 = vpow.pop %v1697
  %v1699 = vadd.f32 %v1698, 1.0
  %v1700 = vrcp.pop %v1699
  %v1701 = vmul.f32 1.0, %v1700
  %v1702 = vadd.f32 %v1693, %v1651
  %v1703 = vsub.f32 0.0, %v1702
  %v1704 = vmul.f32 %v1703, 1.442695
  %v1705 = vpow.pop %v1704
  %v1706 = vadd.f32 %v1705, 1.0
  %v1707 = vrcp.pop %v1706
  %v1708 = vmul.f32 1.0, %v1707
  %v1710 = vlaneseq
  %v1711 = vshrl.u32 %v1710, 7
  %v1712 = vsub.s32 0, %v1711
  %v1713 = vrot.slane %v1427, %v1712
  %v1715 = vadd.f32 %v1653, %v1713
  %v1716 = vmul.f32 %v1701, %v1715
  %v1717 = vadd.f32 %v1694, %v1716
  %v1718 = vtanh.pop %v1717
  %v1719 = vsub.f32 1.0, %v1708
  %v1720 = vmul.f32 %v1719, %v1718
  %v1721 = vmul.f32 %v1708, %v1429
  %v1722 = vadd.f32 %v1720, %v1721
  %1723 = vst [vmem:[#allocation2] sm:$0xff] %v1688
  %1724 = vst [vmem:[#allocation2 + $0x8] sm:$0xff] %v1722
  %1725 = vst [vmem:[%s11] sm:$0xff] %v1688
  %s1726 = scalar_lea.vmem %s95, 56
  %1727 = vst [vmem:[%s1726] sm:$0xff] %v1722
  %v1728 = vld [vmem:[#allocation2] sm:$0xff]
  %v1729 = vld [vmem:[#allocation2 + $0x8] sm:$0xff]
  %1730 = vmatprep.subr.mxu0 %v1331
  %1731 = vmatpush1.msra.mxu0 %v1330
  %1732 = vmatprep.subr.mxu0 %v1337
  %1733 = vmatpush1.msra.mxu0 %v1336
  %1734 = vmatprep.subr.mxu0 %v1343
  %1735 = vmatpush1.msra.mxu0 %v1342
  %1736 = vmatprep.subr.mxu0 %v1349
  %1737 = vmatpush1.msra.mxu0 %v1348
  %1738 = vmatprep.subr.mxu0 %v1355
  %1739 = vmatpush1.msra.mxu0 %v1354
  %1740 = vmatprep.subr.mxu0 %v1361
  %1741 = vmatpush1.msra.mxu0 %v1360
  %1742 = vmatprep.subr.mxu0 %v1367
  %1743 = vmatpush1.msra.mxu0 %v1366
  %1744 = vmatprep.subr.mxu0 %v1373
  %1745 = vmatpush1.msra.mxu0 %v1372
  %1746 = vmatprep.subr.mxu0 %v1379
  %1747 = vmatpush1.msra.mxu0 %v1378
  %1748 = vmatprep.subr.mxu0 %v1385
  %1749 = vmatpush1.msra.mxu0 %v1384
  %1750 = vmatprep.subr.mxu0 %v1391
  %1751 = vmatpush1.msra.mxu0 %v1390
  %1752 = vmatprep.subr.mxu0 %v1397
  %1753 = vmatpush1.msra.mxu0 %v1396
  %1754 = vmatprep.subr.mxu0 %v1403
  %1755 = vmatpush1.msra.mxu0 %v1402
  %1756 = vmatprep.subr.mxu0 %v1409
  %1757 = vmatpush1.msra.mxu0 %v1408
  %1758 = vmatprep.subr.mxu0 %v1415
  %1759 = vmatpush1.msra.mxu0 %v1414
  %1760 = vmatprep.subr.mxu0 %v1421
  %1761 = vmatpush1.msra.mxu0 %v1420
  %1762 = vmatprep.subr.mxu0 0.0
  %1763 = vmatpush1.msra.mxu0 0.0
  %1764 = vmatprep.subr.mxu0 0.0
  %1765 = vmatpush1.msra.mxu0 0.0
  %1766 = vmatprep.subr.mxu0 0.0
  %1767 = vmatpush1.msra.mxu0 0.0
  %1768 = vmatprep.subr.mxu0 0.0
  %1769 = vmatpush1.msra.mxu0 0.0
  %1770 = vmatprep.subr.mxu0 0.0
  %1771 = vmatpush1.msra.mxu0 0.0
  %1772 = vmatprep.subr.mxu0 0.0
  %1773 = vmatpush1.msra.mxu0 0.0
  %1774 = vmatprep.subr.mxu0 0.0
  %1775 = vmatpush1.msra.mxu0 0.0
  %1776 = vmatprep.subr.mxu0 0.0
  %1777 = vmatpush1.msra.mxu0 0.0
  %1778 = vmatprep.subr.mxu0 0.0
  %1779 = vmatpush1.msra.mxu0 0.0
  %1780 = vmatprep.subr.mxu0 0.0
  %1781 = vmatpush1.msra.mxu0 0.0
  %1782 = vmatprep.subr.mxu0 0.0
  %1783 = vmatpush1.msra.mxu0 0.0
  %1784 = vmatprep.subr.mxu0 0.0
  %1785 = vmatpush1.msra.mxu0 0.0
  %1786 = vmatprep.subr.mxu0 0.0
  %1787 = vmatpush1.msra.mxu0 0.0
  %1788 = vmatprep.subr.mxu0 0.0
  %1789 = vmatpush1.msra.mxu0 0.0
  %1790 = vmatprep.subr.mxu0 0.0
  %1791 = vmatpush1.msra.mxu0 0.0
  %1792 = vmatprep.subr.mxu0 0.0
  %1793 = vmatpush1.msra.mxu0 0.0
  %1794 = vmatprep.mubr.f32.mxu0 0.0
  %1795 = vmatmul.mubr.f32.gmra.mrb[0].mxu0 %v1728
  %v1796 = vpop.f32.mrb[0].mxu0
  %v1797 = vadd.f32 0.0, %v1796
  %v1798 = vpop.f32.mrb[0].mxu0
  %v1799 = vadd.f32 0.0, %v1798
  %1800 = vmatprep.mubr.f32.mxu0 0.0
  %1801 = vmatmul.mubr.f32.gmra.mrb[0].mxu0 %v1729
  %v1802 = vpop.f32.mrb[0].mxu0
  %v1803 = vpop.f32.mrb[0].mxu0
  %1804 = vdwg.mxu0
  %1805 = vmatprep.subr.mxu0 %v1333
  %1806 = vmatpush1.msra.mxu0 %v1332
  %1807 = vmatprep.subr.mxu0 %v1339
  %1808 = vmatpush1.msra.mxu0 %v1338
  %1809 = vmatprep.subr.mxu0 %v1345
  %1810 = vmatpush1.msra.mxu0 %v1344
  %1811 = vmatprep.subr.mxu0 %v1351
  %1812 = vmatpush1.msra.mxu0 %v1350
  %1813 = vmatprep.subr.mxu0 %v1357
  %1814 = vmatpush1.msra.mxu0 %v1356
  %1815 = vmatprep.subr.mxu0 %v1363
  %1816 = vmatpush1.msra.mxu0 %v1362
  %1817 = vmatprep.subr.mxu0 %v1369
  %1818 = vmatpush1.msra.mxu0 %v1368
  %1819 = vmatprep.subr.mxu0 %v1375
  %1820 = vmatpush1.msra.mxu0 %v1374
  %1821 = vmatprep.subr.mxu0 %v1381
  %1822 = vmatpush1.msra.mxu0 %v1380
  %1823 = vmatprep.subr.mxu0 %v1387
  %1824 = vmatpush1.msra.mxu0 %v1386
  %1825 = vmatprep.subr.mxu0 %v1393
  %1826 = vmatpush1.msra.mxu0 %v1392
  %1827 = vmatprep.subr.mxu0 %v1399
  %1828 = vmatpush1.msra.mxu0 %v1398
  %1829 = vmatprep.subr.mxu0 %v1405
  %1830 = vmatpush1.msra.mxu0 %v1404
  %1831 = vmatprep.subr.mxu0 %v1411
  %1832 = vmatpush1.msra.mxu0 %v1410
  %1833 = vmatprep.subr.mxu0 %v1417
  %1834 = vmatpush1.msra.mxu0 %v1416
  %1835 = vmatprep.subr.mxu0 %v1423
  %1836 = vmatpush1.msra.mxu0 %v1422
  %1837 = vmatprep.subr.mxu0 0.0
  %1838 = vmatpush1.msra.mxu0 0.0
  %1839 = vmatprep.subr.mxu0 0.0
  %1840 = vmatpush1.msra.mxu0 0.0
  %1841 = vmatprep.subr.mxu0 0.0
  %1842 = vmatpush1.msra.mxu0 0.0
  %1843 = vmatprep.subr.mxu0 0.0
  %1844 = vmatpush1.msra.mxu0 0.0
  %1845 = vmatprep.subr.mxu0 0.0
  %1846 = vmatpush1.msra.mxu0 0.0
  %1847 = vmatprep.subr.mxu0 0.0
  %1848 = vmatpush1.msra.mxu0 0.0
  %1849 = vmatprep.subr.mxu0 0.0
  %1850 = vmatpush1.msra.mxu0 0.0
  %1851 = vmatprep.subr.mxu0 0.0
  %1852 = vmatpush1.msra.mxu0 0.0
  %1853 = vmatprep.subr.mxu0 0.0
  %1854 = vmatpush1.msra.mxu0 0.0
  %1855 = vmatprep.subr.mxu0 0.0
  %1856 = vmatpush1.msra.mxu0 0.0
  %1857 = vmatprep.subr.mxu0 0.0
  %1858 = vmatpush1.msra.mxu0 0.0
  %1859 = vmatprep.subr.mxu0 0.0
  %1860 = vmatpush1.msra.mxu0 0.0
  %1861 = vmatprep.subr.mxu0 0.0
  %1862 = vmatpush1.msra.mxu0 0.0
  %1863 = vmatprep.subr.mxu0 0.0
  %1864 = vmatpush1.msra.mxu0 0.0
  %1865 = vmatprep.subr.mxu0 0.0
  %1866 = vmatpush1.msra.mxu0 0.0
  %1867 = vmatprep.subr.mxu0 0.0
  %1868 = vmatpush1.msra.mxu0 0.0
  %1869 = vmatprep.mubr.f32.mxu0 0.0
  %1870 = vmatmul.mubr.f32.gmra.mrb[0].mxu0 %v1728
  %v1871 = vpop.f32.mrb[0].mxu0
  %v1872 = vadd.f32 0.0, %v1871
  %v1873 = vpop.f32.mrb[0].mxu0
  %1874 = vmatprep.mubr.f32.mxu0 0.0
  %1875 = vmatmul.mubr.f32.gmra.mrb[0].mxu0 %v1729
  %v1876 = vpop.f32.mrb[0].mxu0
  %v1877 = vpop.f32.mrb[0].mxu0
  %v1878 = vadd.f32 0.0, %v1877
  %1879 = vdwg.mxu0
  %1880 = vmatprep.subr.mxu0 %v1335
  %1881 = vmatpush1.msra.mxu0 %v1334
  %1882 = vmatprep.subr.mxu0 %v1341
  %1883 = vmatpush1.msra.mxu0 %v1340
  %1884 = vmatprep.subr.mxu0 %v1347
  %1885 = vmatpush1.msra.mxu0 %v1346
  %1886 = vmatprep.subr.mxu0 %v1353
  %1887 = vmatpush1.msra.mxu0 %v1352
  %1888 = vmatprep.subr.mxu0 %v1359
  %1889 = vmatpush1.msra.mxu0 %v1358
  %1890 = vmatprep.subr.mxu0 %v1365
  %1891 = vmatpush1.msra.mxu0 %v1364
  %1892 = vmatprep.subr.mxu0 %v1371
  %1893 = vmatpush1.msra.mxu0 %v1370
  %1894 = vmatprep.subr.mxu0 %v1377
  %1895 = vmatpush1.msra.mxu0 %v1376
  %1896 = vmatprep.subr.mxu0 %v1383
  %1897 = vmatpush1.msra.mxu0 %v1382
  %1898 = vmatprep.subr.mxu0 %v1389
  %1899 = vmatpush1.msra.mxu0 %v1388
  %1900 = vmatprep.subr.mxu0 %v1395
  %1901 = vmatpush1.msra.mxu0 %v1394
  %1902 = vmatprep.subr.mxu0 %v1401
  %1903 = vmatpush1.msra.mxu0 %v1400
  %1904 = vmatprep.subr.mxu0 %v1407
  %1905 = vmatpush1.msra.mxu0 %v1406
  %1906 = vmatprep.subr.mxu0 %v1413
  %1907 = vmatpush1.msra.mxu0 %v1412
  %1908 = vmatprep.subr.mxu0 %v1419
  %1909 = vmatpush1.msra.mxu0 %v1418
  %1910 = vmatprep.subr.mxu0 %v1425
  %1911 = vmatpush1.msra.mxu0 %v1424
  %1912 = vmatprep.subr.mxu0 0.0
  %1913 = vmatpush1.msra.mxu0 0.0
  %1914 = vmatprep.subr.mxu0 0.0
  %1915 = vmatpush1.msra.mxu0 0.0
  %1916 = vmatprep.subr.mxu0 0.0
  %1917 = vmatpush1.msra.mxu0 0.0
  %1918 = vmatprep.subr.mxu0 0.0
  %1919 = vmatpush1.msra.mxu0 0.0
  %1920 = vmatprep.subr.mxu0 0.0
  %1921 = vmatpush1.msra.mxu0 0.0
  %1922 = vmatprep.subr.mxu0 0.0
  %1923 = vmatpush1.msra.mxu0 0.0
  %1924 = vmatprep.subr.mxu0 0.0
  %1925 = vmatpush1.msra.mxu0 0.0
  %1926 = vmatprep.subr.mxu0 0.0
  %1927 = vmatpush1.msra.mxu0 0.0
  %1928 = vmatprep.subr.mxu0 0.0
  %1929 = vmatpush1.msra.mxu0 0.0
  %1930 = vmatprep.subr.mxu0 0.0
  %1931 = vmatpush1.msra.mxu0 0.0
  %1932 = vmatprep.subr.mxu0 0.0
  %1933 = vmatpush1.msra.mxu0 0.0
  %1934 = vmatprep.subr.mxu0 0.0
  %1935 = vmatpush1.msra.mxu0 0.0
  %1936 = vmatprep.subr.mxu0 0.0
  %1937 = vmatpush1.msra.mxu0 0.0
  %1938 = vmatprep.subr.mxu0 0.0
  %1939 = vmatpush1.msra.mxu0 0.0
  %1940 = vmatprep.subr.mxu0 0.0
  %1941 = vmatpush1.msra.mxu0 0.0
  %1942 = vmatprep.subr.mxu0 0.0
  %1943 = vmatpush1.msra.mxu0 0.0
  %1944 = vmatprep.mubr.f32.mxu0 0.0
  %1945 = vmatmul.mubr.f32.gmra.mrb[0].mxu0 %v1728
  %v1946 = vpop.f32.mrb[0].mxu0
  %v1947 = vpop.f32.mrb[0].mxu0
  %1948 = vmatprep.mubr.f32.mxu0 0.0
  %1949 = vmatmul.mubr.f32.gmra.mrb[0].mxu0 %v1729
  %v1950 = vpop.f32.mrb[0].mxu0
  %v1951 = vadd.f32 0.0, %v1950
  %v1952 = vpop.f32.mrb[0].mxu0
  %v1953 = vadd.f32 0.0, %v1952
  %1954 = vdwg.mxu0
  %s1955 = smul.u32 1, 3
  %s1956 = smul.addr %s1955, 8
  %s1957 = scalar_lea.vmem [#allocation3], %s1956
  %v1958 = vld [vmem:[%s1957] sm:$0xff]
  %v1959 = vld [vmem:[%s1957 + $0x8] sm:$0xff]
  %v1960 = vld [vmem:[%s1957 + $0x10] sm:$0xff]
  %v1961 = vadd.f32 %v1958, %v1797
  %v1962 = vsub.f32 0.0, %v1961
  %v1963 = vmul.f32 %v1962, 1.442695
  %v1964 = vpow.pop %v1963
  %v1965 = vadd.f32 %v1964, 1.0
  %v1966 = vrcp.pop %v1965
  %v1967 = vmul.f32 1.0, %v1966
  %v1968 = vadd.f32 %v1959, %v1799
  %v1969 = vsub.f32 0.0, %v1968
  %v1970 = vmul.f32 %v1969, 1.442695
  %v1971 = vpow.pop %v1970
  %v1972 = vadd.f32 %v1971, 1.0
  %v1973 = vrcp.pop %v1972
  %v1974 = vmul.f32 1.0, %v1973
  %v1975 = vadd.f32 %v1872, %v1679
  %v1976 = vmul.f32 %v1967, %v1975
  %v1977 = vadd.f32 %v1960, %v1976
  %v1978 = vtanh.pop %v1977
  %v1979 = vsub.f32 1.0, %v1974
  %v1980 = vmul.f32 %v1979, %v1978
  %v1981 = vmul.f32 %v1974, %v1728
  %v1982 = vadd.f32 %v1980, %v1981
  %s1983 = smul.u32 6, 3
  %s1984 = smul.addr %s1983, 8
  %s1985 = scalar_lea.vmem [#allocation4], %s1984
  %v1986 = vld [vmem:[%s1985] sm:$0xff]
  %v1987 = vld [vmem:[%s1985 + $0x8] sm:$0xff]
  %v1988 = vld [vmem:[%s1985 + $0x10] sm:$0xff]
  %v1989 = vadd.f32 %v1986, %v1878
  %v1990 = vsub.f32 0.0, %v1989
  %v1991 = vmul.f32 %v1990, 1.442695
  %v1992 = vpow.pop %v1991
  %v1993 = vadd.f32 %v1992, 1.0
  %v1994 = vrcp.pop %v1993
  %v1995 = vmul.f32 1.0, %v1994
  %v1996 = vadd.f32 %v1987, %v1951
  %v1997 = vsub.f32 0.0, %v1996
  %v1998 = vmul.f32 %v1997, 1.442695
  %v1999 = vpow.pop %v1998
  %v2000 = vadd.f32 %v1999, 1.0
  %v2001 = vrcp.pop %v2000
  %v2002 = vmul.f32 1.0, %v2001
  %v2003 = vadd.f32 %v1953, %v1713
  %v2004 = vmul.f32 %v1995, %v2003
  %v2005 = vadd.f32 %v1988, %v2004
  %v2006 = vtanh.pop %v2005
  %v2007 = vsub.f32 1.0, %v2002
  %v2008 = vmul.f32 %v2007, %v2006
  %v2009 = vmul.f32 %v2002, %v1729
  %v2010 = vadd.f32 %v2008, %v2009
  %2011 = vst [vmem:[#allocation2] sm:$0xff] %v1982
  %2012 = vst [vmem:[#allocation2 + $0x8] sm:$0xff] %v2010
  %s2013 = scalar_lea.vmem %s11, 8
  %2014 = vst [vmem:[%s2013] sm:$0xff] %v1982
  %s2015 = scalar_lea.vmem %s95, 48
  %2016 = vst [vmem:[%s2015] sm:$0xff] %v2010
  %v2017 = vld [vmem:[#allocation2] sm:$0xff]
  %v2018 = vld [vmem:[#allocation2 + $0x8] sm:$0xff]
  %2019 = vmatprep.subr.mxu0 %v1331
  %2020 = vmatpush1.msra.mxu0 %v1330
  %2021 = vmatprep.subr.mxu0 %v1337
  %2022 = vmatpush1.msra.mxu0 %v1336
  %2023 = vmatprep.subr.mxu0 %v1343
  %2024 = vmatpush1.msra.mxu0 %v1342
  %2025 = vmatprep.subr.mxu0 %v1349
  %2026 = vmatpush1.msra.mxu0 %v1348
  %2027 = vmatprep.subr.mxu0 %v1355
  %2028 = vmatpush1.msra.mxu0 %v1354
  %2029 = vmatprep.subr.mxu0 %v1361
  %2030 = vmatpush1.msra.mxu0 %v1360
  %2031 = vmatprep.subr.mxu0 %v1367
  %2032 = vmatpush1.msra.mxu0 %v1366
  %2033 = vmatprep.subr.mxu0 %v1373
  %2034 = vmatpush1.msra.mxu0 %v1372
  %2035 = vmatprep.subr.mxu0 %v1379
  %2036 = vmatpush1.msra.mxu0 %v1378
  %2037 = vmatprep.subr.mxu0 %v1385
  %2038 = vmatpush1.msra.mxu0 %v1384
  %2039 = vmatprep.subr.mxu0 %v1391
  %2040 = vmatpush1.msra.mxu0 %v1390
  %2041 = vmatprep.subr.mxu0 %v1397
  %2042 = vmatpush1.msra.mxu0 %v1396
  %2043 = vmatprep.subr.mxu0 %v1403
  %2044 = vmatpush1.msra.mxu0 %v1402
  %2045 = vmatprep.subr.mxu0 %v1409
  %2046 = vmatpush1.msra.mxu0 %v1408
  %2047 = vmatprep.subr.mxu0 %v1415
  %2048 = vmatpush1.msra.mxu0 %v1414
  %2049 = vmatprep.subr.mxu0 %v1421
  %2050 = vmatpush1.msra.mxu0 %v1420
  %2051 = vmatprep.subr.mxu0 0.0
  %2052 = vmatpush1.msra.mxu0 0.0
  %2053 = vmatprep.subr.mxu0 0.0
  %2054 = vmatpush1.msra.mxu0 0.0
  %2055 = vmatprep.subr.mxu0 0.0
  %2056 = vmatpush1.msra.mxu0 0.0
  %2057 = vmatprep.subr.mxu0 0.0
  %2058 = vmatpush1.msra.mxu0 0.0
  %2059 = vmatprep.subr.mxu0 0.0
  %2060 = vmatpush1.msra.mxu0 0.0
  %2061 = vmatprep.subr.mxu0 0.0
  %2062 = vmatpush1.msra.mxu0 0.0
  %2063 = vmatprep.subr.mxu0 0.0
  %2064 = vmatpush1.msra.mxu0 0.0
  %2065 = vmatprep.subr.mxu0 0.0
  %2066 = vmatpush1.msra.mxu0 0.0
  %2067 = vmatprep.subr.mxu0 0.0
  %2068 = vmatpush1.msra.mxu0 0.0
  %2069 = vmatprep.subr.mxu0 0.0
  %2070 = vmatpush1.msra.mxu0 0.0
  %2071 = vmatprep.subr.mxu0 0.0
  %2072 = vmatpush1.msra.mxu0 0.0
  %2073 = vmatprep.subr.mxu0 0.0
  %2074 = vmatpush1.msra.mxu0 0.0
  %2075 = vmatprep.subr.mxu0 0.0
  %2076 = vmatpush1.msra.mxu0 0.0
  %2077 = vmatprep.subr.mxu0 0.0
  %2078 = vmatpush1.msra.mxu0 0.0
  %2079 = vmatprep.subr.mxu0 0.0
  %2080 = vmatpush1.msra.mxu0 0.0
  %2081 = vmatprep.subr.mxu0 0.0
  %2082 = vmatpush1.msra.mxu0 0.0
  %2083 = vmatprep.mubr.f32.mxu0 0.0
  %2084 = vmatmul.mubr.f32.gmra.mrb[0].mxu0 %v2017
  %v2085 = vpop.f32.mrb[0].mxu0
  %v2086 = vadd.f32 0.0, %v2085
  %v2087 = vpop.f32.mrb[0].mxu0
  %v2088 = vadd.f32 0.0, %v2087
  %2089 = vmatprep.mubr.f32.mxu0 0.0
  %2090 = vmatmul.mubr.f32.gmra.mrb[0].mxu0 %v2018
  %v2091 = vpop.f32.mrb[0].mxu0
  %v2092 = vpop.f32.mrb[0].mxu0
  %2093 = vdwg.mxu0
  %2094 = vmatprep.subr.mxu0 %v1333
  %2095 = vmatpush1.msra.mxu0 %v1332
  %2096 = vmatprep.subr.mxu0 %v1339
  %2097 = vmatpush1.msra.mxu0 %v1338
  %2098 = vmatprep.subr.mxu0 %v1345
  %2099 = vmatpush1.msra.mxu0 %v1344
  %2100 = vmatprep.subr.mxu0 %v1351
  %2101 = vmatpush1.msra.mxu0 %v1350
  %2102 = vmatprep.subr.mxu0 %v1357
  %2103 = vmatpush1.msra.mxu0 %v1356
  %2104 = vmatprep.subr.mxu0 %v1363
  %2105 = vmatpush1.msra.mxu0 %v1362
  %2106 = vmatprep.subr.mxu0 %v1369
  %2107 = vmatpush1.msra.mxu0 %v1368
  %2108 = vmatprep.subr.mxu0 %v1375
  %2109 = vmatpush1.msra.mxu0 %v1374
  %2110 = vmatprep.subr.mxu0 %v1381
  %2111 = vmatpush1.msra.mxu0 %v1380
  %2112 = vmatprep.subr.mxu0 %v1387
  %2113 = vmatpush1.msra.mxu0 %v1386
  %2114 = vmatprep.subr.mxu0 %v1393
  %2115 = vmatpush1.msra.mxu0 %v1392
  %2116 = vmatprep.subr.mxu0 %v1399
  %2117 = vmatpush1.msra.mxu0 %v1398
  %2118 = vmatprep.subr.mxu0 %v1405
  %2119 = vmatpush1.msra.mxu0 %v1404
  %2120 = vmatprep.subr.mxu0 %v1411
  %2121 = vmatpush1.msra.mxu0 %v1410
  %2122 = vmatprep.subr.mxu0 %v1417
  %2123 = vmatpush1.msra.mxu0 %v1416
  %2124 = vmatprep.subr.mxu0 %v1423
  %2125 = vmatpush1.msra.mxu0 %v1422
  %2126 = vmatprep.subr.mxu0 0.0
  %2127 = vmatpush1.msra.mxu0 0.0
  %2128 = vmatprep.subr.mxu0 0.0
  %2129 = vmatpush1.msra.mxu0 0.0
  %2130 = vmatprep.subr.mxu0 0.0
  %2131 = vmatpush1.msra.mxu0 0.0
  %2132 = vmatprep.subr.mxu0 0.0
  %2133 = vmatpush1.msra.mxu0 0.0
  %2134 = vmatprep.subr.mxu0 0.0
  %2135 = vmatpush1.msra.mxu0 0.0
  %2136 = vmatprep.subr.mxu0 0.0
  %2137 = vmatpush1.msra.mxu0 0.0
  %2138 = vmatprep.subr.mxu0 0.0
  %2139 = vmatpush1.msra.mxu0 0.0
  %2140 = vmatprep.subr.mxu0 0.0
  %2141 = vmatpush1.msra.mxu0 0.0
  %2142 = vmatprep.subr.mxu0 0.0
  %2143 = vmatpush1.msra.mxu0 0.0
  %2144 = vmatprep.subr.mxu0 0.0
  %2145 = vmatpush1.msra.mxu0 0.0
  %2146 = vmatprep.subr.mxu0 0.0
  %2147 = vmatpush1.msra.mxu0 0.0
  %2148 = vmatprep.subr.mxu0 0.0
  %2149 = vmatpush1.msra.mxu0 0.0
  %2150 = vmatprep.subr.mxu0 0.0
  %2151 = vmatpush1.msra.mxu0 0.0
  %2152 = vmatprep.subr.mxu0 0.0
  %2153 = vmatpush1.msra.mxu0 0.0
  %2154 = vmatprep.subr.mxu0 0.0
  %2155 = vmatpush1.msra.mxu0 0.0
  %2156 = vmatprep.subr.mxu0 0.0
  %2157 = vmatpush1.msra.mxu0 0.0
  %2158 = vmatprep.mubr.f32.mxu0 0.0
  %2159 = vmatmul.mubr.f32.gmra.mrb[0].mxu0 %v2017
  %v2160 = vpop.f32.mrb[0].mxu0
  %v2161 = vadd.f32 0.0, %v2160
  %v2162 = vpop.f32.mrb[0].mxu0
  %2163 = vmatprep.mubr.f32.mxu0 0.0
  %2164 = vmatmul.mubr.f32.gmra.mrb[0].mxu0 %v2018
  %v2165 = vpop.f32.mrb[0].mxu0
  %v2166 = vpop.f32.mrb[0].mxu0
  %v2167 = vadd.f32 0.0, %v2166
  %2168 = vdwg.mxu0
  %2169 = vmatprep.subr.mxu0 %v1335
  %2170 = vmatpush1.msra.mxu0 %v1334
  %2171 = vmatprep.subr.mxu0 %v1341
  %2172 = vmatpush1.msra.mxu0 %v1340
  %2173 = vmatprep.subr.mxu0 %v1347
  %2174 = vmatpush1.msra.mxu0 %v1346
  %2175 = vmatprep.subr.mxu0 %v1353
  %2176 = vmatpush1.msra.mxu0 %v1352
  %2177 = vmatprep.subr.mxu0 %v1359
  %2178 = vmatpush1.msra.mxu0 %v1358
  %2179 = vmatprep.subr.mxu0 %v1365
  %2180 = vmatpush1.msra.mxu0 %v1364
  %2181 = vmatprep.subr.mxu0 %v1371
  %2182 = vmatpush1.msra.mxu0 %v1370
  %2183 = vmatprep.subr.mxu0 %v1377
  %2184 = vmatpush1.msra.mxu0 %v1376
  %2185 = vmatprep.subr.mxu0 %v1383
  %2186 = vmatpush1.msra.mxu0 %v1382
  %2187 = vmatprep.subr.mxu0 %v1389
  %2188 = vmatpush1.msra.mxu0 %v1388
  %2189 = vmatprep.subr.mxu0 %v1395
  %2190 = vmatpush1.msra.mxu0 %v1394
  %2191 = vmatprep.subr.mxu0 %v1401
  %2192 = vmatpush1.msra.mxu0 %v1400
  %2193 = vmatprep.subr.mxu0 %v1407
  %2194 = vmatpush1.msra.mxu0 %v1406
  %2195 = vmatprep.subr.mxu0 %v1413
  %2196 = vmatpush1.msra.mxu0 %v1412
  %2197 = vmatprep.subr.mxu0 %v1419
  %2198 = vmatpush1.msra.mxu0 %v1418
  %2199 = vmatprep.subr.mxu0 %v1425
  %2200 = vmatpush1.msra.mxu0 %v1424
  %2201 = vmatprep.subr.mxu0 0.0
  %2202 = vmatpush1.msra.mxu0 0.0
  %2203 = vmatprep.subr.mxu0 0.0
  %2204 = vmatpush1.msra.mxu0 0.0
  %2205 = vmatprep.subr.mxu0 0.0
  %2206 = vmatpush1.msra.mxu0 0.0
  %2207 = vmatprep.subr.mxu0 0.0
  %2208 = vmatpush1.msra.mxu0 0.0
  %2209 = vmatprep.subr.mxu0 0.0
  %2210 = vmatpush1.msra.mxu0 0.0
  %2211 = vmatprep.subr.mxu0 0.0
  %2212 = vmatpush1.msra.mxu0 0.0
  %2213 = vmatprep.subr.mxu0 0.0
  %2214 = vmatpush1.msra.mxu0 0.0
  %2215 = vmatprep.subr.mxu0 0.0
  %2216 = vmatpush1.msra.mxu0 0.0
  %2217 = vmatprep.subr.mxu0 0.0
  %2218 = vmatpush1.msra.mxu0 0.0
  %2219 = vmatprep.subr.mxu0 0.0
  %2220 = vmatpush1.msra.mxu0 0.0
  %2221 = vmatprep.subr.mxu0 0.0
  %2222 = vmatpush1.msra.mxu0 0.0
  %2223 = vmatprep.subr.mxu0 0.0
  %2224 = vmatpush1.msra.mxu0 0.0
  %2225 = vmatprep.subr.mxu0 0.0
  %2226 = vmatpush1.msra.mxu0 0.0
  %2227 = vmatprep.subr.mxu0 0.0
  %2228 = vmatpush1.msra.mxu0 0.0
  %2229 = vmatprep.subr.mxu0 0.0
  %2230 = vmatpush1.msra.mxu0 0.0
  %2231 = vmatprep.subr.mxu0 0.0
  %2232 = vmatpush1.msra.mxu0 0.0
  %2233 = vmatprep.mubr.f32.mxu0 0.0
  %2234 = vmatmul.mubr.f32.gmra.mrb[0].mxu0 %v2017
  %v2235 = vpop.f32.mrb[0].mxu0
  %v2236 = vpop.f32.mrb[0].mxu0
  %2237 = vmatprep.mubr.f32.mxu0 0.0
  %2238 = vmatmul.mubr.f32.gmra.mrb[0].mxu0 %v2018
  %v2239 = vpop.f32.mrb[0].mxu0
  %v2240 = vadd.f32 0.0, %v2239
  %v2241 = vpop.f32.mrb[0].mxu0
  %v2242 = vadd.f32 0.0, %v2241
  %2243 = vdwg.mxu0
  %s2244 = smul.u32 2, 3
  %s2245 = smul.addr %s2244, 8
  %s2246 = scalar_lea.vmem [#allocation3], %s2245
  %v2247 = vld [vmem:[%s2246] sm:$0xff]
  %v2248 = vld [vmem:[%s2246 + $0x8] sm:$0xff]
  %v2249 = vld [vmem:[%s2246 + $0x10] sm:$0xff]
  %v2250 = vadd.f32 %v2247, %v2086
  %v2251 = vsub.f32 0.0, %v2250
  %v2252 = vmul.f32 %v2251, 1.442695
  %v2253 = vpow.pop %v2252
  %v2254 = vadd.f32 %v2253, 1.0
  %v2255 = vrcp.pop %v2254
  %v2256 = vmul.f32 1.0, %v2255
  %v2257 = vadd.f32 %v2248, %v2088
  %v2258 = vsub.f32 0.0, %v2257
  %v2259 = vmul.f32 %v2258, 1.442695
  %v2260 = vpow.pop %v2259
  %v2261 = vadd.f32 %v2260, 1.0
  %v2262 = vrcp.pop %v2261
  %v2263 = vmul.f32 1.0, %v2262
  %v2264 = vadd.f32 %v2161, %v1679
  %v2265 = vmul.f32 %v2256, %v2264
  %v2266 = vadd.f32 %v2249, %v2265
  %v2267 = vtanh.pop %v2266
  %v2268 = vsub.f32 1.0, %v2263
  %v2269 = vmul.f32 %v2268, %v2267
  %v2270 = vmul.f32 %v2263, %v2017
  %v2271 = vadd.f32 %v2269, %v2270
  %s2272 = smul.u32 5, 3
  %s2273 = smul.addr %s2272, 8
  %s2274 = scalar_lea.vmem [#allocation4], %s2273
  %v2275 = vld [vmem:[%s2274] sm:$0xff]
  %v2276 = vld [vmem:[%s2274 + $0x8] sm:$0xff]
  %v2277 = vld [vmem:[%s2274 + $0x10] sm:$0xff]
  %v2278 = vadd.f32 %v2275, %v2167
  %v2279 = vsub.f32 0.0, %v2278
  %v2280 = vmul.f32 %v2279, 1.442695
  %v2281 = vpow.pop %v2280
  %v2282 = vadd.f32 %v2281, 1.0
  %v2283 = vrcp.pop %v2282
  %v2284 = vmul.f32 1.0, %v2283
  %v2285 = vadd.f32 %v2276, %v2240
  %v2286 = vsub.f32 0.0, %v2285
  %v2287 = vmul.f32 %v2286, 1.442695
  %v2288 = vpow.pop %v2287
  %v2289 = vadd.f32 %v2288, 1.0
  %v2290 = vrcp.pop %v2289
  %v2291 = vmul.f32 1.0, %v2290
  %v2292 = vadd.f32 %v2242, %v1713
  %v2293 = vmul.f32 %v2284, %v2292
  %v2294 = vadd.f32 %v2277, %v2293
  %v2295 = vtanh.pop %v2294
  %v2296 = vsub.f32 1.0, %v2291
  %v2297 = vmul.f32 %v2296, %v2295
  %v2298 = vmul.f32 %v2291, %v2018
  %v2299 = vadd.f32 %v2297, %v2298
  %2300 = vst [vmem:[#allocation2] sm:$0xff] %v2271
  %2301 = vst [vmem:[#allocation2 + $0x8] sm:$0xff] %v2299
  %s2302 = scalar_lea.vmem %s11, 16
  %2303 = vst [vmem:[%s2302] sm:$0xff] %v2271
  %s2304 = scalar_lea.vmem %s95, 40
  %2305 = vst [vmem:[%s2304] sm:$0xff] %v2299
  %v2306 = vld [vmem:[#allocation2] sm:$0xff]
  %v2307 = vld [vmem:[#allocation2 + $0x8] sm:$0xff]
  %2308 = vmatprep.subr.mxu0 %v1331
  %2309 = vmatpush1.msra.mxu0 %v1330
  %2310 = vmatprep.subr.mxu0 %v1337
  %2311 = vmatpush1.msra.mxu0 %v1336
  %2312 = vmatprep.subr.mxu0 %v1343
  %2313 = vmatpush1.msra.mxu0 %v1342
  %2314 = vmatprep.subr.mxu0 %v1349
  %2315 = vmatpush1.msra.mxu0 %v1348
  %2316 = vmatprep.subr.mxu0 %v1355
  %2317 = vmatpush1.msra.mxu0 %v1354
  %2318 = vmatprep.subr.mxu0 %v1361
  %2319 = vmatpush1.msra.mxu0 %v1360
  %2320 = vmatprep.subr.mxu0 %v1367
  %2321 = vmatpush1.msra.mxu0 %v1366
  %2322 = vmatprep.subr.mxu0 %v1373
  %2323 = vmatpush1.msra.mxu0 %v1372
  %2324 = vmatprep.subr.mxu0 %v1379
  %2325 = vmatpush1.msra.mxu0 %v1378
  %2326 = vmatprep.subr.mxu0 %v1385
  %2327 = vmatpush1.msra.mxu0 %v1384
  %2328 = vmatprep.subr.mxu0 %v1391
  %2329 = vmatpush1.msra.mxu0 %v1390
  %2330 = vmatprep.subr.mxu0 %v1397
  %2331 = vmatpush1.msra.mxu0 %v1396
  %2332 = vmatprep.subr.mxu0 %v1403
  %2333 = vmatpush1.msra.mxu0 %v1402
  %2334 = vmatprep.subr.mxu0 %v1409
  %2335 = vmatpush1.msra.mxu0 %v1408
  %2336 = vmatprep.subr.mxu0 %v1415
  %2337 = vmatpush1.msra.mxu0 %v1414
  %2338 = vmatprep.subr.mxu0 %v1421
  %2339 = vmatpush1.msra.mxu0 %v1420
  %2340 = vmatprep.subr.mxu0 0.0
  %2341 = vmatpush1.msra.mxu0 0.0
  %2342 = vmatprep.subr.mxu0 0.0
  %2343 = vmatpush1.msra.mxu0 0.0
  %2344 = vmatprep.subr.mxu0 0.0
  %2345 = vmatpush1.msra.mxu0 0.0
  %2346 = vmatprep.subr.mxu0 0.0
  %2347 = vmatpush1.msra.mxu0 0.0
  %2348 = vmatprep.subr.mxu0 0.0
  %2349 = vmatpush1.msra.mxu0 0.0
  %2350 = vmatprep.subr.mxu0 0.0
  %2351 = vmatpush1.msra.mxu0 0.0
  %2352 = vmatprep.subr.mxu0 0.0
  %2353 = vmatpush1.msra.mxu0 0.0
  %2354 = vmatprep.subr.mxu0 0.0
  %2355 = vmatpush1.msra.mxu0 0.0
  %2356 = vmatprep.subr.mxu0 0.0
  %2357 = vmatpush1.msra.mxu0 0.0
  %2358 = vmatprep.subr.mxu0 0.0
  %2359 = vmatpush1.msra.mxu0 0.0
  %2360 = vmatprep.subr.mxu0 0.0
  %2361 = vmatpush1.msra.mxu0 0.0
  %2362 = vmatprep.subr.mxu0 0.0
  %2363 = vmatpush1.msra.mxu0 0.0
  %2364 = vmatprep.subr.mxu0 0.0
  %2365 = vmatpush1.msra.mxu0 0.0
  %2366 = vmatprep.subr.mxu0 0.0
  %2367 = vmatpush1.msra.mxu0 0.0
  %2368 = vmatprep.subr.mxu0 0.0
  %2369 = vmatpush1.msra.mxu0 0.0
  %2370 = vmatprep.subr.mxu0 0.0
  %2371 = vmatpush1.msra.mxu0 0.0
  %2372 = vmatprep.mubr.f32.mxu0 0.0
  %2373 = vmatmul.mubr.f32.gmra.mrb[0].mxu0 %v2306
  %v2374 = vpop.f32.mrb[0].mxu0
  %v2375 = vadd.f32 0.0, %v2374
  %v2376 = vpop.f32.mrb[0].mxu0
  %v2377 = vadd.f32 0.0, %v2376
  %2378 = vmatprep.mubr.f32.mxu0 0.0
  %2379 = vmatmul.mubr.f32.gmra.mrb[0].mxu0 %v2307
  %v2380 = vpop.f32.mrb[0].mxu0
  %v2381 = vpop.f32.mrb[0].mxu0
  %2382 = vdwg.mxu0
  %2383 = vmatprep.subr.mxu0 %v1333
  %2384 = vmatpush1.msra.mxu0 %v1332
  %2385 = vmatprep.subr.mxu0 %v1339
  %2386 = vmatpush1.msra.mxu0 %v1338
  %2387 = vmatprep.subr.mxu0 %v1345
  %2388 = vmatpush1.msra.mxu0 %v1344
  %2389 = vmatprep.subr.mxu0 %v1351
  %2390 = vmatpush1.msra.mxu0 %v1350
  %2391 = vmatprep.subr.mxu0 %v1357
  %2392 = vmatpush1.msra.mxu0 %v1356
  %2393 = vmatprep.subr.mxu0 %v1363
  %2394 = vmatpush1.msra.mxu0 %v1362
  %2395 = vmatprep.subr.mxu0 %v1369
  %2396 = vmatpush1.msra.mxu0 %v1368
  %2397 = vmatprep.subr.mxu0 %v1375
  %2398 = vmatpush1.msra.mxu0 %v1374
  %2399 = vmatprep.subr.mxu0 %v1381
  %2400 = vmatpush1.msra.mxu0 %v1380
  %2401 = vmatprep.subr.mxu0 %v1387
  %2402 = vmatpush1.msra.mxu0 %v1386
  %2403 = vmatprep.subr.mxu0 %v1393
  %2404 = vmatpush1.msra.mxu0 %v1392
  %2405 = vmatprep.subr.mxu0 %v1399
  %2406 = vmatpush1.msra.mxu0 %v1398
  %2407 = vmatprep.subr.mxu0 %v1405
  %2408 = vmatpush1.msra.mxu0 %v1404
  %2409 = vmatprep.subr.mxu0 %v1411
  %2410 = vmatpush1.msra.mxu0 %v1410
  %2411 = vmatprep.subr.mxu0 %v1417
  %2412 = vmatpush1.msra.mxu0 %v1416
  %2413 = vmatprep.subr.mxu0 %v1423
  %2414 = vmatpush1.msra.mxu0 %v1422
  %2415 = vmatprep.subr.mxu0 0.0
  %2416 = vmatpush1.msra.mxu0 0.0
  %2417 = vmatprep.subr.mxu0 0.0
  %2418 = vmatpush1.msra.mxu0 0.0
  %2419 = vmatprep.subr.mxu0 0.0
  %2420 = vmatpush1.msra.mxu0 0.0
  %2421 = vmatprep.subr.mxu0 0.0
  %2422 = vmatpush1.msra.mxu0 0.0
  %2423 = vmatprep.subr.mxu0 0.0
  %2424 = vmatpush1.msra.mxu0 0.0
  %2425 = vmatprep.subr.mxu0 0.0
  %2426 = vmatpush1.msra.mxu0 0.0
  %2427 = vmatprep.subr.mxu0 0.0
  %2428 = vmatpush1.msra.mxu0 0.0
  %2429 = vmatprep.subr.mxu0 0.0
  %2430 = vmatpush1.msra.mxu0 0.0
  %2431 = vmatprep.subr.mxu0 0.0
  %2432 = vmatpush1.msra.mxu0 0.0
  %2433 = vmatprep.subr.mxu0 0.0
  %2434 = vmatpush1.msra.mxu0 0.0
  %2435 = vmatprep.subr.mxu0 0.0
  %2436 = vmatpush1.msra.mxu0 0.0
  %2437 = vmatprep.subr.mxu0 0.0
  %2438 = vmatpush1.msra.mxu0 0.0
  %2439 = vmatprep.subr.mxu0 0.0
  %2440 = vmatpush1.msra.mxu0 0.0
  %2441 = vmatprep.subr.mxu0 0.0
  %2442 = vmatpush1.msra.mxu0 0.0
  %2443 = vmatprep.subr.mxu0 0.0
  %2444 = vmatpush1.msra.mxu0 0.0
  %2445 = vmatprep.subr.mxu0 0.0
  %2446 = vmatpush1.msra.mxu0 0.0
  %2447 = vmatprep.mubr.f32.mxu0 0.0
  %2448 = vmatmul.mubr.f32.gmra.mrb[0].mxu0 %v2306
  %v2449 = vpop.f32.mrb[0].mxu0
  %v2450 = vadd.f32 0.0, %v2449
  %v2451 = vpop.f32.mrb[0].mxu0
  %2452 = vmatprep.mubr.f32.mxu0 0.0
  %2453 = vmatmul.mubr.f32.gmra.mrb[0].mxu0 %v2307
  %v2454 = vpop.f32.mrb[0].mxu0
  %v2455 = vpop.f32.mrb[0].mxu0
  %v2456 = vadd.f32 0.0, %v2455
  %2457 = vdwg.mxu0
  %2458 = vmatprep.subr.mxu0 %v1335
  %2459 = vmatpush1.msra.mxu0 %v1334
  %2460 = vmatprep.subr.mxu0 %v1341
  %2461 = vmatpush1.msra.mxu0 %v1340
  %2462 = vmatprep.subr.mxu0 %v1347
  %2463 = vmatpush1.msra.mxu0 %v1346
  %2464 = vmatprep.subr.mxu0 %v1353
  %2465 = vmatpush1.msra.mxu0 %v1352
  %2466 = vmatprep.subr.mxu0 %v1359
  %2467 = vmatpush1.msra.mxu0 %v1358
  %2468 = vmatprep.subr.mxu0 %v1365
  %2469 = vmatpush1.msra.mxu0 %v1364
  %2470 = vmatprep.subr.mxu0 %v1371
  %2471 = vmatpush1.msra.mxu0 %v1370
  %2472 = vmatprep.subr.mxu0 %v1377
  %2473 = vmatpush1.msra.mxu0 %v1376
  %2474 = vmatprep.subr.mxu0 %v1383
  %2475 = vmatpush1.msra.mxu0 %v1382
  %2476 = vmatprep.subr.mxu0 %v1389
  %2477 = vmatpush1.msra.mxu0 %v1388
  %2478 = vmatprep.subr.mxu0 %v1395
  %2479 = vmatpush1.msra.mxu0 %v1394
  %2480 = vmatprep.subr.mxu0 %v1401
  %2481 = vmatpush1.msra.mxu0 %v1400
  %2482 = vmatprep.subr.mxu0 %v1407
  %2483 = vmatpush1.msra.mxu0 %v1406
  %2484 = vmatprep.subr.mxu0 %v1413
  %2485 = vmatpush1.msra.mxu0 %v1412
  %2486 = vmatprep.subr.mxu0 %v1419
  %2487 = vmatpush1.msra.mxu0 %v1418
  %2488 = vmatprep.subr.mxu0 %v1425
  %2489 = vmatpush1.msra.mxu0 %v1424
  %2490 = vmatprep.subr.mxu0 0.0
  %2491 = vmatpush1.msra.mxu0 0.0
  %2492 = vmatprep.subr.mxu0 0.0
  %2493 = vmatpush1.msra.mxu0 0.0
  %2494 = vmatprep.subr.mxu0 0.0
  %2495 = vmatpush1.msra.mxu0 0.0
  %2496 = vmatprep.subr.mxu0 0.0
  %2497 = vmatpush1.msra.mxu0 0.0
  %2498 = vmatprep.subr.mxu0 0.0
  %2499 = vmatpush1.msra.mxu0 0.0
  %2500 = vmatprep.subr.mxu0 0.0
  %2501 = vmatpush1.msra.mxu0 0.0
  %2502 = vmatprep.subr.mxu0 0.0
  %2503 = vmatpush1.msra.mxu0 0.0
  %2504 = vmatprep.subr.mxu0 0.0
  %2505 = vmatpush1.msra.mxu0 0.0
  %2506 = vmatprep.subr.mxu0 0.0
  %2507 = vmatpush1.msra.mxu0 0.0
  %2508 = vmatprep.subr.mxu0 0.0
  %2509 = vmatpush1.msra.mxu0 0.0
  %2510 = vmatprep.subr.mxu0 0.0
  %2511 = vmatpush1.msra.mxu0 0.0
  %2512 = vmatprep.subr.mxu0 0.0
  %2513 = vmatpush1.msra.mxu0 0.0
  %2514 = vmatprep.subr.mxu0 0.0
  %2515 = vmatpush1.msra.mxu0 0.0
  %2516 = vmatprep.subr.mxu0 0.0
  %2517 = vmatpush1.msra.mxu0 0.0
  %2518 = vmatprep.subr.mxu0 0.0
  %2519 = vmatpush1.msra.mxu0 0.0
  %2520 = vmatprep.subr.mxu0 0.0
  %2521 = vmatpush1.msra.mxu0 0.0
  %2522 = vmatprep.mubr.f32.mxu0 0.0
  %2523 = vmatmul.mubr.f32.gmra.mrb[0].mxu0 %v2306
  %v2524 = vpop.f32.mrb[0].mxu0
  %v2525 = vpop.f32.mrb[0].mxu0
  %2526 = vmatprep.mubr.f32.mxu0 0.0
  %2527 = vmatmul.mubr.f32.gmra.mrb[0].mxu0 %v2307
  %v2528 = vpop.f32.mrb[0].mxu0
  %v2529 = vadd.f32 0.0, %v2528
  %v2530 = vpop.f32.mrb[0].mxu0
  %v2531 = vadd.f32 0.0, %v2530
  %2532 = vdwg.mxu0
  %s2533 = smul.u32 3, 3
  %s2534 = smul.addr %s2533, 8
  %s2535 = scalar_lea.vmem [#allocation3], %s2534
  %v2536 = vld [vmem:[%s2535] sm:$0xff]
  %v2537 = vld [vmem:[%s2535 + $0x8] sm:$0xff]
  %v2538 = vld [vmem:[%s2535 + $0x10] sm:$0xff]
  %v2539 = vadd.f32 %v2536, %v2375
  %v2540 = vsub.f32 0.0, %v2539
  %v2541 = vmul.f32 %v2540, 1.442695
  %v2542 = vpow.pop %v2541
  %v2543 = vadd.f32 %v2542, 1.0
  %v2544 = vrcp.pop %v2543
  %v2545 = vmul.f32 1.0, %v2544
  %v2546 = vadd.f32 %v2537, %v2377
  %v2547 = vsub.f32 0.0, %v2546
  %v2548 = vmul.f32 %v2547, 1.442695
  %v2549 = vpow.pop %v2548
  %v2550 = vadd.f32 %v2549, 1.0
  %v2551 = vrcp.pop %v2550
  %v2552 = vmul.f32 1.0, %v2551
  %v2553 = vadd.f32 %v2450, %v1679
  %v2554 = vmul.f32 %v2545, %v2553
  %v2555 = vadd.f32 %v2538, %v2554
  %v2556 = vtanh.pop %v2555
  %v2557 = vsub.f32 1.0, %v2552
  %v2558 = vmul.f32 %v2557, %v2556
  %v2559 = vmul.f32 %v2552, %v2306
  %v2560 = vadd.f32 %v2558, %v2559
  %s2561 = smul.u32 4, 3
  %s2562 = smul.addr %s2561, 8
  %s2563 = scalar_lea.vmem [#allocation4], %s2562
  %v2564 = vld [vmem:[%s2563] sm:$0xff]
  %v2565 = vld [vmem:[%s2563 + $0x8] sm:$0xff]
  %v2566 = vld [vmem:[%s2563 + $0x10] sm:$0xff]
  %v2567 = vadd.f32 %v2564, %v2456
  %v2568 = vsub.f32 0.0, %v2567
  %v2569 = vmul.f32 %v2568, 1.442695
  %v2570 = vpow.pop %v2569
  %v2571 = vadd.f32 %v2570, 1.0
  %v2572 = vrcp.pop %v2571
  %v2573 = vmul.f32 1.0, %v2572
  %v2574 = vadd.f32 %v2565, %v2529
  %v2575 = vsub.f32 0.0, %v2574
  %v2576 = vmul.f32 %v2575, 1.442695
  %v2577 = vpow.pop %v2576
  %v2578 = vadd.f32 %v2577, 1.0
  %v2579 = vrcp.pop %v2578
  %v2580 = vmul.f32 1.0, %v2579
  %v2581 = vadd.f32 %v2531, %v1713
  %v2582 = vmul.f32 %v2573, %v2581
  %v2583 = vadd.f32 %v2566, %v2582
  %v2584 = vtanh.pop %v2583
  %v2585 = vsub.f32 1.0, %v2580
  %v2586 = vmul.f32 %v2585, %v2584
  %v2587 = vmul.f32 %v2580, %v2307
  %v2588 = vadd.f32 %v2586, %v2587
  %2589 = vst [vmem:[#allocation2] sm:$0xff] %v2560
  %2590 = vst [vmem:[#allocation2 + $0x8] sm:$0xff] %v2588
  %s2591 = scalar_lea.vmem %s11, 24
  %2592 = vst [vmem:[%s2591] sm:$0xff] %v2560
  %s2593 = scalar_lea.vmem %s95, 32
  %2594 = vst [vmem:[%s2593] sm:$0xff] %v2588
  %v2595 = vld [vmem:[#allocation2] sm:$0xff]
  %v2596 = vld [vmem:[#allocation2 + $0x8] sm:$0xff]
  %2597 = vmatprep.subr.mxu0 %v1331
  %2598 = vmatpush1.msra.mxu0 %v1330
  %2599 = vmatprep.subr.mxu0 %v1337
  %2600 = vmatpush1.msra.mxu0 %v1336
  %2601 = vmatprep.subr.mxu0 %v1343
  %2602 = vmatpush1.msra.mxu0 %v1342
  %2603 = vmatprep.subr.mxu0 %v1349
  %2604 = vmatpush1.msra.mxu0 %v1348
  %2605 = vmatprep.subr.mxu0 %v1355
  %2606 = vmatpush1.msra.mxu0 %v1354
  %2607 = vmatprep.subr.mxu0 %v1361
  %2608 = vmatpush1.msra.mxu0 %v1360
  %2609 = vmatprep.subr.mxu0 %v1367
  %2610 = vmatpush1.msra.mxu0 %v1366
  %2611 = vmatprep.subr.mxu0 %v1373
  %2612 = vmatpush1.msra.mxu0 %v1372
  %2613 = vmatprep.subr.mxu0 %v1379
  %2614 = vmatpush1.msra.mxu0 %v1378
  %2615 = vmatprep.subr.mxu0 %v1385
  %2616 = vmatpush1.msra.mxu0 %v1384
  %2617 = vmatprep.subr.mxu0 %v1391
  %2618 = vmatpush1.msra.mxu0 %v1390
  %2619 = vmatprep.subr.mxu0 %v1397
  %2620 = vmatpush1.msra.mxu0 %v1396
  %2621 = vmatprep.subr.mxu0 %v1403
  %2622 = vmatpush1.msra.mxu0 %v1402
  %2623 = vmatprep.subr.mxu0 %v1409
  %2624 = vmatpush1.msra.mxu0 %v1408
  %2625 = vmatprep.subr.mxu0 %v1415
  %2626 = vmatpush1.msra.mxu0 %v1414
  %2627 = vmatprep.subr.mxu0 %v1421
  %2628 = vmatpush1.msra.mxu0 %v1420
  %2629 = vmatprep.subr.mxu0 0.0
  %2630 = vmatpush1.msra.mxu0 0.0
  %2631 = vmatprep.subr.mxu0 0.0
  %2632 = vmatpush1.msra.mxu0 0.0
  %2633 = vmatprep.subr.mxu0 0.0
  %2634 = vmatpush1.msra.mxu0 0.0
  %2635 = vmatprep.subr.mxu0 0.0
  %2636 = vmatpush1.msra.mxu0 0.0
  %2637 = vmatprep.subr.mxu0 0.0
  %2638 = vmatpush1.msra.mxu0 0.0
  %2639 = vmatprep.subr.mxu0 0.0
  %2640 = vmatpush1.msra.mxu0 0.0
  %2641 = vmatprep.subr.mxu0 0.0
  %2642 = vmatpush1.msra.mxu0 0.0
  %2643 = vmatprep.subr.mxu0 0.0
  %2644 = vmatpush1.msra.mxu0 0.0
  %2645 = vmatprep.subr.mxu0 0.0
  %2646 = vmatpush1.msra.mxu0 0.0
  %2647 = vmatprep.subr.mxu0 0.0
  %2648 = vmatpush1.msra.mxu0 0.0
  %2649 = vmatprep.subr.mxu0 0.0
  %2650 = vmatpush1.msra.mxu0 0.0
  %2651 = vmatprep.subr.mxu0 0.0
  %2652 = vmatpush1.msra.mxu0 0.0
  %2653 = vmatprep.subr.mxu0 0.0
  %2654 = vmatpush1.msra.mxu0 0.0
  %2655 = vmatprep.subr.mxu0 0.0
  %2656 = vmatpush1.msra.mxu0 0.0
  %2657 = vmatprep.subr.mxu0 0.0
  %2658 = vmatpush1.msra.mxu0 0.0
  %2659 = vmatprep.subr.mxu0 0.0
  %2660 = vmatpush1.msra.mxu0 0.0
  %2661 = vmatprep.mubr.f32.mxu0 0.0
  %2662 = vmatmul.mubr.f32.gmra.mrb[0].mxu0 %v2595
  %v2663 = vpop.f32.mrb[0].mxu0
  %v2664 = vadd.f32 0.0, %v2663
  %v2665 = vpop.f32.mrb[0].mxu0
  %v2666 = vadd.f32 0.0, %v2665
  %2667 = vmatprep.mubr.f32.mxu0 0.0
  %2668 = vmatmul.mubr.f32.gmra.mrb[0].mxu0 %v2596
  %v2669 = vpop.f32.mrb[0].mxu0
  %v2670 = vpop.f32.mrb[0].mxu0
  %2671 = vdwg.mxu0
  %2672 = vmatprep.subr.mxu0 %v1333
  %2673 = vmatpush1.msra.mxu0 %v1332
  %2674 = vmatprep.subr.mxu0 %v1339
  %2675 = vmatpush1.msra.mxu0 %v1338
  %2676 = vmatprep.subr.mxu0 %v1345
  %2677 = vmatpush1.msra.mxu0 %v1344
  %2678 = vmatprep.subr.mxu0 %v1351
  %2679 = vmatpush1.msra.mxu0 %v1350
  %2680 = vmatprep.subr.mxu0 %v1357
  %2681 = vmatpush1.msra.mxu0 %v1356
  %2682 = vmatprep.subr.mxu0 %v1363
  %2683 = vmatpush1.msra.mxu0 %v1362
  %2684 = vmatprep.subr.mxu0 %v1369
  %2685 = vmatpush1.msra.mxu0 %v1368
  %2686 = vmatprep.subr.mxu0 %v1375
  %2687 = vmatpush1.msra.mxu0 %v1374
  %2688 = vmatprep.subr.mxu0 %v1381
  %2689 = vmatpush1.msra.mxu0 %v1380
  %2690 = vmatprep.subr.mxu0 %v1387
  %2691 = vmatpush1.msra.mxu0 %v1386
  %2692 = vmatprep.subr.mxu0 %v1393
  %2693 = vmatpush1.msra.mxu0 %v1392
  %2694 = vmatprep.subr.mxu0 %v1399
  %2695 = vmatpush1.msra.mxu0 %v1398
  %2696 = vmatprep.subr.mxu0 %v1405
  %2697 = vmatpush1.msra.mxu0 %v1404
  %2698 = vmatprep.subr.mxu0 %v1411
  %2699 = vmatpush1.msra.mxu0 %v1410
  %2700 = vmatprep.subr.mxu0 %v1417
  %2701 = vmatpush1.msra.mxu0 %v1416
  %2702 = vmatprep.subr.mxu0 %v1423
  %2703 = vmatpush1.msra.mxu0 %v1422
  %2704 = vmatprep.subr.mxu0 0.0
  %2705 = vmatpush1.msra.mxu0 0.0
  %2706 = vmatprep.subr.mxu0 0.0
  %2707 = vmatpush1.msra.mxu0 0.0
  %2708 = vmatprep.subr.mxu0 0.0
  %2709 = vmatpush1.msra.mxu0 0.0
  %2710 = vmatprep.subr.mxu0 0.0
  %2711 = vmatpush1.msra.mxu0 0.0
  %2712 = vmatprep.subr.mxu0 0.0
  %2713 = vmatpush1.msra.mxu0 0.0
  %2714 = vmatprep.subr.mxu0 0.0
  %2715 = vmatpush1.msra.mxu0 0.0
  %2716 = vmatprep.subr.mxu0 0.0
  %2717 = vmatpush1.msra.mxu0 0.0
  %2718 = vmatprep.subr.mxu0 0.0
  %2719 = vmatpush1.msra.mxu0 0.0
  %2720 = vmatprep.subr.mxu0 0.0
  %2721 = vmatpush1.msra.mxu0 0.0
  %2722 = vmatprep.subr.mxu0 0.0
  %2723 = vmatpush1.msra.mxu0 0.0
  %2724 = vmatprep.subr.mxu0 0.0
  %2725 = vmatpush1.msra.mxu0 0.0
  %2726 = vmatprep.subr.mxu0 0.0
  %2727 = vmatpush1.msra.mxu0 0.0
  %2728 = vmatprep.subr.mxu0 0.0
  %2729 = vmatpush1.msra.mxu0 0.0
  %2730 = vmatprep.subr.mxu0 0.0
  %2731 = vmatpush1.msra.mxu0 0.0
  %2732 = vmatprep.subr.mxu0 0.0
  %2733 = vmatpush1.msra.mxu0 0.0
  %2734 = vmatprep.subr.mxu0 0.0
  %2735 = vmatpush1.msra.mxu0 0.0
  %2736 = vmatprep.mubr.f32.mxu0 0.0
  %2737 = vmatmul.mubr.f32.gmra.mrb[0].mxu0 %v2595
  %v2738 = vpop.f32.mrb[0].mxu0
  %v2739 = vadd.f32 0.0, %v2738
  %v2740 = vpop.f32.mrb[0].mxu0
  %2741 = vmatprep.mubr.f32.mxu0 0.0
  %2742 = vmatmul.mubr.f32.gmra.mrb[0].mxu0 %v2596
  %v2743 = vpop.f32.mrb[0].mxu0
  %v2744 = vpop.f32.mrb[0].mxu0
  %v2745 = vadd.f32 0.0, %v2744
  %2746 = vdwg.mxu0
  %2747 = vmatprep.subr.mxu0 %v1335
  %2748 = vmatpush1.msra.mxu0 %v1334
  %2749 = vmatprep.subr.mxu0 %v1341
  %2750 = vmatpush1.msra.mxu0 %v1340
  %2751 = vmatprep.subr.mxu0 %v1347
  %2752 = vmatpush1.msra.mxu0 %v1346
  %2753 = vmatprep.subr.mxu0 %v1353
  %2754 = vmatpush1.msra.mxu0 %v1352
  %2755 = vmatprep.subr.mxu0 %v1359
  %2756 = vmatpush1.msra.mxu0 %v1358
  %2757 = vmatprep.subr.mxu0 %v1365
  %2758 = vmatpush1.msra.mxu0 %v1364
  %2759 = vmatprep.subr.mxu0 %v1371
  %2760 = vmatpush1.msra.mxu0 %v1370
  %2761 = vmatprep.subr.mxu0 %v1377
  %2762 = vmatpush1.msra.mxu0 %v1376
  %2763 = vmatprep.subr.mxu0 %v1383
  %2764 = vmatpush1.msra.mxu0 %v1382
  %2765 = vmatprep.subr.mxu0 %v1389
  %2766 = vmatpush1.msra.mxu0 %v1388
  %2767 = vmatprep.subr.mxu0 %v1395
  %2768 = vmatpush1.msra.mxu0 %v1394
  %2769 = vmatprep.subr.mxu0 %v1401
  %2770 = vmatpush1.msra.mxu0 %v1400
  %2771 = vmatprep.subr.mxu0 %v1407
  %2772 = vmatpush1.msra.mxu0 %v1406
  %2773 = vmatprep.subr.mxu0 %v1413
  %2774 = vmatpush1.msra.mxu0 %v1412
  %2775 = vmatprep.subr.mxu0 %v1419
  %2776 = vmatpush1.msra.mxu0 %v1418
  %2777 = vmatprep.subr.mxu0 %v1425
  %2778 = vmatpush1.msra.mxu0 %v1424
  %2779 = vmatprep.subr.mxu0 0.0
  %2780 = vmatpush1.msra.mxu0 0.0
  %2781 = vmatprep.subr.mxu0 0.0
  %2782 = vmatpush1.msra.mxu0 0.0
  %2783 = vmatprep.subr.mxu0 0.0
  %2784 = vmatpush1.msra.mxu0 0.0
  %2785 = vmatprep.subr.mxu0 0.0
  %2786 = vmatpush1.msra.mxu0 0.0
  %2787 = vmatprep.subr.mxu0 0.0
  %2788 = vmatpush1.msra.mxu0 0.0
  %2789 = vmatprep.subr.mxu0 0.0
  %2790 = vmatpush1.msra.mxu0 0.0
  %2791 = vmatprep.subr.mxu0 0.0
  %2792 = vmatpush1.msra.mxu0 0.0
  %2793 = vmatprep.subr.mxu0 0.0
  %2794 = vmatpush1.msra.mxu0 0.0
  %2795 = vmatprep.subr.mxu0 0.0
  %2796 = vmatpush1.msra.mxu0 0.0
  %2797 = vmatprep.subr.mxu0 0.0
  %2798 = vmatpush1.msra.mxu0 0.0
  %2799 = vmatprep.subr.mxu0 0.0
  %2800 = vmatpush1.msra.mxu0 0.0
  %2801 = vmatprep.subr.mxu0 0.0
  %2802 = vmatpush1.msra.mxu0 0.0
  %2803 = vmatprep.subr.mxu0 0.0
  %2804 = vmatpush1.msra.mxu0 0.0
  %2805 = vmatprep.subr.mxu0 0.0
  %2806 = vmatpush1.msra.mxu0 0.0
  %2807 = vmatprep.subr.mxu0 0.0
  %2808 = vmatpush1.msra.mxu0 0.0
  %2809 = vmatprep.subr.mxu0 0.0
  %2810 = vmatpush1.msra.mxu0 0.0
  %2811 = vmatprep.mubr.f32.mxu0 0.0
  %2812 = vmatmul.mubr.f32.gmra.mrb[0].mxu0 %v2595
  %v2813 = vpop.f32.mrb[0].mxu0
  %v2814 = vpop.f32.mrb[0].mxu0
  %2815 = vmatprep.mubr.f32.mxu0 0.0
  %2816 = vmatmul.mubr.f32.gmra.mrb[0].mxu0 %v2596
  %v2817 = vpop.f32.mrb[0].mxu0
  %v2818 = vadd.f32 0.0, %v2817
  %v2819 = vpop.f32.mrb[0].mxu0
  %v2820 = vadd.f32 0.0, %v2819
  %2821 = vdwg.mxu0
  %s2822 = smul.addr %s2561, 8
  %s2823 = scalar_lea.vmem [#allocation3], %s2822
  %v2824 = vld [vmem:[%s2823] sm:$0xff]
  %v2825 = vld [vmem:[%s2823 + $0x8] sm:$0xff]
  %v2826 = vld [vmem:[%s2823 + $0x10] sm:$0xff]
  %v2827 = vadd.f32 %v2824, %v2664
  %v2828 = vsub.f32 0.0, %v2827
  %v2829 = vmul.f32 %v2828, 1.442695
  %v2830 = vpow.pop %v2829
  %v2831 = vadd.f32 %v2830, 1.0
  %v2832 = vrcp.pop %v2831
  %v2833 = vmul.f32 1.0, %v2832
  %v2834 = vadd.f32 %v2825, %v2666
  %v2835 = vsub.f32 0.0, %v2834
  %v2836 = vmul.f32 %v2835, 1.442695
  %v2837 = vpow.pop %v2836
  %v2838 = vadd.f32 %v2837, 1.0
  %v2839 = vrcp.pop %v2838
  %v2840 = vmul.f32 1.0, %v2839
  %v2841 = vadd.f32 %v2739, %v1679
  %v2842 = vmul.f32 %v2833, %v2841
  %v2843 = vadd.f32 %v2826, %v2842
  %v2844 = vtanh.pop %v2843
  %v2845 = vsub.f32 1.0, %v2840
  %v2846 = vmul.f32 %v2845, %v2844
  %v2847 = vmul.f32 %v2840, %v2595
  %v2848 = vadd.f32 %v2846, %v2847
  %s2849 = smul.addr %s2533, 8
  %s2850 = scalar_lea.vmem [#allocation4], %s2849
  %v2851 = vld [vmem:[%s2850] sm:$0xff]
  %v2852 = vld [vmem:[%s2850 + $0x8] sm:$0xff]
  %v2853 = vld [vmem:[%s2850 + $0x10] sm:$0xff]
  %v2854 = vadd.f32 %v2851, %v2745
  %v2855 = vsub.f32 0.0, %v2854
  %v2856 = vmul.f32 %v2855, 1.442695
  %v2857 = vpow.pop %v2856
  %v2858 = vadd.f32 %v2857, 1.0
  %v2859 = vrcp.pop %v2858
  %v2860 = vmul.f32 1.0, %v2859
  %v2861 = vadd.f32 %v2852, %v2818
  %v2862 = vsub.f32 0.0, %v2861
  %v2863 = vmul.f32 %v2862, 1.442695
  %v2864 = vpow.pop %v2863
  %v2865 = vadd.f32 %v2864, 1.0
  %v2866 = vrcp.pop %v2865
  %v2867 = vmul.f32 1.0, %v2866
  %v2868 = vadd.f32 %v2820, %v1713
  %v2869 = vmul.f32 %v2860, %v2868
  %v2870 = vadd.f32 %v2853, %v2869
  %v2871 = vtanh.pop %v2870
  %v2872 = vsub.f32 1.0, %v2867
  %v2873 = vmul.f32 %v2872, %v2871
  %v2874 = vmul.f32 %v2867, %v2596
  %v2875 = vadd.f32 %v2873, %v2874
  %2876 = vst [vmem:[#allocation2] sm:$0xff] %v2848
  %2877 = vst [vmem:[#allocation2 + $0x8] sm:$0xff] %v2875
  %s2878 = scalar_lea.vmem %s11, 32
  %2879 = vst [vmem:[%s2878] sm:$0xff] %v2848
  %s2880 = scalar_lea.vmem %s95, 24
  %2881 = vst [vmem:[%s2880] sm:$0xff] %v2875
  %v2882 = vld [vmem:[#allocation2] sm:$0xff]
  %v2883 = vld [vmem:[#allocation2 + $0x8] sm:$0xff]
  %2884 = vmatprep.subr.mxu0 %v1331
  %2885 = vmatpush1.msra.mxu0 %v1330
  %2886 = vmatprep.subr.mxu0 %v1337
  %2887 = vmatpush1.msra.mxu0 %v1336
  %2888 = vmatprep.subr.mxu0 %v1343
  %2889 = vmatpush1.msra.mxu0 %v1342
  %2890 = vmatprep.subr.mxu0 %v1349
  %2891 = vmatpush1.msra.mxu0 %v1348
  %2892 = vmatprep.subr.mxu0 %v1355
  %2893 = vmatpush1.msra.mxu0 %v1354
  %2894 = vmatprep.subr.mxu0 %v1361
  %2895 = vmatpush1.msra.mxu0 %v1360
  %2896 = vmatprep.subr.mxu0 %v1367
  %2897 = vmatpush1.msra.mxu0 %v1366
  %2898 = vmatprep.subr.mxu0 %v1373
  %2899 = vmatpush1.msra.mxu0 %v1372
  %2900 = vmatprep.subr.mxu0 %v1379
  %2901 = vmatpush1.msra.mxu0 %v1378
  %2902 = vmatprep.subr.mxu0 %v1385
  %2903 = vmatpush1.msra.mxu0 %v1384
  %2904 = vmatprep.subr.mxu0 %v1391
  %2905 = vmatpush1.msra.mxu0 %v1390
  %2906 = vmatprep.subr.mxu0 %v1397
  %2907 = vmatpush1.msra.mxu0 %v1396
  %2908 = vmatprep.subr.mxu0 %v1403
  %2909 = vmatpush1.msra.mxu0 %v1402
  %2910 = vmatprep.subr.mxu0 %v1409
  %2911 = vmatpush1.msra.mxu0 %v1408
  %2912 = vmatprep.subr.mxu0 %v1415
  %2913 = vmatpush1.msra.mxu0 %v1414
  %2914 = vmatprep.subr.mxu0 %v1421
  %2915 = vmatpush1.msra.mxu0 %v1420
  %2916 = vmatprep.subr.mxu0 0.0
  %2917 = vmatpush1.msra.mxu0 0.0
  %2918 = vmatprep.subr.mxu0 0.0
  %2919 = vmatpush1.msra.mxu0 0.0
  %2920 = vmatprep.subr.mxu0 0.0
  %2921 = vmatpush1.msra.mxu0 0.0
  %2922 = vmatprep.subr.mxu0 0.0
  %2923 = vmatpush1.msra.mxu0 0.0
  %2924 = vmatprep.subr.mxu0 0.0
  %2925 = vmatpush1.msra.mxu0 0.0
  %2926 = vmatprep.subr.mxu0 0.0
  %2927 = vmatpush1.msra.mxu0 0.0
  %2928 = vmatprep.subr.mxu0 0.0
  %2929 = vmatpush1.msra.mxu0 0.0
  %2930 = vmatprep.subr.mxu0 0.0
  %2931 = vmatpush1.msra.mxu0 0.0
  %2932 = vmatprep.subr.mxu0 0.0
  %2933 = vmatpush1.msra.mxu0 0.0
  %2934 = vmatprep.subr.mxu0 0.0
  %2935 = vmatpush1.msra.mxu0 0.0
  %2936 = vmatprep.subr.mxu0 0.0
  %2937 = vmatpush1.msra.mxu0 0.0
  %2938 = vmatprep.subr.mxu0 0.0
  %2939 = vmatpush1.msra.mxu0 0.0
  %2940 = vmatprep.subr.mxu0 0.0
  %2941 = vmatpush1.msra.mxu0 0.0
  %2942 = vmatprep.subr.mxu0 0.0
  %2943 = vmatpush1.msra.mxu0 0.0
  %2944 = vmatprep.subr.mxu0 0.0
  %2945 = vmatpush1.msra.mxu0 0.0
  %2946 = vmatprep.subr.mxu0 0.0
  %2947 = vmatpush1.msra.mxu0 0.0
  %2948 = vmatprep.mubr.f32.mxu0 0.0
  %2949 = vmatmul.mubr.f32.gmra.mrb[0].mxu0 %v2882
  %v2950 = vpop.f32.mrb[0].mxu0
  %v2951 = vadd.f32 0.0, %v2950
  %v2952 = vpop.f32.mrb[0].mxu0
  %v2953 = vadd.f32 0.0, %v2952
  %2954 = vmatprep.mubr.f32.mxu0 0.0
  %2955 = vmatmul.mubr.f32.gmra.mrb[0].mxu0 %v2883
  %v2956 = vpop.f32.mrb[0].mxu0
  %v2957 = vpop.f32.mrb[0].mxu0
  %2958 = vdwg.mxu0
  %2959 = vmatprep.subr.mxu0 %v1333
  %2960 = vmatpush1.msra.mxu0 %v1332
  %2961 = vmatprep.subr.mxu0 %v1339
  %2962 = vmatpush1.msra.mxu0 %v1338
  %2963 = vmatprep.subr.mxu0 %v1345
  %2964 = vmatpush1.msra.mxu0 %v1344
  %2965 = vmatprep.subr.mxu0 %v1351
  %2966 = vmatpush1.msra.mxu0 %v1350
  %2967 = vmatprep.subr.mxu0 %v1357
  %2968 = vmatpush1.msra.mxu0 %v1356
  %2969 = vmatprep.subr.mxu0 %v1363
  %2970 = vmatpush1.msra.mxu0 %v1362
  %2971 = vmatprep.subr.mxu0 %v1369
  %2972 = vmatpush1.msra.mxu0 %v1368
  %2973 = vmatprep.subr.mxu0 %v1375
  %2974 = vmatpush1.msra.mxu0 %v1374
  %2975 = vmatprep.subr.mxu0 %v1381
  %2976 = vmatpush1.msra.mxu0 %v1380
  %2977 = vmatprep.subr.mxu0 %v1387
  %2978 = vmatpush1.msra.mxu0 %v1386
  %2979 = vmatprep.subr.mxu0 %v1393
  %2980 = vmatpush1.msra.mxu0 %v1392
  %2981 = vmatprep.subr.mxu0 %v1399
  %2982 = vmatpush1.msra.mxu0 %v1398
  %2983 = vmatprep.subr.mxu0 %v1405
  %2984 = vmatpush1.msra.mxu0 %v1404
  %2985 = vmatprep.subr.mxu0 %v1411
  %2986 = vmatpush1.msra.mxu0 %v1410
  %2987 = vmatprep.subr.mxu0 %v1417
  %2988 = vmatpush1.msra.mxu0 %v1416
  %2989 = vmatprep.subr.mxu0 %v1423
  %2990 = vmatpush1.msra.mxu0 %v1422
  %2991 = vmatprep.subr.mxu0 0.0
  %2992 = vmatpush1.msra.mxu0 0.0
  %2993 = vmatprep.subr.mxu0 0.0
  %2994 = vmatpush1.msra.mxu0 0.0
  %2995 = vmatprep.subr.mxu0 0.0
  %2996 = vmatpush1.msra.mxu0 0.0
  %2997 = vmatprep.subr.mxu0 0.0
  %2998 = vmatpush1.msra.mxu0 0.0
  %2999 = vmatprep.subr.mxu0 0.0
  %3000 = vmatpush1.msra.mxu0 0.0
  %3001 = vmatprep.subr.mxu0 0.0
  %3002 = vmatpush1.msra.mxu0 0.0
  %3003 = vmatprep.subr.mxu0 0.0
  %3004 = vmatpush1.msra.mxu0 0.0
  %3005 = vmatprep.subr.mxu0 0.0
  %3006 = vmatpush1.msra.mxu0 0.0
  %3007 = vmatprep.subr.mxu0 0.0
  %3008 = vmatpush1.msra.mxu0 0.0
  %3009 = vmatprep.subr.mxu0 0.0
  %3010 = vmatpush1.msra.mxu0 0.0
  %3011 = vmatprep.subr.mxu0 0.0
  %3012 = vmatpush1.msra.mxu0 0.0
  %3013 = vmatprep.subr.mxu0 0.0
  %3014 = vmatpush1.msra.mxu0 0.0
  %3015 = vmatprep.subr.mxu0 0.0
  %3016 = vmatpush1.msra.mxu0 0.0
  %3017 = vmatprep.subr.mxu0 0.0
  %3018 = vmatpush1.msra.mxu0 0.0
  %3019 = vmatprep.subr.mxu0 0.0
  %3020 = vmatpush1.msra.mxu0 0.0
  %3021 = vmatprep.subr.mxu0 0.0
  %3022 = vmatpush1.msra.mxu0 0.0
  %3023 = vmatprep.mubr.f32.mxu0 0.0
  %3024 = vmatmul.mubr.f32.gmra.mrb[0].mxu0 %v2882
  %v3025 = vpop.f32.mrb[0].mxu0
  %v3026 = vadd.f32 0.0, %v3025
  %v3027 = vpop.f32.mrb[0].mxu0
  %3028 = vmatprep.mubr.f32.mxu0 0.0
  %3029 = vmatmul.mubr.f32.gmra.mrb[0].mxu0 %v2883
  %v3030 = vpop.f32.mrb[0].mxu0
  %v3031 = vpop.f32.mrb[0].mxu0
  %v3032 = vadd.f32 0.0, %v3031
  %3033 = vdwg.mxu0
  %3034 = vmatprep.subr.mxu0 %v1335
  %3035 = vmatpush1.msra.mxu0 %v1334
  %3036 = vmatprep.subr.mxu0 %v1341
  %3037 = vmatpush1.msra.mxu0 %v1340
  %3038 = vmatprep.subr.mxu0 %v1347
  %3039 = vmatpush1.msra.mxu0 %v1346
  %3040 = vmatprep.subr.mxu0 %v1353
  %3041 = vmatpush1.msra.mxu0 %v1352
  %3042 = vmatprep.subr.mxu0 %v1359
  %3043 = vmatpush1.msra.mxu0 %v1358
  %3044 = vmatprep.subr.mxu0 %v1365
  %3045 = vmatpush1.msra.mxu0 %v1364
  %3046 = vmatprep.subr.mxu0 %v1371
  %3047 = vmatpush1.msra.mxu0 %v1370
  %3048 = vmatprep.subr.mxu0 %v1377
  %3049 = vmatpush1.msra.mxu0 %v1376
  %3050 = vmatprep.subr.mxu0 %v1383
  %3051 = vmatpush1.msra.mxu0 %v1382
  %3052 = vmatprep.subr.mxu0 %v1389
  %3053 = vmatpush1.msra.mxu0 %v1388
  %3054 = vmatprep.subr.mxu0 %v1395
  %3055 = vmatpush1.msra.mxu0 %v1394
  %3056 = vmatprep.subr.mxu0 %v1401
  %3057 = vmatpush1.msra.mxu0 %v1400
  %3058 = vmatprep.subr.mxu0 %v1407
  %3059 = vmatpush1.msra.mxu0 %v1406
  %3060 = vmatprep.subr.mxu0 %v1413
  %3061 = vmatpush1.msra.mxu0 %v1412
  %3062 = vmatprep.subr.mxu0 %v1419
  %3063 = vmatpush1.msra.mxu0 %v1418
  %3064 = vmatprep.subr.mxu0 %v1425
  %3065 = vmatpush1.msra.mxu0 %v1424
  %3066 = vmatprep.subr.mxu0 0.0
  %3067 = vmatpush1.msra.mxu0 0.0
  %3068 = vmatprep.subr.mxu0 0.0
  %3069 = vmatpush1.msra.mxu0 0.0
  %3070 = vmatprep.subr.mxu0 0.0
  %3071 = vmatpush1.msra.mxu0 0.0
  %3072 = vmatprep.subr.mxu0 0.0
  %3073 = vmatpush1.msra.mxu0 0.0
  %3074 = vmatprep.subr.mxu0 0.0
  %3075 = vmatpush1.msra.mxu0 0.0
  %3076 = vmatprep.subr.mxu0 0.0
  %3077 = vmatpush1.msra.mxu0 0.0
  %3078 = vmatprep.subr.mxu0 0.0
  %3079 = vmatpush1.msra.mxu0 0.0
  %3080 = vmatprep.subr.mxu0 0.0
  %3081 = vmatpush1.msra.mxu0 0.0
  %3082 = vmatprep.subr.mxu0 0.0
  %3083 = vmatpush1.msra.mxu0 0.0
  %3084 = vmatprep.subr.mxu0 0.0
  %3085 = vmatpush1.msra.mxu0 0.0
  %3086 = vmatprep.subr.mxu0 0.0
  %3087 = vmatpush1.msra.mxu0 0.0
  %3088 = vmatprep.subr.mxu0 0.0
  %3089 = vmatpush1.msra.mxu0 0.0
  %3090 = vmatprep.subr.mxu0 0.0
  %3091 = vmatpush1.msra.mxu0 0.0
  %3092 = vmatprep.subr.mxu0 0.0
  %3093 = vmatpush1.msra.mxu0 0.0
  %3094 = vmatprep.subr.mxu0 0.0
  %3095 = vmatpush1.msra.mxu0 0.0
  %3096 = vmatprep.subr.mxu0 0.0
  %3097 = vmatpush1.msra.mxu0 0.0
  %3098 = vmatprep.mubr.f32.mxu0 0.0
  %3099 = vmatmul.mubr.f32.gmra.mrb[0].mxu0 %v2882
  %v3100 = vpop.f32.mrb[0].mxu0
  %v3101 = vpop.f32.mrb[0].mxu0
  %3102 = vmatprep.mubr.f32.mxu0 0.0
  %3103 = vmatmul.mubr.f32.gmra.mrb[0].mxu0 %v2883
  %v3104 = vpop.f32.mrb[0].mxu0
  %v3105 = vadd.f32 0.0, %v3104
  %v3106 = vpop.f32.mrb[0].mxu0
  %v3107 = vadd.f32 0.0, %v3106
  %3108 = vdwg.mxu0
  %s3109 = smul.addr %s2272, 8
  %s3110 = scalar_lea.vmem [#allocation3], %s3109
  %v3111 = vld [vmem:[%s3110] sm:$0xff]
  %v3112 = vld [vmem:[%s3110 + $0x8] sm:$0xff]
  %v3113 = vld [vmem:[%s3110 + $0x10] sm:$0xff]
  %v3114 = vadd.f32 %v3111, %v2951
  %v3115 = vsub.f32 0.0, %v3114
  %v3116 = vmul.f32 %v3115, 1.442695
  %v3117 = vpow.pop %v3116
  %v3118 = vadd.f32 %v3117, 1.0
  %v3119 = vrcp.pop %v3118
  %v3120 = vmul.f32 1.0, %v3119
  %v3121 = vadd.f32 %v3112, %v2953
  %v3122 = vsub.f32 0.0, %v3121
  %v3123 = vmul.f32 %v3122, 1.442695
  %v3124 = vpow.pop %v3123
  %v3125 = vadd.f32 %v3124, 1.0
  %v3126 = vrcp.pop %v3125
  %v3127 = vmul.f32 1.0, %v3126
  %v3128 = vadd.f32 %v3026, %v1679
  %v3129 = vmul.f32 %v3120, %v3128
  %v3130 = vadd.f32 %v3113, %v3129
  %v3131 = vtanh.pop %v3130
  %v3132 = vsub.f32 1.0, %v3127
  %v3133 = vmul.f32 %v3132, %v3131
  %v3134 = vmul.f32 %v3127, %v2882
  %v3135 = vadd.f32 %v3133, %v3134
  %s3136 = smul.addr %s2244, 8
  %s3137 = scalar_lea.vmem [#allocation4], %s3136
  %v3138 = vld [vmem:[%s3137] sm:$0xff]
  %v3139 = vld [vmem:[%s3137 + $0x8] sm:$0xff]
  %v3140 = vld [vmem:[%s3137 + $0x10] sm:$0xff]
  %v3141 = vadd.f32 %v3138, %v3032
  %v3142 = vsub.f32 0.0, %v3141
  %v3143 = vmul.f32 %v3142, 1.442695
  %v3144 = vpow.pop %v3143
  %v3145 = vadd.f32 %v3144, 1.0
  %v3146 = vrcp.pop %v3145
  %v3147 = vmul.f32 1.0, %v3146
  %v3148 = vadd.f32 %v3139, %v3105
  %v3149 = vsub.f32 0.0, %v3148
  %v3150 = vmul.f32 %v3149, 1.442695
  %v3151 = vpow.pop %v3150
  %v3152 = vadd.f32 %v3151, 1.0
  %v3153 = vrcp.pop %v3152
  %v3154 = vmul.f32 1.0, %v3153
  %v3155 = vadd.f32 %v3107, %v1713
  %v3156 = vmul.f32 %v3147, %v3155
  %v3157 = vadd.f32 %v3140, %v3156
  %v3158 = vtanh.pop %v3157
  %v3159 = vsub.f32 1.0, %v3154
  %v3160 = vmul.f32 %v3159, %v3158
  %v3161 = vmul.f32 %v3154, %v2883
  %v3162 = vadd.f32 %v3160, %v3161
  %3163 = vst [vmem:[#allocation2] sm:$0xff] %v3135
  %3164 = vst [vmem:[#allocation2 + $0x8] sm:$0xff] %v3162
  %s3165 = scalar_lea.vmem %s11, 40
  %3166 = vst [vmem:[%s3165] sm:$0xff] %v3135
  %s3167 = scalar_lea.vmem %s95, 16
  %3168 = vst [vmem:[%s3167] sm:$0xff] %v3162
  %v3169 = vld [vmem:[#allocation2] sm:$0xff]
  %v3170 = vld [vmem:[#allocation2 + $0x8] sm:$0xff]
  %3171 = vmatprep.subr.mxu0 %v1331
  %3172 = vmatpush1.msra.mxu0 %v1330
  %3173 = vmatprep.subr.mxu0 %v1337
  %3174 = vmatpush1.msra.mxu0 %v1336
  %3175 = vmatprep.subr.mxu0 %v1343
  %3176 = vmatpush1.msra.mxu0 %v1342
  %3177 = vmatprep.subr.mxu0 %v1349
  %3178 = vmatpush1.msra.mxu0 %v1348
  %3179 = vmatprep.subr.mxu0 %v1355
  %3180 = vmatpush1.msra.mxu0 %v1354
  %3181 = vmatprep.subr.mxu0 %v1361
  %3182 = vmatpush1.msra.mxu0 %v1360
  %3183 = vmatprep.subr.mxu0 %v1367
  %3184 = vmatpush1.msra.mxu0 %v1366
  %3185 = vmatprep.subr.mxu0 %v1373
  %3186 = vmatpush1.msra.mxu0 %v1372
  %3187 = vmatprep.subr.mxu0 %v1379
  %3188 = vmatpush1.msra.mxu0 %v1378
  %3189 = vmatprep.subr.mxu0 %v1385
  %3190 = vmatpush1.msra.mxu0 %v1384
  %3191 = vmatprep.subr.mxu0 %v1391
  %3192 = vmatpush1.msra.mxu0 %v1390
  %3193 = vmatprep.subr.mxu0 %v1397
  %3194 = vmatpush1.msra.mxu0 %v1396
  %3195 = vmatprep.subr.mxu0 %v1403
  %3196 = vmatpush1.msra.mxu0 %v1402
  %3197 = vmatprep.subr.mxu0 %v1409
  %3198 = vmatpush1.msra.mxu0 %v1408
  %3199 = vmatprep.subr.mxu0 %v1415
  %3200 = vmatpush1.msra.mxu0 %v1414
  %3201 = vmatprep.subr.mxu0 %v1421
  %3202 = vmatpush1.msra.mxu0 %v1420
  %3203 = vmatprep.subr.mxu0 0.0
  %3204 = vmatpush1.msra.mxu0 0.0
  %3205 = vmatprep.subr.mxu0 0.0
  %3206 = vmatpush1.msra.mxu0 0.0
  %3207 = vmatprep.subr.mxu0 0.0
  %3208 = vmatpush1.msra.mxu0 0.0
  %3209 = vmatprep.subr.mxu0 0.0
  %3210 = vmatpush1.msra.mxu0 0.0
  %3211 = vmatprep.subr.mxu0 0.0
  %3212 = vmatpush1.msra.mxu0 0.0
  %3213 = vmatprep.subr.mxu0 0.0
  %3214 = vmatpush1.msra.mxu0 0.0
  %3215 = vmatprep.subr.mxu0 0.0
  %3216 = vmatpush1.msra.mxu0 0.0
  %3217 = vmatprep.subr.mxu0 0.0
  %3218 = vmatpush1.msra.mxu0 0.0
  %3219 = vmatprep.subr.mxu0 0.0
  %3220 = vmatpush1.msra.mxu0 0.0
  %3221 = vmatprep.subr.mxu0 0.0
  %3222 = vmatpush1.msra.mxu0 0.0
  %3223 = vmatprep.subr.mxu0 0.0
  %3224 = vmatpush1.msra.mxu0 0.0
  %3225 = vmatprep.subr.mxu0 0.0
  %3226 = vmatpush1.msra.mxu0 0.0
  %3227 = vmatprep.subr.mxu0 0.0
  %3228 = vmatpush1.msra.mxu0 0.0
  %3229 = vmatprep.subr.mxu0 0.0
  %3230 = vmatpush1.msra.mxu0 0.0
  %3231 = vmatprep.subr.mxu0 0.0
  %3232 = vmatpush1.msra.mxu0 0.0
  %3233 = vmatprep.subr.mxu0 0.0
  %3234 = vmatpush1.msra.mxu0 0.0
  %3235 = vmatprep.mubr.f32.mxu0 0.0
  %3236 = vmatmul.mubr.f32.gmra.mrb[0].mxu0 %v3169
  %v3237 = vpop.f32.mrb[0].mxu0
  %v3238 = vadd.f32 0.0, %v3237
  %v3239 = vpop.f32.mrb[0].mxu0
  %v3240 = vadd.f32 0.0, %v3239
  %3241 = vmatprep.mubr.f32.mxu0 0.0
  %3242 = vmatmul.mubr.f32.gmra.mrb[0].mxu0 %v3170
  %v3243 = vpop.f32.mrb[0].mxu0
  %v3244 = vpop.f32.mrb[0].mxu0
  %3245 = vdwg.mxu0
  %3246 = vmatprep.subr.mxu0 %v1333
  %3247 = vmatpush1.msra.mxu0 %v1332
  %3248 = vmatprep.subr.mxu0 %v1339
  %3249 = vmatpush1.msra.mxu0 %v1338
  %3250 = vmatprep.subr.mxu0 %v1345
  %3251 = vmatpush1.msra.mxu0 %v1344
  %3252 = vmatprep.subr.mxu0 %v1351
  %3253 = vmatpush1.msra.mxu0 %v1350
  %3254 = vmatprep.subr.mxu0 %v1357
  %3255 = vmatpush1.msra.mxu0 %v1356
  %3256 = vmatprep.subr.mxu0 %v1363
  %3257 = vmatpush1.msra.mxu0 %v1362
  %3258 = vmatprep.subr.mxu0 %v1369
  %3259 = vmatpush1.msra.mxu0 %v1368
  %3260 = vmatprep.subr.mxu0 %v1375
  %3261 = vmatpush1.msra.mxu0 %v1374
  %3262 = vmatprep.subr.mxu0 %v1381
  %3263 = vmatpush1.msra.mxu0 %v1380
  %3264 = vmatprep.subr.mxu0 %v1387
  %3265 = vmatpush1.msra.mxu0 %v1386
  %3266 = vmatprep.subr.mxu0 %v1393
  %3267 = vmatpush1.msra.mxu0 %v1392
  %3268 = vmatprep.subr.mxu0 %v1399
  %3269 = vmatpush1.msra.mxu0 %v1398
  %3270 = vmatprep.subr.mxu0 %v1405
  %3271 = vmatpush1.msra.mxu0 %v1404
  %3272 = vmatprep.subr.mxu0 %v1411
  %3273 = vmatpush1.msra.mxu0 %v1410
  %3274 = vmatprep.subr.mxu0 %v1417
  %3275 = vmatpush1.msra.mxu0 %v1416
  %3276 = vmatprep.subr.mxu0 %v1423
  %3277 = vmatpush1.msra.mxu0 %v1422
  %3278 = vmatprep.subr.mxu0 0.0
  %3279 = vmatpush1.msra.mxu0 0.0
  %3280 = vmatprep.subr.mxu0 0.0
  %3281 = vmatpush1.msra.mxu0 0.0
  %3282 = vmatprep.subr.mxu0 0.0
  %3283 = vmatpush1.msra.mxu0 0.0
  %3284 = vmatprep.subr.mxu0 0.0
  %3285 = vmatpush1.msra.mxu0 0.0
  %3286 = vmatprep.subr.mxu0 0.0
  %3287 = vmatpush1.msra.mxu0 0.0
  %3288 = vmatprep.subr.mxu0 0.0
  %3289 = vmatpush1.msra.mxu0 0.0
  %3290 = vmatprep.subr.mxu0 0.0
  %3291 = vmatpush1.msra.mxu0 0.0
  %3292 = vmatprep.subr.mxu0 0.0
  %3293 = vmatpush1.msra.mxu0 0.0
  %3294 = vmatprep.subr.mxu0 0.0
  %3295 = vmatpush1.msra.mxu0 0.0
  %3296 = vmatprep.subr.mxu0 0.0
  %3297 = vmatpush1.msra.mxu0 0.0
  %3298 = vmatprep.subr.mxu0 0.0
  %3299 = vmatpush1.msra.mxu0 0.0
  %3300 = vmatprep.subr.mxu0 0.0
  %3301 = vmatpush1.msra.mxu0 0.0
  %3302 = vmatprep.subr.mxu0 0.0
  %3303 = vmatpush1.msra.mxu0 0.0
  %3304 = vmatprep.subr.mxu0 0.0
  %3305 = vmatpush1.msra.mxu0 0.0
  %3306 = vmatprep.subr.mxu0 0.0
  %3307 = vmatpush1.msra.mxu0 0.0
  %3308 = vmatprep.subr.mxu0 0.0
  %3309 = vmatpush1.msra.mxu0 0.0
  %3310 = vmatprep.mubr.f32.mxu0 0.0
  %3311 = vmatmul.mubr.f32.gmra.mrb[0].mxu0 %v3169
  %v3312 = vpop.f32.mrb[0].mxu0
  %v3313 = vadd.f32 0.0, %v3312
  %v3314 = vpop.f32.mrb[0].mxu0
  %3315 = vmatprep.mubr.f32.mxu0 0.0
  %3316 = vmatmul.mubr.f32.gmra.mrb[0].mxu0 %v3170
  %v3317 = vpop.f32.mrb[0].mxu0
  %v3318 = vpop.f32.mrb[0].mxu0
  %v3319 = vadd.f32 0.0, %v3318
  %3320 = vdwg.mxu0
  %3321 = vmatprep.subr.mxu0 %v1335
  %3322 = vmatpush1.msra.mxu0 %v1334
  %3323 = vmatprep.subr.mxu0 %v1341
  %3324 = vmatpush1.msra.mxu0 %v1340
  %3325 = vmatprep.subr.mxu0 %v1347
  %3326 = vmatpush1.msra.mxu0 %v1346
  %3327 = vmatprep.subr.mxu0 %v1353
  %3328 = vmatpush1.msra.mxu0 %v1352
  %3329 = vmatprep.subr.mxu0 %v1359
  %3330 = vmatpush1.msra.mxu0 %v1358
  %3331 = vmatprep.subr.mxu0 %v1365
  %3332 = vmatpush1.msra.mxu0 %v1364
  %3333 = vmatprep.subr.mxu0 %v1371
  %3334 = vmatpush1.msra.mxu0 %v1370
  %3335 = vmatprep.subr.mxu0 %v1377
  %3336 = vmatpush1.msra.mxu0 %v1376
  %3337 = vmatprep.subr.mxu0 %v1383
  %3338 = vmatpush1.msra.mxu0 %v1382
  %3339 = vmatprep.subr.mxu0 %v1389
  %3340 = vmatpush1.msra.mxu0 %v1388
  %3341 = vmatprep.subr.mxu0 %v1395
  %3342 = vmatpush1.msra.mxu0 %v1394
  %3343 = vmatprep.subr.mxu0 %v1401
  %3344 = vmatpush1.msra.mxu0 %v1400
  %3345 = vmatprep.subr.mxu0 %v1407
  %3346 = vmatpush1.msra.mxu0 %v1406
  %3347 = vmatprep.subr.mxu0 %v1413
  %3348 = vmatpush1.msra.mxu0 %v1412
  %3349 = vmatprep.subr.mxu0 %v1419
  %3350 = vmatpush1.msra.mxu0 %v1418
  %3351 = vmatprep.subr.mxu0 %v1425
  %3352 = vmatpush1.msra.mxu0 %v1424
  %3353 = vmatprep.subr.mxu0 0.0
  %3354 = vmatpush1.msra.mxu0 0.0
  %3355 = vmatprep.subr.mxu0 0.0
  %3356 = vmatpush1.msra.mxu0 0.0
  %3357 = vmatprep.subr.mxu0 0.0
  %3358 = vmatpush1.msra.mxu0 0.0
  %3359 = vmatprep.subr.mxu0 0.0
  %3360 = vmatpush1.msra.mxu0 0.0
  %3361 = vmatprep.subr.mxu0 0.0
  %3362 = vmatpush1.msra.mxu0 0.0
  %3363 = vmatprep.subr.mxu0 0.0
  %3364 = vmatpush1.msra.mxu0 0.0
  %3365 = vmatprep.subr.mxu0 0.0
  %3366 = vmatpush1.msra.mxu0 0.0
  %3367 = vmatprep.subr.mxu0 0.0
  %3368 = vmatpush1.msra.mxu0 0.0
  %3369 = vmatprep.subr.mxu0 0.0
  %3370 = vmatpush1.msra.mxu0 0.0
  %3371 = vmatprep.subr.mxu0 0.0
  %3372 = vmatpush1.msra.mxu0 0.0
  %3373 = vmatprep.subr.mxu0 0.0
  %3374 = vmatpush1.msra.mxu0 0.0
  %3375 = vmatprep.subr.mxu0 0.0
  %3376 = vmatpush1.msra.mxu0 0.0
  %3377 = vmatprep.subr.mxu0 0.0
  %3378 = vmatpush1.msra.mxu0 0.0
  %3379 = vmatprep.subr.mxu0 0.0
  %3380 = vmatpush1.msra.mxu0 0.0
  %3381 = vmatprep.subr.mxu0 0.0
  %3382 = vmatpush1.msra.mxu0 0.0
  %3383 = vmatprep.subr.mxu0 0.0
  %3384 = vmatpush1.msra.mxu0 0.0
  %3385 = vmatprep.mubr.f32.mxu0 0.0
  %3386 = vmatmul.mubr.f32.gmra.mrb[0].mxu0 %v3169
  %v3387 = vpop.f32.mrb[0].mxu0
  %v3388 = vpop.f32.mrb[0].mxu0
  %3389 = vmatprep.mubr.f32.mxu0 0.0
  %3390 = vmatmul.mubr.f32.gmra.mrb[0].mxu0 %v3170
  %v3391 = vpop.f32.mrb[0].mxu0
  %v3392 = vadd.f32 0.0, %v3391
  %v3393 = vpop.f32.mrb[0].mxu0
  %v3394 = vadd.f32 0.0, %v3393
  %3395 = vdwg.mxu0
  %s3396 = smul.addr %s1983, 8
  %s3397 = scalar_lea.vmem [#allocation3], %s3396
  %v3398 = vld [vmem:[%s3397] sm:$0xff]
  %v3399 = vld [vmem:[%s3397 + $0x8] sm:$0xff]
  %v3400 = vld [vmem:[%s3397 + $0x10] sm:$0xff]
  %v3401 = vadd.f32 %v3398, %v3238
  %v3402 = vsub.f32 0.0, %v3401
  %v3403 = vmul.f32 %v3402, 1.442695
  %v3404 = vpow.pop %v3403
  %v3405 = vadd.f32 %v3404, 1.0
  %v3406 = vrcp.pop %v3405
  %v3407 = vmul.f32 1.0, %v3406
  %v3408 = vadd.f32 %v3399, %v3240
  %v3409 = vsub.f32 0.0, %v3408
  %v3410 = vmul.f32 %v3409, 1.442695
  %v3411 = vpow.pop %v3410
  %v3412 = vadd.f32 %v3411, 1.0
  %v3413 = vrcp.pop %v3412
  %v3414 = vmul.f32 1.0, %v3413
  %v3415 = vadd.f32 %v3313, %v1679
  %v3416 = vmul.f32 %v3407, %v3415
  %v3417 = vadd.f32 %v3400, %v3416
  %v3418 = vtanh.pop %v3417
  %v3419 = vsub.f32 1.0, %v3414
  %v3420 = vmul.f32 %v3419, %v3418
  %v3421 = vmul.f32 %v3414, %v3169
  %v3422 = vadd.f32 %v3420, %v3421
  %s3423 = smul.addr %s1955, 8
  %s3424 = scalar_lea.vmem [#allocation4], %s3423
  %v3425 = vld [vmem:[%s3424] sm:$0xff]
  %v3426 = vld [vmem:[%s3424 + $0x8] sm:$0xff]
  %v3427 = vld [vmem:[%s3424 + $0x10] sm:$0xff]
  %v3428 = vadd.f32 %v3425, %v3319
  %v3429 = vsub.f32 0.0, %v3428
  %v3430 = vmul.f32 %v3429, 1.442695
  %v3431 = vpow.pop %v3430
  %v3432 = vadd.f32 %v3431, 1.0
  %v3433 = vrcp.pop %v3432
  %v3434 = vmul.f32 1.0, %v3433
  %v3435 = vadd.f32 %v3426, %v3392
  %v3436 = vsub.f32 0.0, %v3435
  %v3437 = vmul.f32 %v3436, 1.442695
  %v3438 = vpow.pop %v3437
  %v3439 = vadd.f32 %v3438, 1.0
  %v3440 = vrcp.pop %v3439
  %v3441 = vmul.f32 1.0, %v3440
  %v3442 = vadd.f32 %v3394, %v1713
  %v3443 = vmul.f32 %v3434, %v3442
  %v3444 = vadd.f32 %v3427, %v3443
  %v3445 = vtanh.pop %v3444
  %v3446 = vsub.f32 1.0, %v3441
  %v3447 = vmul.f32 %v3446, %v3445
  %v3448 = vmul.f32 %v3441, %v3170
  %v3449 = vadd.f32 %v3447, %v3448
  %3450 = vst [vmem:[#allocation2] sm:$0xff] %v3422
  %3451 = vst [vmem:[#allocation2 + $0x8] sm:$0xff] %v3449
  %s3452 = scalar_lea.vmem %s11, 48
  %3453 = vst [vmem:[%s3452] sm:$0xff] %v3422
  %s3454 = scalar_lea.vmem %s95, 8
  %3455 = vst [vmem:[%s3454] sm:$0xff] %v3449
  %v3456 = vld [vmem:[#allocation2] sm:$0xff]
  %v3457 = vld [vmem:[#allocation2 + $0x8] sm:$0xff]
  %3458 = vmatprep.subr.mxu0 %v1331
  %3459 = vmatpush1.msra.mxu0 %v1330
  %3460 = vmatprep.subr.mxu0 %v1337
  %3461 = vmatpush1.msra.mxu0 %v1336
  %3462 = vmatprep.subr.mxu0 %v1343
  %3463 = vmatpush1.msra.mxu0 %v1342
  %3464 = vmatprep.subr.mxu0 %v1349
  %3465 = vmatpush1.msra.mxu0 %v1348
  %3466 = vmatprep.subr.mxu0 %v1355
  %3467 = vmatpush1.msra.mxu0 %v1354
  %3468 = vmatprep.subr.mxu0 %v1361
  %3469 = vmatpush1.msra.mxu0 %v1360
  %3470 = vmatprep.subr.mxu0 %v1367
  %3471 = vmatpush1.msra.mxu0 %v1366
  %3472 = vmatprep.subr.mxu0 %v1373
  %3473 = vmatpush1.msra.mxu0 %v1372
  %3474 = vmatprep.subr.mxu0 %v1379
  %3475 = vmatpush1.msra.mxu0 %v1378
  %3476 = vmatprep.subr.mxu0 %v1385
  %3477 = vmatpush1.msra.mxu0 %v1384
  %3478 = vmatprep.subr.mxu0 %v1391
  %3479 = vmatpush1.msra.mxu0 %v1390
  %3480 = vmatprep.subr.mxu0 %v1397
  %3481 = vmatpush1.msra.mxu0 %v1396
  %3482 = vmatprep.subr.mxu0 %v1403
  %3483 = vmatpush1.msra.mxu0 %v1402
  %3484 = vmatprep.subr.mxu0 %v1409
  %3485 = vmatpush1.msra.mxu0 %v1408
  %3486 = vmatprep.subr.mxu0 %v1415
  %3487 = vmatpush1.msra.mxu0 %v1414
  %3488 = vmatprep.subr.mxu0 %v1421
  %3489 = vmatpush1.msra.mxu0 %v1420
  %3490 = vmatprep.subr.mxu0 0.0
  %3491 = vmatpush1.msra.mxu0 0.0
  %3492 = vmatprep.subr.mxu0 0.0
  %3493 = vmatpush1.msra.mxu0 0.0
  %3494 = vmatprep.subr.mxu0 0.0
  %3495 = vmatpush1.msra.mxu0 0.0
  %3496 = vmatprep.subr.mxu0 0.0
  %3497 = vmatpush1.msra.mxu0 0.0
  %3498 = vmatprep.subr.mxu0 0.0
  %3499 = vmatpush1.msra.mxu0 0.0
  %3500 = vmatprep.subr.mxu0 0.0
  %3501 = vmatpush1.msra.mxu0 0.0
  %3502 = vmatprep.subr.mxu0 0.0
  %3503 = vmatpush1.msra.mxu0 0.0
  %3504 = vmatprep.subr.mxu0 0.0
  %3505 = vmatpush1.msra.mxu0 0.0
  %3506 = vmatprep.subr.mxu0 0.0
  %3507 = vmatpush1.msra.mxu0 0.0
  %3508 = vmatprep.subr.mxu0 0.0
  %3509 = vmatpush1.msra.mxu0 0.0
  %3510 = vmatprep.subr.mxu0 0.0
  %3511 = vmatpush1.msra.mxu0 0.0
  %3512 = vmatprep.subr.mxu0 0.0
  %3513 = vmatpush1.msra.mxu0 0.0
  %3514 = vmatprep.subr.mxu0 0.0
  %3515 = vmatpush1.msra.mxu0 0.0
  %3516 = vmatprep.subr.mxu0 0.0
  %3517 = vmatpush1.msra.mxu0 0.0
  %3518 = vmatprep.subr.mxu0 0.0
  %3519 = vmatpush1.msra.mxu0 0.0
  %3520 = vmatprep.subr.mxu0 0.0
  %3521 = vmatpush1.msra.mxu0 0.0
  %3522 = vmatprep.mubr.f32.mxu0 0.0
  %3523 = vmatmul.mubr.f32.gmra.mrb[0].mxu0 %v3456
  %v3524 = vpop.f32.mrb[0].mxu0
  %v3525 = vadd.f32 0.0, %v3524
  %v3526 = vpop.f32.mrb[0].mxu0
  %v3527 = vadd.f32 0.0, %v3526
  %3528 = vmatprep.mubr.f32.mxu0 0.0
  %3529 = vmatmul.mubr.f32.gmra.mrb[0].mxu0 %v3457
  %v3530 = vpop.f32.mrb[0].mxu0
  %v3531 = vpop.f32.mrb[0].mxu0
  %3532 = vdwg.mxu0
  %3533 = vmatprep.subr.mxu0 %v1333
  %3534 = vmatpush1.msra.mxu0 %v1332
  %3535 = vmatprep.subr.mxu0 %v1339
  %3536 = vmatpush1.msra.mxu0 %v1338
  %3537 = vmatprep.subr.mxu0 %v1345
  %3538 = vmatpush1.msra.mxu0 %v1344
  %3539 = vmatprep.subr.mxu0 %v1351
  %3540 = vmatpush1.msra.mxu0 %v1350
  %3541 = vmatprep.subr.mxu0 %v1357
  %3542 = vmatpush1.msra.mxu0 %v1356
  %3543 = vmatprep.subr.mxu0 %v1363
  %3544 = vmatpush1.msra.mxu0 %v1362
  %3545 = vmatprep.subr.mxu0 %v1369
  %3546 = vmatpush1.msra.mxu0 %v1368
  %3547 = vmatprep.subr.mxu0 %v1375
  %3548 = vmatpush1.msra.mxu0 %v1374
  %3549 = vmatprep.subr.mxu0 %v1381
  %3550 = vmatpush1.msra.mxu0 %v1380
  %3551 = vmatprep.subr.mxu0 %v1387
  %3552 = vmatpush1.msra.mxu0 %v1386
  %3553 = vmatprep.subr.mxu0 %v1393
  %3554 = vmatpush1.msra.mxu0 %v1392
  %3555 = vmatprep.subr.mxu0 %v1399
  %3556 = vmatpush1.msra.mxu0 %v1398
  %3557 = vmatprep.subr.mxu0 %v1405
  %3558 = vmatpush1.msra.mxu0 %v1404
  %3559 = vmatprep.subr.mxu0 %v1411
  %3560 = vmatpush1.msra.mxu0 %v1410
  %3561 = vmatprep.subr.mxu0 %v1417
  %3562 = vmatpush1.msra.mxu0 %v1416
  %3563 = vmatprep.subr.mxu0 %v1423
  %3564 = vmatpush1.msra.mxu0 %v1422
  %3565 = vmatprep.subr.mxu0 0.0
  %3566 = vmatpush1.msra.mxu0 0.0
  %3567 = vmatprep.subr.mxu0 0.0
  %3568 = vmatpush1.msra.mxu0 0.0
  %3569 = vmatprep.subr.mxu0 0.0
  %3570 = vmatpush1.msra.mxu0 0.0
  %3571 = vmatprep.subr.mxu0 0.0
  %3572 = vmatpush1.msra.mxu0 0.0
  %3573 = vmatprep.subr.mxu0 0.0
  %3574 = vmatpush1.msra.mxu0 0.0
  %3575 = vmatprep.subr.mxu0 0.0
  %3576 = vmatpush1.msra.mxu0 0.0
  %3577 = vmatprep.subr.mxu0 0.0
  %3578 = vmatpush1.msra.mxu0 0.0
  %3579 = vmatprep.subr.mxu0 0.0
  %3580 = vmatpush1.msra.mxu0 0.0
  %3581 = vmatprep.subr.mxu0 0.0
  %3582 = vmatpush1.msra.mxu0 0.0
  %3583 = vmatprep.subr.mxu0 0.0
  %3584 = vmatpush1.msra.mxu0 0.0
  %3585 = vmatprep.subr.mxu0 0.0
  %3586 = vmatpush1.msra.mxu0 0.0
  %3587 = vmatprep.subr.mxu0 0.0
  %3588 = vmatpush1.msra.mxu0 0.0
  %3589 = vmatprep.subr.mxu0 0.0
  %3590 = vmatpush1.msra.mxu0 0.0
  %3591 = vmatprep.subr.mxu0 0.0
  %3592 = vmatpush1.msra.mxu0 0.0
  %3593 = vmatprep.subr.mxu0 0.0
  %3594 = vmatpush1.msra.mxu0 0.0
  %3595 = vmatprep.subr.mxu0 0.0
  %3596 = vmatpush1.msra.mxu0 0.0
  %3597 = vmatprep.mubr.f32.mxu0 0.0
  %3598 = vmatmul.mubr.f32.gmra.mrb[0].mxu0 %v3456
  %v3599 = vpop.f32.mrb[0].mxu0
  %v3600 = vadd.f32 0.0, %v3599
  %v3601 = vpop.f32.mrb[0].mxu0
  %3602 = vmatprep.mubr.f32.mxu0 0.0
  %3603 = vmatmul.mubr.f32.gmra.mrb[0].mxu0 %v3457
  %v3604 = vpop.f32.mrb[0].mxu0
  %v3605 = vpop.f32.mrb[0].mxu0
  %v3606 = vadd.f32 0.0, %v3605
  %3607 = vdwg.mxu0
  %3608 = vmatprep.subr.mxu0 %v1335
  %3609 = vmatpush1.msra.mxu0 %v1334
  %3610 = vmatprep.subr.mxu0 %v1341
  %3611 = vmatpush1.msra.mxu0 %v1340
  %3612 = vmatprep.subr.mxu0 %v1347
  %3613 = vmatpush1.msra.mxu0 %v1346
  %3614 = vmatprep.subr.mxu0 %v1353
  %3615 = vmatpush1.msra.mxu0 %v1352
  %3616 = vmatprep.subr.mxu0 %v1359
  %3617 = vmatpush1.msra.mxu0 %v1358
  %3618 = vmatprep.subr.mxu0 %v1365
  %3619 = vmatpush1.msra.mxu0 %v1364
  %3620 = vmatprep.subr.mxu0 %v1371
  %3621 = vmatpush1.msra.mxu0 %v1370
  %3622 = vmatprep.subr.mxu0 %v1377
  %3623 = vmatpush1.msra.mxu0 %v1376
  %3624 = vmatprep.subr.mxu0 %v1383
  %3625 = vmatpush1.msra.mxu0 %v1382
  %3626 = vmatprep.subr.mxu0 %v1389
  %3627 = vmatpush1.msra.mxu0 %v1388
  %3628 = vmatprep.subr.mxu0 %v1395
  %3629 = vmatpush1.msra.mxu0 %v1394
  %3630 = vmatprep.subr.mxu0 %v1401
  %3631 = vmatpush1.msra.mxu0 %v1400
  %3632 = vmatprep.subr.mxu0 %v1407
  %3633 = vmatpush1.msra.mxu0 %v1406
  %3634 = vmatprep.subr.mxu0 %v1413
  %3635 = vmatpush1.msra.mxu0 %v1412
  %3636 = vmatprep.subr.mxu0 %v1419
  %3637 = vmatpush1.msra.mxu0 %v1418
  %3638 = vmatprep.subr.mxu0 %v1425
  %3639 = vmatpush1.msra.mxu0 %v1424
  %3640 = vmatprep.subr.mxu0 0.0
  %3641 = vmatpush1.msra.mxu0 0.0
  %3642 = vmatprep.subr.mxu0 0.0
  %3643 = vmatpush1.msra.mxu0 0.0
  %3644 = vmatprep.subr.mxu0 0.0
  %3645 = vmatpush1.msra.mxu0 0.0
  %3646 = vmatprep.subr.mxu0 0.0
  %3647 = vmatpush1.msra.mxu0 0.0
  %3648 = vmatprep.subr.mxu0 0.0
  %3649 = vmatpush1.msra.mxu0 0.0
  %3650 = vmatprep.subr.mxu0 0.0
  %3651 = vmatpush1.msra.mxu0 0.0
  %3652 = vmatprep.subr.mxu0 0.0
  %3653 = vmatpush1.msra.mxu0 0.0
  %3654 = vmatprep.subr.mxu0 0.0
  %3655 = vmatpush1.msra.mxu0 0.0
  %3656 = vmatprep.subr.mxu0 0.0
  %3657 = vmatpush1.msra.mxu0 0.0
  %3658 = vmatprep.subr.mxu0 0.0
  %3659 = vmatpush1.msra.mxu0 0.0
  %3660 = vmatprep.subr.mxu0 0.0
  %3661 = vmatpush1.msra.mxu0 0.0
  %3662 = vmatprep.subr.mxu0 0.0
  %3663 = vmatpush1.msra.mxu0 0.0
  %3664 = vmatprep.subr.mxu0 0.0
  %3665 = vmatpush1.msra.mxu0 0.0
  %3666 = vmatprep.subr.mxu0 0.0
  %3667 = vmatpush1.msra.mxu0 0.0
  %3668 = vmatprep.subr.mxu0 0.0
  %3669 = vmatpush1.msra.mxu0 0.0
  %3670 = vmatprep.subr.mxu0 0.0
  %3671 = vmatpush1.msra.mxu0 0.0
  %3672 = vmatprep.mubr.f32.mxu0 0.0
  %3673 = vmatmul.mubr.f32.gmra.mrb[0].mxu0 %v3456
  %v3674 = vpop.f32.mrb[0].mxu0
  %v3675 = vpop.f32.mrb[0].mxu0
  %3676 = vmatprep.mubr.f32.mxu0 0.0
  %3677 = vmatmul.mubr.f32.gmra.mrb[0].mxu0 %v3457
  %v3678 = vpop.f32.mrb[0].mxu0
  %v3679 = vadd.f32 0.0, %v3678
  %v3680 = vpop.f32.mrb[0].mxu0
  %v3681 = vadd.f32 0.0, %v3680
  %3682 = vdwg.mxu0
  %s3683 = smul.addr %s1689, 8
  %s3684 = scalar_lea.vmem [#allocation3], %s3683
  %v3685 = vld [vmem:[%s3684] sm:$0xff]
  %v3686 = vld [vmem:[%s3684 + $0x8] sm:$0xff]
  %v3687 = vld [vmem:[%s3684 + $0x10] sm:$0xff]
  %v3688 = vadd.f32 %v3685, %v3525
  %v3689 = vsub.f32 0.0, %v3688
  %v3690 = vmul.f32 %v3689, 1.442695
  %v3691 = vpow.pop %v3690
  %v3692 = vadd.f32 %v3691, 1.0
  %v3693 = vrcp.pop %v3692
  %v3694 = vmul.f32 1.0, %v3693
  %v3695 = vadd.f32 %v3686, %v3527
  %v3696 = vsub.f32 0.0, %v3695
  %v3697 = vmul.f32 %v3696, 1.442695
  %v3698 = vpow.pop %v3697
  %v3699 = vadd.f32 %v3698, 1.0
  %v3700 = vrcp.pop %v3699
  %v3701 = vmul.f32 1.0, %v3700
  %v3702 = vadd.f32 %v3600, %v1679
  %v3703 = vmul.f32 %v3694, %v3702
  %v3704 = vadd.f32 %v3687, %v3703
  %v3705 = vtanh.pop %v3704
  %v3706 = vsub.f32 1.0, %v3701
  %v3707 = vmul.f32 %v3706, %v3705
  %v3708 = vmul.f32 %v3701, %v3456
  %v3709 = vadd.f32 %v3707, %v3708
  %s3710 = smul.addr %s1655, 8
  %s3711 = scalar_lea.vmem [#allocation4], %s3710
  %v3712 = vld [vmem:[%s3711] sm:$0xff]
  %v3713 = vld [vmem:[%s3711 + $0x8] sm:$0xff]
  %v3714 = vld [vmem:[%s3711 + $0x10] sm:$0xff]
  %v3715 = vadd.f32 %v3712, %v3606
  %v3716 = vsub.f32 0.0, %v3715
  %v3717 = vmul.f32 %v3716, 1.442695
  %v3718 = vpow.pop %v3717
  %v3719 = vadd.f32 %v3718, 1.0
  %v3720 = vrcp.pop %v3719
  %v3721 = vmul.f32 1.0, %v3720
  %v3722 = vadd.f32 %v3713, %v3679
  %v3723 = vsub.f32 0.0, %v3722
  %v3724 = vmul.f32 %v3723, 1.442695
  %v3725 = vpow.pop %v3724
  %v3726 = vadd.f32 %v3725, 1.0
  %v3727 = vrcp.pop %v3726
  %v3728 = vmul.f32 1.0, %v3727
  %v3729 = vadd.f32 %v3681, %v1713
  %v3730 = vmul.f32 %v3721, %v3729
  %v3731 = vadd.f32 %v3714, %v3730
  %v3732 = vtanh.pop %v3731
  %v3733 = vsub.f32 1.0, %v3728
  %v3734 = vmul.f32 %v3733, %v3732
  %v3735 = vmul.f32 %v3728, %v3457
  %v3736 = vadd.f32 %v3734, %v3735
  %3737 = vst [vmem:[#allocation2] sm:$0xff] %v3709
  %3738 = vst [vmem:[#allocation2 + $0x8] sm:$0xff] %v3736
  %s3739 = scalar_lea.vmem %s11, 56
  %3740 = vst [vmem:[%s3739] sm:$0xff] %v3709
  %3741 = vst [vmem:[%s95] sm:$0xff] %v3736
  %s3742 = ssub.s32 0, 0
  %s3743 = smul.u32 8, %s3742
  %p3744 = scmp.lt.s32.totalorder %s3743, 7
  %s3745 = scalar_select %p3744, %s3743, 7
  %s3746 = smul.addr %s3745, 8
  %s3747 = scalar_lea.vmem %s12, %s3746
  // Predicated region
  $region50: #{enh_model_forward.4} parent=0 // pred_check
    _
  $region51: #{enh_model_forward.4} parent=0 // pred_check_branch
    %3749 = sbr.rel (0) target = $region53
  $region52: #{enh_model_forward.4} parent=0 // pred_region
    _
  $region53: #{enh_model_forward.4} parent=0 // pred_fallthru
    _
  // Predicated region
  $region54: #{enh_model_forward.4} parent=0 // pred_check
    _
  $region55: #{enh_model_forward.4} parent=0 // pred_check_branch
    %3751 = sbr.rel (0) target = $region57
  $region56: #{enh_model_forward.4} parent=0 // pred_region
    %s3752 = ssub.s32 0, 0
    %s3753 = smul.u32 8, %s3752
  $region57: #{enh_model_forward.4} parent=0 // pred_fallthru
    _
  // Predicated region
  $region58: #{enh_model_forward.4} parent=0 // pred_check
    _
  $region59: #{enh_model_forward.4} parent=0 // pred_check_branch
    %3755 = sbr.rel (0) target = $region61
  $region60: #{enh_model_forward.4} parent=0 // pred_region
    _
  $region61: #{enh_model_forward.4} parent=0 // pred_fallthru
    _
  // Predicated region
  $region62: #{enh_model_forward.4} parent=0 // pred_check
    _
  $region63: #{enh_model_forward.4} parent=0 // pred_check_branch
    %3757 = sbr.rel (0) target = $region65
  $region64: #{enh_model_forward.4} parent=0 // pred_region
    %s3758 = ssub.s32 0, 0
    %s3759 = smul.u32 8, %s3758
    %p3760 = scmp.lt.s32.totalorder %s3759, 7
    %s3761 = scalar_select %p3760, %s3759, 7
    %s3762 = smul.addr %s3761, 8
    %s3763 = scalar_lea.vmem %s12, %s3762
  $region65: #{enh_model_forward.4} parent=0 // pred_fallthru
    _

</llo_original>
